<compile_context>
chip_gen: v7x
topology: tpu7x:2x2x1
jax: 0.10.0
libtpu: 0.0.40
codegen_flags: <defaults>
</compile_context>

<pallas_src>
import functools

import jax
import jax.numpy as jnp
from jax.experimental import pallas as pl
from jax.experimental.pallas import tpu as pltpu

IN_DIM = 11
H1, H2, H3 = 128, 64, 32
FC1_DIM, FC2_DIM = 16, 1
P = 128            # padded lane width for every activation / gate block
NG = 4             # gates per LSTM cell (i, f, g, o)


def sequence_kernel(x_ref,
                    w1_ref, b1_ref, w2_ref, b2_ref, w3_ref, b3_ref,
                    wfc_ref, bfc_ref,
                    out_ref, *, time_steps, batch):
    # Hoist weight reads and bias broadcasts out of the unrolled time loop
    # (JAX does not CSE broadcast_in_dim).
    W1 = w1_ref[...]
    W2 = w2_ref[...]
    W3 = w3_ref[...]
    B1 = jnp.broadcast_to(b1_ref[...], (batch, NG * P))
    B2 = jnp.broadcast_to(b2_ref[...], (batch, NG * P))
    B3 = jnp.broadcast_to(b3_ref[...], (batch, NG * P))

    zeros = jnp.zeros((batch, P), jnp.float32)
    h1, c1 = zeros, zeros
    h2, c2 = zeros, zeros
    h3, c3 = zeros, zeros

    def cell(z, W, B, c):
        # Single fused MXU contraction per cell: [x_pad | h_prev] @ [W_ih; W_hh].
        g = jnp.dot(z, W, preferred_element_type=jnp.float32) + B
        # 128-lane aligned gate slices; zero-padded gate columns stay inert.
        i = jax.nn.sigmoid(g[:, 0 * P:1 * P])
        f = jax.nn.sigmoid(g[:, 1 * P:2 * P])
        gg = jnp.tanh(g[:, 2 * P:3 * P])
        o = jax.nn.sigmoid(g[:, 3 * P:4 * P])
        c_new = f * c + i * gg
        h_new = o * jnp.tanh(c_new)
        return h_new, c_new

    for t in time_steps:          # static, fully unrolled in-kernel loop
        x = x_ref[t]              # (batch, P) -- features zero-padded 11 -> 128
        h1, c1 = cell(jnp.concatenate([x, h1], axis=-1), W1, B1, c1)
        # Dropout(0.2) is identity in eval/inference mode.
        # TODO(synk): training-mode dropout mask not implemented.
        h2, c2 = cell(jnp.concatenate([h1, h2], axis=-1), W2, B2, c2)
        h3, c3 = cell(jnp.concatenate([h2, h3], axis=-1), W3, B3, c3)

    # fc1 and fc2 folded into one matmul (no nonlinearity between them).
    out_ref[...] = (jnp.dot(h3, wfc_ref[...], preferred_element_type=jnp.float32)
                    + bfc_ref[...])


def init_params(key):
    """Deterministic raw parameters mirroring torch shapes (stored transposed).

    Note: b_k models (b_ih + b_hh) as a single uniform draw -- fine for this
    self-consistent test; when loading a real PyTorch checkpoint, sum the two
    torch bias vectors instead.
    """
    def uni(key, shape, fan):
        bound = 1.0 / jnp.sqrt(jnp.float32(fan))
        return jax.random.uniform(key, shape, jnp.float32, -bound, bound)

    keys = jax.random.split(key, 13)
    return [
        uni(keys[0], (IN_DIM, 4 * H1), H1),          # wih1 = lstm1.weight_ih.T
        uni(keys[1], (H1, 4 * H1), H1),              # whh1
        uni(keys[2], (1, 4 * H1), H1),               # b1 (= b_ih + b_hh)
        uni(keys[3], (H1, 4 * H2), H2),              # wih2
        uni(keys[4], (H2, 4 * H2), H2),              # whh2
        uni(keys[5], (1, 4 * H2), H2),               # b2
        uni(keys[6], (H2, 4 * H3), H3),              # wih3
        uni(keys[7], (H3, 4 * H3), H3),              # whh3
        uni(keys[8], (1, 4 * H3), H3),               # b3
        uni(keys[9], (H3, FC1_DIM), H3),             # fc1 weight.T
        uni(keys[10], (1, FC1_DIM), H3),             # fc1 bias
        uni(keys[11], (FC1_DIM, FC2_DIM), FC1_DIM),  # fc2 weight.T
        uni(keys[12], (1, FC2_DIM), FC1_DIM),        # fc2 bias
    ]


def pack_params(params):
    """Fuse + pad raw params into the MXU-friendly kernel layout.

    Per LSTM layer: stacked weight [[W_ih.T], [W_hh.T]] embedded in a
    (2P, 4P) zero matrix with each gate block padded to 128 lanes, so
    gates = [x_pad | h_prev] @ W + b is one 256-deep MXU contraction and
    every gate slice is 128-lane aligned.  fc1/fc2 are composed exactly into
    a single (P, 1) weight + scalar bias.
    """
    (wih1, whh1, b1, wih2, whh2, b2, wih3, whh3, b3,
     fw1, fb1, fw2, fb2) = params

    def pack_layer(wih, whh, b, in_dim, hid):
        W = jnp.zeros((2 * P, NG * P), jnp.float32)
        bias = jnp.zeros((1, NG * P), jnp.float32)
        for g in range(NG):
            W = W.at[:in_dim, g * P:g * P + hid].set(wih[:, g * hid:(g + 1) * hid])
            W = W.at[P:P + hid, g * P:g * P + hid].set(whh[:, g * hid:(g + 1) * hid])
            bias = bias.at[:, g * P:g * P + hid].set(b[:, g * hid:(g + 1) * hid])
        return W, bias

    W1, B1 = pack_layer(wih1, whh1, b1, IN_DIM, H1)
    W2, B2 = pack_layer(wih2, whh2, b2, H1, H2)
    W3, B3 = pack_layer(wih3, whh3, b3, H2, H3)

    wfc = fw1 @ fw2                    # (H3, 1)
    bfc = fb1 @ fw2 + fb2              # (1, 1)
    Wfc = jnp.zeros((P, FC2_DIM), jnp.float32).at[:H3, :].set(wfc)
    return (W1, B1, W2, B2, W3, B3, Wfc, bfc)


@jax.jit
def sequence_forward(x, packed):
    seq, batch, in_dim = x.shape
    assert in_dim == IN_DIM
    # Reference forward re-processes input[4] after the loop; guard OOB.
    assert seq > 4, "Sequence.forward requires seq_len > 4 (uses input[4])"

    # Zero-pad features 11 -> 128 so the fused [x | h] concat is lane-aligned.
    x_pad = jnp.pad(x, ((0, 0), (0, 0), (0, P - IN_DIM)))

    time_steps = tuple(range(seq)) + (4,)   # torch loop + extra input[4] pass
    kernel = functools.partial(sequence_kernel,
                               time_steps=time_steps, batch=batch)

    vmem = pl.BlockSpec(memory_space=pltpu.MemorySpace.VMEM)
    return pl.pallas_call(
        kernel,
        out_shape=jax.ShapeDtypeStruct((batch, FC2_DIM), jnp.float32),
        in_specs=[vmem] * (1 + len(packed)),
        out_specs=vmem,
    )(x_pad, *packed)


def reference_forward(x, params):
    """Pure-JAX reference reproducing the PyTorch forward exactly."""
    (wih1, whh1, b1, wih2, whh2, b2, wih3, whh3, b3,
     fw1, fb1, fw2, fb2) = params
    seq, batch, _ = x.shape
    h1 = jnp.zeros((batch, H1)); c1 = jnp.zeros((batch, H1))
    h2 = jnp.zeros((batch, H2)); c2 = jnp.zeros((batch, H2))
    h3 = jnp.zeros((batch, H3)); c3 = jnp.zeros((batch, H3))

    def cell(xi, h, c, wih, whh, b, hid):
        g = xi @ wih + h @ whh + b
        i = jax.nn.sigmoid(g[:, 0 * hid:1 * hid])
        f = jax.nn.sigmoid(g[:, 1 * hid:2 * hid])
        gg = jnp.tanh(g[:, 2 * hid:3 * hid])
        o = jax.nn.sigmoid(g[:, 3 * hid:4 * hid])
        c = f * c + i * gg
        return o * jnp.tanh(c), c

    out = None
    for idx in list(range(seq)) + [4]:
        h1, c1 = cell(x[idx], h1, c1, wih1, whh1, b1, H1)
        h2, c2 = cell(h1, h2, c2, wih2, whh2, b2, H2)
        h3, c3 = cell(h2, h3, c3, wih3, whh3, b3, H3)
        out = (h3 @ fw1 + fb1) @ fw2 + fb2
    return out


if __name__ == "__main__":
    key = jax.random.PRNGKey(0)
    k_x, k_p = jax.random.split(key)
    seq_len, batch = 8, 8
    x = jax.random.normal(k_x, (seq_len, batch, IN_DIM), jnp.float32)
    params = init_params(k_p)
    packed = pack_params(params)

    out = sequence_forward(x, packed)
    out = jax.block_until_ready(out)

    ref = reference_forward(x, params)
    assert out.shape == (batch, FC2_DIM)
    assert jnp.allclose(out, ref, atol=1e-4, rtol=1e-4), (out, ref)
    print("KERNEL_OK")
</pallas_src>

<mosaic_0001>
module attributes {stable_mosaic.version = 11 : i64} {
  func.func @sequence_kernel(%arg0: memref<8x8x128xf32, #tpu.memory_space<vmem>>, %arg1: memref<256x512xf32, #tpu.memory_space<vmem>>, %arg2: memref<1x512xf32, #tpu.memory_space<vmem>>, %arg3: memref<256x512xf32, #tpu.memory_space<vmem>>, %arg4: memref<1x512xf32, #tpu.memory_space<vmem>>, %arg5: memref<256x512xf32, #tpu.memory_space<vmem>>, %arg6: memref<1x512xf32, #tpu.memory_space<vmem>>, %arg7: memref<128x1xf32, #tpu.memory_space<vmem>>, %arg8: memref<1x1xf32, #tpu.memory_space<vmem>>, %arg9: memref<8x1xf32, #tpu.memory_space<vmem>>) attributes {dimension_semantics = [], scalar_prefetch = 0 : i64, scratch_operands = 0 : i64, tpu.core_type = #tpu.core_type<tc>} {
    %c0 = arith.constant 0 : index
    %c0_0 = arith.constant 0 : index
    %0 = vector.load %arg1[%c0, %c0_0] : memref<256x512xf32, #tpu.memory_space<vmem>>, vector<256x512xf32>
    %c0_1 = arith.constant 0 : index
    %c0_2 = arith.constant 0 : index
    %1 = vector.load %arg3[%c0_1, %c0_2] : memref<256x512xf32, #tpu.memory_space<vmem>>, vector<256x512xf32>
    %c0_3 = arith.constant 0 : index
    %c0_4 = arith.constant 0 : index
    %2 = vector.load %arg5[%c0_3, %c0_4] : memref<256x512xf32, #tpu.memory_space<vmem>>, vector<256x512xf32>
    %c0_5 = arith.constant 0 : index
    %c0_6 = arith.constant 0 : index
    %3 = vector.load %arg2[%c0_5, %c0_6] : memref<1x512xf32, #tpu.memory_space<vmem>>, vector<1x512xf32>
    %4 = vector.shape_cast %3 : vector<1x512xf32> to vector<1x512xf32>
    %5 = vector.broadcast %4 : vector<1x512xf32> to vector<8x512xf32>
    %c0_7 = arith.constant 0 : index
    %c0_8 = arith.constant 0 : index
    %6 = vector.load %arg4[%c0_7, %c0_8] : memref<1x512xf32, #tpu.memory_space<vmem>>, vector<1x512xf32>
    %7 = vector.shape_cast %6 : vector<1x512xf32> to vector<1x512xf32>
    %8 = vector.broadcast %7 : vector<1x512xf32> to vector<8x512xf32>
    %c0_9 = arith.constant 0 : index
    %c0_10 = arith.constant 0 : index
    %9 = vector.load %arg6[%c0_9, %c0_10] : memref<1x512xf32, #tpu.memory_space<vmem>>, vector<1x512xf32>
    %10 = vector.shape_cast %9 : vector<1x512xf32> to vector<1x512xf32>
    %11 = vector.broadcast %10 : vector<1x512xf32> to vector<8x512xf32>
    %cst = arith.constant 0.000000e+00 : f32
    %12 = vector.broadcast %cst : f32 to vector<8x128xf32>
    %c0_11 = arith.constant 0 : index
    %c0_12 = arith.constant 0 : index
    %c0_13 = arith.constant 0 : index
    %13 = vector.load %arg0[%c0_11, %c0_12, %c0_13] : memref<8x8x128xf32, #tpu.memory_space<vmem>>, vector<1x8x128xf32>
    %14 = vector.shape_cast %13 : vector<1x8x128xf32> to vector<8x128xf32>
    %15 = tpu.concatenate %14, %12 in 1 : vector<8x128xf32>, vector<8x128xf32> -> vector<8x256xf32>
    %cst_14 = arith.constant dense<0.000000e+00> : vector<8x512xf32>
    %16 = tpu.matmul %15, %0, %cst_14 {dimension_numbers = #tpu.dot_dimension_numbers<[1], [0], [0], [1], [0, 0, 1, 1], [], []>} : vector<8x256xf32>, vector<256x512xf32>, vector<8x512xf32> -> vector<8x512xf32>
    %17 = arith.addf %16, %5 : vector<8x512xf32>
    %18 = vector.extract_strided_slice %17 {offsets = [0, 0], sizes = [8, 128], strides = [1, 1]} : vector<8x512xf32> to vector<8x128xf32>
    %19 = arith.negf %18 : vector<8x128xf32>
    %20 = math.exp %19 : vector<8x128xf32>
    %cst_15 = arith.constant 1.000000e+00 : f32
    %21 = vector.broadcast %cst_15 : f32 to vector<8x128xf32>
    %22 = arith.addf %21, %20 : vector<8x128xf32>
    %23 = arith.divf %21, %22 : vector<8x128xf32>
    %24 = vector.extract_strided_slice %17 {offsets = [0, 128], sizes = [8, 128], strides = [1, 1]} : vector<8x512xf32> to vector<8x128xf32>
    %25 = arith.negf %24 : vector<8x128xf32>
    %26 = math.exp %25 : vector<8x128xf32>
    %cst_16 = arith.constant 1.000000e+00 : f32
    %27 = vector.broadcast %cst_16 : f32 to vector<8x128xf32>
    %28 = arith.addf %27, %26 : vector<8x128xf32>
    %29 = arith.divf %27, %28 : vector<8x128xf32>
    %30 = vector.extract_strided_slice %17 {offsets = [0, 256], sizes = [8, 128], strides = [1, 1]} : vector<8x512xf32> to vector<8x128xf32>
    %31 = math.tanh %30 : vector<8x128xf32>
    %32 = vector.extract_strided_slice %17 {offsets = [0, 384], sizes = [8, 128], strides = [1, 1]} : vector<8x512xf32> to vector<8x128xf32>
    %33 = arith.negf %32 : vector<8x128xf32>
    %34 = math.exp %33 : vector<8x128xf32>
    %cst_17 = arith.constant 1.000000e+00 : f32
    %35 = vector.broadcast %cst_17 : f32 to vector<8x128xf32>
    %36 = arith.addf %35, %34 : vector<8x128xf32>
    %37 = arith.divf %35, %36 : vector<8x128xf32>
    %38 = arith.mulf %29, %12 : vector<8x128xf32>
    %39 = arith.mulf %23, %31 : vector<8x128xf32>
    %40 = arith.addf %38, %39 : vector<8x128xf32>
    %41 = math.tanh %40 : vector<8x128xf32>
    %42 = arith.mulf %37, %41 : vector<8x128xf32>
    %43 = tpu.concatenate %42, %12 in 1 : vector<8x128xf32>, vector<8x128xf32> -> vector<8x256xf32>
    %cst_18 = arith.constant dense<0.000000e+00> : vector<8x512xf32>
    %44 = tpu.matmul %43, %1, %cst_18 {dimension_numbers = #tpu.dot_dimension_numbers<[1], [0], [0], [1], [0, 0, 1, 1], [], []>} : vector<8x256xf32>, vector<256x512xf32>, vector<8x512xf32> -> vector<8x512xf32>
    %45 = arith.addf %44, %8 : vector<8x512xf32>
    %46 = vector.extract_strided_slice %45 {offsets = [0, 0], sizes = [8, 128], strides = [1, 1]} : vector<8x512xf32> to vector<8x128xf32>
    %47 = arith.negf %46 : vector<8x128xf32>
    %48 = math.exp %47 : vector<8x128xf32>
    %cst_19 = arith.constant 1.000000e+00 : f32
    %49 = vector.broadcast %cst_19 : f32 to vector<8x128xf32>
    %50 = arith.addf %49, %48 : vector<8x128xf32>
    %51 = arith.divf %49, %50 : vector<8x128xf32>
    %52 = vector.extract_strided_slice %45 {offsets = [0, 128], sizes = [8, 128], strides = [1, 1]} : vector<8x512xf32> to vector<8x128xf32>
    %53 = arith.negf %52 : vector<8x128xf32>
    %54 = math.exp %53 : vector<8x128xf32>
    %cst_20 = arith.constant 1.000000e+00 : f32
    %55 = vector.broadcast %cst_20 : f32 to vector<8x128xf32>
    %56 = arith.addf %55, %54 : vector<8x128xf32>
    %57 = arith.divf %55, %56 : vector<8x128xf32>
    %58 = vector.extract_strided_slice %45 {offsets = [0, 256], sizes = [8, 128], strides = [1, 1]} : vector<8x512xf32> to vector<8x128xf32>
    %59 = math.tanh %58 : vector<8x128xf32>
    %60 = vector.extract_strided_slice %45 {offsets = [0, 384], sizes = [8, 128], strides = [1, 1]} : vector<8x512xf32> to vector<8x128xf32>
    %61 = arith.negf %60 : vector<8x128xf32>
    %62 = math.exp %61 : vector<8x128xf32>
    %cst_21 = arith.constant 1.000000e+00 : f32
    %63 = vector.broadcast %cst_21 : f32 to vector<8x128xf32>
    %64 = arith.addf %63, %62 : vector<8x128xf32>
    %65 = arith.divf %63, %64 : vector<8x128xf32>
    %66 = arith.mulf %57, %12 : vector<8x128xf32>
    %67 = arith.mulf %51, %59 : vector<8x128xf32>
    %68 = arith.addf %66, %67 : vector<8x128xf32>
    %69 = math.tanh %68 : vector<8x128xf32>
    %70 = arith.mulf %65, %69 : vector<8x128xf32>
    %71 = tpu.concatenate %70, %12 in 1 : vector<8x128xf32>, vector<8x128xf32> -> vector<8x256xf32>
    %cst_22 = arith.constant dense<0.000000e+00> : vector<8x512xf32>
    %72 = tpu.matmul %71, %2, %cst_22 {dimension_numbers = #tpu.dot_dimension_numbers<[1], [0], [0], [1], [0, 0, 1, 1], [], []>} : vector<8x256xf32>, vector<256x512xf32>, vector<8x512xf32> -> vector<8x512xf32>
    %73 = arith.addf %72, %11 : vector<8x512xf32>
    %74 = vector.extract_strided_slice %73 {offsets = [0, 0], sizes = [8, 128], strides = [1, 1]} : vector<8x512xf32> to vector<8x128xf32>
    %75 = arith.negf %74 : vector<8x128xf32>
    %76 = math.exp %75 : vector<8x128xf32>
    %cst_23 = arith.constant 1.000000e+00 : f32
    %77 = vector.broadcast %cst_23 : f32 to vector<8x128xf32>
    %78 = arith.addf %77, %76 : vector<8x128xf32>
    %79 = arith.divf %77, %78 : vector<8x128xf32>
    %80 = vector.extract_strided_slice %73 {offsets = [0, 128], sizes = [8, 128], strides = [1, 1]} : vector<8x512xf32> to vector<8x128xf32>
    %81 = arith.negf %80 : vector<8x128xf32>
    %82 = math.exp %81 : vector<8x128xf32>
    %cst_24 = arith.constant 1.000000e+00 : f32
    %83 = vector.broadcast %cst_24 : f32 to vector<8x128xf32>
    %84 = arith.addf %83, %82 : vector<8x128xf32>
    %85 = arith.divf %83, %84 : vector<8x128xf32>
    %86 = vector.extract_strided_slice %73 {offsets = [0, 256], sizes = [8, 128], strides = [1, 1]} : vector<8x512xf32> to vector<8x128xf32>
    %87 = math.tanh %86 : vector<8x128xf32>
    %88 = vector.extract_strided_slice %73 {offsets = [0, 384], sizes = [8, 128], strides = [1, 1]} : vector<8x512xf32> to vector<8x128xf32>
    %89 = arith.negf %88 : vector<8x128xf32>
    %90 = math.exp %89 : vector<8x128xf32>
    %cst_25 = arith.constant 1.000000e+00 : f32
    %91 = vector.broadcast %cst_25 : f32 to vector<8x128xf32>
    %92 = arith.addf %91, %90 : vector<8x128xf32>
    %93 = arith.divf %91, %92 : vector<8x128xf32>
    %94 = arith.mulf %85, %12 : vector<8x128xf32>
    %95 = arith.mulf %79, %87 : vector<8x128xf32>
    %96 = arith.addf %94, %95 : vector<8x128xf32>
    %97 = math.tanh %96 : vector<8x128xf32>
    %98 = arith.mulf %93, %97 : vector<8x128xf32>
    %c1 = arith.constant 1 : index
    %c0_26 = arith.constant 0 : index
    %c0_27 = arith.constant 0 : index
    %99 = vector.load %arg0[%c1, %c0_26, %c0_27] : memref<8x8x128xf32, #tpu.memory_space<vmem>>, vector<1x8x128xf32>
    %100 = vector.shape_cast %99 : vector<1x8x128xf32> to vector<8x128xf32>
    %101 = tpu.concatenate %100, %42 in 1 : vector<8x128xf32>, vector<8x128xf32> -> vector<8x256xf32>
    %cst_28 = arith.constant dense<0.000000e+00> : vector<8x512xf32>
    %102 = tpu.matmul %101, %0, %cst_28 {dimension_numbers = #tpu.dot_dimension_numbers<[1], [0], [0], [1], [0, 0, 1, 1], [], []>} : vector<8x256xf32>, vector<256x512xf32>, vector<8x512xf32> -> vector<8x512xf32>
    %103 = arith.addf %102, %5 : vector<8x512xf32>
    %104 = vector.extract_strided_slice %103 {offsets = [0, 0], sizes = [8, 128], strides = [1, 1]} : vector<8x512xf32> to vector<8x128xf32>
    %105 = arith.negf %104 : vector<8x128xf32>
    %106 = math.exp %105 : vector<8x128xf32>
    %cst_29 = arith.constant 1.000000e+00 : f32
    %107 = vector.broadcast %cst_29 : f32 to vector<8x128xf32>
    %108 = arith.addf %107, %106 : vector<8x128xf32>
    %109 = arith.divf %107, %108 : vector<8x128xf32>
    %110 = vector.extract_strided_slice %103 {offsets = [0, 128], sizes = [8, 128], strides = [1, 1]} : vector<8x512xf32> to vector<8x128xf32>
    %111 = arith.negf %110 : vector<8x128xf32>
    %112 = math.exp %111 : vector<8x128xf32>
    %cst_30 = arith.constant 1.000000e+00 : f32
    %113 = vector.broadcast %cst_30 : f32 to vector<8x128xf32>
    %114 = arith.addf %113, %112 : vector<8x128xf32>
    %115 = arith.divf %113, %114 : vector<8x128xf32>
    %116 = vector.extract_strided_slice %103 {offsets = [0, 256], sizes = [8, 128], strides = [1, 1]} : vector<8x512xf32> to vector<8x128xf32>
    %117 = math.tanh %116 : vector<8x128xf32>
    %118 = vector.extract_strided_slice %103 {offsets = [0, 384], sizes = [8, 128], strides = [1, 1]} : vector<8x512xf32> to vector<8x128xf32>
    %119 = arith.negf %118 : vector<8x128xf32>
    %120 = math.exp %119 : vector<8x128xf32>
    %cst_31 = arith.constant 1.000000e+00 : f32
    %121 = vector.broadcast %cst_31 : f32 to vector<8x128xf32>
    %122 = arith.addf %121, %120 : vector<8x128xf32>
    %123 = arith.divf %121, %122 : vector<8x128xf32>
    %124 = arith.mulf %115, %40 : vector<8x128xf32>
    %125 = arith.mulf %109, %117 : vector<8x128xf32>
    %126 = arith.addf %124, %125 : vector<8x128xf32>
    %127 = math.tanh %126 : vector<8x128xf32>
    %128 = arith.mulf %123, %127 : vector<8x128xf32>
    %129 = tpu.concatenate %128, %70 in 1 : vector<8x128xf32>, vector<8x128xf32> -> vector<8x256xf32>
    %cst_32 = arith.constant dense<0.000000e+00> : vector<8x512xf32>
    %130 = tpu.matmul %129, %1, %cst_32 {dimension_numbers = #tpu.dot_dimension_numbers<[1], [0], [0], [1], [0, 0, 1, 1], [], []>} : vector<8x256xf32>, vector<256x512xf32>, vector<8x512xf32> -> vector<8x512xf32>
    %131 = arith.addf %130, %8 : vector<8x512xf32>
    %132 = vector.extract_strided_slice %131 {offsets = [0, 0], sizes = [8, 128], strides = [1, 1]} : vector<8x512xf32> to vector<8x128xf32>
    %133 = arith.negf %132 : vector<8x128xf32>
    %134 = math.exp %133 : vector<8x128xf32>
    %cst_33 = arith.constant 1.000000e+00 : f32
    %135 = vector.broadcast %cst_33 : f32 to vector<8x128xf32>
    %136 = arith.addf %135, %134 : vector<8x128xf32>
    %137 = arith.divf %135, %136 : vector<8x128xf32>
    %138 = vector.extract_strided_slice %131 {offsets = [0, 128], sizes = [8, 128], strides = [1, 1]} : vector<8x512xf32> to vector<8x128xf32>
    %139 = arith.negf %138 : vector<8x128xf32>
    %140 = math.exp %139 : vector<8x128xf32>
    %cst_34 = arith.constant 1.000000e+00 : f32
    %141 = vector.broadcast %cst_34 : f32 to vector<8x128xf32>
    %142 = arith.addf %141, %140 : vector<8x128xf32>
    %143 = arith.divf %141, %142 : vector<8x128xf32>
    %144 = vector.extract_strided_slice %131 {offsets = [0, 256], sizes = [8, 128], strides = [1, 1]} : vector<8x512xf32> to vector<8x128xf32>
    %145 = math.tanh %144 : vector<8x128xf32>
    %146 = vector.extract_strided_slice %131 {offsets = [0, 384], sizes = [8, 128], strides = [1, 1]} : vector<8x512xf32> to vector<8x128xf32>
    %147 = arith.negf %146 : vector<8x128xf32>
    %148 = math.exp %147 : vector<8x128xf32>
    %cst_35 = arith.constant 1.000000e+00 : f32
    %149 = vector.broadcast %cst_35 : f32 to vector<8x128xf32>
    %150 = arith.addf %149, %148 : vector<8x128xf32>
    %151 = arith.divf %149, %150 : vector<8x128xf32>
    %152 = arith.mulf %143, %68 : vector<8x128xf32>
    %153 = arith.mulf %137, %145 : vector<8x128xf32>
    %154 = arith.addf %152, %153 : vector<8x128xf32>
    %155 = math.tanh %154 : vector<8x128xf32>
    %156 = arith.mulf %151, %155 : vector<8x128xf32>
    %157 = tpu.concatenate %156, %98 in 1 : vector<8x128xf32>, vector<8x128xf32> -> vector<8x256xf32>
    %cst_36 = arith.constant dense<0.000000e+00> : vector<8x512xf32>
    %158 = tpu.matmul %157, %2, %cst_36 {dimension_numbers = #tpu.dot_dimension_numbers<[1], [0], [0], [1], [0, 0, 1, 1], [], []>} : vector<8x256xf32>, vector<256x512xf32>, vector<8x512xf32> -> vector<8x512xf32>
    %159 = arith.addf %158, %11 : vector<8x512xf32>
    %160 = vector.extract_strided_slice %159 {offsets = [0, 0], sizes = [8, 128], strides = [1, 1]} : vector<8x512xf32> to vector<8x128xf32>
    %161 = arith.negf %160 : vector<8x128xf32>
    %162 = math.exp %161 : vector<8x128xf32>
    %cst_37 = arith.constant 1.000000e+00 : f32
    %163 = vector.broadcast %cst_37 : f32 to vector<8x128xf32>
    %164 = arith.addf %163, %162 : vector<8x128xf32>
    %165 = arith.divf %163, %164 : vector<8x128xf32>
    %166 = vector.extract_strided_slice %159 {offsets = [0, 128], sizes = [8, 128], strides = [1, 1]} : vector<8x512xf32> to vector<8x128xf32>
    %167 = arith.negf %166 : vector<8x128xf32>
    %168 = math.exp %167 : vector<8x128xf32>
    %cst_38 = arith.constant 1.000000e+00 : f32
    %169 = vector.broadcast %cst_38 : f32 to vector<8x128xf32>
    %170 = arith.addf %169, %168 : vector<8x128xf32>
    %171 = arith.divf %169, %170 : vector<8x128xf32>
    %172 = vector.extract_strided_slice %159 {offsets = [0, 256], sizes = [8, 128], strides = [1, 1]} : vector<8x512xf32> to vector<8x128xf32>
    %173 = math.tanh %172 : vector<8x128xf32>
    %174 = vector.extract_strided_slice %159 {offsets = [0, 384], sizes = [8, 128], strides = [1, 1]} : vector<8x512xf32> to vector<8x128xf32>
    %175 = arith.negf %174 : vector<8x128xf32>
    %176 = math.exp %175 : vector<8x128xf32>
    %cst_39 = arith.constant 1.000000e+00 : f32
    %177 = vector.broadcast %cst_39 : f32 to vector<8x128xf32>
    %178 = arith.addf %177, %176 : vector<8x128xf32>
    %179 = arith.divf %177, %178 : vector<8x128xf32>
    %180 = arith.mulf %171, %96 : vector<8x128xf32>
    %181 = arith.mulf %165, %173 : vector<8x128xf32>
    %182 = arith.addf %180, %181 : vector<8x128xf32>
    %183 = math.tanh %182 : vector<8x128xf32>
    %184 = arith.mulf %179, %183 : vector<8x128xf32>
    %c2 = arith.constant 2 : index
    %c0_40 = arith.constant 0 : index
    %c0_41 = arith.constant 0 : index
    %185 = vector.load %arg0[%c2, %c0_40, %c0_41] : memref<8x8x128xf32, #tpu.memory_space<vmem>>, vector<1x8x128xf32>
    %186 = vector.shape_cast %185 : vector<1x8x128xf32> to vector<8x128xf32>
    %187 = tpu.concatenate %186, %128 in 1 : vector<8x128xf32>, vector<8x128xf32> -> vector<8x256xf32>
    %cst_42 = arith.constant dense<0.000000e+00> : vector<8x512xf32>
    %188 = tpu.matmul %187, %0, %cst_42 {dimension_numbers = #tpu.dot_dimension_numbers<[1], [0], [0], [1], [0, 0, 1, 1], [], []>} : vector<8x256xf32>, vector<256x512xf32>, vector<8x512xf32> -> vector<8x512xf32>
    %189 = arith.addf %188, %5 : vector<8x512xf32>
    %190 = vector.extract_strided_slice %189 {offsets = [0, 0], sizes = [8, 128], strides = [1, 1]} : vector<8x512xf32> to vector<8x128xf32>
    %191 = arith.negf %190 : vector<8x128xf32>
    %192 = math.exp %191 : vector<8x128xf32>
    %cst_43 = arith.constant 1.000000e+00 : f32
    %193 = vector.broadcast %cst_43 : f32 to vector<8x128xf32>
    %194 = arith.addf %193, %192 : vector<8x128xf32>
    %195 = arith.divf %193, %194 : vector<8x128xf32>
    %196 = vector.extract_strided_slice %189 {offsets = [0, 128], sizes = [8, 128], strides = [1, 1]} : vector<8x512xf32> to vector<8x128xf32>
    %197 = arith.negf %196 : vector<8x128xf32>
    %198 = math.exp %197 : vector<8x128xf32>
    %cst_44 = arith.constant 1.000000e+00 : f32
    %199 = vector.broadcast %cst_44 : f32 to vector<8x128xf32>
    %200 = arith.addf %199, %198 : vector<8x128xf32>
    %201 = arith.divf %199, %200 : vector<8x128xf32>
    %202 = vector.extract_strided_slice %189 {offsets = [0, 256], sizes = [8, 128], strides = [1, 1]} : vector<8x512xf32> to vector<8x128xf32>
    %203 = math.tanh %202 : vector<8x128xf32>
    %204 = vector.extract_strided_slice %189 {offsets = [0, 384], sizes = [8, 128], strides = [1, 1]} : vector<8x512xf32> to vector<8x128xf32>
    %205 = arith.negf %204 : vector<8x128xf32>
    %206 = math.exp %205 : vector<8x128xf32>
    %cst_45 = arith.constant 1.000000e+00 : f32
    %207 = vector.broadcast %cst_45 : f32 to vector<8x128xf32>
    %208 = arith.addf %207, %206 : vector<8x128xf32>
    %209 = arith.divf %207, %208 : vector<8x128xf32>
    %210 = arith.mulf %201, %126 : vector<8x128xf32>
    %211 = arith.mulf %195, %203 : vector<8x128xf32>
    %212 = arith.addf %210, %211 : vector<8x128xf32>
    %213 = math.tanh %212 : vector<8x128xf32>
    %214 = arith.mulf %209, %213 : vector<8x128xf32>
    %215 = tpu.concatenate %214, %156 in 1 : vector<8x128xf32>, vector<8x128xf32> -> vector<8x256xf32>
    %cst_46 = arith.constant dense<0.000000e+00> : vector<8x512xf32>
    %216 = tpu.matmul %215, %1, %cst_46 {dimension_numbers = #tpu.dot_dimension_numbers<[1], [0], [0], [1], [0, 0, 1, 1], [], []>} : vector<8x256xf32>, vector<256x512xf32>, vector<8x512xf32> -> vector<8x512xf32>
    %217 = arith.addf %216, %8 : vector<8x512xf32>
    %218 = vector.extract_strided_slice %217 {offsets = [0, 0], sizes = [8, 128], strides = [1, 1]} : vector<8x512xf32> to vector<8x128xf32>
    %219 = arith.negf %218 : vector<8x128xf32>
    %220 = math.exp %219 : vector<8x128xf32>
    %cst_47 = arith.constant 1.000000e+00 : f32
    %221 = vector.broadcast %cst_47 : f32 to vector<8x128xf32>
    %222 = arith.addf %221, %220 : vector<8x128xf32>
    %223 = arith.divf %221, %222 : vector<8x128xf32>
    %224 = vector.extract_strided_slice %217 {offsets = [0, 128], sizes = [8, 128], strides = [1, 1]} : vector<8x512xf32> to vector<8x128xf32>
    %225 = arith.negf %224 : vector<8x128xf32>
    %226 = math.exp %225 : vector<8x128xf32>
    %cst_48 = arith.constant 1.000000e+00 : f32
    %227 = vector.broadcast %cst_48 : f32 to vector<8x128xf32>
    %228 = arith.addf %227, %226 : vector<8x128xf32>
    %229 = arith.divf %227, %228 : vector<8x128xf32>
    %230 = vector.extract_strided_slice %217 {offsets = [0, 256], sizes = [8, 128], strides = [1, 1]} : vector<8x512xf32> to vector<8x128xf32>
    %231 = math.tanh %230 : vector<8x128xf32>
    %232 = vector.extract_strided_slice %217 {offsets = [0, 384], sizes = [8, 128], strides = [1, 1]} : vector<8x512xf32> to vector<8x128xf32>
    %233 = arith.negf %232 : vector<8x128xf32>
    %234 = math.exp %233 : vector<8x128xf32>
    %cst_49 = arith.constant 1.000000e+00 : f32
    %235 = vector.broadcast %cst_49 : f32 to vector<8x128xf32>
    %236 = arith.addf %235, %234 : vector<8x128xf32>
    %237 = arith.divf %235, %236 : vector<8x128xf32>
    %238 = arith.mulf %229, %154 : vector<8x128xf32>
    %239 = arith.mulf %223, %231 : vector<8x128xf32>
    %240 = arith.addf %238, %239 : vector<8x128xf32>
    %241 = math.tanh %240 : vector<8x128xf32>
    %242 = arith.mulf %237, %241 : vector<8x128xf32>
    %243 = tpu.concatenate %242, %184 in 1 : vector<8x128xf32>, vector<8x128xf32> -> vector<8x256xf32>
    %cst_50 = arith.constant dense<0.000000e+00> : vector<8x512xf32>
    %244 = tpu.matmul %243, %2, %cst_50 {dimension_numbers = #tpu.dot_dimension_numbers<[1], [0], [0], [1], [0, 0, 1, 1], [], []>} : vector<8x256xf32>, vector<256x512xf32>, vector<8x512xf32> -> vector<8x512xf32>
    %245 = arith.addf %244, %11 : vector<8x512xf32>
    %246 = vector.extract_strided_slice %245 {offsets = [0, 0], sizes = [8, 128], strides = [1, 1]} : vector<8x512xf32> to vector<8x128xf32>
    %247 = arith.negf %246 : vector<8x128xf32>
    %248 = math.exp %247 : vector<8x128xf32>
    %cst_51 = arith.constant 1.000000e+00 : f32
    %249 = vector.broadcast %cst_51 : f32 to vector<8x128xf32>
    %250 = arith.addf %249, %248 : vector<8x128xf32>
    %251 = arith.divf %249, %250 : vector<8x128xf32>
    %252 = vector.extract_strided_slice %245 {offsets = [0, 128], sizes = [8, 128], strides = [1, 1]} : vector<8x512xf32> to vector<8x128xf32>
    %253 = arith.negf %252 : vector<8x128xf32>
    %254 = math.exp %253 : vector<8x128xf32>
    %cst_52 = arith.constant 1.000000e+00 : f32
    %255 = vector.broadcast %cst_52 : f32 to vector<8x128xf32>
    %256 = arith.addf %255, %254 : vector<8x128xf32>
    %257 = arith.divf %255, %256 : vector<8x128xf32>
    %258 = vector.extract_strided_slice %245 {offsets = [0, 256], sizes = [8, 128], strides = [1, 1]} : vector<8x512xf32> to vector<8x128xf32>
    %259 = math.tanh %258 : vector<8x128xf32>
    %260 = vector.extract_strided_slice %245 {offsets = [0, 384], sizes = [8, 128], strides = [1, 1]} : vector<8x512xf32> to vector<8x128xf32>
    %261 = arith.negf %260 : vector<8x128xf32>
    %262 = math.exp %261 : vector<8x128xf32>
    %cst_53 = arith.constant 1.000000e+00 : f32
    %263 = vector.broadcast %cst_53 : f32 to vector<8x128xf32>
    %264 = arith.addf %263, %262 : vector<8x128xf32>
    %265 = arith.divf %263, %264 : vector<8x128xf32>
    %266 = arith.mulf %257, %182 : vector<8x128xf32>
    %267 = arith.mulf %251, %259 : vector<8x128xf32>
    %268 = arith.addf %266, %267 : vector<8x128xf32>
    %269 = math.tanh %268 : vector<8x128xf32>
    %270 = arith.mulf %265, %269 : vector<8x128xf32>
    %c3 = arith.constant 3 : index
    %c0_54 = arith.constant 0 : index
    %c0_55 = arith.constant 0 : index
    %271 = vector.load %arg0[%c3, %c0_54, %c0_55] : memref<8x8x128xf32, #tpu.memory_space<vmem>>, vector<1x8x128xf32>
    %272 = vector.shape_cast %271 : vector<1x8x128xf32> to vector<8x128xf32>
    %273 = tpu.concatenate %272, %214 in 1 : vector<8x128xf32>, vector<8x128xf32> -> vector<8x256xf32>
    %cst_56 = arith.constant dense<0.000000e+00> : vector<8x512xf32>
    %274 = tpu.matmul %273, %0, %cst_56 {dimension_numbers = #tpu.dot_dimension_numbers<[1], [0], [0], [1], [0, 0, 1, 1], [], []>} : vector<8x256xf32>, vector<256x512xf32>, vector<8x512xf32> -> vector<8x512xf32>
    %275 = arith.addf %274, %5 : vector<8x512xf32>
    %276 = vector.extract_strided_slice %275 {offsets = [0, 0], sizes = [8, 128], strides = [1, 1]} : vector<8x512xf32> to vector<8x128xf32>
    %277 = arith.negf %276 : vector<8x128xf32>
    %278 = math.exp %277 : vector<8x128xf32>
    %cst_57 = arith.constant 1.000000e+00 : f32
    %279 = vector.broadcast %cst_57 : f32 to vector<8x128xf32>
    %280 = arith.addf %279, %278 : vector<8x128xf32>
    %281 = arith.divf %279, %280 : vector<8x128xf32>
    %282 = vector.extract_strided_slice %275 {offsets = [0, 128], sizes = [8, 128], strides = [1, 1]} : vector<8x512xf32> to vector<8x128xf32>
    %283 = arith.negf %282 : vector<8x128xf32>
    %284 = math.exp %283 : vector<8x128xf32>
    %cst_58 = arith.constant 1.000000e+00 : f32
    %285 = vector.broadcast %cst_58 : f32 to vector<8x128xf32>
    %286 = arith.addf %285, %284 : vector<8x128xf32>
    %287 = arith.divf %285, %286 : vector<8x128xf32>
    %288 = vector.extract_strided_slice %275 {offsets = [0, 256], sizes = [8, 128], strides = [1, 1]} : vector<8x512xf32> to vector<8x128xf32>
    %289 = math.tanh %288 : vector<8x128xf32>
    %290 = vector.extract_strided_slice %275 {offsets = [0, 384], sizes = [8, 128], strides = [1, 1]} : vector<8x512xf32> to vector<8x128xf32>
    %291 = arith.negf %290 : vector<8x128xf32>
    %292 = math.exp %291 : vector<8x128xf32>
    %cst_59 = arith.constant 1.000000e+00 : f32
    %293 = vector.broadcast %cst_59 : f32 to vector<8x128xf32>
    %294 = arith.addf %293, %292 : vector<8x128xf32>
    %295 = arith.divf %293, %294 : vector<8x128xf32>
    %296 = arith.mulf %287, %212 : vector<8x128xf32>
    %297 = arith.mulf %281, %289 : vector<8x128xf32>
    %298 = arith.addf %296, %297 : vector<8x128xf32>
    %299 = math.tanh %298 : vector<8x128xf32>
    %300 = arith.mulf %295, %299 : vector<8x128xf32>
    %301 = tpu.concatenate %300, %242 in 1 : vector<8x128xf32>, vector<8x128xf32> -> vector<8x256xf32>
    %cst_60 = arith.constant dense<0.000000e+00> : vector<8x512xf32>
    %302 = tpu.matmul %301, %1, %cst_60 {dimension_numbers = #tpu.dot_dimension_numbers<[1], [0], [0], [1], [0, 0, 1, 1], [], []>} : vector<8x256xf32>, vector<256x512xf32>, vector<8x512xf32> -> vector<8x512xf32>
    %303 = arith.addf %302, %8 : vector<8x512xf32>
    %304 = vector.extract_strided_slice %303 {offsets = [0, 0], sizes = [8, 128], strides = [1, 1]} : vector<8x512xf32> to vector<8x128xf32>
    %305 = arith.negf %304 : vector<8x128xf32>
    %306 = math.exp %305 : vector<8x128xf32>
    %cst_61 = arith.constant 1.000000e+00 : f32
    %307 = vector.broadcast %cst_61 : f32 to vector<8x128xf32>
    %308 = arith.addf %307, %306 : vector<8x128xf32>
    %309 = arith.divf %307, %308 : vector<8x128xf32>
    %310 = vector.extract_strided_slice %303 {offsets = [0, 128], sizes = [8, 128], strides = [1, 1]} : vector<8x512xf32> to vector<8x128xf32>
    %311 = arith.negf %310 : vector<8x128xf32>
    %312 = math.exp %311 : vector<8x128xf32>
    %cst_62 = arith.constant 1.000000e+00 : f32
    %313 = vector.broadcast %cst_62 : f32 to vector<8x128xf32>
    %314 = arith.addf %313, %312 : vector<8x128xf32>
    %315 = arith.divf %313, %314 : vector<8x128xf32>
    %316 = vector.extract_strided_slice %303 {offsets = [0, 256], sizes = [8, 128], strides = [1, 1]} : vector<8x512xf32> to vector<8x128xf32>
    %317 = math.tanh %316 : vector<8x128xf32>
    %318 = vector.extract_strided_slice %303 {offsets = [0, 384], sizes = [8, 128], strides = [1, 1]} : vector<8x512xf32> to vector<8x128xf32>
    %319 = arith.negf %318 : vector<8x128xf32>
    %320 = math.exp %319 : vector<8x128xf32>
    %cst_63 = arith.constant 1.000000e+00 : f32
    %321 = vector.broadcast %cst_63 : f32 to vector<8x128xf32>
    %322 = arith.addf %321, %320 : vector<8x128xf32>
    %323 = arith.divf %321, %322 : vector<8x128xf32>
    %324 = arith.mulf %315, %240 : vector<8x128xf32>
    %325 = arith.mulf %309, %317 : vector<8x128xf32>
    %326 = arith.addf %324, %325 : vector<8x128xf32>
    %327 = math.tanh %326 : vector<8x128xf32>
    %328 = arith.mulf %323, %327 : vector<8x128xf32>
    %329 = tpu.concatenate %328, %270 in 1 : vector<8x128xf32>, vector<8x128xf32> -> vector<8x256xf32>
    %cst_64 = arith.constant dense<0.000000e+00> : vector<8x512xf32>
    %330 = tpu.matmul %329, %2, %cst_64 {dimension_numbers = #tpu.dot_dimension_numbers<[1], [0], [0], [1], [0, 0, 1, 1], [], []>} : vector<8x256xf32>, vector<256x512xf32>, vector<8x512xf32> -> vector<8x512xf32>
    %331 = arith.addf %330, %11 : vector<8x512xf32>
    %332 = vector.extract_strided_slice %331 {offsets = [0, 0], sizes = [8, 128], strides = [1, 1]} : vector<8x512xf32> to vector<8x128xf32>
    %333 = arith.negf %332 : vector<8x128xf32>
    %334 = math.exp %333 : vector<8x128xf32>
    %cst_65 = arith.constant 1.000000e+00 : f32
    %335 = vector.broadcast %cst_65 : f32 to vector<8x128xf32>
    %336 = arith.addf %335, %334 : vector<8x128xf32>
    %337 = arith.divf %335, %336 : vector<8x128xf32>
    %338 = vector.extract_strided_slice %331 {offsets = [0, 128], sizes = [8, 128], strides = [1, 1]} : vector<8x512xf32> to vector<8x128xf32>
    %339 = arith.negf %338 : vector<8x128xf32>
    %340 = math.exp %339 : vector<8x128xf32>
    %cst_66 = arith.constant 1.000000e+00 : f32
    %341 = vector.broadcast %cst_66 : f32 to vector<8x128xf32>
    %342 = arith.addf %341, %340 : vector<8x128xf32>
    %343 = arith.divf %341, %342 : vector<8x128xf32>
    %344 = vector.extract_strided_slice %331 {offsets = [0, 256], sizes = [8, 128], strides = [1, 1]} : vector<8x512xf32> to vector<8x128xf32>
    %345 = math.tanh %344 : vector<8x128xf32>
    %346 = vector.extract_strided_slice %331 {offsets = [0, 384], sizes = [8, 128], strides = [1, 1]} : vector<8x512xf32> to vector<8x128xf32>
    %347 = arith.negf %346 : vector<8x128xf32>
    %348 = math.exp %347 : vector<8x128xf32>
    %cst_67 = arith.constant 1.000000e+00 : f32
    %349 = vector.broadcast %cst_67 : f32 to vector<8x128xf32>
    %350 = arith.addf %349, %348 : vector<8x128xf32>
    %351 = arith.divf %349, %350 : vector<8x128xf32>
    %352 = arith.mulf %343, %268 : vector<8x128xf32>
    %353 = arith.mulf %337, %345 : vector<8x128xf32>
    %354 = arith.addf %352, %353 : vector<8x128xf32>
    %355 = math.tanh %354 : vector<8x128xf32>
    %356 = arith.mulf %351, %355 : vector<8x128xf32>
    %c4 = arith.constant 4 : index
    %c0_68 = arith.constant 0 : index
    %c0_69 = arith.constant 0 : index
    %357 = vector.load %arg0[%c4, %c0_68, %c0_69] : memref<8x8x128xf32, #tpu.memory_space<vmem>>, vector<1x8x128xf32>
    %358 = vector.shape_cast %357 : vector<1x8x128xf32> to vector<8x128xf32>
    %359 = tpu.concatenate %358, %300 in 1 : vector<8x128xf32>, vector<8x128xf32> -> vector<8x256xf32>
    %cst_70 = arith.constant dense<0.000000e+00> : vector<8x512xf32>
    %360 = tpu.matmul %359, %0, %cst_70 {dimension_numbers = #tpu.dot_dimension_numbers<[1], [0], [0], [1], [0, 0, 1, 1], [], []>} : vector<8x256xf32>, vector<256x512xf32>, vector<8x512xf32> -> vector<8x512xf32>
    %361 = arith.addf %360, %5 : vector<8x512xf32>
    %362 = vector.extract_strided_slice %361 {offsets = [0, 0], sizes = [8, 128], strides = [1, 1]} : vector<8x512xf32> to vector<8x128xf32>
    %363 = arith.negf %362 : vector<8x128xf32>
    %364 = math.exp %363 : vector<8x128xf32>
    %cst_71 = arith.constant 1.000000e+00 : f32
    %365 = vector.broadcast %cst_71 : f32 to vector<8x128xf32>
    %366 = arith.addf %365, %364 : vector<8x128xf32>
    %367 = arith.divf %365, %366 : vector<8x128xf32>
    %368 = vector.extract_strided_slice %361 {offsets = [0, 128], sizes = [8, 128], strides = [1, 1]} : vector<8x512xf32> to vector<8x128xf32>
    %369 = arith.negf %368 : vector<8x128xf32>
    %370 = math.exp %369 : vector<8x128xf32>
    %cst_72 = arith.constant 1.000000e+00 : f32
    %371 = vector.broadcast %cst_72 : f32 to vector<8x128xf32>
    %372 = arith.addf %371, %370 : vector<8x128xf32>
    %373 = arith.divf %371, %372 : vector<8x128xf32>
    %374 = vector.extract_strided_slice %361 {offsets = [0, 256], sizes = [8, 128], strides = [1, 1]} : vector<8x512xf32> to vector<8x128xf32>
    %375 = math.tanh %374 : vector<8x128xf32>
    %376 = vector.extract_strided_slice %361 {offsets = [0, 384], sizes = [8, 128], strides = [1, 1]} : vector<8x512xf32> to vector<8x128xf32>
    %377 = arith.negf %376 : vector<8x128xf32>
    %378 = math.exp %377 : vector<8x128xf32>
    %cst_73 = arith.constant 1.000000e+00 : f32
    %379 = vector.broadcast %cst_73 : f32 to vector<8x128xf32>
    %380 = arith.addf %379, %378 : vector<8x128xf32>
    %381 = arith.divf %379, %380 : vector<8x128xf32>
    %382 = arith.mulf %373, %298 : vector<8x128xf32>
    %383 = arith.mulf %367, %375 : vector<8x128xf32>
    %384 = arith.addf %382, %383 : vector<8x128xf32>
    %385 = math.tanh %384 : vector<8x128xf32>
    %386 = arith.mulf %381, %385 : vector<8x128xf32>
    %387 = tpu.concatenate %386, %328 in 1 : vector<8x128xf32>, vector<8x128xf32> -> vector<8x256xf32>
    %cst_74 = arith.constant dense<0.000000e+00> : vector<8x512xf32>
    %388 = tpu.matmul %387, %1, %cst_74 {dimension_numbers = #tpu.dot_dimension_numbers<[1], [0], [0], [1], [0, 0, 1, 1], [], []>} : vector<8x256xf32>, vector<256x512xf32>, vector<8x512xf32> -> vector<8x512xf32>
    %389 = arith.addf %388, %8 : vector<8x512xf32>
    %390 = vector.extract_strided_slice %389 {offsets = [0, 0], sizes = [8, 128], strides = [1, 1]} : vector<8x512xf32> to vector<8x128xf32>
    %391 = arith.negf %390 : vector<8x128xf32>
    %392 = math.exp %391 : vector<8x128xf32>
    %cst_75 = arith.constant 1.000000e+00 : f32
    %393 = vector.broadcast %cst_75 : f32 to vector<8x128xf32>
    %394 = arith.addf %393, %392 : vector<8x128xf32>
    %395 = arith.divf %393, %394 : vector<8x128xf32>
    %396 = vector.extract_strided_slice %389 {offsets = [0, 128], sizes = [8, 128], strides = [1, 1]} : vector<8x512xf32> to vector<8x128xf32>
    %397 = arith.negf %396 : vector<8x128xf32>
    %398 = math.exp %397 : vector<8x128xf32>
    %cst_76 = arith.constant 1.000000e+00 : f32
    %399 = vector.broadcast %cst_76 : f32 to vector<8x128xf32>
    %400 = arith.addf %399, %398 : vector<8x128xf32>
    %401 = arith.divf %399, %400 : vector<8x128xf32>
    %402 = vector.extract_strided_slice %389 {offsets = [0, 256], sizes = [8, 128], strides = [1, 1]} : vector<8x512xf32> to vector<8x128xf32>
    %403 = math.tanh %402 : vector<8x128xf32>
    %404 = vector.extract_strided_slice %389 {offsets = [0, 384], sizes = [8, 128], strides = [1, 1]} : vector<8x512xf32> to vector<8x128xf32>
    %405 = arith.negf %404 : vector<8x128xf32>
    %406 = math.exp %405 : vector<8x128xf32>
    %cst_77 = arith.constant 1.000000e+00 : f32
    %407 = vector.broadcast %cst_77 : f32 to vector<8x128xf32>
    %408 = arith.addf %407, %406 : vector<8x128xf32>
    %409 = arith.divf %407, %408 : vector<8x128xf32>
    %410 = arith.mulf %401, %326 : vector<8x128xf32>
    %411 = arith.mulf %395, %403 : vector<8x128xf32>
    %412 = arith.addf %410, %411 : vector<8x128xf32>
    %413 = math.tanh %412 : vector<8x128xf32>
    %414 = arith.mulf %409, %413 : vector<8x128xf32>
    %415 = tpu.concatenate %414, %356 in 1 : vector<8x128xf32>, vector<8x128xf32> -> vector<8x256xf32>
    %cst_78 = arith.constant dense<0.000000e+00> : vector<8x512xf32>
    %416 = tpu.matmul %415, %2, %cst_78 {dimension_numbers = #tpu.dot_dimension_numbers<[1], [0], [0], [1], [0, 0, 1, 1], [], []>} : vector<8x256xf32>, vector<256x512xf32>, vector<8x512xf32> -> vector<8x512xf32>
    %417 = arith.addf %416, %11 : vector<8x512xf32>
    %418 = vector.extract_strided_slice %417 {offsets = [0, 0], sizes = [8, 128], strides = [1, 1]} : vector<8x512xf32> to vector<8x128xf32>
    %419 = arith.negf %418 : vector<8x128xf32>
    %420 = math.exp %419 : vector<8x128xf32>
    %cst_79 = arith.constant 1.000000e+00 : f32
    %421 = vector.broadcast %cst_79 : f32 to vector<8x128xf32>
    %422 = arith.addf %421, %420 : vector<8x128xf32>
    %423 = arith.divf %421, %422 : vector<8x128xf32>
    %424 = vector.extract_strided_slice %417 {offsets = [0, 128], sizes = [8, 128], strides = [1, 1]} : vector<8x512xf32> to vector<8x128xf32>
    %425 = arith.negf %424 : vector<8x128xf32>
    %426 = math.exp %425 : vector<8x128xf32>
    %cst_80 = arith.constant 1.000000e+00 : f32
    %427 = vector.broadcast %cst_80 : f32 to vector<8x128xf32>
    %428 = arith.addf %427, %426 : vector<8x128xf32>
    %429 = arith.divf %427, %428 : vector<8x128xf32>
    %430 = vector.extract_strided_slice %417 {offsets = [0, 256], sizes = [8, 128], strides = [1, 1]} : vector<8x512xf32> to vector<8x128xf32>
    %431 = math.tanh %430 : vector<8x128xf32>
    %432 = vector.extract_strided_slice %417 {offsets = [0, 384], sizes = [8, 128], strides = [1, 1]} : vector<8x512xf32> to vector<8x128xf32>
    %433 = arith.negf %432 : vector<8x128xf32>
    %434 = math.exp %433 : vector<8x128xf32>
    %cst_81 = arith.constant 1.000000e+00 : f32
    %435 = vector.broadcast %cst_81 : f32 to vector<8x128xf32>
    %436 = arith.addf %435, %434 : vector<8x128xf32>
    %437 = arith.divf %435, %436 : vector<8x128xf32>
    %438 = arith.mulf %429, %354 : vector<8x128xf32>
    %439 = arith.mulf %423, %431 : vector<8x128xf32>
    %440 = arith.addf %438, %439 : vector<8x128xf32>
    %441 = math.tanh %440 : vector<8x128xf32>
    %442 = arith.mulf %437, %441 : vector<8x128xf32>
    %c5 = arith.constant 5 : index
    %c0_82 = arith.constant 0 : index
    %c0_83 = arith.constant 0 : index
    %443 = vector.load %arg0[%c5, %c0_82, %c0_83] : memref<8x8x128xf32, #tpu.memory_space<vmem>>, vector<1x8x128xf32>
    %444 = vector.shape_cast %443 : vector<1x8x128xf32> to vector<8x128xf32>
    %445 = tpu.concatenate %444, %386 in 1 : vector<8x128xf32>, vector<8x128xf32> -> vector<8x256xf32>
    %cst_84 = arith.constant dense<0.000000e+00> : vector<8x512xf32>
    %446 = tpu.matmul %445, %0, %cst_84 {dimension_numbers = #tpu.dot_dimension_numbers<[1], [0], [0], [1], [0, 0, 1, 1], [], []>} : vector<8x256xf32>, vector<256x512xf32>, vector<8x512xf32> -> vector<8x512xf32>
    %447 = arith.addf %446, %5 : vector<8x512xf32>
    %448 = vector.extract_strided_slice %447 {offsets = [0, 0], sizes = [8, 128], strides = [1, 1]} : vector<8x512xf32> to vector<8x128xf32>
    %449 = arith.negf %448 : vector<8x128xf32>
    %450 = math.exp %449 : vector<8x128xf32>
    %cst_85 = arith.constant 1.000000e+00 : f32
    %451 = vector.broadcast %cst_85 : f32 to vector<8x128xf32>
    %452 = arith.addf %451, %450 : vector<8x128xf32>
    %453 = arith.divf %451, %452 : vector<8x128xf32>
    %454 = vector.extract_strided_slice %447 {offsets = [0, 128], sizes = [8, 128], strides = [1, 1]} : vector<8x512xf32> to vector<8x128xf32>
    %455 = arith.negf %454 : vector<8x128xf32>
    %456 = math.exp %455 : vector<8x128xf32>
    %cst_86 = arith.constant 1.000000e+00 : f32
    %457 = vector.broadcast %cst_86 : f32 to vector<8x128xf32>
    %458 = arith.addf %457, %456 : vector<8x128xf32>
    %459 = arith.divf %457, %458 : vector<8x128xf32>
    %460 = vector.extract_strided_slice %447 {offsets = [0, 256], sizes = [8, 128], strides = [1, 1]} : vector<8x512xf32> to vector<8x128xf32>
    %461 = math.tanh %460 : vector<8x128xf32>
    %462 = vector.extract_strided_slice %447 {offsets = [0, 384], sizes = [8, 128], strides = [1, 1]} : vector<8x512xf32> to vector<8x128xf32>
    %463 = arith.negf %462 : vector<8x128xf32>
    %464 = math.exp %463 : vector<8x128xf32>
    %cst_87 = arith.constant 1.000000e+00 : f32
    %465 = vector.broadcast %cst_87 : f32 to vector<8x128xf32>
    %466 = arith.addf %465, %464 : vector<8x128xf32>
    %467 = arith.divf %465, %466 : vector<8x128xf32>
    %468 = arith.mulf %459, %384 : vector<8x128xf32>
    %469 = arith.mulf %453, %461 : vector<8x128xf32>
    %470 = arith.addf %468, %469 : vector<8x128xf32>
    %471 = math.tanh %470 : vector<8x128xf32>
    %472 = arith.mulf %467, %471 : vector<8x128xf32>
    %473 = tpu.concatenate %472, %414 in 1 : vector<8x128xf32>, vector<8x128xf32> -> vector<8x256xf32>
    %cst_88 = arith.constant dense<0.000000e+00> : vector<8x512xf32>
    %474 = tpu.matmul %473, %1, %cst_88 {dimension_numbers = #tpu.dot_dimension_numbers<[1], [0], [0], [1], [0, 0, 1, 1], [], []>} : vector<8x256xf32>, vector<256x512xf32>, vector<8x512xf32> -> vector<8x512xf32>
    %475 = arith.addf %474, %8 : vector<8x512xf32>
    %476 = vector.extract_strided_slice %475 {offsets = [0, 0], sizes = [8, 128], strides = [1, 1]} : vector<8x512xf32> to vector<8x128xf32>
    %477 = arith.negf %476 : vector<8x128xf32>
    %478 = math.exp %477 : vector<8x128xf32>
    %cst_89 = arith.constant 1.000000e+00 : f32
    %479 = vector.broadcast %cst_89 : f32 to vector<8x128xf32>
    %480 = arith.addf %479, %478 : vector<8x128xf32>
    %481 = arith.divf %479, %480 : vector<8x128xf32>
    %482 = vector.extract_strided_slice %475 {offsets = [0, 128], sizes = [8, 128], strides = [1, 1]} : vector<8x512xf32> to vector<8x128xf32>
    %483 = arith.negf %482 : vector<8x128xf32>
    %484 = math.exp %483 : vector<8x128xf32>
    %cst_90 = arith.constant 1.000000e+00 : f32
    %485 = vector.broadcast %cst_90 : f32 to vector<8x128xf32>
    %486 = arith.addf %485, %484 : vector<8x128xf32>
    %487 = arith.divf %485, %486 : vector<8x128xf32>
    %488 = vector.extract_strided_slice %475 {offsets = [0, 256], sizes = [8, 128], strides = [1, 1]} : vector<8x512xf32> to vector<8x128xf32>
    %489 = math.tanh %488 : vector<8x128xf32>
    %490 = vector.extract_strided_slice %475 {offsets = [0, 384], sizes = [8, 128], strides = [1, 1]} : vector<8x512xf32> to vector<8x128xf32>
    %491 = arith.negf %490 : vector<8x128xf32>
    %492 = math.exp %491 : vector<8x128xf32>
    %cst_91 = arith.constant 1.000000e+00 : f32
    %493 = vector.broadcast %cst_91 : f32 to vector<8x128xf32>
    %494 = arith.addf %493, %492 : vector<8x128xf32>
    %495 = arith.divf %493, %494 : vector<8x128xf32>
    %496 = arith.mulf %487, %412 : vector<8x128xf32>
    %497 = arith.mulf %481, %489 : vector<8x128xf32>
    %498 = arith.addf %496, %497 : vector<8x128xf32>
    %499 = math.tanh %498 : vector<8x128xf32>
    %500 = arith.mulf %495, %499 : vector<8x128xf32>
    %501 = tpu.concatenate %500, %442 in 1 : vector<8x128xf32>, vector<8x128xf32> -> vector<8x256xf32>
    %cst_92 = arith.constant dense<0.000000e+00> : vector<8x512xf32>
    %502 = tpu.matmul %501, %2, %cst_92 {dimension_numbers = #tpu.dot_dimension_numbers<[1], [0], [0], [1], [0, 0, 1, 1], [], []>} : vector<8x256xf32>, vector<256x512xf32>, vector<8x512xf32> -> vector<8x512xf32>
    %503 = arith.addf %502, %11 : vector<8x512xf32>
    %504 = vector.extract_strided_slice %503 {offsets = [0, 0], sizes = [8, 128], strides = [1, 1]} : vector<8x512xf32> to vector<8x128xf32>
    %505 = arith.negf %504 : vector<8x128xf32>
    %506 = math.exp %505 : vector<8x128xf32>
    %cst_93 = arith.constant 1.000000e+00 : f32
    %507 = vector.broadcast %cst_93 : f32 to vector<8x128xf32>
    %508 = arith.addf %507, %506 : vector<8x128xf32>
    %509 = arith.divf %507, %508 : vector<8x128xf32>
    %510 = vector.extract_strided_slice %503 {offsets = [0, 128], sizes = [8, 128], strides = [1, 1]} : vector<8x512xf32> to vector<8x128xf32>
    %511 = arith.negf %510 : vector<8x128xf32>
    %512 = math.exp %511 : vector<8x128xf32>
    %cst_94 = arith.constant 1.000000e+00 : f32
    %513 = vector.broadcast %cst_94 : f32 to vector<8x128xf32>
    %514 = arith.addf %513, %512 : vector<8x128xf32>
    %515 = arith.divf %513, %514 : vector<8x128xf32>
    %516 = vector.extract_strided_slice %503 {offsets = [0, 256], sizes = [8, 128], strides = [1, 1]} : vector<8x512xf32> to vector<8x128xf32>
    %517 = math.tanh %516 : vector<8x128xf32>
    %518 = vector.extract_strided_slice %503 {offsets = [0, 384], sizes = [8, 128], strides = [1, 1]} : vector<8x512xf32> to vector<8x128xf32>
    %519 = arith.negf %518 : vector<8x128xf32>
    %520 = math.exp %519 : vector<8x128xf32>
    %cst_95 = arith.constant 1.000000e+00 : f32
    %521 = vector.broadcast %cst_95 : f32 to vector<8x128xf32>
    %522 = arith.addf %521, %520 : vector<8x128xf32>
    %523 = arith.divf %521, %522 : vector<8x128xf32>
    %524 = arith.mulf %515, %440 : vector<8x128xf32>
    %525 = arith.mulf %509, %517 : vector<8x128xf32>
    %526 = arith.addf %524, %525 : vector<8x128xf32>
    %527 = math.tanh %526 : vector<8x128xf32>
    %528 = arith.mulf %523, %527 : vector<8x128xf32>
    %c6 = arith.constant 6 : index
    %c0_96 = arith.constant 0 : index
    %c0_97 = arith.constant 0 : index
    %529 = vector.load %arg0[%c6, %c0_96, %c0_97] : memref<8x8x128xf32, #tpu.memory_space<vmem>>, vector<1x8x128xf32>
    %530 = vector.shape_cast %529 : vector<1x8x128xf32> to vector<8x128xf32>
    %531 = tpu.concatenate %530, %472 in 1 : vector<8x128xf32>, vector<8x128xf32> -> vector<8x256xf32>
    %cst_98 = arith.constant dense<0.000000e+00> : vector<8x512xf32>
    %532 = tpu.matmul %531, %0, %cst_98 {dimension_numbers = #tpu.dot_dimension_numbers<[1], [0], [0], [1], [0, 0, 1, 1], [], []>} : vector<8x256xf32>, vector<256x512xf32>, vector<8x512xf32> -> vector<8x512xf32>
    %533 = arith.addf %532, %5 : vector<8x512xf32>
    %534 = vector.extract_strided_slice %533 {offsets = [0, 0], sizes = [8, 128], strides = [1, 1]} : vector<8x512xf32> to vector<8x128xf32>
    %535 = arith.negf %534 : vector<8x128xf32>
    %536 = math.exp %535 : vector<8x128xf32>
    %cst_99 = arith.constant 1.000000e+00 : f32
    %537 = vector.broadcast %cst_99 : f32 to vector<8x128xf32>
    %538 = arith.addf %537, %536 : vector<8x128xf32>
    %539 = arith.divf %537, %538 : vector<8x128xf32>
    %540 = vector.extract_strided_slice %533 {offsets = [0, 128], sizes = [8, 128], strides = [1, 1]} : vector<8x512xf32> to vector<8x128xf32>
    %541 = arith.negf %540 : vector<8x128xf32>
    %542 = math.exp %541 : vector<8x128xf32>
    %cst_100 = arith.constant 1.000000e+00 : f32
    %543 = vector.broadcast %cst_100 : f32 to vector<8x128xf32>
    %544 = arith.addf %543, %542 : vector<8x128xf32>
    %545 = arith.divf %543, %544 : vector<8x128xf32>
    %546 = vector.extract_strided_slice %533 {offsets = [0, 256], sizes = [8, 128], strides = [1, 1]} : vector<8x512xf32> to vector<8x128xf32>
    %547 = math.tanh %546 : vector<8x128xf32>
    %548 = vector.extract_strided_slice %533 {offsets = [0, 384], sizes = [8, 128], strides = [1, 1]} : vector<8x512xf32> to vector<8x128xf32>
    %549 = arith.negf %548 : vector<8x128xf32>
    %550 = math.exp %549 : vector<8x128xf32>
    %cst_101 = arith.constant 1.000000e+00 : f32
    %551 = vector.broadcast %cst_101 : f32 to vector<8x128xf32>
    %552 = arith.addf %551, %550 : vector<8x128xf32>
    %553 = arith.divf %551, %552 : vector<8x128xf32>
    %554 = arith.mulf %545, %470 : vector<8x128xf32>
    %555 = arith.mulf %539, %547 : vector<8x128xf32>
    %556 = arith.addf %554, %555 : vector<8x128xf32>
    %557 = math.tanh %556 : vector<8x128xf32>
    %558 = arith.mulf %553, %557 : vector<8x128xf32>
    %559 = tpu.concatenate %558, %500 in 1 : vector<8x128xf32>, vector<8x128xf32> -> vector<8x256xf32>
    %cst_102 = arith.constant dense<0.000000e+00> : vector<8x512xf32>
    %560 = tpu.matmul %559, %1, %cst_102 {dimension_numbers = #tpu.dot_dimension_numbers<[1], [0], [0], [1], [0, 0, 1, 1], [], []>} : vector<8x256xf32>, vector<256x512xf32>, vector<8x512xf32> -> vector<8x512xf32>
    %561 = arith.addf %560, %8 : vector<8x512xf32>
    %562 = vector.extract_strided_slice %561 {offsets = [0, 0], sizes = [8, 128], strides = [1, 1]} : vector<8x512xf32> to vector<8x128xf32>
    %563 = arith.negf %562 : vector<8x128xf32>
    %564 = math.exp %563 : vector<8x128xf32>
    %cst_103 = arith.constant 1.000000e+00 : f32
    %565 = vector.broadcast %cst_103 : f32 to vector<8x128xf32>
    %566 = arith.addf %565, %564 : vector<8x128xf32>
    %567 = arith.divf %565, %566 : vector<8x128xf32>
    %568 = vector.extract_strided_slice %561 {offsets = [0, 128], sizes = [8, 128], strides = [1, 1]} : vector<8x512xf32> to vector<8x128xf32>
    %569 = arith.negf %568 : vector<8x128xf32>
    %570 = math.exp %569 : vector<8x128xf32>
    %cst_104 = arith.constant 1.000000e+00 : f32
    %571 = vector.broadcast %cst_104 : f32 to vector<8x128xf32>
    %572 = arith.addf %571, %570 : vector<8x128xf32>
    %573 = arith.divf %571, %572 : vector<8x128xf32>
    %574 = vector.extract_strided_slice %561 {offsets = [0, 256], sizes = [8, 128], strides = [1, 1]} : vector<8x512xf32> to vector<8x128xf32>
    %575 = math.tanh %574 : vector<8x128xf32>
    %576 = vector.extract_strided_slice %561 {offsets = [0, 384], sizes = [8, 128], strides = [1, 1]} : vector<8x512xf32> to vector<8x128xf32>
    %577 = arith.negf %576 : vector<8x128xf32>
    %578 = math.exp %577 : vector<8x128xf32>
    %cst_105 = arith.constant 1.000000e+00 : f32
    %579 = vector.broadcast %cst_105 : f32 to vector<8x128xf32>
    %580 = arith.addf %579, %578 : vector<8x128xf32>
    %581 = arith.divf %579, %580 : vector<8x128xf32>
    %582 = arith.mulf %573, %498 : vector<8x128xf32>
    %583 = arith.mulf %567, %575 : vector<8x128xf32>
    %584 = arith.addf %582, %583 : vector<8x128xf32>
    %585 = math.tanh %584 : vector<8x128xf32>
    %586 = arith.mulf %581, %585 : vector<8x128xf32>
    %587 = tpu.concatenate %586, %528 in 1 : vector<8x128xf32>, vector<8x128xf32> -> vector<8x256xf32>
    %cst_106 = arith.constant dense<0.000000e+00> : vector<8x512xf32>
    %588 = tpu.matmul %587, %2, %cst_106 {dimension_numbers = #tpu.dot_dimension_numbers<[1], [0], [0], [1], [0, 0, 1, 1], [], []>} : vector<8x256xf32>, vector<256x512xf32>, vector<8x512xf32> -> vector<8x512xf32>
    %589 = arith.addf %588, %11 : vector<8x512xf32>
    %590 = vector.extract_strided_slice %589 {offsets = [0, 0], sizes = [8, 128], strides = [1, 1]} : vector<8x512xf32> to vector<8x128xf32>
    %591 = arith.negf %590 : vector<8x128xf32>
    %592 = math.exp %591 : vector<8x128xf32>
    %cst_107 = arith.constant 1.000000e+00 : f32
    %593 = vector.broadcast %cst_107 : f32 to vector<8x128xf32>
    %594 = arith.addf %593, %592 : vector<8x128xf32>
    %595 = arith.divf %593, %594 : vector<8x128xf32>
    %596 = vector.extract_strided_slice %589 {offsets = [0, 128], sizes = [8, 128], strides = [1, 1]} : vector<8x512xf32> to vector<8x128xf32>
    %597 = arith.negf %596 : vector<8x128xf32>
    %598 = math.exp %597 : vector<8x128xf32>
    %cst_108 = arith.constant 1.000000e+00 : f32
    %599 = vector.broadcast %cst_108 : f32 to vector<8x128xf32>
    %600 = arith.addf %599, %598 : vector<8x128xf32>
    %601 = arith.divf %599, %600 : vector<8x128xf32>
    %602 = vector.extract_strided_slice %589 {offsets = [0, 256], sizes = [8, 128], strides = [1, 1]} : vector<8x512xf32> to vector<8x128xf32>
    %603 = math.tanh %602 : vector<8x128xf32>
    %604 = vector.extract_strided_slice %589 {offsets = [0, 384], sizes = [8, 128], strides = [1, 1]} : vector<8x512xf32> to vector<8x128xf32>
    %605 = arith.negf %604 : vector<8x128xf32>
    %606 = math.exp %605 : vector<8x128xf32>
    %cst_109 = arith.constant 1.000000e+00 : f32
    %607 = vector.broadcast %cst_109 : f32 to vector<8x128xf32>
    %608 = arith.addf %607, %606 : vector<8x128xf32>
    %609 = arith.divf %607, %608 : vector<8x128xf32>
    %610 = arith.mulf %601, %526 : vector<8x128xf32>
    %611 = arith.mulf %595, %603 : vector<8x128xf32>
    %612 = arith.addf %610, %611 : vector<8x128xf32>
    %613 = math.tanh %612 : vector<8x128xf32>
    %614 = arith.mulf %609, %613 : vector<8x128xf32>
    %c7 = arith.constant 7 : index
    %c0_110 = arith.constant 0 : index
    %c0_111 = arith.constant 0 : index
    %615 = vector.load %arg0[%c7, %c0_110, %c0_111] : memref<8x8x128xf32, #tpu.memory_space<vmem>>, vector<1x8x128xf32>
    %616 = vector.shape_cast %615 : vector<1x8x128xf32> to vector<8x128xf32>
    %617 = tpu.concatenate %616, %558 in 1 : vector<8x128xf32>, vector<8x128xf32> -> vector<8x256xf32>
    %cst_112 = arith.constant dense<0.000000e+00> : vector<8x512xf32>
    %618 = tpu.matmul %617, %0, %cst_112 {dimension_numbers = #tpu.dot_dimension_numbers<[1], [0], [0], [1], [0, 0, 1, 1], [], []>} : vector<8x256xf32>, vector<256x512xf32>, vector<8x512xf32> -> vector<8x512xf32>
    %619 = arith.addf %618, %5 : vector<8x512xf32>
    %620 = vector.extract_strided_slice %619 {offsets = [0, 0], sizes = [8, 128], strides = [1, 1]} : vector<8x512xf32> to vector<8x128xf32>
    %621 = arith.negf %620 : vector<8x128xf32>
    %622 = math.exp %621 : vector<8x128xf32>
    %cst_113 = arith.constant 1.000000e+00 : f32
    %623 = vector.broadcast %cst_113 : f32 to vector<8x128xf32>
    %624 = arith.addf %623, %622 : vector<8x128xf32>
    %625 = arith.divf %623, %624 : vector<8x128xf32>
    %626 = vector.extract_strided_slice %619 {offsets = [0, 128], sizes = [8, 128], strides = [1, 1]} : vector<8x512xf32> to vector<8x128xf32>
    %627 = arith.negf %626 : vector<8x128xf32>
    %628 = math.exp %627 : vector<8x128xf32>
    %cst_114 = arith.constant 1.000000e+00 : f32
    %629 = vector.broadcast %cst_114 : f32 to vector<8x128xf32>
    %630 = arith.addf %629, %628 : vector<8x128xf32>
    %631 = arith.divf %629, %630 : vector<8x128xf32>
    %632 = vector.extract_strided_slice %619 {offsets = [0, 256], sizes = [8, 128], strides = [1, 1]} : vector<8x512xf32> to vector<8x128xf32>
    %633 = math.tanh %632 : vector<8x128xf32>
    %634 = vector.extract_strided_slice %619 {offsets = [0, 384], sizes = [8, 128], strides = [1, 1]} : vector<8x512xf32> to vector<8x128xf32>
    %635 = arith.negf %634 : vector<8x128xf32>
    %636 = math.exp %635 : vector<8x128xf32>
    %cst_115 = arith.constant 1.000000e+00 : f32
    %637 = vector.broadcast %cst_115 : f32 to vector<8x128xf32>
    %638 = arith.addf %637, %636 : vector<8x128xf32>
    %639 = arith.divf %637, %638 : vector<8x128xf32>
    %640 = arith.mulf %631, %556 : vector<8x128xf32>
    %641 = arith.mulf %625, %633 : vector<8x128xf32>
    %642 = arith.addf %640, %641 : vector<8x128xf32>
    %643 = math.tanh %642 : vector<8x128xf32>
    %644 = arith.mulf %639, %643 : vector<8x128xf32>
    %645 = tpu.concatenate %644, %586 in 1 : vector<8x128xf32>, vector<8x128xf32> -> vector<8x256xf32>
    %cst_116 = arith.constant dense<0.000000e+00> : vector<8x512xf32>
    %646 = tpu.matmul %645, %1, %cst_116 {dimension_numbers = #tpu.dot_dimension_numbers<[1], [0], [0], [1], [0, 0, 1, 1], [], []>} : vector<8x256xf32>, vector<256x512xf32>, vector<8x512xf32> -> vector<8x512xf32>
    %647 = arith.addf %646, %8 : vector<8x512xf32>
    %648 = vector.extract_strided_slice %647 {offsets = [0, 0], sizes = [8, 128], strides = [1, 1]} : vector<8x512xf32> to vector<8x128xf32>
    %649 = arith.negf %648 : vector<8x128xf32>
    %650 = math.exp %649 : vector<8x128xf32>
    %cst_117 = arith.constant 1.000000e+00 : f32
    %651 = vector.broadcast %cst_117 : f32 to vector<8x128xf32>
    %652 = arith.addf %651, %650 : vector<8x128xf32>
    %653 = arith.divf %651, %652 : vector<8x128xf32>
    %654 = vector.extract_strided_slice %647 {offsets = [0, 128], sizes = [8, 128], strides = [1, 1]} : vector<8x512xf32> to vector<8x128xf32>
    %655 = arith.negf %654 : vector<8x128xf32>
    %656 = math.exp %655 : vector<8x128xf32>
    %cst_118 = arith.constant 1.000000e+00 : f32
    %657 = vector.broadcast %cst_118 : f32 to vector<8x128xf32>
    %658 = arith.addf %657, %656 : vector<8x128xf32>
    %659 = arith.divf %657, %658 : vector<8x128xf32>
    %660 = vector.extract_strided_slice %647 {offsets = [0, 256], sizes = [8, 128], strides = [1, 1]} : vector<8x512xf32> to vector<8x128xf32>
    %661 = math.tanh %660 : vector<8x128xf32>
    %662 = vector.extract_strided_slice %647 {offsets = [0, 384], sizes = [8, 128], strides = [1, 1]} : vector<8x512xf32> to vector<8x128xf32>
    %663 = arith.negf %662 : vector<8x128xf32>
    %664 = math.exp %663 : vector<8x128xf32>
    %cst_119 = arith.constant 1.000000e+00 : f32
    %665 = vector.broadcast %cst_119 : f32 to vector<8x128xf32>
    %666 = arith.addf %665, %664 : vector<8x128xf32>
    %667 = arith.divf %665, %666 : vector<8x128xf32>
    %668 = arith.mulf %659, %584 : vector<8x128xf32>
    %669 = arith.mulf %653, %661 : vector<8x128xf32>
    %670 = arith.addf %668, %669 : vector<8x128xf32>
    %671 = math.tanh %670 : vector<8x128xf32>
    %672 = arith.mulf %667, %671 : vector<8x128xf32>
    %673 = tpu.concatenate %672, %614 in 1 : vector<8x128xf32>, vector<8x128xf32> -> vector<8x256xf32>
    %cst_120 = arith.constant dense<0.000000e+00> : vector<8x512xf32>
    %674 = tpu.matmul %673, %2, %cst_120 {dimension_numbers = #tpu.dot_dimension_numbers<[1], [0], [0], [1], [0, 0, 1, 1], [], []>} : vector<8x256xf32>, vector<256x512xf32>, vector<8x512xf32> -> vector<8x512xf32>
    %675 = arith.addf %674, %11 : vector<8x512xf32>
    %676 = vector.extract_strided_slice %675 {offsets = [0, 0], sizes = [8, 128], strides = [1, 1]} : vector<8x512xf32> to vector<8x128xf32>
    %677 = arith.negf %676 : vector<8x128xf32>
    %678 = math.exp %677 : vector<8x128xf32>
    %cst_121 = arith.constant 1.000000e+00 : f32
    %679 = vector.broadcast %cst_121 : f32 to vector<8x128xf32>
    %680 = arith.addf %679, %678 : vector<8x128xf32>
    %681 = arith.divf %679, %680 : vector<8x128xf32>
    %682 = vector.extract_strided_slice %675 {offsets = [0, 128], sizes = [8, 128], strides = [1, 1]} : vector<8x512xf32> to vector<8x128xf32>
    %683 = arith.negf %682 : vector<8x128xf32>
    %684 = math.exp %683 : vector<8x128xf32>
    %cst_122 = arith.constant 1.000000e+00 : f32
    %685 = vector.broadcast %cst_122 : f32 to vector<8x128xf32>
    %686 = arith.addf %685, %684 : vector<8x128xf32>
    %687 = arith.divf %685, %686 : vector<8x128xf32>
    %688 = vector.extract_strided_slice %675 {offsets = [0, 256], sizes = [8, 128], strides = [1, 1]} : vector<8x512xf32> to vector<8x128xf32>
    %689 = math.tanh %688 : vector<8x128xf32>
    %690 = vector.extract_strided_slice %675 {offsets = [0, 384], sizes = [8, 128], strides = [1, 1]} : vector<8x512xf32> to vector<8x128xf32>
    %691 = arith.negf %690 : vector<8x128xf32>
    %692 = math.exp %691 : vector<8x128xf32>
    %cst_123 = arith.constant 1.000000e+00 : f32
    %693 = vector.broadcast %cst_123 : f32 to vector<8x128xf32>
    %694 = arith.addf %693, %692 : vector<8x128xf32>
    %695 = arith.divf %693, %694 : vector<8x128xf32>
    %696 = arith.mulf %687, %612 : vector<8x128xf32>
    %697 = arith.mulf %681, %689 : vector<8x128xf32>
    %698 = arith.addf %696, %697 : vector<8x128xf32>
    %699 = math.tanh %698 : vector<8x128xf32>
    %700 = arith.mulf %695, %699 : vector<8x128xf32>
    %c4_124 = arith.constant 4 : index
    %c0_125 = arith.constant 0 : index
    %c0_126 = arith.constant 0 : index
    %701 = vector.load %arg0[%c4_124, %c0_125, %c0_126] : memref<8x8x128xf32, #tpu.memory_space<vmem>>, vector<1x8x128xf32>
    %702 = vector.shape_cast %701 : vector<1x8x128xf32> to vector<8x128xf32>
    %703 = tpu.concatenate %702, %644 in 1 : vector<8x128xf32>, vector<8x128xf32> -> vector<8x256xf32>
    %cst_127 = arith.constant dense<0.000000e+00> : vector<8x512xf32>
    %704 = tpu.matmul %703, %0, %cst_127 {dimension_numbers = #tpu.dot_dimension_numbers<[1], [0], [0], [1], [0, 0, 1, 1], [], []>} : vector<8x256xf32>, vector<256x512xf32>, vector<8x512xf32> -> vector<8x512xf32>
    %705 = arith.addf %704, %5 : vector<8x512xf32>
    %706 = vector.extract_strided_slice %705 {offsets = [0, 0], sizes = [8, 128], strides = [1, 1]} : vector<8x512xf32> to vector<8x128xf32>
    %707 = arith.negf %706 : vector<8x128xf32>
    %708 = math.exp %707 : vector<8x128xf32>
    %cst_128 = arith.constant 1.000000e+00 : f32
    %709 = vector.broadcast %cst_128 : f32 to vector<8x128xf32>
    %710 = arith.addf %709, %708 : vector<8x128xf32>
    %711 = arith.divf %709, %710 : vector<8x128xf32>
    %712 = vector.extract_strided_slice %705 {offsets = [0, 128], sizes = [8, 128], strides = [1, 1]} : vector<8x512xf32> to vector<8x128xf32>
    %713 = arith.negf %712 : vector<8x128xf32>
    %714 = math.exp %713 : vector<8x128xf32>
    %cst_129 = arith.constant 1.000000e+00 : f32
    %715 = vector.broadcast %cst_129 : f32 to vector<8x128xf32>
    %716 = arith.addf %715, %714 : vector<8x128xf32>
    %717 = arith.divf %715, %716 : vector<8x128xf32>
    %718 = vector.extract_strided_slice %705 {offsets = [0, 256], sizes = [8, 128], strides = [1, 1]} : vector<8x512xf32> to vector<8x128xf32>
    %719 = math.tanh %718 : vector<8x128xf32>
    %720 = vector.extract_strided_slice %705 {offsets = [0, 384], sizes = [8, 128], strides = [1, 1]} : vector<8x512xf32> to vector<8x128xf32>
    %721 = arith.negf %720 : vector<8x128xf32>
    %722 = math.exp %721 : vector<8x128xf32>
    %cst_130 = arith.constant 1.000000e+00 : f32
    %723 = vector.broadcast %cst_130 : f32 to vector<8x128xf32>
    %724 = arith.addf %723, %722 : vector<8x128xf32>
    %725 = arith.divf %723, %724 : vector<8x128xf32>
    %726 = arith.mulf %717, %642 : vector<8x128xf32>
    %727 = arith.mulf %711, %719 : vector<8x128xf32>
    %728 = arith.addf %726, %727 : vector<8x128xf32>
    %729 = math.tanh %728 : vector<8x128xf32>
    %730 = arith.mulf %725, %729 : vector<8x128xf32>
    %731 = tpu.concatenate %730, %672 in 1 : vector<8x128xf32>, vector<8x128xf32> -> vector<8x256xf32>
    %cst_131 = arith.constant dense<0.000000e+00> : vector<8x512xf32>
    %732 = tpu.matmul %731, %1, %cst_131 {dimension_numbers = #tpu.dot_dimension_numbers<[1], [0], [0], [1], [0, 0, 1, 1], [], []>} : vector<8x256xf32>, vector<256x512xf32>, vector<8x512xf32> -> vector<8x512xf32>
    %733 = arith.addf %732, %8 : vector<8x512xf32>
    %734 = vector.extract_strided_slice %733 {offsets = [0, 0], sizes = [8, 128], strides = [1, 1]} : vector<8x512xf32> to vector<8x128xf32>
    %735 = arith.negf %734 : vector<8x128xf32>
    %736 = math.exp %735 : vector<8x128xf32>
    %cst_132 = arith.constant 1.000000e+00 : f32
    %737 = vector.broadcast %cst_132 : f32 to vector<8x128xf32>
    %738 = arith.addf %737, %736 : vector<8x128xf32>
    %739 = arith.divf %737, %738 : vector<8x128xf32>
    %740 = vector.extract_strided_slice %733 {offsets = [0, 128], sizes = [8, 128], strides = [1, 1]} : vector<8x512xf32> to vector<8x128xf32>
    %741 = arith.negf %740 : vector<8x128xf32>
    %742 = math.exp %741 : vector<8x128xf32>
    %cst_133 = arith.constant 1.000000e+00 : f32
    %743 = vector.broadcast %cst_133 : f32 to vector<8x128xf32>
    %744 = arith.addf %743, %742 : vector<8x128xf32>
    %745 = arith.divf %743, %744 : vector<8x128xf32>
    %746 = vector.extract_strided_slice %733 {offsets = [0, 256], sizes = [8, 128], strides = [1, 1]} : vector<8x512xf32> to vector<8x128xf32>
    %747 = math.tanh %746 : vector<8x128xf32>
    %748 = vector.extract_strided_slice %733 {offsets = [0, 384], sizes = [8, 128], strides = [1, 1]} : vector<8x512xf32> to vector<8x128xf32>
    %749 = arith.negf %748 : vector<8x128xf32>
    %750 = math.exp %749 : vector<8x128xf32>
    %cst_134 = arith.constant 1.000000e+00 : f32
    %751 = vector.broadcast %cst_134 : f32 to vector<8x128xf32>
    %752 = arith.addf %751, %750 : vector<8x128xf32>
    %753 = arith.divf %751, %752 : vector<8x128xf32>
    %754 = arith.mulf %745, %670 : vector<8x128xf32>
    %755 = arith.mulf %739, %747 : vector<8x128xf32>
    %756 = arith.addf %754, %755 : vector<8x128xf32>
    %757 = math.tanh %756 : vector<8x128xf32>
    %758 = arith.mulf %753, %757 : vector<8x128xf32>
    %759 = tpu.concatenate %758, %700 in 1 : vector<8x128xf32>, vector<8x128xf32> -> vector<8x256xf32>
    %cst_135 = arith.constant dense<0.000000e+00> : vector<8x512xf32>
    %760 = tpu.matmul %759, %2, %cst_135 {dimension_numbers = #tpu.dot_dimension_numbers<[1], [0], [0], [1], [0, 0, 1, 1], [], []>} : vector<8x256xf32>, vector<256x512xf32>, vector<8x512xf32> -> vector<8x512xf32>
    %761 = arith.addf %760, %11 : vector<8x512xf32>
    %762 = vector.extract_strided_slice %761 {offsets = [0, 0], sizes = [8, 128], strides = [1, 1]} : vector<8x512xf32> to vector<8x128xf32>
    %763 = arith.negf %762 : vector<8x128xf32>
    %764 = math.exp %763 : vector<8x128xf32>
    %cst_136 = arith.constant 1.000000e+00 : f32
    %765 = vector.broadcast %cst_136 : f32 to vector<8x128xf32>
    %766 = arith.addf %765, %764 : vector<8x128xf32>
    %767 = arith.divf %765, %766 : vector<8x128xf32>
    %768 = vector.extract_strided_slice %761 {offsets = [0, 128], sizes = [8, 128], strides = [1, 1]} : vector<8x512xf32> to vector<8x128xf32>
    %769 = arith.negf %768 : vector<8x128xf32>
    %770 = math.exp %769 : vector<8x128xf32>
    %cst_137 = arith.constant 1.000000e+00 : f32
    %771 = vector.broadcast %cst_137 : f32 to vector<8x128xf32>
    %772 = arith.addf %771, %770 : vector<8x128xf32>
    %773 = arith.divf %771, %772 : vector<8x128xf32>
    %774 = vector.extract_strided_slice %761 {offsets = [0, 256], sizes = [8, 128], strides = [1, 1]} : vector<8x512xf32> to vector<8x128xf32>
    %775 = math.tanh %774 : vector<8x128xf32>
    %776 = vector.extract_strided_slice %761 {offsets = [0, 384], sizes = [8, 128], strides = [1, 1]} : vector<8x512xf32> to vector<8x128xf32>
    %777 = arith.negf %776 : vector<8x128xf32>
    %778 = math.exp %777 : vector<8x128xf32>
    %cst_138 = arith.constant 1.000000e+00 : f32
    %779 = vector.broadcast %cst_138 : f32 to vector<8x128xf32>
    %780 = arith.addf %779, %778 : vector<8x128xf32>
    %781 = arith.divf %779, %780 : vector<8x128xf32>
    %782 = arith.mulf %773, %698 : vector<8x128xf32>
    %783 = arith.mulf %767, %775 : vector<8x128xf32>
    %784 = arith.addf %782, %783 : vector<8x128xf32>
    %785 = math.tanh %784 : vector<8x128xf32>
    %786 = arith.mulf %781, %785 : vector<8x128xf32>
    %c0_139 = arith.constant 0 : index
    %c0_140 = arith.constant 0 : index
    %787 = vector.load %arg7[%c0_139, %c0_140] : memref<128x1xf32, #tpu.memory_space<vmem>>, vector<128x1xf32>
    %cst_141 = arith.constant dense<0.000000e+00> : vector<8x1xf32>
    %788 = tpu.matmul %786, %787, %cst_141 {dimension_numbers = #tpu.dot_dimension_numbers<[1], [0], [0], [1], [0, 0, 1, 1], [], []>} : vector<8x128xf32>, vector<128x1xf32>, vector<8x1xf32> -> vector<8x1xf32>
    %c0_142 = arith.constant 0 : index
    %c0_143 = arith.constant 0 : index
    %789 = vector.load %arg8[%c0_142, %c0_143] : memref<1x1xf32, #tpu.memory_space<vmem>>, vector<1x1xf32>
    %790 = vector.broadcast %789 : vector<1x1xf32> to vector<8x1xf32>
    %791 = arith.addf %788, %790 : vector<8x1xf32>
    %c0_144 = arith.constant 0 : index
    %c0_145 = arith.constant 0 : index
    %792 = vector.load %arg9[%c0_144, %c0_145] : memref<8x1xf32, #tpu.memory_space<vmem>>, vector<8x1xf32>
    tpu.vector_store %arg9[%c0_144, %c0_145], %791 {strides = array<i32>} : memref<8x1xf32, #tpu.memory_space<vmem>>, vector<8x1xf32>,
    return
  }
}

</mosaic_0001>

<llo_original>
// kernel: sequence_forward.1
$region0: #{sequence_forward.1}
  #allocation0 [shape = 'u32[]', space=smem, size = 0x4, offset = 0x4, fixed_abs, tag = 'smem constant byte address 0x4 - core index']
  #allocation1 [shape = 'u32[144,128]{1,0:T(1,128)}', space=vmem, size = 0x12000, scoped, tag = 'internal scratch']
  #allocation2 [shape = 'f32[1,1]{1,0:T(1,128)S(1)}', space=vmem, size = 0x200, scoped, tag = 'scoped memory for sequence_forward.1']
  %s0 = inlined_call_operand.vmem [shape: f32[8,8,128], index: 0, kind: input, shape index: {}]
  %s1 = inlined_call_operand.hbm [shape: f32[256,512], index: 1, kind: input, shape index: {}]
  %s2 = inlined_call_operand.vmem [shape: f32[1,512], index: 2, kind: input, shape index: {}]
  %s3 = inlined_call_operand.hbm [shape: f32[256,512], index: 3, kind: input, shape index: {}]
  %s4 = inlined_call_operand.vmem [shape: f32[1,512], index: 4, kind: input, shape index: {}]
  %s5 = inlined_call_operand.hbm [shape: f32[256,512], index: 5, kind: input, shape index: {}]
  %s6 = inlined_call_operand.vmem [shape: f32[1,512], index: 6, kind: input, shape index: {}]
  %s7 = inlined_call_operand.vmem [shape: f32[128,1], index: 7, kind: input, shape index: {}]
  %s8 = inlined_call_operand.<no memory space> [shape: f32[1,1], index: 8, kind: input, shape index: {}]
  %s9 = inlined_call_operand.vmem [shape: f32[8,1], index: 9, kind: output, shape index: {}]
  %s10 = sld [smem:[#allocation0]]
  $region58: #{sequence_forward.1} parent=0
    _
  %s12 = ssub.s32 1, %s10
  %s13 = scalar_select 0, %s12, %s10
  %v14 = vstv %s8
  %15 = vst [vmem:[#allocation2] sm:$0x1] %v14
  $region1: #{sequence_forward.1} parent=0
    #allocation3 [shape = 'u8[524288]{0}', space=vmem, size = 0x80000, scoped, tag = 'input window, operand 1, single buffered']
    #allocation4 [shape = 's32[1]{0}', space=sflag, size = 0x4, scoped, tag = 'scoped memory for sequence_forward.1']
    #allocation5 [shape = 'u8[524288]{0}', space=vmem, size = 0x80000, scoped, tag = 'input window, operand 3, single buffered']
    #allocation6 [shape = 's32[1]{0}', space=sflag, size = 0x4, scoped, tag = 'scoped memory for sequence_forward.1']
    #allocation7 [shape = 'u8[524288]{0}', space=vmem, size = 0x80000, scoped, tag = 'input window, operand 5, single buffered']
    %16 = vsyncpa [#allocation4], 0
    %17 = vsyncpa [#allocation6], 0
    // Predicated region
    $region2: #{sequence_forward.1} parent=1 // pred_check
      _
    $region3: #{sequence_forward.1} parent=1 // pred_check_branch
      %19 = sbr.rel (0) target = $region5
    $region4: #{sequence_forward.1} parent=1 // pred_region
      _
    $region5: #{sequence_forward.1} parent=1 // pred_fallthru
      _
    // Predicated region
    $region6: #{sequence_forward.1} parent=1 // pred_check
      _
    $region7: #{sequence_forward.1} parent=1 // pred_check_branch
      %21 = sbr.rel (0) target = $region9
    $region8: #{sequence_forward.1} parent=1 // pred_region
      %s23 = ssub.s32 16384, 16384
      %24 = vsyncadd [#allocation4], %s23
      %s25 = sshll.u32 [#allocation3], 4
      %s26 = int_to_ptr.vmem [resolvable:$true] %s25
      %31 = dma.hbm_to_vmem [thread:$0]  %s1, 16384, %s26, [#allocation4], 512, 512, 32
    $region9: #{sequence_forward.1} parent=1 // pred_fallthru
      _
    // Predicated region
    $region10: #{sequence_forward.1} parent=1 // pred_check
      _
    $region11: #{sequence_forward.1} parent=1 // pred_check_branch
      %33 = sbr.rel (0) target = $region13
    $region12: #{sequence_forward.1} parent=1 // pred_region
      _
    $region13: #{sequence_forward.1} parent=1 // pred_fallthru
      _
    // Predicated region
    $region14: #{sequence_forward.1} parent=1 // pred_check
      _
    $region15: #{sequence_forward.1} parent=1 // pred_check_branch
      %35 = sbr.rel (0) target = $region17
    $region16: #{sequence_forward.1} parent=1 // pred_region
      %s37 = ssub.s32 16384, 16384
      %38 = vsyncadd [#allocation6], %s37
      %s39 = sshll.u32 [#allocation5], 4
      %s40 = int_to_ptr.vmem [resolvable:$true] %s39
      %45 = dma.hbm_to_vmem [thread:$0]  %s3, 16384, %s40, [#allocation6], 512, 512, 32
    $region17: #{sequence_forward.1} parent=1 // pred_fallthru
      _
    // Predicated region
    $region18: #{sequence_forward.1} parent=1 // pred_check
      _
    $region19: #{sequence_forward.1} parent=1 // pred_check_branch
      %47 = sbr.rel (0) target = $region21
    $region20: #{sequence_forward.1} parent=1 // pred_region
      _
    $region21: #{sequence_forward.1} parent=1 // pred_fallthru
      _
    // Predicated region
    $region22: #{sequence_forward.1} parent=1 // pred_check
      _
    $region23: #{sequence_forward.1} parent=1 // pred_check_branch
      %49 = sbr.rel (0) target = $region25
    $region24: #{sequence_forward.1} parent=1 // pred_region
      %s51 = ssub.s32 16384, 16384
      %52 = vsyncadd [#allocation6], %s51
      %s53 = sshll.u32 [#allocation7], 4
      %s54 = int_to_ptr.vmem [resolvable:$true] %s53
      %59 = dma.hbm_to_vmem [thread:$0]  %s5, 16384, %s54, [#allocation6], 512, 512, 32
    $region25: #{sequence_forward.1} parent=1 // pred_fallthru
      _
    // Predicated region
    $region26: #{sequence_forward.1} parent=1 // pred_check
      _
    $region27: #{sequence_forward.1} parent=1 // pred_check_branch
      %61 = sbr.rel (0) target = $region29
    $region28: #{sequence_forward.1} parent=1 // pred_region
      _
    $region29: #{sequence_forward.1} parent=1 // pred_fallthru
      _
    // Predicated region
    $region30: #{sequence_forward.1} parent=1 // pred_check
      _
    $region31: #{sequence_forward.1} parent=1 // pred_check_branch
      %63 = sbr.rel (0) target = $region33
    $region32: #{sequence_forward.1} parent=1 // pred_region
      _
    $region33: #{sequence_forward.1} parent=1 // pred_fallthru
      _
    // Predicated region
    $region34: #{sequence_forward.1} parent=1 // pred_check
      _
    $region35: #{sequence_forward.1} parent=1 // pred_check_branch
      %65 = sbr.rel (0) target = $region37
    $region36: #{sequence_forward.1} parent=1 // pred_region
      _
    $region37: #{sequence_forward.1} parent=1 // pred_fallthru
      _
    // Predicated region
    $region38: #{sequence_forward.1} parent=1 // pred_check
      _
    $region39: #{sequence_forward.1} parent=1 // pred_check_branch
      %67 = sbr.rel (0) target = $region41
    $region40: #{sequence_forward.1} parent=1 // pred_region
      %68 = dma.done [#allocation4], 16384
    $region41: #{sequence_forward.1} parent=1 // pred_fallthru
      _
    // Predicated region
    $region42: #{sequence_forward.1} parent=1 // pred_check
      _
    $region43: #{sequence_forward.1} parent=1 // pred_check_branch
      %70 = sbr.rel (0) target = $region45
    $region44: #{sequence_forward.1} parent=1 // pred_region
      %71 = dma.done [#allocation6], 16384
    $region45: #{sequence_forward.1} parent=1 // pred_fallthru
      _
    // Predicated region
    $region46: #{sequence_forward.1} parent=1 // pred_check
      _
    $region47: #{sequence_forward.1} parent=1 // pred_check_branch
      %73 = sbr.rel (0) target = $region49
    $region48: #{sequence_forward.1} parent=1 // pred_region
      %74 = dma.done [#allocation6], 16384
    $region49: #{sequence_forward.1} parent=1 // pred_fallthru
      _
    %v75 = vld [vmem:[#allocation3] sm:$0xff]
    %v76 = vld [vmem:[#allocation3 + $0x8] sm:$0xff]
    %v77 = vld [vmem:[#allocation3 + $0x10] sm:$0xff]
    %v78 = vld [vmem:[#allocation3 + $0x18] sm:$0xff]
    %v79 = vld [vmem:[#allocation3 + $0x20] sm:$0xff]
    %v80 = vld [vmem:[#allocation3 + $0x28] sm:$0xff]
    %v81 = vld [vmem:[#allocation3 + $0x30] sm:$0xff]
    %v82 = vld [vmem:[#allocation3 + $0x38] sm:$0xff]
    %v83 = vld [vmem:[#allocation3 + $0x40] sm:$0xff]
    %v84 = vld [vmem:[#allocation3 + $0x48] sm:$0xff]
    %v85 = vld [vmem:[#allocation3 + $0x50] sm:$0xff]
    %v86 = vld [vmem:[#allocation3 + $0x58] sm:$0xff]
    %v87 = vld [vmem:[#allocation3 + $0x60] sm:$0xff]
    %v88 = vld [vmem:[#allocation3 + $0x68] sm:$0xff]
    %v89 = vld [vmem:[#allocation3 + $0x70] sm:$0xff]
    %v90 = vld [vmem:[#allocation3 + $0x78] sm:$0xff]
    %v91 = vld [vmem:[#allocation3 + $0x80] sm:$0xff]
    %v92 = vld [vmem:[#allocation3 + $0x88] sm:$0xff]
    %v93 = vld [vmem:[#allocation3 + $0x90] sm:$0xff]
    %v94 = vld [vmem:[#allocation3 + $0x98] sm:$0xff]
    %v95 = vld [vmem:[#allocation3 + $0xa0] sm:$0xff]
    %v96 = vld [vmem:[#allocation3 + $0xa8] sm:$0xff]
    %v97 = vld [vmem:[#allocation3 + $0xb0] sm:$0xff]
    %v98 = vld [vmem:[#allocation3 + $0xb8] sm:$0xff]
    %v99 = vld [vmem:[#allocation3 + $0xc0] sm:$0xff]
    %v100 = vld [vmem:[#allocation3 + $0xc8] sm:$0xff]
    %v101 = vld [vmem:[#allocation3 + $0xd0] sm:$0xff]
    %v102 = vld [vmem:[#allocation3 + $0xd8] sm:$0xff]
    %v103 = vld [vmem:[#allocation3 + $0xe0] sm:$0xff]
    %v104 = vld [vmem:[#allocation3 + $0xe8] sm:$0xff]
    %v105 = vld [vmem:[#allocation3 + $0xf0] sm:$0xff]
    %v106 = vld [vmem:[#allocation3 + $0xf8] sm:$0xff]
    %v107 = vld [vmem:[#allocation3 + $0x100] sm:$0xff]
    %v108 = vld [vmem:[#allocation3 + $0x108] sm:$0xff]
    %v109 = vld [vmem:[#allocation3 + $0x110] sm:$0xff]
    %v110 = vld [vmem:[#allocation3 + $0x118] sm:$0xff]
    %v111 = vld [vmem:[#allocation3 + $0x120] sm:$0xff]
    %v112 = vld [vmem:[#allocation3 + $0x128] sm:$0xff]
    %v113 = vld [vmem:[#allocation3 + $0x130] sm:$0xff]
    %v114 = vld [vmem:[#allocation3 + $0x138] sm:$0xff]
    %v115 = vld [vmem:[#allocation3 + $0x140] sm:$0xff]
    %v116 = vld [vmem:[#allocation3 + $0x148] sm:$0xff]
    %v117 = vld [vmem:[#allocation3 + $0x150] sm:$0xff]
    %v118 = vld [vmem:[#allocation3 + $0x158] sm:$0xff]
    %v119 = vld [vmem:[#allocation3 + $0x160] sm:$0xff]
    %v120 = vld [vmem:[#allocation3 + $0x168] sm:$0xff]
    %v121 = vld [vmem:[#allocation3 + $0x170] sm:$0xff]
    %v122 = vld [vmem:[#allocation3 + $0x178] sm:$0xff]
    %v123 = vld [vmem:[#allocation3 + $0x180] sm:$0xff]
    %v124 = vld [vmem:[#allocation3 + $0x188] sm:$0xff]
    %v125 = vld [vmem:[#allocation3 + $0x190] sm:$0xff]
    %v126 = vld [vmem:[#allocation3 + $0x198] sm:$0xff]
    %v127 = vld [vmem:[#allocation3 + $0x1a0] sm:$0xff]
    %v128 = vld [vmem:[#allocation3 + $0x1a8] sm:$0xff]
    %v129 = vld [vmem:[#allocation3 + $0x1b0] sm:$0xff]
    %v130 = vld [vmem:[#allocation3 + $0x1b8] sm:$0xff]
    %v131 = vld [vmem:[#allocation3 + $0x1c0] sm:$0xff]
    %v132 = vld [vmem:[#allocation3 + $0x1c8] sm:$0xff]
    %v133 = vld [vmem:[#allocation3 + $0x1d0] sm:$0xff]
    %v134 = vld [vmem:[#allocation3 + $0x1d8] sm:$0xff]
    %v135 = vld [vmem:[#allocation3 + $0x1e0] sm:$0xff]
    %v136 = vld [vmem:[#allocation3 + $0x1e8] sm:$0xff]
    %v137 = vld [vmem:[#allocation3 + $0x1f0] sm:$0xff]
    %v138 = vld [vmem:[#allocation3 + $0x1f8] sm:$0xff]
    %v139 = vld [vmem:[#allocation3 + $0x200] sm:$0xff]
    %v140 = vld [vmem:[#allocation3 + $0x208] sm:$0xff]
    %v141 = vld [vmem:[#allocation3 + $0x210] sm:$0xff]
    %v142 = vld [vmem:[#allocation3 + $0x218] sm:$0xff]
    %v143 = vld [vmem:[#allocation3 + $0x220] sm:$0xff]
    %v144 = vld [vmem:[#allocation3 + $0x228] sm:$0xff]
    %v145 = vld [vmem:[#allocation3 + $0x230] sm:$0xff]
    %v146 = vld [vmem:[#allocation3 + $0x238] sm:$0xff]
    %v147 = vld [vmem:[#allocation3 + $0x240] sm:$0xff]
    %v148 = vld [vmem:[#allocation3 + $0x248] sm:$0xff]
    %v149 = vld [vmem:[#allocation3 + $0x250] sm:$0xff]
    %v150 = vld [vmem:[#allocation3 + $0x258] sm:$0xff]
    %v151 = vld [vmem:[#allocation3 + $0x260] sm:$0xff]
    %v152 = vld [vmem:[#allocation3 + $0x268] sm:$0xff]
    %v153 = vld [vmem:[#allocation3 + $0x270] sm:$0xff]
    %v154 = vld [vmem:[#allocation3 + $0x278] sm:$0xff]
    %v155 = vld [vmem:[#allocation3 + $0x280] sm:$0xff]
    %v156 = vld [vmem:[#allocation3 + $0x288] sm:$0xff]
    %v157 = vld [vmem:[#allocation3 + $0x290] sm:$0xff]
    %v158 = vld [vmem:[#allocation3 + $0x298] sm:$0xff]
    %v159 = vld [vmem:[#allocation3 + $0x2a0] sm:$0xff]
    %v160 = vld [vmem:[#allocation3 + $0x2a8] sm:$0xff]
    %v161 = vld [vmem:[#allocation3 + $0x2b0] sm:$0xff]
    %v162 = vld [vmem:[#allocation3 + $0x2b8] sm:$0xff]
    %v163 = vld [vmem:[#allocation3 + $0x2c0] sm:$0xff]
    %v164 = vld [vmem:[#allocation3 + $0x2c8] sm:$0xff]
    %v165 = vld [vmem:[#allocation3 + $0x2d0] sm:$0xff]
    %v166 = vld [vmem:[#allocation3 + $0x2d8] sm:$0xff]
    %v167 = vld [vmem:[#allocation3 + $0x2e0] sm:$0xff]
    %v168 = vld [vmem:[#allocation3 + $0x2e8] sm:$0xff]
    %v169 = vld [vmem:[#allocation3 + $0x2f0] sm:$0xff]
    %v170 = vld [vmem:[#allocation3 + $0x2f8] sm:$0xff]
    %v171 = vld [vmem:[#allocation3 + $0x300] sm:$0xff]
    %v172 = vld [vmem:[#allocation3 + $0x308] sm:$0xff]
    %v173 = vld [vmem:[#allocation3 + $0x310] sm:$0xff]
    %v174 = vld [vmem:[#allocation3 + $0x318] sm:$0xff]
    %v175 = vld [vmem:[#allocation3 + $0x320] sm:$0xff]
    %v176 = vld [vmem:[#allocation3 + $0x328] sm:$0xff]
    %v177 = vld [vmem:[#allocation3 + $0x330] sm:$0xff]
    %v178 = vld [vmem:[#allocation3 + $0x338] sm:$0xff]
    %v179 = vld [vmem:[#allocation3 + $0x340] sm:$0xff]
    %v180 = vld [vmem:[#allocation3 + $0x348] sm:$0xff]
    %v181 = vld [vmem:[#allocation3 + $0x350] sm:$0xff]
    %v182 = vld [vmem:[#allocation3 + $0x358] sm:$0xff]
    %v183 = vld [vmem:[#allocation3 + $0x360] sm:$0xff]
    %v184 = vld [vmem:[#allocation3 + $0x368] sm:$0xff]
    %v185 = vld [vmem:[#allocation3 + $0x370] sm:$0xff]
    %v186 = vld [vmem:[#allocation3 + $0x378] sm:$0xff]
    %v187 = vld [vmem:[#allocation3 + $0x380] sm:$0xff]
    %v188 = vld [vmem:[#allocation3 + $0x388] sm:$0xff]
    %v189 = vld [vmem:[#allocation3 + $0x390] sm:$0xff]
    %v190 = vld [vmem:[#allocation3 + $0x398] sm:$0xff]
    %v191 = vld [vmem:[#allocation3 + $0x3a0] sm:$0xff]
    %v192 = vld [vmem:[#allocation3 + $0x3a8] sm:$0xff]
    %v193 = vld [vmem:[#allocation3 + $0x3b0] sm:$0xff]
    %v194 = vld [vmem:[#allocation3 + $0x3b8] sm:$0xff]
    %v195 = vld [vmem:[#allocation3 + $0x3c0] sm:$0xff]
    %v196 = vld [vmem:[#allocation3 + $0x3c8] sm:$0xff]
    %v197 = vld [vmem:[#allocation3 + $0x3d0] sm:$0xff]
    %v198 = vld [vmem:[#allocation3 + $0x3d8] sm:$0xff]
    %v199 = vld [vmem:[#allocation3 + $0x3e0] sm:$0xff]
    %v200 = vld [vmem:[#allocation3 + $0x3e8] sm:$0xff]
    %v201 = vld [vmem:[#allocation3 + $0x3f0] sm:$0xff]
    %v202 = vld [vmem:[#allocation3 + $0x3f8] sm:$0xff]
    %v203 = vld [vmem:[#allocation5] sm:$0xff]
    %v204 = vld [vmem:[#allocation5 + $0x8] sm:$0xff]
    %v205 = vld [vmem:[#allocation5 + $0x10] sm:$0xff]
    %v206 = vld [vmem:[#allocation5 + $0x18] sm:$0xff]
    %v207 = vld [vmem:[#allocation5 + $0x20] sm:$0xff]
    %v208 = vld [vmem:[#allocation5 + $0x28] sm:$0xff]
    %v209 = vld [vmem:[#allocation5 + $0x30] sm:$0xff]
    %v210 = vld [vmem:[#allocation5 + $0x38] sm:$0xff]
    %v211 = vld [vmem:[#allocation5 + $0x40] sm:$0xff]
    %v212 = vld [vmem:[#allocation5 + $0x48] sm:$0xff]
    %v213 = vld [vmem:[#allocation5 + $0x50] sm:$0xff]
    %v214 = vld [vmem:[#allocation5 + $0x58] sm:$0xff]
    %v215 = vld [vmem:[#allocation5 + $0x60] sm:$0xff]
    %v216 = vld [vmem:[#allocation5 + $0x68] sm:$0xff]
    %v217 = vld [vmem:[#allocation5 + $0x70] sm:$0xff]
    %v218 = vld [vmem:[#allocation5 + $0x78] sm:$0xff]
    %v219 = vld [vmem:[#allocation5 + $0x80] sm:$0xff]
    %v220 = vld [vmem:[#allocation5 + $0x88] sm:$0xff]
    %v221 = vld [vmem:[#allocation5 + $0x90] sm:$0xff]
    %v222 = vld [vmem:[#allocation5 + $0x98] sm:$0xff]
    %v223 = vld [vmem:[#allocation5 + $0xa0] sm:$0xff]
    %v224 = vld [vmem:[#allocation5 + $0xa8] sm:$0xff]
    %v225 = vld [vmem:[#allocation5 + $0xb0] sm:$0xff]
    %v226 = vld [vmem:[#allocation5 + $0xb8] sm:$0xff]
    %v227 = vld [vmem:[#allocation5 + $0xc0] sm:$0xff]
    %v228 = vld [vmem:[#allocation5 + $0xc8] sm:$0xff]
    %v229 = vld [vmem:[#allocation5 + $0xd0] sm:$0xff]
    %v230 = vld [vmem:[#allocation5 + $0xd8] sm:$0xff]
    %v231 = vld [vmem:[#allocation5 + $0xe0] sm:$0xff]
    %v232 = vld [vmem:[#allocation5 + $0xe8] sm:$0xff]
    %v233 = vld [vmem:[#allocation5 + $0xf0] sm:$0xff]
    %v234 = vld [vmem:[#allocation5 + $0xf8] sm:$0xff]
    %v235 = vld [vmem:[#allocation5 + $0x100] sm:$0xff]
    %v236 = vld [vmem:[#allocation5 + $0x108] sm:$0xff]
    %v237 = vld [vmem:[#allocation5 + $0x110] sm:$0xff]
    %v238 = vld [vmem:[#allocation5 + $0x118] sm:$0xff]
    %v239 = vld [vmem:[#allocation5 + $0x120] sm:$0xff]
    %v240 = vld [vmem:[#allocation5 + $0x128] sm:$0xff]
    %v241 = vld [vmem:[#allocation5 + $0x130] sm:$0xff]
    %v242 = vld [vmem:[#allocation5 + $0x138] sm:$0xff]
    %v243 = vld [vmem:[#allocation5 + $0x140] sm:$0xff]
    %v244 = vld [vmem:[#allocation5 + $0x148] sm:$0xff]
    %v245 = vld [vmem:[#allocation5 + $0x150] sm:$0xff]
    %v246 = vld [vmem:[#allocation5 + $0x158] sm:$0xff]
    %v247 = vld [vmem:[#allocation5 + $0x160] sm:$0xff]
    %v248 = vld [vmem:[#allocation5 + $0x168] sm:$0xff]
    %v249 = vld [vmem:[#allocation5 + $0x170] sm:$0xff]
    %v250 = vld [vmem:[#allocation5 + $0x178] sm:$0xff]
    %v251 = vld [vmem:[#allocation5 + $0x180] sm:$0xff]
    %v252 = vld [vmem:[#allocation5 + $0x188] sm:$0xff]
    %v253 = vld [vmem:[#allocation5 + $0x190] sm:$0xff]
    %v254 = vld [vmem:[#allocation5 + $0x198] sm:$0xff]
    %v255 = vld [vmem:[#allocation5 + $0x1a0] sm:$0xff]
    %v256 = vld [vmem:[#allocation5 + $0x1a8] sm:$0xff]
    %v257 = vld [vmem:[#allocation5 + $0x1b0] sm:$0xff]
    %v258 = vld [vmem:[#allocation5 + $0x1b8] sm:$0xff]
    %v259 = vld [vmem:[#allocation5 + $0x1c0] sm:$0xff]
    %v260 = vld [vmem:[#allocation5 + $0x1c8] sm:$0xff]
    %v261 = vld [vmem:[#allocation5 + $0x1d0] sm:$0xff]
    %v262 = vld [vmem:[#allocation5 + $0x1d8] sm:$0xff]
    %v263 = vld [vmem:[#allocation5 + $0x1e0] sm:$0xff]
    %v264 = vld [vmem:[#allocation5 + $0x1e8] sm:$0xff]
    %v265 = vld [vmem:[#allocation5 + $0x1f0] sm:$0xff]
    %v266 = vld [vmem:[#allocation5 + $0x1f8] sm:$0xff]
    %v267 = vld [vmem:[#allocation5 + $0x200] sm:$0xff]
    %v268 = vld [vmem:[#allocation5 + $0x208] sm:$0xff]
    %v269 = vld [vmem:[#allocation5 + $0x210] sm:$0xff]
    %v270 = vld [vmem:[#allocation5 + $0x218] sm:$0xff]
    %v271 = vld [vmem:[#allocation5 + $0x220] sm:$0xff]
    %v272 = vld [vmem:[#allocation5 + $0x228] sm:$0xff]
    %v273 = vld [vmem:[#allocation5 + $0x230] sm:$0xff]
    %v274 = vld [vmem:[#allocation5 + $0x238] sm:$0xff]
    %v275 = vld [vmem:[#allocation5 + $0x240] sm:$0xff]
    %v276 = vld [vmem:[#allocation5 + $0x248] sm:$0xff]
    %v277 = vld [vmem:[#allocation5 + $0x250] sm:$0xff]
    %v278 = vld [vmem:[#allocation5 + $0x258] sm:$0xff]
    %v279 = vld [vmem:[#allocation5 + $0x260] sm:$0xff]
    %v280 = vld [vmem:[#allocation5 + $0x268] sm:$0xff]
    %v281 = vld [vmem:[#allocation5 + $0x270] sm:$0xff]
    %v282 = vld [vmem:[#allocation5 + $0x278] sm:$0xff]
    %v283 = vld [vmem:[#allocation5 + $0x280] sm:$0xff]
    %v284 = vld [vmem:[#allocation5 + $0x288] sm:$0xff]
    %v285 = vld [vmem:[#allocation5 + $0x290] sm:$0xff]
    %v286 = vld [vmem:[#allocation5 + $0x298] sm:$0xff]
    %v287 = vld [vmem:[#allocation5 + $0x2a0] sm:$0xff]
    %v288 = vld [vmem:[#allocation5 + $0x2a8] sm:$0xff]
    %v289 = vld [vmem:[#allocation5 + $0x2b0] sm:$0xff]
    %v290 = vld [vmem:[#allocation5 + $0x2b8] sm:$0xff]
    %v291 = vld [vmem:[#allocation5 + $0x2c0] sm:$0xff]
    %v292 = vld [vmem:[#allocation5 + $0x2c8] sm:$0xff]
    %v293 = vld [vmem:[#allocation5 + $0x2d0] sm:$0xff]
    %v294 = vld [vmem:[#allocation5 + $0x2d8] sm:$0xff]
    %v295 = vld [vmem:[#allocation5 + $0x2e0] sm:$0xff]
    %v296 = vld [vmem:[#allocation5 + $0x2e8] sm:$0xff]
    %v297 = vld [vmem:[#allocation5 + $0x2f0] sm:$0xff]
    %v298 = vld [vmem:[#allocation5 + $0x2f8] sm:$0xff]
    %v299 = vld [vmem:[#allocation5 + $0x300] sm:$0xff]
    %v300 = vld [vmem:[#allocation5 + $0x308] sm:$0xff]
    %v301 = vld [vmem:[#allocation5 + $0x310] sm:$0xff]
    %v302 = vld [vmem:[#allocation5 + $0x318] sm:$0xff]
    %v303 = vld [vmem:[#allocation5 + $0x320] sm:$0xff]
    %v304 = vld [vmem:[#allocation5 + $0x328] sm:$0xff]
    %v305 = vld [vmem:[#allocation5 + $0x330] sm:$0xff]
    %v306 = vld [vmem:[#allocation5 + $0x338] sm:$0xff]
    %v307 = vld [vmem:[#allocation5 + $0x340] sm:$0xff]
    %v308 = vld [vmem:[#allocation5 + $0x348] sm:$0xff]
    %v309 = vld [vmem:[#allocation5 + $0x350] sm:$0xff]
    %v310 = vld [vmem:[#allocation5 + $0x358] sm:$0xff]
    %v311 = vld [vmem:[#allocation5 + $0x360] sm:$0xff]
    %v312 = vld [vmem:[#allocation5 + $0x368] sm:$0xff]
    %v313 = vld [vmem:[#allocation5 + $0x370] sm:$0xff]
    %v314 = vld [vmem:[#allocation5 + $0x378] sm:$0xff]
    %v315 = vld [vmem:[#allocation5 + $0x380] sm:$0xff]
    %v316 = vld [vmem:[#allocation5 + $0x388] sm:$0xff]
    %v317 = vld [vmem:[#allocation5 + $0x390] sm:$0xff]
    %v318 = vld [vmem:[#allocation5 + $0x398] sm:$0xff]
    %v319 = vld [vmem:[#allocation5 + $0x3a0] sm:$0xff]
    %v320 = vld [vmem:[#allocation5 + $0x3a8] sm:$0xff]
    %v321 = vld [vmem:[#allocation5 + $0x3b0] sm:$0xff]
    %v322 = vld [vmem:[#allocation5 + $0x3b8] sm:$0xff]
    %v323 = vld [vmem:[#allocation5 + $0x3c0] sm:$0xff]
    %v324 = vld [vmem:[#allocation5 + $0x3c8] sm:$0xff]
    %v325 = vld [vmem:[#allocation5 + $0x3d0] sm:$0xff]
    %v326 = vld [vmem:[#allocation5 + $0x3d8] sm:$0xff]
    %v327 = vld [vmem:[#allocation5 + $0x3e0] sm:$0xff]
    %v328 = vld [vmem:[#allocation5 + $0x3e8] sm:$0xff]
    %v329 = vld [vmem:[#allocation5 + $0x3f0] sm:$0xff]
    %v330 = vld [vmem:[#allocation5 + $0x3f8] sm:$0xff]
    %v331 = vld [vmem:[#allocation7] sm:$0xff]
    %v332 = vld [vmem:[#allocation7 + $0x8] sm:$0xff]
    %v333 = vld [vmem:[#allocation7 + $0x10] sm:$0xff]
    %v334 = vld [vmem:[#allocation7 + $0x18] sm:$0xff]
    %v335 = vld [vmem:[#allocation7 + $0x20] sm:$0xff]
    %v336 = vld [vmem:[#allocation7 + $0x28] sm:$0xff]
    %v337 = vld [vmem:[#allocation7 + $0x30] sm:$0xff]
    %v338 = vld [vmem:[#allocation7 + $0x38] sm:$0xff]
    %v339 = vld [vmem:[#allocation7 + $0x40] sm:$0xff]
    %v340 = vld [vmem:[#allocation7 + $0x48] sm:$0xff]
    %v341 = vld [vmem:[#allocation7 + $0x50] sm:$0xff]
    %v342 = vld [vmem:[#allocation7 + $0x58] sm:$0xff]
    %v343 = vld [vmem:[#allocation7 + $0x60] sm:$0xff]
    %v344 = vld [vmem:[#allocation7 + $0x68] sm:$0xff]
    %v345 = vld [vmem:[#allocation7 + $0x70] sm:$0xff]
    %v346 = vld [vmem:[#allocation7 + $0x78] sm:$0xff]
    %v347 = vld [vmem:[#allocation7 + $0x80] sm:$0xff]
    %v348 = vld [vmem:[#allocation7 + $0x88] sm:$0xff]
    %v349 = vld [vmem:[#allocation7 + $0x90] sm:$0xff]
    %v350 = vld [vmem:[#allocation7 + $0x98] sm:$0xff]
    %v351 = vld [vmem:[#allocation7 + $0xa0] sm:$0xff]
    %v352 = vld [vmem:[#allocation7 + $0xa8] sm:$0xff]
    %v353 = vld [vmem:[#allocation7 + $0xb0] sm:$0xff]
    %v354 = vld [vmem:[#allocation7 + $0xb8] sm:$0xff]
    %v355 = vld [vmem:[#allocation7 + $0xc0] sm:$0xff]
    %v356 = vld [vmem:[#allocation7 + $0xc8] sm:$0xff]
    %v357 = vld [vmem:[#allocation7 + $0xd0] sm:$0xff]
    %v358 = vld [vmem:[#allocation7 + $0xd8] sm:$0xff]
    %v359 = vld [vmem:[#allocation7 + $0xe0] sm:$0xff]
    %v360 = vld [vmem:[#allocation7 + $0xe8] sm:$0xff]
    %v361 = vld [vmem:[#allocation7 + $0xf0] sm:$0xff]
    %v362 = vld [vmem:[#allocation7 + $0xf8] sm:$0xff]
    %v363 = vld [vmem:[#allocation7 + $0x100] sm:$0xff]
    %v364 = vld [vmem:[#allocation7 + $0x108] sm:$0xff]
    %v365 = vld [vmem:[#allocation7 + $0x110] sm:$0xff]
    %v366 = vld [vmem:[#allocation7 + $0x118] sm:$0xff]
    %v367 = vld [vmem:[#allocation7 + $0x120] sm:$0xff]
    %v368 = vld [vmem:[#allocation7 + $0x128] sm:$0xff]
    %v369 = vld [vmem:[#allocation7 + $0x130] sm:$0xff]
    %v370 = vld [vmem:[#allocation7 + $0x138] sm:$0xff]
    %v371 = vld [vmem:[#allocation7 + $0x140] sm:$0xff]
    %v372 = vld [vmem:[#allocation7 + $0x148] sm:$0xff]
    %v373 = vld [vmem:[#allocation7 + $0x150] sm:$0xff]
    %v374 = vld [vmem:[#allocation7 + $0x158] sm:$0xff]
    %v375 = vld [vmem:[#allocation7 + $0x160] sm:$0xff]
    %v376 = vld [vmem:[#allocation7 + $0x168] sm:$0xff]
    %v377 = vld [vmem:[#allocation7 + $0x170] sm:$0xff]
    %v378 = vld [vmem:[#allocation7 + $0x178] sm:$0xff]
    %v379 = vld [vmem:[#allocation7 + $0x180] sm:$0xff]
    %v380 = vld [vmem:[#allocation7 + $0x188] sm:$0xff]
    %v381 = vld [vmem:[#allocation7 + $0x190] sm:$0xff]
    %v382 = vld [vmem:[#allocation7 + $0x198] sm:$0xff]
    %v383 = vld [vmem:[#allocation7 + $0x1a0] sm:$0xff]
    %v384 = vld [vmem:[#allocation7 + $0x1a8] sm:$0xff]
    %v385 = vld [vmem:[#allocation7 + $0x1b0] sm:$0xff]
    %v386 = vld [vmem:[#allocation7 + $0x1b8] sm:$0xff]
    %v387 = vld [vmem:[#allocation7 + $0x1c0] sm:$0xff]
    %v388 = vld [vmem:[#allocation7 + $0x1c8] sm:$0xff]
    %v389 = vld [vmem:[#allocation7 + $0x1d0] sm:$0xff]
    %v390 = vld [vmem:[#allocation7 + $0x1d8] sm:$0xff]
    %v391 = vld [vmem:[#allocation7 + $0x1e0] sm:$0xff]
    %v392 = vld [vmem:[#allocation7 + $0x1e8] sm:$0xff]
    %v393 = vld [vmem:[#allocation7 + $0x1f0] sm:$0xff]
    %v394 = vld [vmem:[#allocation7 + $0x1f8] sm:$0xff]
    %v395 = vld [vmem:[#allocation7 + $0x200] sm:$0xff]
    %v396 = vld [vmem:[#allocation7 + $0x208] sm:$0xff]
    %v397 = vld [vmem:[#allocation7 + $0x210] sm:$0xff]
    %v398 = vld [vmem:[#allocation7 + $0x218] sm:$0xff]
    %v399 = vld [vmem:[#allocation7 + $0x220] sm:$0xff]
    %v400 = vld [vmem:[#allocation7 + $0x228] sm:$0xff]
    %v401 = vld [vmem:[#allocation7 + $0x230] sm:$0xff]
    %v402 = vld [vmem:[#allocation7 + $0x238] sm:$0xff]
    %v403 = vld [vmem:[#allocation7 + $0x240] sm:$0xff]
    %v404 = vld [vmem:[#allocation7 + $0x248] sm:$0xff]
    %v405 = vld [vmem:[#allocation7 + $0x250] sm:$0xff]
    %v406 = vld [vmem:[#allocation7 + $0x258] sm:$0xff]
    %v407 = vld [vmem:[#allocation7 + $0x260] sm:$0xff]
    %v408 = vld [vmem:[#allocation7 + $0x268] sm:$0xff]
    %v409 = vld [vmem:[#allocation7 + $0x270] sm:$0xff]
    %v410 = vld [vmem:[#allocation7 + $0x278] sm:$0xff]
    %v411 = vld [vmem:[#allocation7 + $0x280] sm:$0xff]
    %v412 = vld [vmem:[#allocation7 + $0x288] sm:$0xff]
    %v413 = vld [vmem:[#allocation7 + $0x290] sm:$0xff]
    %v414 = vld [vmem:[#allocation7 + $0x298] sm:$0xff]
    %v415 = vld [vmem:[#allocation7 + $0x2a0] sm:$0xff]
    %v416 = vld [vmem:[#allocation7 + $0x2a8] sm:$0xff]
    %v417 = vld [vmem:[#allocation7 + $0x2b0] sm:$0xff]
    %v418 = vld [vmem:[#allocation7 + $0x2b8] sm:$0xff]
    %v419 = vld [vmem:[#allocation7 + $0x2c0] sm:$0xff]
    %v420 = vld [vmem:[#allocation7 + $0x2c8] sm:$0xff]
    %v421 = vld [vmem:[#allocation7 + $0x2d0] sm:$0xff]
    %v422 = vld [vmem:[#allocation7 + $0x2d8] sm:$0xff]
    %v423 = vld [vmem:[#allocation7 + $0x2e0] sm:$0xff]
    %v424 = vld [vmem:[#allocation7 + $0x2e8] sm:$0xff]
    %v425 = vld [vmem:[#allocation7 + $0x2f0] sm:$0xff]
    %v426 = vld [vmem:[#allocation7 + $0x2f8] sm:$0xff]
    %v427 = vld [vmem:[#allocation7 + $0x300] sm:$0xff]
    %v428 = vld [vmem:[#allocation7 + $0x308] sm:$0xff]
    %v429 = vld [vmem:[#allocation7 + $0x310] sm:$0xff]
    %v430 = vld [vmem:[#allocation7 + $0x318] sm:$0xff]
    %v431 = vld [vmem:[#allocation7 + $0x320] sm:$0xff]
    %v432 = vld [vmem:[#allocation7 + $0x328] sm:$0xff]
    %v433 = vld [vmem:[#allocation7 + $0x330] sm:$0xff]
    %v434 = vld [vmem:[#allocation7 + $0x338] sm:$0xff]
    %v435 = vld [vmem:[#allocation7 + $0x340] sm:$0xff]
    %v436 = vld [vmem:[#allocation7 + $0x348] sm:$0xff]
    %v437 = vld [vmem:[#allocation7 + $0x350] sm:$0xff]
    %v438 = vld [vmem:[#allocation7 + $0x358] sm:$0xff]
    %v439 = vld [vmem:[#allocation7 + $0x360] sm:$0xff]
    %v440 = vld [vmem:[#allocation7 + $0x368] sm:$0xff]
    %v441 = vld [vmem:[#allocation7 + $0x370] sm:$0xff]
    %v442 = vld [vmem:[#allocation7 + $0x378] sm:$0xff]
    %v443 = vld [vmem:[#allocation7 + $0x380] sm:$0xff]
    %v444 = vld [vmem:[#allocation7 + $0x388] sm:$0xff]
    %v445 = vld [vmem:[#allocation7 + $0x390] sm:$0xff]
    %v446 = vld [vmem:[#allocation7 + $0x398] sm:$0xff]
    %v447 = vld [vmem:[#allocation7 + $0x3a0] sm:$0xff]
    %v448 = vld [vmem:[#allocation7 + $0x3a8] sm:$0xff]
    %v449 = vld [vmem:[#allocation7 + $0x3b0] sm:$0xff]
    %v450 = vld [vmem:[#allocation7 + $0x3b8] sm:$0xff]
    %v451 = vld [vmem:[#allocation7 + $0x3c0] sm:$0xff]
    %v452 = vld [vmem:[#allocation7 + $0x3c8] sm:$0xff]
    %v453 = vld [vmem:[#allocation7 + $0x3d0] sm:$0xff]
    %v454 = vld [vmem:[#allocation7 + $0x3d8] sm:$0xff]
    %v455 = vld [vmem:[#allocation7 + $0x3e0] sm:$0xff]
    %v456 = vld [vmem:[#allocation7 + $0x3e8] sm:$0xff]
    %v457 = vld [vmem:[#allocation7 + $0x3f0] sm:$0xff]
    %v458 = vld [vmem:[#allocation7 + $0x3f8] sm:$0xff]
    %v459 = vld [vmem:[%s2] sm:$0xf]
    %v461 = vlaneseq
    %v462 = vshrl.u32 %v461, 7
    %v463 = vsub.s32 0, %v462
    %v464 = vrot.slane %v459, %v463
    %v465 = vlaneseq
    %v466 = vshrl.u32 %v465, 7
    %v467 = vsub.s32 1, %v466
    %v468 = vrot.slane %v459, %v467
    %v469 = vlaneseq
    %v470 = vshrl.u32 %v469, 7
    %v471 = vsub.s32 2, %v470
    %v472 = vrot.slane %v459, %v471
    %v473 = vlaneseq
    %v474 = vshrl.u32 %v473, 7
    %v475 = vsub.s32 3, %v474
    %v476 = vrot.slane %v459, %v475
    %v481 = vld [vmem:[%s4] sm:$0xf]
    %v483 = vlaneseq
    %v484 = vshrl.u32 %v483, 7
    %v485 = vsub.s32 0, %v484
    %v486 = vrot.slane %v481, %v485
    %v487 = vlaneseq
    %v488 = vshrl.u32 %v487, 7
    %v489 = vsub.s32 1, %v488
    %v490 = vrot.slane %v481, %v489
    %v491 = vlaneseq
    %v492 = vshrl.u32 %v491, 7
    %v493 = vsub.s32 2, %v492
    %v494 = vrot.slane %v481, %v493
    %v495 = vlaneseq
    %v496 = vshrl.u32 %v495, 7
    %v497 = vsub.s32 3, %v496
    %v498 = vrot.slane %v481, %v497
    %v503 = vld [vmem:[%s6] sm:$0xf]
    %v505 = vlaneseq
    %v506 = vshrl.u32 %v505, 7
    %v507 = vsub.s32 0, %v506
    %v508 = vrot.slane %v503, %v507
    %v509 = vlaneseq
    %v510 = vshrl.u32 %v509, 7
    %v511 = vsub.s32 1, %v510
    %v512 = vrot.slane %v503, %v511
    %v513 = vlaneseq
    %v514 = vshrl.u32 %v513, 7
    %v515 = vsub.s32 2, %v514
    %v516 = vrot.slane %v503, %v515
    %v517 = vlaneseq
    %v518 = vshrl.u32 %v517, 7
    %v519 = vsub.s32 3, %v518
    %v520 = vrot.slane %v503, %v519
    %v525 = vld [vmem:[%s0] sm:$0xff]
    %526 = vmatprep.subr.mxu0 %v76
    %527 = vmatpush1.msra.mxu0 %v75
    %528 = vmatprep.subr.mxu0 %v80
    %529 = vmatpush1.msra.mxu0 %v79
    %530 = vmatprep.subr.mxu0 %v84
    %531 = vmatpush1.msra.mxu0 %v83
    %532 = vmatprep.subr.mxu0 %v88
    %533 = vmatpush1.msra.mxu0 %v87
    %534 = vmatprep.subr.mxu0 %v92
    %535 = vmatpush1.msra.mxu0 %v91
    %536 = vmatprep.subr.mxu0 %v96
    %537 = vmatpush1.msra.mxu0 %v95
    %538 = vmatprep.subr.mxu0 %v100
    %539 = vmatpush1.msra.mxu0 %v99
    %540 = vmatprep.subr.mxu0 %v104
    %541 = vmatpush1.msra.mxu0 %v103
    %542 = vmatprep.subr.mxu0 %v108
    %543 = vmatpush1.msra.mxu0 %v107
    %544 = vmatprep.subr.mxu0 %v112
    %545 = vmatpush1.msra.mxu0 %v111
    %546 = vmatprep.subr.mxu0 %v116
    %547 = vmatpush1.msra.mxu0 %v115
    %548 = vmatprep.subr.mxu0 %v120
    %549 = vmatpush1.msra.mxu0 %v119
    %550 = vmatprep.subr.mxu0 %v124
    %551 = vmatpush1.msra.mxu0 %v123
    %552 = vmatprep.subr.mxu0 %v128
    %553 = vmatpush1.msra.mxu0 %v127
    %554 = vmatprep.subr.mxu0 %v132
    %555 = vmatpush1.msra.mxu0 %v131
    %556 = vmatprep.subr.mxu0 %v136
    %557 = vmatpush1.msra.mxu0 %v135
    %558 = vmatprep.subr.mxu0 %v140
    %559 = vmatpush1.msra.mxu0 %v139
    %560 = vmatprep.subr.mxu0 %v144
    %561 = vmatpush1.msra.mxu0 %v143
    %562 = vmatprep.subr.mxu0 %v148
    %563 = vmatpush1.msra.mxu0 %v147
    %564 = vmatprep.subr.mxu0 %v152
    %565 = vmatpush1.msra.mxu0 %v151
    %566 = vmatprep.subr.mxu0 %v156
    %567 = vmatpush1.msra.mxu0 %v155
    %568 = vmatprep.subr.mxu0 %v160
    %569 = vmatpush1.msra.mxu0 %v159
    %570 = vmatprep.subr.mxu0 %v164
    %571 = vmatpush1.msra.mxu0 %v163
    %572 = vmatprep.subr.mxu0 %v168
    %573 = vmatpush1.msra.mxu0 %v167
    %574 = vmatprep.subr.mxu0 %v172
    %575 = vmatpush1.msra.mxu0 %v171
    %576 = vmatprep.subr.mxu0 %v176
    %577 = vmatpush1.msra.mxu0 %v175
    %578 = vmatprep.subr.mxu0 %v180
    %579 = vmatpush1.msra.mxu0 %v179
    %580 = vmatprep.subr.mxu0 %v184
    %581 = vmatpush1.msra.mxu0 %v183
    %582 = vmatprep.subr.mxu0 %v188
    %583 = vmatpush1.msra.mxu0 %v187
    %584 = vmatprep.subr.mxu0 %v192
    %585 = vmatpush1.msra.mxu0 %v191
    %586 = vmatprep.subr.mxu0 %v196
    %587 = vmatpush1.msra.mxu0 %v195
    %588 = vmatprep.subr.mxu0 %v200
    %589 = vmatpush1.msra.mxu0 %v199
    %590 = vmatprep.mubr.f32.mxu0 0.0
    %591 = vmatmul.mubr.f32.gmra.mrb[0].mxu0 %v525
    %v592 = vpop.f32.mrb[0].mxu0
    %v593 = vadd.f32 %v464, %v592
    %v594 = vpop.f32.mrb[0].mxu0
    %v595 = vadd.f32 %v468, %v594
    %596 = vdwg.mxu0
    %597 = vmatprep.subr.mxu0 %v78
    %598 = vmatpush1.msra.mxu0 %v77
    %599 = vmatprep.subr.mxu0 %v82
    %600 = vmatpush1.msra.mxu0 %v81
    %601 = vmatprep.subr.mxu0 %v86
    %602 = vmatpush1.msra.mxu0 %v85
    %603 = vmatprep.subr.mxu0 %v90
    %604 = vmatpush1.msra.mxu0 %v89
    %605 = vmatprep.subr.mxu0 %v94
    %606 = vmatpush1.msra.mxu0 %v93
    %607 = vmatprep.subr.mxu0 %v98
    %608 = vmatpush1.msra.mxu0 %v97
    %609 = vmatprep.subr.mxu0 %v102
    %610 = vmatpush1.msra.mxu0 %v101
    %611 = vmatprep.subr.mxu0 %v106
    %612 = vmatpush1.msra.mxu0 %v105
    %613 = vmatprep.subr.mxu0 %v110
    %614 = vmatpush1.msra.mxu0 %v109
    %615 = vmatprep.subr.mxu0 %v114
    %616 = vmatpush1.msra.mxu0 %v113
    %617 = vmatprep.subr.mxu0 %v118
    %618 = vmatpush1.msra.mxu0 %v117
    %619 = vmatprep.subr.mxu0 %v122
    %620 = vmatpush1.msra.mxu0 %v121
    %621 = vmatprep.subr.mxu0 %v126
    %622 = vmatpush1.msra.mxu0 %v125
    %623 = vmatprep.subr.mxu0 %v130
    %624 = vmatpush1.msra.mxu0 %v129
    %625 = vmatprep.subr.mxu0 %v134
    %626 = vmatpush1.msra.mxu0 %v133
    %627 = vmatprep.subr.mxu0 %v138
    %628 = vmatpush1.msra.mxu0 %v137
    %629 = vmatprep.subr.mxu0 %v142
    %630 = vmatpush1.msra.mxu0 %v141
    %631 = vmatprep.subr.mxu0 %v146
    %632 = vmatpush1.msra.mxu0 %v145
    %633 = vmatprep.subr.mxu0 %v150
    %634 = vmatpush1.msra.mxu0 %v149
    %635 = vmatprep.subr.mxu0 %v154
    %636 = vmatpush1.msra.mxu0 %v153
    %637 = vmatprep.subr.mxu0 %v158
    %638 = vmatpush1.msra.mxu0 %v157
    %639 = vmatprep.subr.mxu0 %v162
    %640 = vmatpush1.msra.mxu0 %v161
    %641 = vmatprep.subr.mxu0 %v166
    %642 = vmatpush1.msra.mxu0 %v165
    %643 = vmatprep.subr.mxu0 %v170
    %644 = vmatpush1.msra.mxu0 %v169
    %645 = vmatprep.subr.mxu0 %v174
    %646 = vmatpush1.msra.mxu0 %v173
    %647 = vmatprep.subr.mxu0 %v178
    %648 = vmatpush1.msra.mxu0 %v177
    %649 = vmatprep.subr.mxu0 %v182
    %650 = vmatpush1.msra.mxu0 %v181
    %651 = vmatprep.subr.mxu0 %v186
    %652 = vmatpush1.msra.mxu0 %v185
    %653 = vmatprep.subr.mxu0 %v190
    %654 = vmatpush1.msra.mxu0 %v189
    %655 = vmatprep.subr.mxu0 %v194
    %656 = vmatpush1.msra.mxu0 %v193
    %657 = vmatprep.subr.mxu0 %v198
    %658 = vmatpush1.msra.mxu0 %v197
    %659 = vmatprep.subr.mxu0 %v202
    %660 = vmatpush1.msra.mxu0 %v201
    %661 = vmatprep.mubr.f32.mxu0 0.0
    %662 = vmatmul.mubr.f32.gmra.mrb[0].mxu0 %v525
    %v663 = vpop.f32.mrb[0].mxu0
    %v664 = vadd.f32 %v472, %v663
    %v665 = vpop.f32.mrb[0].mxu0
    %v666 = vadd.f32 %v476, %v665
    %667 = vdwg.mxu0
    %v668 = vxor.u32 %v593, 2147483648
    %v669 = vmul.f32 %v668, 1.442695
    %v670 = vpow.pop %v669
    %v671 = vadd.f32 %v670, 1.0
    %v672 = vrcp.pop %v671
    %v673 = vmul.f32 1.0, %v672
    %v674 = vxor.u32 %v595, 2147483648
    %v675 = vmul.f32 %v674, 1.442695
    %v676 = vpow.pop %v675
    %v677 = vadd.f32 %v676, 1.0
    %v678 = vrcp.pop %v677
    %v679 = vmul.f32 1.0, %v678
    %v680 = vtanh.pop %v664
    %v681 = vxor.u32 %v666, 2147483648
    %v682 = vmul.f32 %v681, 1.442695
    %v683 = vpow.pop %v682
    %v684 = vadd.f32 %v683, 1.0
    %v685 = vrcp.pop %v684
    %v686 = vmul.f32 1.0, %v685
    %v687 = vmul.f32 %v679, 0.0
    %v688 = vmul.f32 %v673, %v680
    %v689 = vadd.f32 %v687, %v688
    %v690 = vtanh.pop %v689
    %v691 = vmul.f32 %v686, %v690
    %692 = vmatprep.subr.mxu0 %v204
    %693 = vmatpush1.msra.mxu0 %v203
    %694 = vmatprep.subr.mxu0 %v208
    %695 = vmatpush1.msra.mxu0 %v207
    %696 = vmatprep.subr.mxu0 %v212
    %697 = vmatpush1.msra.mxu0 %v211
    %698 = vmatprep.subr.mxu0 %v216
    %699 = vmatpush1.msra.mxu0 %v215
    %700 = vmatprep.subr.mxu0 %v220
    %701 = vmatpush1.msra.mxu0 %v219
    %702 = vmatprep.subr.mxu0 %v224
    %703 = vmatpush1.msra.mxu0 %v223
    %704 = vmatprep.subr.mxu0 %v228
    %705 = vmatpush1.msra.mxu0 %v227
    %706 = vmatprep.subr.mxu0 %v232
    %707 = vmatpush1.msra.mxu0 %v231
    %708 = vmatprep.subr.mxu0 %v236
    %709 = vmatpush1.msra.mxu0 %v235
    %710 = vmatprep.subr.mxu0 %v240
    %711 = vmatpush1.msra.mxu0 %v239
    %712 = vmatprep.subr.mxu0 %v244
    %713 = vmatpush1.msra.mxu0 %v243
    %714 = vmatprep.subr.mxu0 %v248
    %715 = vmatpush1.msra.mxu0 %v247
    %716 = vmatprep.subr.mxu0 %v252
    %717 = vmatpush1.msra.mxu0 %v251
    %718 = vmatprep.subr.mxu0 %v256
    %719 = vmatpush1.msra.mxu0 %v255
    %720 = vmatprep.subr.mxu0 %v260
    %721 = vmatpush1.msra.mxu0 %v259
    %722 = vmatprep.subr.mxu0 %v264
    %723 = vmatpush1.msra.mxu0 %v263
    %724 = vmatprep.subr.mxu0 %v268
    %725 = vmatpush1.msra.mxu0 %v267
    %726 = vmatprep.subr.mxu0 %v272
    %727 = vmatpush1.msra.mxu0 %v271
    %728 = vmatprep.subr.mxu0 %v276
    %729 = vmatpush1.msra.mxu0 %v275
    %730 = vmatprep.subr.mxu0 %v280
    %731 = vmatpush1.msra.mxu0 %v279
    %732 = vmatprep.subr.mxu0 %v284
    %733 = vmatpush1.msra.mxu0 %v283
    %734 = vmatprep.subr.mxu0 %v288
    %735 = vmatpush1.msra.mxu0 %v287
    %736 = vmatprep.subr.mxu0 %v292
    %737 = vmatpush1.msra.mxu0 %v291
    %738 = vmatprep.subr.mxu0 %v296
    %739 = vmatpush1.msra.mxu0 %v295
    %740 = vmatprep.subr.mxu0 %v300
    %741 = vmatpush1.msra.mxu0 %v299
    %742 = vmatprep.subr.mxu0 %v304
    %743 = vmatpush1.msra.mxu0 %v303
    %744 = vmatprep.subr.mxu0 %v308
    %745 = vmatpush1.msra.mxu0 %v307
    %746 = vmatprep.subr.mxu0 %v312
    %747 = vmatpush1.msra.mxu0 %v311
    %748 = vmatprep.subr.mxu0 %v316
    %749 = vmatpush1.msra.mxu0 %v315
    %750 = vmatprep.subr.mxu0 %v320
    %751 = vmatpush1.msra.mxu0 %v319
    %752 = vmatprep.subr.mxu0 %v324
    %753 = vmatpush1.msra.mxu0 %v323
    %754 = vmatprep.subr.mxu0 %v328
    %755 = vmatpush1.msra.mxu0 %v327
    %756 = vmatprep.mubr.f32.mxu0 0.0
    %757 = vmatmul.mubr.f32.gmra.mrb[0].mxu0 %v691
    %v758 = vpop.f32.mrb[0].mxu0
    %v759 = vadd.f32 %v486, %v758
    %v760 = vpop.f32.mrb[0].mxu0
    %v761 = vadd.f32 %v490, %v760
    %762 = vdwg.mxu0
    %763 = vmatprep.subr.mxu0 %v206
    %764 = vmatpush1.msra.mxu0 %v205
    %765 = vmatprep.subr.mxu0 %v210
    %766 = vmatpush1.msra.mxu0 %v209
    %767 = vmatprep.subr.mxu0 %v214
    %768 = vmatpush1.msra.mxu0 %v213
    %769 = vmatprep.subr.mxu0 %v218
    %770 = vmatpush1.msra.mxu0 %v217
    %771 = vmatprep.subr.mxu0 %v222
    %772 = vmatpush1.msra.mxu0 %v221
    %773 = vmatprep.subr.mxu0 %v226
    %774 = vmatpush1.msra.mxu0 %v225
    %775 = vmatprep.subr.mxu0 %v230
    %776 = vmatpush1.msra.mxu0 %v229
    %777 = vmatprep.subr.mxu0 %v234
    %778 = vmatpush1.msra.mxu0 %v233
    %779 = vmatprep.subr.mxu0 %v238
    %780 = vmatpush1.msra.mxu0 %v237
    %781 = vmatprep.subr.mxu0 %v242
    %782 = vmatpush1.msra.mxu0 %v241
    %783 = vmatprep.subr.mxu0 %v246
    %784 = vmatpush1.msra.mxu0 %v245
    %785 = vmatprep.subr.mxu0 %v250
    %786 = vmatpush1.msra.mxu0 %v249
    %787 = vmatprep.subr.mxu0 %v254
    %788 = vmatpush1.msra.mxu0 %v253
    %789 = vmatprep.subr.mxu0 %v258
    %790 = vmatpush1.msra.mxu0 %v257
    %791 = vmatprep.subr.mxu0 %v262
    %792 = vmatpush1.msra.mxu0 %v261
    %793 = vmatprep.subr.mxu0 %v266
    %794 = vmatpush1.msra.mxu0 %v265
    %795 = vmatprep.subr.mxu0 %v270
    %796 = vmatpush1.msra.mxu0 %v269
    %797 = vmatprep.subr.mxu0 %v274
    %798 = vmatpush1.msra.mxu0 %v273
    %799 = vmatprep.subr.mxu0 %v278
    %800 = vmatpush1.msra.mxu0 %v277
    %801 = vmatprep.subr.mxu0 %v282
    %802 = vmatpush1.msra.mxu0 %v281
    %803 = vmatprep.subr.mxu0 %v286
    %804 = vmatpush1.msra.mxu0 %v285
    %805 = vmatprep.subr.mxu0 %v290
    %806 = vmatpush1.msra.mxu0 %v289
    %807 = vmatprep.subr.mxu0 %v294
    %808 = vmatpush1.msra.mxu0 %v293
    %809 = vmatprep.subr.mxu0 %v298
    %810 = vmatpush1.msra.mxu0 %v297
    %811 = vmatprep.subr.mxu0 %v302
    %812 = vmatpush1.msra.mxu0 %v301
    %813 = vmatprep.subr.mxu0 %v306
    %814 = vmatpush1.msra.mxu0 %v305
    %815 = vmatprep.subr.mxu0 %v310
    %816 = vmatpush1.msra.mxu0 %v309
    %817 = vmatprep.subr.mxu0 %v314
    %818 = vmatpush1.msra.mxu0 %v313
    %819 = vmatprep.subr.mxu0 %v318
    %820 = vmatpush1.msra.mxu0 %v317
    %821 = vmatprep.subr.mxu0 %v322
    %822 = vmatpush1.msra.mxu0 %v321
    %823 = vmatprep.subr.mxu0 %v326
    %824 = vmatpush1.msra.mxu0 %v325
    %825 = vmatprep.subr.mxu0 %v330
    %826 = vmatpush1.msra.mxu0 %v329
    %827 = vmatprep.mubr.f32.mxu0 0.0
    %828 = vmatmul.mubr.f32.gmra.mrb[0].mxu0 %v691
    %v829 = vpop.f32.mrb[0].mxu0
    %v830 = vadd.f32 %v494, %v829
    %v831 = vpop.f32.mrb[0].mxu0
    %v832 = vadd.f32 %v498, %v831
    %833 = vdwg.mxu0
    %v834 = vxor.u32 %v759, 2147483648
    %v835 = vmul.f32 %v834, 1.442695
    %v836 = vpow.pop %v835
    %v837 = vadd.f32 %v836, 1.0
    %v838 = vrcp.pop %v837
    %v839 = vmul.f32 1.0, %v838
    %v840 = vxor.u32 %v761, 2147483648
    %v841 = vmul.f32 %v840, 1.442695
    %v842 = vpow.pop %v841
    %v843 = vadd.f32 %v842, 1.0
    %v844 = vrcp.pop %v843
    %v845 = vmul.f32 1.0, %v844
    %v846 = vtanh.pop %v830
    %v847 = vxor.u32 %v832, 2147483648
    %v848 = vmul.f32 %v847, 1.442695
    %v849 = vpow.pop %v848
    %v850 = vadd.f32 %v849, 1.0
    %v851 = vrcp.pop %v850
    %v852 = vmul.f32 1.0, %v851
    %v853 = vmul.f32 %v845, 0.0
    %v854 = vmul.f32 %v839, %v846
    %v855 = vadd.f32 %v853, %v854
    %v856 = vtanh.pop %v855
    %v857 = vmul.f32 %v852, %v856
    %858 = vmatprep.subr.mxu0 %v332
    %859 = vmatpush1.msra.mxu0 %v331
    %860 = vmatprep.subr.mxu0 %v336
    %861 = vmatpush1.msra.mxu0 %v335
    %862 = vmatprep.subr.mxu0 %v340
    %863 = vmatpush1.msra.mxu0 %v339
    %864 = vmatprep.subr.mxu0 %v344
    %865 = vmatpush1.msra.mxu0 %v343
    %866 = vmatprep.subr.mxu0 %v348
    %867 = vmatpush1.msra.mxu0 %v347
    %868 = vmatprep.subr.mxu0 %v352
    %869 = vmatpush1.msra.mxu0 %v351
    %870 = vmatprep.subr.mxu0 %v356
    %871 = vmatpush1.msra.mxu0 %v355
    %872 = vmatprep.subr.mxu0 %v360
    %873 = vmatpush1.msra.mxu0 %v359
    %874 = vmatprep.subr.mxu0 %v364
    %875 = vmatpush1.msra.mxu0 %v363
    %876 = vmatprep.subr.mxu0 %v368
    %877 = vmatpush1.msra.mxu0 %v367
    %878 = vmatprep.subr.mxu0 %v372
    %879 = vmatpush1.msra.mxu0 %v371
    %880 = vmatprep.subr.mxu0 %v376
    %881 = vmatpush1.msra.mxu0 %v375
    %882 = vmatprep.subr.mxu0 %v380
    %883 = vmatpush1.msra.mxu0 %v379
    %884 = vmatprep.subr.mxu0 %v384
    %885 = vmatpush1.msra.mxu0 %v383
    %886 = vmatprep.subr.mxu0 %v388
    %887 = vmatpush1.msra.mxu0 %v387
    %888 = vmatprep.subr.mxu0 %v392
    %889 = vmatpush1.msra.mxu0 %v391
    %890 = vmatprep.subr.mxu0 %v396
    %891 = vmatpush1.msra.mxu0 %v395
    %892 = vmatprep.subr.mxu0 %v400
    %893 = vmatpush1.msra.mxu0 %v399
    %894 = vmatprep.subr.mxu0 %v404
    %895 = vmatpush1.msra.mxu0 %v403
    %896 = vmatprep.subr.mxu0 %v408
    %897 = vmatpush1.msra.mxu0 %v407
    %898 = vmatprep.subr.mxu0 %v412
    %899 = vmatpush1.msra.mxu0 %v411
    %900 = vmatprep.subr.mxu0 %v416
    %901 = vmatpush1.msra.mxu0 %v415
    %902 = vmatprep.subr.mxu0 %v420
    %903 = vmatpush1.msra.mxu0 %v419
    %904 = vmatprep.subr.mxu0 %v424
    %905 = vmatpush1.msra.mxu0 %v423
    %906 = vmatprep.subr.mxu0 %v428
    %907 = vmatpush1.msra.mxu0 %v427
    %908 = vmatprep.subr.mxu0 %v432
    %909 = vmatpush1.msra.mxu0 %v431
    %910 = vmatprep.subr.mxu0 %v436
    %911 = vmatpush1.msra.mxu0 %v435
    %912 = vmatprep.subr.mxu0 %v440
    %913 = vmatpush1.msra.mxu0 %v439
    %914 = vmatprep.subr.mxu0 %v444
    %915 = vmatpush1.msra.mxu0 %v443
    %916 = vmatprep.subr.mxu0 %v448
    %917 = vmatpush1.msra.mxu0 %v447
    %918 = vmatprep.subr.mxu0 %v452
    %919 = vmatpush1.msra.mxu0 %v451
    %920 = vmatprep.subr.mxu0 %v456
    %921 = vmatpush1.msra.mxu0 %v455
    %922 = vmatprep.mubr.f32.mxu0 0.0
    %923 = vmatmul.mubr.f32.gmra.mrb[0].mxu0 %v857
    %v924 = vpop.f32.mrb[0].mxu0
    %v925 = vadd.f32 %v508, %v924
    %v926 = vpop.f32.mrb[0].mxu0
    %v927 = vadd.f32 %v512, %v926
    %928 = vdwg.mxu0
    %929 = vmatprep.subr.mxu0 %v334
    %930 = vmatpush1.msra.mxu0 %v333
    %931 = vmatprep.subr.mxu0 %v338
    %932 = vmatpush1.msra.mxu0 %v337
    %933 = vmatprep.subr.mxu0 %v342
    %934 = vmatpush1.msra.mxu0 %v341
    %935 = vmatprep.subr.mxu0 %v346
    %936 = vmatpush1.msra.mxu0 %v345
    %937 = vmatprep.subr.mxu0 %v350
    %938 = vmatpush1.msra.mxu0 %v349
    %939 = vmatprep.subr.mxu0 %v354
    %940 = vmatpush1.msra.mxu0 %v353
    %941 = vmatprep.subr.mxu0 %v358
    %942 = vmatpush1.msra.mxu0 %v357
    %943 = vmatprep.subr.mxu0 %v362
    %944 = vmatpush1.msra.mxu0 %v361
    %945 = vmatprep.subr.mxu0 %v366
    %946 = vmatpush1.msra.mxu0 %v365
    %947 = vmatprep.subr.mxu0 %v370
    %948 = vmatpush1.msra.mxu0 %v369
    %949 = vmatprep.subr.mxu0 %v374
    %950 = vmatpush1.msra.mxu0 %v373
    %951 = vmatprep.subr.mxu0 %v378
    %952 = vmatpush1.msra.mxu0 %v377
    %953 = vmatprep.subr.mxu0 %v382
    %954 = vmatpush1.msra.mxu0 %v381
    %955 = vmatprep.subr.mxu0 %v386
    %956 = vmatpush1.msra.mxu0 %v385
    %957 = vmatprep.subr.mxu0 %v390
    %958 = vmatpush1.msra.mxu0 %v389
    %959 = vmatprep.subr.mxu0 %v394
    %960 = vmatpush1.msra.mxu0 %v393
    %961 = vmatprep.subr.mxu0 %v398
    %962 = vmatpush1.msra.mxu0 %v397
    %963 = vmatprep.subr.mxu0 %v402
    %964 = vmatpush1.msra.mxu0 %v401
    %965 = vmatprep.subr.mxu0 %v406
    %966 = vmatpush1.msra.mxu0 %v405
    %967 = vmatprep.subr.mxu0 %v410
    %968 = vmatpush1.msra.mxu0 %v409
    %969 = vmatprep.subr.mxu0 %v414
    %970 = vmatpush1.msra.mxu0 %v413
    %971 = vmatprep.subr.mxu0 %v418
    %972 = vmatpush1.msra.mxu0 %v417
    %973 = vmatprep.subr.mxu0 %v422
    %974 = vmatpush1.msra.mxu0 %v421
    %975 = vmatprep.subr.mxu0 %v426
    %976 = vmatpush1.msra.mxu0 %v425
    %977 = vmatprep.subr.mxu0 %v430
    %978 = vmatpush1.msra.mxu0 %v429
    %979 = vmatprep.subr.mxu0 %v434
    %980 = vmatpush1.msra.mxu0 %v433
    %981 = vmatprep.subr.mxu0 %v438
    %982 = vmatpush1.msra.mxu0 %v437
    %983 = vmatprep.subr.mxu0 %v442
    %984 = vmatpush1.msra.mxu0 %v441
    %985 = vmatprep.subr.mxu0 %v446
    %986 = vmatpush1.msra.mxu0 %v445
    %987 = vmatprep.subr.mxu0 %v450
    %988 = vmatpush1.msra.mxu0 %v449
    %989 = vmatprep.subr.mxu0 %v454
    %990 = vmatpush1.msra.mxu0 %v453
    %991 = vmatprep.subr.mxu0 %v458
    %992 = vmatpush1.msra.mxu0 %v457
    %993 = vmatprep.mubr.f32.mxu0 0.0
    %994 = vmatmul.mubr.f32.gmra.mrb[0].mxu0 %v857
    %v995 = vpop.f32.mrb[0].mxu0
    %v996 = vadd.f32 %v516, %v995
    %v997 = vpop.f32.mrb[0].mxu0
    %v998 = vadd.f32 %v520, %v997
    %999 = vdwg.mxu0
    %v1000 = vxor.u32 %v925, 2147483648
    %v1001 = vmul.f32 %v1000, 1.442695
    %v1002 = vpow.pop %v1001
    %v1003 = vadd.f32 %v1002, 1.0
    %v1004 = vrcp.pop %v1003
    %v1005 = vmul.f32 1.0, %v1004
    %v1006 = vxor.u32 %v927, 2147483648
    %v1007 = vmul.f32 %v1006, 1.442695
    %v1008 = vpow.pop %v1007
    %v1009 = vadd.f32 %v1008, 1.0
    %v1010 = vrcp.pop %v1009
    %v1011 = vmul.f32 1.0, %v1010
    %v1012 = vtanh.pop %v996
    %v1013 = vxor.u32 %v998, 2147483648
    %v1014 = vmul.f32 %v1013, 1.442695
    %v1015 = vpow.pop %v1014
    %v1016 = vadd.f32 %v1015, 1.0
    %v1017 = vrcp.pop %v1016
    %v1018 = vmul.f32 1.0, %v1017
    %v1019 = vmul.f32 %v1011, 0.0
    %v1020 = vmul.f32 %v1005, %v1012
    %v1021 = vadd.f32 %v1019, %v1020
    %v1022 = vtanh.pop %v1021
    %v1023 = vmul.f32 %v1018, %v1022
    %s1024 = scalar_lea.vmem %s0, 8
    %v1025 = vld [vmem:[%s1024] sm:$0xff]
    %1026 = vmatprep.subr.mxu0 %v76
    %1027 = vmatpush1.msra.mxu0 %v75
    %1028 = vmatprep.subr.mxu0 %v80
    %1029 = vmatpush1.msra.mxu0 %v79
    %1030 = vmatprep.subr.mxu0 %v84
    %1031 = vmatpush1.msra.mxu0 %v83
    %1032 = vmatprep.subr.mxu0 %v88
    %1033 = vmatpush1.msra.mxu0 %v87
    %1034 = vmatprep.subr.mxu0 %v92
    %1035 = vmatpush1.msra.mxu0 %v91
    %1036 = vmatprep.subr.mxu0 %v96
    %1037 = vmatpush1.msra.mxu0 %v95
    %1038 = vmatprep.subr.mxu0 %v100
    %1039 = vmatpush1.msra.mxu0 %v99
    %1040 = vmatprep.subr.mxu0 %v104
    %1041 = vmatpush1.msra.mxu0 %v103
    %1042 = vmatprep.subr.mxu0 %v108
    %1043 = vmatpush1.msra.mxu0 %v107
    %1044 = vmatprep.subr.mxu0 %v112
    %1045 = vmatpush1.msra.mxu0 %v111
    %1046 = vmatprep.subr.mxu0 %v116
    %1047 = vmatpush1.msra.mxu0 %v115
    %1048 = vmatprep.subr.mxu0 %v120
    %1049 = vmatpush1.msra.mxu0 %v119
    %1050 = vmatprep.subr.mxu0 %v124
    %1051 = vmatpush1.msra.mxu0 %v123
    %1052 = vmatprep.subr.mxu0 %v128
    %1053 = vmatpush1.msra.mxu0 %v127
    %1054 = vmatprep.subr.mxu0 %v132
    %1055 = vmatpush1.msra.mxu0 %v131
    %1056 = vmatprep.subr.mxu0 %v136
    %1057 = vmatpush1.msra.mxu0 %v135
    %1058 = vmatprep.subr.mxu0 %v140
    %1059 = vmatpush1.msra.mxu0 %v139
    %1060 = vmatprep.subr.mxu0 %v144
    %1061 = vmatpush1.msra.mxu0 %v143
    %1062 = vmatprep.subr.mxu0 %v148
    %1063 = vmatpush1.msra.mxu0 %v147
    %1064 = vmatprep.subr.mxu0 %v152
    %1065 = vmatpush1.msra.mxu0 %v151
    %1066 = vmatprep.subr.mxu0 %v156
    %1067 = vmatpush1.msra.mxu0 %v155
    %1068 = vmatprep.subr.mxu0 %v160
    %1069 = vmatpush1.msra.mxu0 %v159
    %1070 = vmatprep.subr.mxu0 %v164
    %1071 = vmatpush1.msra.mxu0 %v163
    %1072 = vmatprep.subr.mxu0 %v168
    %1073 = vmatpush1.msra.mxu0 %v167
    %1074 = vmatprep.subr.mxu0 %v172
    %1075 = vmatpush1.msra.mxu0 %v171
    %1076 = vmatprep.subr.mxu0 %v176
    %1077 = vmatpush1.msra.mxu0 %v175
    %1078 = vmatprep.subr.mxu0 %v180
    %1079 = vmatpush1.msra.mxu0 %v179
    %1080 = vmatprep.subr.mxu0 %v184
    %1081 = vmatpush1.msra.mxu0 %v183
    %1082 = vmatprep.subr.mxu0 %v188
    %1083 = vmatpush1.msra.mxu0 %v187
    %1084 = vmatprep.subr.mxu0 %v192
    %1085 = vmatpush1.msra.mxu0 %v191
    %1086 = vmatprep.subr.mxu0 %v196
    %1087 = vmatpush1.msra.mxu0 %v195
    %1088 = vmatprep.subr.mxu0 %v200
    %1089 = vmatpush1.msra.mxu0 %v199
    %1090 = vmatprep.mubr.f32.mxu0 %v691
    %1091 = vmatmul.mubr.f32.gmra.mrb[0].mxu0 %v1025
    %v1092 = vpop.f32.mrb[0].mxu0
    %v1093 = vadd.f32 %v464, %v1092
    %v1094 = vpop.f32.mrb[0].mxu0
    %v1095 = vadd.f32 %v468, %v1094
    %1096 = vdwg.mxu0
    %1097 = vmatprep.subr.mxu0 %v78
    %1098 = vmatpush1.msra.mxu0 %v77
    %1099 = vmatprep.subr.mxu0 %v82
    %1100 = vmatpush1.msra.mxu0 %v81
    %1101 = vmatprep.subr.mxu0 %v86
    %1102 = vmatpush1.msra.mxu0 %v85
    %1103 = vmatprep.subr.mxu0 %v90
    %1104 = vmatpush1.msra.mxu0 %v89
    %1105 = vmatprep.subr.mxu0 %v94
    %1106 = vmatpush1.msra.mxu0 %v93
    %1107 = vmatprep.subr.mxu0 %v98
    %1108 = vmatpush1.msra.mxu0 %v97
    %1109 = vmatprep.subr.mxu0 %v102
    %1110 = vmatpush1.msra.mxu0 %v101
    %1111 = vmatprep.subr.mxu0 %v106
    %1112 = vmatpush1.msra.mxu0 %v105
    %1113 = vmatprep.subr.mxu0 %v110
    %1114 = vmatpush1.msra.mxu0 %v109
    %1115 = vmatprep.subr.mxu0 %v114
    %1116 = vmatpush1.msra.mxu0 %v113
    %1117 = vmatprep.subr.mxu0 %v118
    %1118 = vmatpush1.msra.mxu0 %v117
    %1119 = vmatprep.subr.mxu0 %v122
    %1120 = vmatpush1.msra.mxu0 %v121
    %1121 = vmatprep.subr.mxu0 %v126
    %1122 = vmatpush1.msra.mxu0 %v125
    %1123 = vmatprep.subr.mxu0 %v130
    %1124 = vmatpush1.msra.mxu0 %v129
    %1125 = vmatprep.subr.mxu0 %v134
    %1126 = vmatpush1.msra.mxu0 %v133
    %1127 = vmatprep.subr.mxu0 %v138
    %1128 = vmatpush1.msra.mxu0 %v137
    %1129 = vmatprep.subr.mxu0 %v142
    %1130 = vmatpush1.msra.mxu0 %v141
    %1131 = vmatprep.subr.mxu0 %v146
    %1132 = vmatpush1.msra.mxu0 %v145
    %1133 = vmatprep.subr.mxu0 %v150
    %1134 = vmatpush1.msra.mxu0 %v149
    %1135 = vmatprep.subr.mxu0 %v154
    %1136 = vmatpush1.msra.mxu0 %v153
    %1137 = vmatprep.subr.mxu0 %v158
    %1138 = vmatpush1.msra.mxu0 %v157
    %1139 = vmatprep.subr.mxu0 %v162
    %1140 = vmatpush1.msra.mxu0 %v161
    %1141 = vmatprep.subr.mxu0 %v166
    %1142 = vmatpush1.msra.mxu0 %v165
    %1143 = vmatprep.subr.mxu0 %v170
    %1144 = vmatpush1.msra.mxu0 %v169
    %1145 = vmatprep.subr.mxu0 %v174
    %1146 = vmatpush1.msra.mxu0 %v173
    %1147 = vmatprep.subr.mxu0 %v178
    %1148 = vmatpush1.msra.mxu0 %v177
    %1149 = vmatprep.subr.mxu0 %v182
    %1150 = vmatpush1.msra.mxu0 %v181
    %1151 = vmatprep.subr.mxu0 %v186
    %1152 = vmatpush1.msra.mxu0 %v185
    %1153 = vmatprep.subr.mxu0 %v190
    %1154 = vmatpush1.msra.mxu0 %v189
    %1155 = vmatprep.subr.mxu0 %v194
    %1156 = vmatpush1.msra.mxu0 %v193
    %1157 = vmatprep.subr.mxu0 %v198
    %1158 = vmatpush1.msra.mxu0 %v197
    %1159 = vmatprep.subr.mxu0 %v202
    %1160 = vmatpush1.msra.mxu0 %v201
    %1161 = vmatprep.mubr.f32.mxu0 %v691
    %1162 = vmatmul.mubr.f32.gmra.mrb[0].mxu0 %v1025
    %v1163 = vpop.f32.mrb[0].mxu0
    %v1164 = vadd.f32 %v472, %v1163
    %v1165 = vpop.f32.mrb[0].mxu0
    %v1166 = vadd.f32 %v476, %v1165
    %1167 = vdwg.mxu0
    %v1168 = vxor.u32 %v1093, 2147483648
    %v1169 = vmul.f32 %v1168, 1.442695
    %v1170 = vpow.pop %v1169
    %v1171 = vadd.f32 %v1170, 1.0
    %v1172 = vrcp.pop %v1171
    %v1173 = vmul.f32 1.0, %v1172
    %v1174 = vxor.u32 %v1095, 2147483648
    %v1175 = vmul.f32 %v1174, 1.442695
    %v1176 = vpow.pop %v1175
    %v1177 = vadd.f32 %v1176, 1.0
    %v1178 = vrcp.pop %v1177
    %v1179 = vmul.f32 1.0, %v1178
    %v1180 = vtanh.pop %v1164
    %v1181 = vxor.u32 %v1166, 2147483648
    %v1182 = vmul.f32 %v1181, 1.442695
    %v1183 = vpow.pop %v1182
    %v1184 = vadd.f32 %v1183, 1.0
    %v1185 = vrcp.pop %v1184
    %v1186 = vmul.f32 1.0, %v1185
    %v1187 = vmul.f32 %v1179, %v689
    %v1188 = vmul.f32 %v1173, %v1180
    %v1189 = vadd.f32 %v1187, %v1188
    %v1190 = vtanh.pop %v1189
    %v1191 = vmul.f32 %v1186, %v1190
    %1192 = vmatprep.subr.mxu0 %v204
    %1193 = vmatpush1.msra.mxu0 %v203
    %1194 = vmatprep.subr.mxu0 %v208
    %1195 = vmatpush1.msra.mxu0 %v207
    %1196 = vmatprep.subr.mxu0 %v212
    %1197 = vmatpush1.msra.mxu0 %v211
    %1198 = vmatprep.subr.mxu0 %v216
    %1199 = vmatpush1.msra.mxu0 %v215
    %1200 = vmatprep.subr.mxu0 %v220
    %1201 = vmatpush1.msra.mxu0 %v219
    %1202 = vmatprep.subr.mxu0 %v224
    %1203 = vmatpush1.msra.mxu0 %v223
    %1204 = vmatprep.subr.mxu0 %v228
    %1205 = vmatpush1.msra.mxu0 %v227
    %1206 = vmatprep.subr.mxu0 %v232
    %1207 = vmatpush1.msra.mxu0 %v231
    %1208 = vmatprep.subr.mxu0 %v236
    %1209 = vmatpush1.msra.mxu0 %v235
    %1210 = vmatprep.subr.mxu0 %v240
    %1211 = vmatpush1.msra.mxu0 %v239
    %1212 = vmatprep.subr.mxu0 %v244
    %1213 = vmatpush1.msra.mxu0 %v243
    %1214 = vmatprep.subr.mxu0 %v248
    %1215 = vmatpush1.msra.mxu0 %v247
    %1216 = vmatprep.subr.mxu0 %v252
    %1217 = vmatpush1.msra.mxu0 %v251
    %1218 = vmatprep.subr.mxu0 %v256
    %1219 = vmatpush1.msra.mxu0 %v255
    %1220 = vmatprep.subr.mxu0 %v260
    %1221 = vmatpush1.msra.mxu0 %v259
    %1222 = vmatprep.subr.mxu0 %v264
    %1223 = vmatpush1.msra.mxu0 %v263
    %1224 = vmatprep.subr.mxu0 %v268
    %1225 = vmatpush1.msra.mxu0 %v267
    %1226 = vmatprep.subr.mxu0 %v272
    %1227 = vmatpush1.msra.mxu0 %v271
    %1228 = vmatprep.subr.mxu0 %v276
    %1229 = vmatpush1.msra.mxu0 %v275
    %1230 = vmatprep.subr.mxu0 %v280
    %1231 = vmatpush1.msra.mxu0 %v279
    %1232 = vmatprep.subr.mxu0 %v284
    %1233 = vmatpush1.msra.mxu0 %v283
    %1234 = vmatprep.subr.mxu0 %v288
    %1235 = vmatpush1.msra.mxu0 %v287
    %1236 = vmatprep.subr.mxu0 %v292
    %1237 = vmatpush1.msra.mxu0 %v291
    %1238 = vmatprep.subr.mxu0 %v296
    %1239 = vmatpush1.msra.mxu0 %v295
    %1240 = vmatprep.subr.mxu0 %v300
    %1241 = vmatpush1.msra.mxu0 %v299
    %1242 = vmatprep.subr.mxu0 %v304
    %1243 = vmatpush1.msra.mxu0 %v303
    %1244 = vmatprep.subr.mxu0 %v308
    %1245 = vmatpush1.msra.mxu0 %v307
    %1246 = vmatprep.subr.mxu0 %v312
    %1247 = vmatpush1.msra.mxu0 %v311
    %1248 = vmatprep.subr.mxu0 %v316
    %1249 = vmatpush1.msra.mxu0 %v315
    %1250 = vmatprep.subr.mxu0 %v320
    %1251 = vmatpush1.msra.mxu0 %v319
    %1252 = vmatprep.subr.mxu0 %v324
    %1253 = vmatpush1.msra.mxu0 %v323
    %1254 = vmatprep.subr.mxu0 %v328
    %1255 = vmatpush1.msra.mxu0 %v327
    %1256 = vmatprep.mubr.f32.mxu0 %v857
    %1257 = vmatmul.mubr.f32.gmra.mrb[0].mxu0 %v1191
    %v1258 = vpop.f32.mrb[0].mxu0
    %v1259 = vadd.f32 %v486, %v1258
    %v1260 = vpop.f32.mrb[0].mxu0
    %v1261 = vadd.f32 %v490, %v1260
    %1262 = vdwg.mxu0
    %1263 = vmatprep.subr.mxu0 %v206
    %1264 = vmatpush1.msra.mxu0 %v205
    %1265 = vmatprep.subr.mxu0 %v210
    %1266 = vmatpush1.msra.mxu0 %v209
    %1267 = vmatprep.subr.mxu0 %v214
    %1268 = vmatpush1.msra.mxu0 %v213
    %1269 = vmatprep.subr.mxu0 %v218
    %1270 = vmatpush1.msra.mxu0 %v217
    %1271 = vmatprep.subr.mxu0 %v222
    %1272 = vmatpush1.msra.mxu0 %v221
    %1273 = vmatprep.subr.mxu0 %v226
    %1274 = vmatpush1.msra.mxu0 %v225
    %1275 = vmatprep.subr.mxu0 %v230
    %1276 = vmatpush1.msra.mxu0 %v229
    %1277 = vmatprep.subr.mxu0 %v234
    %1278 = vmatpush1.msra.mxu0 %v233
    %1279 = vmatprep.subr.mxu0 %v238
    %1280 = vmatpush1.msra.mxu0 %v237
    %1281 = vmatprep.subr.mxu0 %v242
    %1282 = vmatpush1.msra.mxu0 %v241
    %1283 = vmatprep.subr.mxu0 %v246
    %1284 = vmatpush1.msra.mxu0 %v245
    %1285 = vmatprep.subr.mxu0 %v250
    %1286 = vmatpush1.msra.mxu0 %v249
    %1287 = vmatprep.subr.mxu0 %v254
    %1288 = vmatpush1.msra.mxu0 %v253
    %1289 = vmatprep.subr.mxu0 %v258
    %1290 = vmatpush1.msra.mxu0 %v257
    %1291 = vmatprep.subr.mxu0 %v262
    %1292 = vmatpush1.msra.mxu0 %v261
    %1293 = vmatprep.subr.mxu0 %v266
    %1294 = vmatpush1.msra.mxu0 %v265
    %1295 = vmatprep.subr.mxu0 %v270
    %1296 = vmatpush1.msra.mxu0 %v269
    %1297 = vmatprep.subr.mxu0 %v274
    %1298 = vmatpush1.msra.mxu0 %v273
    %1299 = vmatprep.subr.mxu0 %v278
    %1300 = vmatpush1.msra.mxu0 %v277
    %1301 = vmatprep.subr.mxu0 %v282
    %1302 = vmatpush1.msra.mxu0 %v281
    %1303 = vmatprep.subr.mxu0 %v286
    %1304 = vmatpush1.msra.mxu0 %v285
    %1305 = vmatprep.subr.mxu0 %v290
    %1306 = vmatpush1.msra.mxu0 %v289
    %1307 = vmatprep.subr.mxu0 %v294
    %1308 = vmatpush1.msra.mxu0 %v293
    %1309 = vmatprep.subr.mxu0 %v298
    %1310 = vmatpush1.msra.mxu0 %v297
    %1311 = vmatprep.subr.mxu0 %v302
    %1312 = vmatpush1.msra.mxu0 %v301
    %1313 = vmatprep.subr.mxu0 %v306
    %1314 = vmatpush1.msra.mxu0 %v305
    %1315 = vmatprep.subr.mxu0 %v310
    %1316 = vmatpush1.msra.mxu0 %v309
    %1317 = vmatprep.subr.mxu0 %v314
    %1318 = vmatpush1.msra.mxu0 %v313
    %1319 = vmatprep.subr.mxu0 %v318
    %1320 = vmatpush1.msra.mxu0 %v317
    %1321 = vmatprep.subr.mxu0 %v322
    %1322 = vmatpush1.msra.mxu0 %v321
    %1323 = vmatprep.subr.mxu0 %v326
    %1324 = vmatpush1.msra.mxu0 %v325
    %1325 = vmatprep.subr.mxu0 %v330
    %1326 = vmatpush1.msra.mxu0 %v329
    %1327 = vmatprep.mubr.f32.mxu0 %v857
    %1328 = vmatmul.mubr.f32.gmra.mrb[0].mxu0 %v1191
    %v1329 = vpop.f32.mrb[0].mxu0
    %v1330 = vadd.f32 %v494, %v1329
    %v1331 = vpop.f32.mrb[0].mxu0
    %v1332 = vadd.f32 %v498, %v1331
    %1333 = vdwg.mxu0
    %v1334 = vxor.u32 %v1259, 2147483648
    %v1335 = vmul.f32 %v1334, 1.442695
    %v1336 = vpow.pop %v1335
    %v1337 = vadd.f32 %v1336, 1.0
    %v1338 = vrcp.pop %v1337
    %v1339 = vmul.f32 1.0, %v1338
    %v1340 = vxor.u32 %v1261, 2147483648
    %v1341 = vmul.f32 %v1340, 1.442695
    %v1342 = vpow.pop %v1341
    %v1343 = vadd.f32 %v1342, 1.0
    %v1344 = vrcp.pop %v1343
    %v1345 = vmul.f32 1.0, %v1344
    %v1346 = vtanh.pop %v1330
    %v1347 = vxor.u32 %v1332, 2147483648
    %v1348 = vmul.f32 %v1347, 1.442695
    %v1349 = vpow.pop %v1348
    %v1350 = vadd.f32 %v1349, 1.0
    %v1351 = vrcp.pop %v1350
    %v1352 = vmul.f32 1.0, %v1351
    %v1353 = vmul.f32 %v1345, %v855
    %v1354 = vmul.f32 %v1339, %v1346
    %v1355 = vadd.f32 %v1353, %v1354
    %v1356 = vtanh.pop %v1355
    %v1357 = vmul.f32 %v1352, %v1356
    %1358 = vmatprep.subr.mxu0 %v332
    %1359 = vmatpush1.msra.mxu0 %v331
    %1360 = vmatprep.subr.mxu0 %v336
    %1361 = vmatpush1.msra.mxu0 %v335
    %1362 = vmatprep.subr.mxu0 %v340
    %1363 = vmatpush1.msra.mxu0 %v339
    %1364 = vmatprep.subr.mxu0 %v344
    %1365 = vmatpush1.msra.mxu0 %v343
    %1366 = vmatprep.subr.mxu0 %v348
    %1367 = vmatpush1.msra.mxu0 %v347
    %1368 = vmatprep.subr.mxu0 %v352
    %1369 = vmatpush1.msra.mxu0 %v351
    %1370 = vmatprep.subr.mxu0 %v356
    %1371 = vmatpush1.msra.mxu0 %v355
    %1372 = vmatprep.subr.mxu0 %v360
    %1373 = vmatpush1.msra.mxu0 %v359
    %1374 = vmatprep.subr.mxu0 %v364
    %1375 = vmatpush1.msra.mxu0 %v363
    %1376 = vmatprep.subr.mxu0 %v368
    %1377 = vmatpush1.msra.mxu0 %v367
    %1378 = vmatprep.subr.mxu0 %v372
    %1379 = vmatpush1.msra.mxu0 %v371
    %1380 = vmatprep.subr.mxu0 %v376
    %1381 = vmatpush1.msra.mxu0 %v375
    %1382 = vmatprep.subr.mxu0 %v380
    %1383 = vmatpush1.msra.mxu0 %v379
    %1384 = vmatprep.subr.mxu0 %v384
    %1385 = vmatpush1.msra.mxu0 %v383
    %1386 = vmatprep.subr.mxu0 %v388
    %1387 = vmatpush1.msra.mxu0 %v387
    %1388 = vmatprep.subr.mxu0 %v392
    %1389 = vmatpush1.msra.mxu0 %v391
    %1390 = vmatprep.subr.mxu0 %v396
    %1391 = vmatpush1.msra.mxu0 %v395
    %1392 = vmatprep.subr.mxu0 %v400
    %1393 = vmatpush1.msra.mxu0 %v399
    %1394 = vmatprep.subr.mxu0 %v404
    %1395 = vmatpush1.msra.mxu0 %v403
    %1396 = vmatprep.subr.mxu0 %v408
    %1397 = vmatpush1.msra.mxu0 %v407
    %1398 = vmatprep.subr.mxu0 %v412
    %1399 = vmatpush1.msra.mxu0 %v411
    %1400 = vmatprep.subr.mxu0 %v416
    %1401 = vmatpush1.msra.mxu0 %v415
    %1402 = vmatprep.subr.mxu0 %v420
    %1403 = vmatpush1.msra.mxu0 %v419
    %1404 = vmatprep.subr.mxu0 %v424
    %1405 = vmatpush1.msra.mxu0 %v423
    %1406 = vmatprep.subr.mxu0 %v428
    %1407 = vmatpush1.msra.mxu0 %v427
    %1408 = vmatprep.subr.mxu0 %v432
    %1409 = vmatpush1.msra.mxu0 %v431
    %1410 = vmatprep.subr.mxu0 %v436
    %1411 = vmatpush1.msra.mxu0 %v435
    %1412 = vmatprep.subr.mxu0 %v440
    %1413 = vmatpush1.msra.mxu0 %v439
    %1414 = vmatprep.subr.mxu0 %v444
    %1415 = vmatpush1.msra.mxu0 %v443
    %1416 = vmatprep.subr.mxu0 %v448
    %1417 = vmatpush1.msra.mxu0 %v447
    %1418 = vmatprep.subr.mxu0 %v452
    %1419 = vmatpush1.msra.mxu0 %v451
    %1420 = vmatprep.subr.mxu0 %v456
    %1421 = vmatpush1.msra.mxu0 %v455
    %1422 = vmatprep.mubr.f32.mxu0 %v1023
    %1423 = vmatmul.mubr.f32.gmra.mrb[0].mxu0 %v1357
    %v1424 = vpop.f32.mrb[0].mxu0
    %v1425 = vadd.f32 %v508, %v1424
    %v1426 = vpop.f32.mrb[0].mxu0
    %v1427 = vadd.f32 %v512, %v1426
    %1428 = vdwg.mxu0
    %1429 = vmatprep.subr.mxu0 %v334
    %1430 = vmatpush1.msra.mxu0 %v333
    %1431 = vmatprep.subr.mxu0 %v338
    %1432 = vmatpush1.msra.mxu0 %v337
    %1433 = vmatprep.subr.mxu0 %v342
    %1434 = vmatpush1.msra.mxu0 %v341
    %1435 = vmatprep.subr.mxu0 %v346
    %1436 = vmatpush1.msra.mxu0 %v345
    %1437 = vmatprep.subr.mxu0 %v350
    %1438 = vmatpush1.msra.mxu0 %v349
    %1439 = vmatprep.subr.mxu0 %v354
    %1440 = vmatpush1.msra.mxu0 %v353
    %1441 = vmatprep.subr.mxu0 %v358
    %1442 = vmatpush1.msra.mxu0 %v357
    %1443 = vmatprep.subr.mxu0 %v362
    %1444 = vmatpush1.msra.mxu0 %v361
    %1445 = vmatprep.subr.mxu0 %v366
    %1446 = vmatpush1.msra.mxu0 %v365
    %1447 = vmatprep.subr.mxu0 %v370
    %1448 = vmatpush1.msra.mxu0 %v369
    %1449 = vmatprep.subr.mxu0 %v374
    %1450 = vmatpush1.msra.mxu0 %v373
    %1451 = vmatprep.subr.mxu0 %v378
    %1452 = vmatpush1.msra.mxu0 %v377
    %1453 = vmatprep.subr.mxu0 %v382
    %1454 = vmatpush1.msra.mxu0 %v381
    %1455 = vmatprep.subr.mxu0 %v386
    %1456 = vmatpush1.msra.mxu0 %v385
    %1457 = vmatprep.subr.mxu0 %v390
    %1458 = vmatpush1.msra.mxu0 %v389
    %1459 = vmatprep.subr.mxu0 %v394
    %1460 = vmatpush1.msra.mxu0 %v393
    %1461 = vmatprep.subr.mxu0 %v398
    %1462 = vmatpush1.msra.mxu0 %v397
    %1463 = vmatprep.subr.mxu0 %v402
    %1464 = vmatpush1.msra.mxu0 %v401
    %1465 = vmatprep.subr.mxu0 %v406
    %1466 = vmatpush1.msra.mxu0 %v405
    %1467 = vmatprep.subr.mxu0 %v410
    %1468 = vmatpush1.msra.mxu0 %v409
    %1469 = vmatprep.subr.mxu0 %v414
    %1470 = vmatpush1.msra.mxu0 %v413
    %1471 = vmatprep.subr.mxu0 %v418
    %1472 = vmatpush1.msra.mxu0 %v417
    %1473 = vmatprep.subr.mxu0 %v422
    %1474 = vmatpush1.msra.mxu0 %v421
    %1475 = vmatprep.subr.mxu0 %v426
    %1476 = vmatpush1.msra.mxu0 %v425
    %1477 = vmatprep.subr.mxu0 %v430
    %1478 = vmatpush1.msra.mxu0 %v429
    %1479 = vmatprep.subr.mxu0 %v434
    %1480 = vmatpush1.msra.mxu0 %v433
    %1481 = vmatprep.subr.mxu0 %v438
    %1482 = vmatpush1.msra.mxu0 %v437
    %1483 = vmatprep.subr.mxu0 %v442
    %1484 = vmatpush1.msra.mxu0 %v441
    %1485 = vmatprep.subr.mxu0 %v446
    %1486 = vmatpush1.msra.mxu0 %v445
    %1487 = vmatprep.subr.mxu0 %v450
    %1488 = vmatpush1.msra.mxu0 %v449
    %1489 = vmatprep.subr.mxu0 %v454
    %1490 = vmatpush1.msra.mxu0 %v453
    %1491 = vmatprep.subr.mxu0 %v458
    %1492 = vmatpush1.msra.mxu0 %v457
    %1493 = vmatprep.mubr.f32.mxu0 %v1023
    %1494 = vmatmul.mubr.f32.gmra.mrb[0].mxu0 %v1357
    %v1495 = vpop.f32.mrb[0].mxu0
    %v1496 = vadd.f32 %v516, %v1495
    %v1497 = vpop.f32.mrb[0].mxu0
    %v1498 = vadd.f32 %v520, %v1497
    %1499 = vdwg.mxu0
    %v1500 = vxor.u32 %v1425, 2147483648
    %v1501 = vmul.f32 %v1500, 1.442695
    %v1502 = vpow.pop %v1501
    %v1503 = vadd.f32 %v1502, 1.0
    %v1504 = vrcp.pop %v1503
    %v1505 = vmul.f32 1.0, %v1504
    %v1506 = vxor.u32 %v1427, 2147483648
    %v1507 = vmul.f32 %v1506, 1.442695
    %v1508 = vpow.pop %v1507
    %v1509 = vadd.f32 %v1508, 1.0
    %v1510 = vrcp.pop %v1509
    %v1511 = vmul.f32 1.0, %v1510
    %v1512 = vtanh.pop %v1496
    %v1513 = vxor.u32 %v1498, 2147483648
    %v1514 = vmul.f32 %v1513, 1.442695
    %v1515 = vpow.pop %v1514
    %v1516 = vadd.f32 %v1515, 1.0
    %v1517 = vrcp.pop %v1516
    %v1518 = vmul.f32 1.0, %v1517
    %v1519 = vmul.f32 %v1511, %v1021
    %v1520 = vmul.f32 %v1505, %v1512
    %v1521 = vadd.f32 %v1519, %v1520
    %v1522 = vtanh.pop %v1521
    %v1523 = vmul.f32 %v1518, %v1522
    %s1524 = scalar_lea.vmem %s0, 16
    %v1525 = vld [vmem:[%s1524] sm:$0xff]
    %1526 = vmatprep.subr.mxu0 %v76
    %1527 = vmatpush1.msra.mxu0 %v75
    %1528 = vmatprep.subr.mxu0 %v80
    %1529 = vmatpush1.msra.mxu0 %v79
    %1530 = vmatprep.subr.mxu0 %v84
    %1531 = vmatpush1.msra.mxu0 %v83
    %1532 = vmatprep.subr.mxu0 %v88
    %1533 = vmatpush1.msra.mxu0 %v87
    %1534 = vmatprep.subr.mxu0 %v92
    %1535 = vmatpush1.msra.mxu0 %v91
    %1536 = vmatprep.subr.mxu0 %v96
    %1537 = vmatpush1.msra.mxu0 %v95
    %1538 = vmatprep.subr.mxu0 %v100
    %1539 = vmatpush1.msra.mxu0 %v99
    %1540 = vmatprep.subr.mxu0 %v104
    %1541 = vmatpush1.msra.mxu0 %v103
    %1542 = vmatprep.subr.mxu0 %v108
    %1543 = vmatpush1.msra.mxu0 %v107
    %1544 = vmatprep.subr.mxu0 %v112
    %1545 = vmatpush1.msra.mxu0 %v111
    %1546 = vmatprep.subr.mxu0 %v116
    %1547 = vmatpush1.msra.mxu0 %v115
    %1548 = vmatprep.subr.mxu0 %v120
    %1549 = vmatpush1.msra.mxu0 %v119
    %1550 = vmatprep.subr.mxu0 %v124
    %1551 = vmatpush1.msra.mxu0 %v123
    %1552 = vmatprep.subr.mxu0 %v128
    %1553 = vmatpush1.msra.mxu0 %v127
    %1554 = vmatprep.subr.mxu0 %v132
    %1555 = vmatpush1.msra.mxu0 %v131
    %1556 = vmatprep.subr.mxu0 %v136
    %1557 = vmatpush1.msra.mxu0 %v135
    %1558 = vmatprep.subr.mxu0 %v140
    %1559 = vmatpush1.msra.mxu0 %v139
    %1560 = vmatprep.subr.mxu0 %v144
    %1561 = vmatpush1.msra.mxu0 %v143
    %1562 = vmatprep.subr.mxu0 %v148
    %1563 = vmatpush1.msra.mxu0 %v147
    %1564 = vmatprep.subr.mxu0 %v152
    %1565 = vmatpush1.msra.mxu0 %v151
    %1566 = vmatprep.subr.mxu0 %v156
    %1567 = vmatpush1.msra.mxu0 %v155
    %1568 = vmatprep.subr.mxu0 %v160
    %1569 = vmatpush1.msra.mxu0 %v159
    %1570 = vmatprep.subr.mxu0 %v164
    %1571 = vmatpush1.msra.mxu0 %v163
    %1572 = vmatprep.subr.mxu0 %v168
    %1573 = vmatpush1.msra.mxu0 %v167
    %1574 = vmatprep.subr.mxu0 %v172
    %1575 = vmatpush1.msra.mxu0 %v171
    %1576 = vmatprep.subr.mxu0 %v176
    %1577 = vmatpush1.msra.mxu0 %v175
    %1578 = vmatprep.subr.mxu0 %v180
    %1579 = vmatpush1.msra.mxu0 %v179
    %1580 = vmatprep.subr.mxu0 %v184
    %1581 = vmatpush1.msra.mxu0 %v183
    %1582 = vmatprep.subr.mxu0 %v188
    %1583 = vmatpush1.msra.mxu0 %v187
    %1584 = vmatprep.subr.mxu0 %v192
    %1585 = vmatpush1.msra.mxu0 %v191
    %1586 = vmatprep.subr.mxu0 %v196
    %1587 = vmatpush1.msra.mxu0 %v195
    %1588 = vmatprep.subr.mxu0 %v200
    %1589 = vmatpush1.msra.mxu0 %v199
    %1590 = vmatprep.mubr.f32.mxu0 %v1191
    %1591 = vmatmul.mubr.f32.gmra.mrb[0].mxu0 %v1525
    %v1592 = vpop.f32.mrb[0].mxu0
    %v1593 = vadd.f32 %v464, %v1592
    %v1594 = vpop.f32.mrb[0].mxu0
    %v1595 = vadd.f32 %v468, %v1594
    %1596 = vdwg.mxu0
    %1597 = vmatprep.subr.mxu0 %v78
    %1598 = vmatpush1.msra.mxu0 %v77
    %1599 = vmatprep.subr.mxu0 %v82
    %1600 = vmatpush1.msra.mxu0 %v81
    %1601 = vmatprep.subr.mxu0 %v86
    %1602 = vmatpush1.msra.mxu0 %v85
    %1603 = vmatprep.subr.mxu0 %v90
    %1604 = vmatpush1.msra.mxu0 %v89
    %1605 = vmatprep.subr.mxu0 %v94
    %1606 = vmatpush1.msra.mxu0 %v93
    %1607 = vmatprep.subr.mxu0 %v98
    %1608 = vmatpush1.msra.mxu0 %v97
    %1609 = vmatprep.subr.mxu0 %v102
    %1610 = vmatpush1.msra.mxu0 %v101
    %1611 = vmatprep.subr.mxu0 %v106
    %1612 = vmatpush1.msra.mxu0 %v105
    %1613 = vmatprep.subr.mxu0 %v110
    %1614 = vmatpush1.msra.mxu0 %v109
    %1615 = vmatprep.subr.mxu0 %v114
    %1616 = vmatpush1.msra.mxu0 %v113
    %1617 = vmatprep.subr.mxu0 %v118
    %1618 = vmatpush1.msra.mxu0 %v117
    %1619 = vmatprep.subr.mxu0 %v122
    %1620 = vmatpush1.msra.mxu0 %v121
    %1621 = vmatprep.subr.mxu0 %v126
    %1622 = vmatpush1.msra.mxu0 %v125
    %1623 = vmatprep.subr.mxu0 %v130
    %1624 = vmatpush1.msra.mxu0 %v129
    %1625 = vmatprep.subr.mxu0 %v134
    %1626 = vmatpush1.msra.mxu0 %v133
    %1627 = vmatprep.subr.mxu0 %v138
    %1628 = vmatpush1.msra.mxu0 %v137
    %1629 = vmatprep.subr.mxu0 %v142
    %1630 = vmatpush1.msra.mxu0 %v141
    %1631 = vmatprep.subr.mxu0 %v146
    %1632 = vmatpush1.msra.mxu0 %v145
    %1633 = vmatprep.subr.mxu0 %v150
    %1634 = vmatpush1.msra.mxu0 %v149
    %1635 = vmatprep.subr.mxu0 %v154
    %1636 = vmatpush1.msra.mxu0 %v153
    %1637 = vmatprep.subr.mxu0 %v158
    %1638 = vmatpush1.msra.mxu0 %v157
    %1639 = vmatprep.subr.mxu0 %v162
    %1640 = vmatpush1.msra.mxu0 %v161
    %1641 = vmatprep.subr.mxu0 %v166
    %1642 = vmatpush1.msra.mxu0 %v165
    %1643 = vmatprep.subr.mxu0 %v170
    %1644 = vmatpush1.msra.mxu0 %v169
    %1645 = vmatprep.subr.mxu0 %v174
    %1646 = vmatpush1.msra.mxu0 %v173
    %1647 = vmatprep.subr.mxu0 %v178
    %1648 = vmatpush1.msra.mxu0 %v177
    %1649 = vmatprep.subr.mxu0 %v182
    %1650 = vmatpush1.msra.mxu0 %v181
    %1651 = vmatprep.subr.mxu0 %v186
    %1652 = vmatpush1.msra.mxu0 %v185
    %1653 = vmatprep.subr.mxu0 %v190
    %1654 = vmatpush1.msra.mxu0 %v189
    %1655 = vmatprep.subr.mxu0 %v194
    %1656 = vmatpush1.msra.mxu0 %v193
    %1657 = vmatprep.subr.mxu0 %v198
    %1658 = vmatpush1.msra.mxu0 %v197
    %1659 = vmatprep.subr.mxu0 %v202
    %1660 = vmatpush1.msra.mxu0 %v201
    %1661 = vmatprep.mubr.f32.mxu0 %v1191
    %1662 = vmatmul.mubr.f32.gmra.mrb[0].mxu0 %v1525
    %v1663 = vpop.f32.mrb[0].mxu0
    %v1664 = vadd.f32 %v472, %v1663
    %v1665 = vpop.f32.mrb[0].mxu0
    %v1666 = vadd.f32 %v476, %v1665
    %1667 = vdwg.mxu0
    %v1668 = vxor.u32 %v1593, 2147483648
    %v1669 = vmul.f32 %v1668, 1.442695
    %v1670 = vpow.pop %v1669
    %v1671 = vadd.f32 %v1670, 1.0
    %v1672 = vrcp.pop %v1671
    %v1673 = vmul.f32 1.0, %v1672
    %v1674 = vxor.u32 %v1595, 2147483648
    %v1675 = vmul.f32 %v1674, 1.442695
    %v1676 = vpow.pop %v1675
    %v1677 = vadd.f32 %v1676, 1.0
    %v1678 = vrcp.pop %v1677
    %v1679 = vmul.f32 1.0, %v1678
    %v1680 = vtanh.pop %v1664
    %v1681 = vxor.u32 %v1666, 2147483648
    %v1682 = vmul.f32 %v1681, 1.442695
    %v1683 = vpow.pop %v1682
    %v1684 = vadd.f32 %v1683, 1.0
    %v1685 = vrcp.pop %v1684
    %v1686 = vmul.f32 1.0, %v1685
    %v1687 = vmul.f32 %v1679, %v1189
    %v1688 = vmul.f32 %v1673, %v1680
    %v1689 = vadd.f32 %v1687, %v1688
    %v1690 = vtanh.pop %v1689
    %v1691 = vmul.f32 %v1686, %v1690
    %1692 = vmatprep.subr.mxu0 %v204
    %1693 = vmatpush1.msra.mxu0 %v203
    %1694 = vmatprep.subr.mxu0 %v208
    %1695 = vmatpush1.msra.mxu0 %v207
    %1696 = vmatprep.subr.mxu0 %v212
    %1697 = vmatpush1.msra.mxu0 %v211
    %1698 = vmatprep.subr.mxu0 %v216
    %1699 = vmatpush1.msra.mxu0 %v215
    %1700 = vmatprep.subr.mxu0 %v220
    %1701 = vmatpush1.msra.mxu0 %v219
    %1702 = vmatprep.subr.mxu0 %v224
    %1703 = vmatpush1.msra.mxu0 %v223
    %1704 = vmatprep.subr.mxu0 %v228
    %1705 = vmatpush1.msra.mxu0 %v227
    %1706 = vmatprep.subr.mxu0 %v232
    %1707 = vmatpush1.msra.mxu0 %v231
    %1708 = vmatprep.subr.mxu0 %v236
    %1709 = vmatpush1.msra.mxu0 %v235
    %1710 = vmatprep.subr.mxu0 %v240
    %1711 = vmatpush1.msra.mxu0 %v239
    %1712 = vmatprep.subr.mxu0 %v244
    %1713 = vmatpush1.msra.mxu0 %v243
    %1714 = vmatprep.subr.mxu0 %v248
    %1715 = vmatpush1.msra.mxu0 %v247
    %1716 = vmatprep.subr.mxu0 %v252
    %1717 = vmatpush1.msra.mxu0 %v251
    %1718 = vmatprep.subr.mxu0 %v256
    %1719 = vmatpush1.msra.mxu0 %v255
    %1720 = vmatprep.subr.mxu0 %v260
    %1721 = vmatpush1.msra.mxu0 %v259
    %1722 = vmatprep.subr.mxu0 %v264
    %1723 = vmatpush1.msra.mxu0 %v263
    %1724 = vmatprep.subr.mxu0 %v268
    %1725 = vmatpush1.msra.mxu0 %v267
    %1726 = vmatprep.subr.mxu0 %v272
    %1727 = vmatpush1.msra.mxu0 %v271
    %1728 = vmatprep.subr.mxu0 %v276
    %1729 = vmatpush1.msra.mxu0 %v275
    %1730 = vmatprep.subr.mxu0 %v280
    %1731 = vmatpush1.msra.mxu0 %v279
    %1732 = vmatprep.subr.mxu0 %v284
    %1733 = vmatpush1.msra.mxu0 %v283
    %1734 = vmatprep.subr.mxu0 %v288
    %1735 = vmatpush1.msra.mxu0 %v287
    %1736 = vmatprep.subr.mxu0 %v292
    %1737 = vmatpush1.msra.mxu0 %v291
    %1738 = vmatprep.subr.mxu0 %v296
    %1739 = vmatpush1.msra.mxu0 %v295
    %1740 = vmatprep.subr.mxu0 %v300
    %1741 = vmatpush1.msra.mxu0 %v299
    %1742 = vmatprep.subr.mxu0 %v304
    %1743 = vmatpush1.msra.mxu0 %v303
    %1744 = vmatprep.subr.mxu0 %v308
    %1745 = vmatpush1.msra.mxu0 %v307
    %1746 = vmatprep.subr.mxu0 %v312
    %1747 = vmatpush1.msra.mxu0 %v311
    %1748 = vmatprep.subr.mxu0 %v316
    %1749 = vmatpush1.msra.mxu0 %v315
    %1750 = vmatprep.subr.mxu0 %v320
    %1751 = vmatpush1.msra.mxu0 %v319
    %1752 = vmatprep.subr.mxu0 %v324
    %1753 = vmatpush1.msra.mxu0 %v323
    %1754 = vmatprep.subr.mxu0 %v328
    %1755 = vmatpush1.msra.mxu0 %v327
    %1756 = vmatprep.mubr.f32.mxu0 %v1357
    %1757 = vmatmul.mubr.f32.gmra.mrb[0].mxu0 %v1691
    %v1758 = vpop.f32.mrb[0].mxu0
    %v1759 = vadd.f32 %v486, %v1758
    %v1760 = vpop.f32.mrb[0].mxu0
    %v1761 = vadd.f32 %v490, %v1760
    %1762 = vdwg.mxu0
    %1763 = vmatprep.subr.mxu0 %v206
    %1764 = vmatpush1.msra.mxu0 %v205
    %1765 = vmatprep.subr.mxu0 %v210
    %1766 = vmatpush1.msra.mxu0 %v209
    %1767 = vmatprep.subr.mxu0 %v214
    %1768 = vmatpush1.msra.mxu0 %v213
    %1769 = vmatprep.subr.mxu0 %v218
    %1770 = vmatpush1.msra.mxu0 %v217
    %1771 = vmatprep.subr.mxu0 %v222
    %1772 = vmatpush1.msra.mxu0 %v221
    %1773 = vmatprep.subr.mxu0 %v226
    %1774 = vmatpush1.msra.mxu0 %v225
    %1775 = vmatprep.subr.mxu0 %v230
    %1776 = vmatpush1.msra.mxu0 %v229
    %1777 = vmatprep.subr.mxu0 %v234
    %1778 = vmatpush1.msra.mxu0 %v233
    %1779 = vmatprep.subr.mxu0 %v238
    %1780 = vmatpush1.msra.mxu0 %v237
    %1781 = vmatprep.subr.mxu0 %v242
    %1782 = vmatpush1.msra.mxu0 %v241
    %1783 = vmatprep.subr.mxu0 %v246
    %1784 = vmatpush1.msra.mxu0 %v245
    %1785 = vmatprep.subr.mxu0 %v250
    %1786 = vmatpush1.msra.mxu0 %v249
    %1787 = vmatprep.subr.mxu0 %v254
    %1788 = vmatpush1.msra.mxu0 %v253
    %1789 = vmatprep.subr.mxu0 %v258
    %1790 = vmatpush1.msra.mxu0 %v257
    %1791 = vmatprep.subr.mxu0 %v262
    %1792 = vmatpush1.msra.mxu0 %v261
    %1793 = vmatprep.subr.mxu0 %v266
    %1794 = vmatpush1.msra.mxu0 %v265
    %1795 = vmatprep.subr.mxu0 %v270
    %1796 = vmatpush1.msra.mxu0 %v269
    %1797 = vmatprep.subr.mxu0 %v274
    %1798 = vmatpush1.msra.mxu0 %v273
    %1799 = vmatprep.subr.mxu0 %v278
    %1800 = vmatpush1.msra.mxu0 %v277
    %1801 = vmatprep.subr.mxu0 %v282
    %1802 = vmatpush1.msra.mxu0 %v281
    %1803 = vmatprep.subr.mxu0 %v286
    %1804 = vmatpush1.msra.mxu0 %v285
    %1805 = vmatprep.subr.mxu0 %v290
    %1806 = vmatpush1.msra.mxu0 %v289
    %1807 = vmatprep.subr.mxu0 %v294
    %1808 = vmatpush1.msra.mxu0 %v293
    %1809 = vmatprep.subr.mxu0 %v298
    %1810 = vmatpush1.msra.mxu0 %v297
    %1811 = vmatprep.subr.mxu0 %v302
    %1812 = vmatpush1.msra.mxu0 %v301
    %1813 = vmatprep.subr.mxu0 %v306
    %1814 = vmatpush1.msra.mxu0 %v305
    %1815 = vmatprep.subr.mxu0 %v310
    %1816 = vmatpush1.msra.mxu0 %v309
    %1817 = vmatprep.subr.mxu0 %v314
    %1818 = vmatpush1.msra.mxu0 %v313
    %1819 = vmatprep.subr.mxu0 %v318
    %1820 = vmatpush1.msra.mxu0 %v317
    %1821 = vmatprep.subr.mxu0 %v322
    %1822 = vmatpush1.msra.mxu0 %v321
    %1823 = vmatprep.subr.mxu0 %v326
    %1824 = vmatpush1.msra.mxu0 %v325
    %1825 = vmatprep.subr.mxu0 %v330
    %1826 = vmatpush1.msra.mxu0 %v329
    %1827 = vmatprep.mubr.f32.mxu0 %v1357
    %1828 = vmatmul.mubr.f32.gmra.mrb[0].mxu0 %v1691
    %v1829 = vpop.f32.mrb[0].mxu0
    %v1830 = vadd.f32 %v494, %v1829
    %v1831 = vpop.f32.mrb[0].mxu0
    %v1832 = vadd.f32 %v498, %v1831
    %1833 = vdwg.mxu0
    %v1834 = vxor.u32 %v1759, 2147483648
    %v1835 = vmul.f32 %v1834, 1.442695
    %v1836 = vpow.pop %v1835
    %v1837 = vadd.f32 %v1836, 1.0
    %v1838 = vrcp.pop %v1837
    %v1839 = vmul.f32 1.0, %v1838
    %v1840 = vxor.u32 %v1761, 2147483648
    %v1841 = vmul.f32 %v1840, 1.442695
    %v1842 = vpow.pop %v1841
    %v1843 = vadd.f32 %v1842, 1.0
    %v1844 = vrcp.pop %v1843
    %v1845 = vmul.f32 1.0, %v1844
    %v1846 = vtanh.pop %v1830
    %v1847 = vxor.u32 %v1832, 2147483648
    %v1848 = vmul.f32 %v1847, 1.442695
    %v1849 = vpow.pop %v1848
    %v1850 = vadd.f32 %v1849, 1.0
    %v1851 = vrcp.pop %v1850
    %v1852 = vmul.f32 1.0, %v1851
    %v1853 = vmul.f32 %v1845, %v1355
    %v1854 = vmul.f32 %v1839, %v1846
    %v1855 = vadd.f32 %v1853, %v1854
    %v1856 = vtanh.pop %v1855
    %v1857 = vmul.f32 %v1852, %v1856
    %1858 = vmatprep.subr.mxu0 %v332
    %1859 = vmatpush1.msra.mxu0 %v331
    %1860 = vmatprep.subr.mxu0 %v336
    %1861 = vmatpush1.msra.mxu0 %v335
    %1862 = vmatprep.subr.mxu0 %v340
    %1863 = vmatpush1.msra.mxu0 %v339
    %1864 = vmatprep.subr.mxu0 %v344
    %1865 = vmatpush1.msra.mxu0 %v343
    %1866 = vmatprep.subr.mxu0 %v348
    %1867 = vmatpush1.msra.mxu0 %v347
    %1868 = vmatprep.subr.mxu0 %v352
    %1869 = vmatpush1.msra.mxu0 %v351
    %1870 = vmatprep.subr.mxu0 %v356
    %1871 = vmatpush1.msra.mxu0 %v355
    %1872 = vmatprep.subr.mxu0 %v360
    %1873 = vmatpush1.msra.mxu0 %v359
    %1874 = vmatprep.subr.mxu0 %v364
    %1875 = vmatpush1.msra.mxu0 %v363
    %1876 = vmatprep.subr.mxu0 %v368
    %1877 = vmatpush1.msra.mxu0 %v367
    %1878 = vmatprep.subr.mxu0 %v372
    %1879 = vmatpush1.msra.mxu0 %v371
    %1880 = vmatprep.subr.mxu0 %v376
    %1881 = vmatpush1.msra.mxu0 %v375
    %1882 = vmatprep.subr.mxu0 %v380
    %1883 = vmatpush1.msra.mxu0 %v379
    %1884 = vmatprep.subr.mxu0 %v384
    %1885 = vmatpush1.msra.mxu0 %v383
    %1886 = vmatprep.subr.mxu0 %v388
    %1887 = vmatpush1.msra.mxu0 %v387
    %1888 = vmatprep.subr.mxu0 %v392
    %1889 = vmatpush1.msra.mxu0 %v391
    %1890 = vmatprep.subr.mxu0 %v396
    %1891 = vmatpush1.msra.mxu0 %v395
    %1892 = vmatprep.subr.mxu0 %v400
    %1893 = vmatpush1.msra.mxu0 %v399
    %1894 = vmatprep.subr.mxu0 %v404
    %1895 = vmatpush1.msra.mxu0 %v403
    %1896 = vmatprep.subr.mxu0 %v408
    %1897 = vmatpush1.msra.mxu0 %v407
    %1898 = vmatprep.subr.mxu0 %v412
    %1899 = vmatpush1.msra.mxu0 %v411
    %1900 = vmatprep.subr.mxu0 %v416
    %1901 = vmatpush1.msra.mxu0 %v415
    %1902 = vmatprep.subr.mxu0 %v420
    %1903 = vmatpush1.msra.mxu0 %v419
    %1904 = vmatprep.subr.mxu0 %v424
    %1905 = vmatpush1.msra.mxu0 %v423
    %1906 = vmatprep.subr.mxu0 %v428
    %1907 = vmatpush1.msra.mxu0 %v427
    %1908 = vmatprep.subr.mxu0 %v432
    %1909 = vmatpush1.msra.mxu0 %v431
    %1910 = vmatprep.subr.mxu0 %v436
    %1911 = vmatpush1.msra.mxu0 %v435
    %1912 = vmatprep.subr.mxu0 %v440
    %1913 = vmatpush1.msra.mxu0 %v439
    %1914 = vmatprep.subr.mxu0 %v444
    %1915 = vmatpush1.msra.mxu0 %v443
    %1916 = vmatprep.subr.mxu0 %v448
    %1917 = vmatpush1.msra.mxu0 %v447
    %1918 = vmatprep.subr.mxu0 %v452
    %1919 = vmatpush1.msra.mxu0 %v451
    %1920 = vmatprep.subr.mxu0 %v456
    %1921 = vmatpush1.msra.mxu0 %v455
    %1922 = vmatprep.mubr.f32.mxu0 %v1523
    %1923 = vmatmul.mubr.f32.gmra.mrb[0].mxu0 %v1857
    %v1924 = vpop.f32.mrb[0].mxu0
    %v1925 = vadd.f32 %v508, %v1924
    %v1926 = vpop.f32.mrb[0].mxu0
    %v1927 = vadd.f32 %v512, %v1926
    %1928 = vdwg.mxu0
    %1929 = vmatprep.subr.mxu0 %v334
    %1930 = vmatpush1.msra.mxu0 %v333
    %1931 = vmatprep.subr.mxu0 %v338
    %1932 = vmatpush1.msra.mxu0 %v337
    %1933 = vmatprep.subr.mxu0 %v342
    %1934 = vmatpush1.msra.mxu0 %v341
    %1935 = vmatprep.subr.mxu0 %v346
    %1936 = vmatpush1.msra.mxu0 %v345
    %1937 = vmatprep.subr.mxu0 %v350
    %1938 = vmatpush1.msra.mxu0 %v349
    %1939 = vmatprep.subr.mxu0 %v354
    %1940 = vmatpush1.msra.mxu0 %v353
    %1941 = vmatprep.subr.mxu0 %v358
    %1942 = vmatpush1.msra.mxu0 %v357
    %1943 = vmatprep.subr.mxu0 %v362
    %1944 = vmatpush1.msra.mxu0 %v361
    %1945 = vmatprep.subr.mxu0 %v366
    %1946 = vmatpush1.msra.mxu0 %v365
    %1947 = vmatprep.subr.mxu0 %v370
    %1948 = vmatpush1.msra.mxu0 %v369
    %1949 = vmatprep.subr.mxu0 %v374
    %1950 = vmatpush1.msra.mxu0 %v373
    %1951 = vmatprep.subr.mxu0 %v378
    %1952 = vmatpush1.msra.mxu0 %v377
    %1953 = vmatprep.subr.mxu0 %v382
    %1954 = vmatpush1.msra.mxu0 %v381
    %1955 = vmatprep.subr.mxu0 %v386
    %1956 = vmatpush1.msra.mxu0 %v385
    %1957 = vmatprep.subr.mxu0 %v390
    %1958 = vmatpush1.msra.mxu0 %v389
    %1959 = vmatprep.subr.mxu0 %v394
    %1960 = vmatpush1.msra.mxu0 %v393
    %1961 = vmatprep.subr.mxu0 %v398
    %1962 = vmatpush1.msra.mxu0 %v397
    %1963 = vmatprep.subr.mxu0 %v402
    %1964 = vmatpush1.msra.mxu0 %v401
    %1965 = vmatprep.subr.mxu0 %v406
    %1966 = vmatpush1.msra.mxu0 %v405
    %1967 = vmatprep.subr.mxu0 %v410
    %1968 = vmatpush1.msra.mxu0 %v409
    %1969 = vmatprep.subr.mxu0 %v414
    %1970 = vmatpush1.msra.mxu0 %v413
    %1971 = vmatprep.subr.mxu0 %v418
    %1972 = vmatpush1.msra.mxu0 %v417
    %1973 = vmatprep.subr.mxu0 %v422
    %1974 = vmatpush1.msra.mxu0 %v421
    %1975 = vmatprep.subr.mxu0 %v426
    %1976 = vmatpush1.msra.mxu0 %v425
    %1977 = vmatprep.subr.mxu0 %v430
    %1978 = vmatpush1.msra.mxu0 %v429
    %1979 = vmatprep.subr.mxu0 %v434
    %1980 = vmatpush1.msra.mxu0 %v433
    %1981 = vmatprep.subr.mxu0 %v438
    %1982 = vmatpush1.msra.mxu0 %v437
    %1983 = vmatprep.subr.mxu0 %v442
    %1984 = vmatpush1.msra.mxu0 %v441
    %1985 = vmatprep.subr.mxu0 %v446
    %1986 = vmatpush1.msra.mxu0 %v445
    %1987 = vmatprep.subr.mxu0 %v450
    %1988 = vmatpush1.msra.mxu0 %v449
    %1989 = vmatprep.subr.mxu0 %v454
    %1990 = vmatpush1.msra.mxu0 %v453
    %1991 = vmatprep.subr.mxu0 %v458
    %1992 = vmatpush1.msra.mxu0 %v457
    %1993 = vmatprep.mubr.f32.mxu0 %v1523
    %1994 = vmatmul.mubr.f32.gmra.mrb[0].mxu0 %v1857
    %v1995 = vpop.f32.mrb[0].mxu0
    %v1996 = vadd.f32 %v516, %v1995
    %v1997 = vpop.f32.mrb[0].mxu0
    %v1998 = vadd.f32 %v520, %v1997
    %1999 = vdwg.mxu0
    %v2000 = vxor.u32 %v1925, 2147483648
    %v2001 = vmul.f32 %v2000, 1.442695
    %v2002 = vpow.pop %v2001
    %v2003 = vadd.f32 %v2002, 1.0
    %v2004 = vrcp.pop %v2003
    %v2005 = vmul.f32 1.0, %v2004
    %v2006 = vxor.u32 %v1927, 2147483648
    %v2007 = vmul.f32 %v2006, 1.442695
    %v2008 = vpow.pop %v2007
    %v2009 = vadd.f32 %v2008, 1.0
    %v2010 = vrcp.pop %v2009
    %v2011 = vmul.f32 1.0, %v2010
    %v2012 = vtanh.pop %v1996
    %v2013 = vxor.u32 %v1998, 2147483648
    %v2014 = vmul.f32 %v2013, 1.442695
    %v2015 = vpow.pop %v2014
    %v2016 = vadd.f32 %v2015, 1.0
    %v2017 = vrcp.pop %v2016
    %v2018 = vmul.f32 1.0, %v2017
    %v2019 = vmul.f32 %v2011, %v1521
    %v2020 = vmul.f32 %v2005, %v2012
    %v2021 = vadd.f32 %v2019, %v2020
    %v2022 = vtanh.pop %v2021
    %v2023 = vmul.f32 %v2018, %v2022
    %s2024 = scalar_lea.vmem %s0, 24
    %v2025 = vld [vmem:[%s2024] sm:$0xff]
    %2026 = vmatprep.subr.mxu0 %v76
    %2027 = vmatpush1.msra.mxu0 %v75
    %2028 = vmatprep.subr.mxu0 %v80
    %2029 = vmatpush1.msra.mxu0 %v79
    %2030 = vmatprep.subr.mxu0 %v84
    %2031 = vmatpush1.msra.mxu0 %v83
    %2032 = vmatprep.subr.mxu0 %v88
    %2033 = vmatpush1.msra.mxu0 %v87
    %2034 = vmatprep.subr.mxu0 %v92
    %2035 = vmatpush1.msra.mxu0 %v91
    %2036 = vmatprep.subr.mxu0 %v96
    %2037 = vmatpush1.msra.mxu0 %v95
    %2038 = vmatprep.subr.mxu0 %v100
    %2039 = vmatpush1.msra.mxu0 %v99
    %2040 = vmatprep.subr.mxu0 %v104
    %2041 = vmatpush1.msra.mxu0 %v103
    %2042 = vmatprep.subr.mxu0 %v108
    %2043 = vmatpush1.msra.mxu0 %v107
    %2044 = vmatprep.subr.mxu0 %v112
    %2045 = vmatpush1.msra.mxu0 %v111
    %2046 = vmatprep.subr.mxu0 %v116
    %2047 = vmatpush1.msra.mxu0 %v115
    %2048 = vmatprep.subr.mxu0 %v120
    %2049 = vmatpush1.msra.mxu0 %v119
    %2050 = vmatprep.subr.mxu0 %v124
    %2051 = vmatpush1.msra.mxu0 %v123
    %2052 = vmatprep.subr.mxu0 %v128
    %2053 = vmatpush1.msra.mxu0 %v127
    %2054 = vmatprep.subr.mxu0 %v132
    %2055 = vmatpush1.msra.mxu0 %v131
    %2056 = vmatprep.subr.mxu0 %v136
    %2057 = vmatpush1.msra.mxu0 %v135
    %2058 = vmatprep.subr.mxu0 %v140
    %2059 = vmatpush1.msra.mxu0 %v139
    %2060 = vmatprep.subr.mxu0 %v144
    %2061 = vmatpush1.msra.mxu0 %v143
    %2062 = vmatprep.subr.mxu0 %v148
    %2063 = vmatpush1.msra.mxu0 %v147
    %2064 = vmatprep.subr.mxu0 %v152
    %2065 = vmatpush1.msra.mxu0 %v151
    %2066 = vmatprep.subr.mxu0 %v156
    %2067 = vmatpush1.msra.mxu0 %v155
    %2068 = vmatprep.subr.mxu0 %v160
    %2069 = vmatpush1.msra.mxu0 %v159
    %2070 = vmatprep.subr.mxu0 %v164
    %2071 = vmatpush1.msra.mxu0 %v163
    %2072 = vmatprep.subr.mxu0 %v168
    %2073 = vmatpush1.msra.mxu0 %v167
    %2074 = vmatprep.subr.mxu0 %v172
    %2075 = vmatpush1.msra.mxu0 %v171
    %2076 = vmatprep.subr.mxu0 %v176
    %2077 = vmatpush1.msra.mxu0 %v175
    %2078 = vmatprep.subr.mxu0 %v180
    %2079 = vmatpush1.msra.mxu0 %v179
    %2080 = vmatprep.subr.mxu0 %v184
    %2081 = vmatpush1.msra.mxu0 %v183
    %2082 = vmatprep.subr.mxu0 %v188
    %2083 = vmatpush1.msra.mxu0 %v187
    %2084 = vmatprep.subr.mxu0 %v192
    %2085 = vmatpush1.msra.mxu0 %v191
    %2086 = vmatprep.subr.mxu0 %v196
    %2087 = vmatpush1.msra.mxu0 %v195
    %2088 = vmatprep.subr.mxu0 %v200
    %2089 = vmatpush1.msra.mxu0 %v199
    %2090 = vmatprep.mubr.f32.mxu0 %v1691
    %2091 = vmatmul.mubr.f32.gmra.mrb[0].mxu0 %v2025
    %v2092 = vpop.f32.mrb[0].mxu0
    %v2093 = vadd.f32 %v464, %v2092
    %v2094 = vpop.f32.mrb[0].mxu0
    %v2095 = vadd.f32 %v468, %v2094
    %2096 = vdwg.mxu0
    %2097 = vmatprep.subr.mxu0 %v78
    %2098 = vmatpush1.msra.mxu0 %v77
    %2099 = vmatprep.subr.mxu0 %v82
    %2100 = vmatpush1.msra.mxu0 %v81
    %2101 = vmatprep.subr.mxu0 %v86
    %2102 = vmatpush1.msra.mxu0 %v85
    %2103 = vmatprep.subr.mxu0 %v90
    %2104 = vmatpush1.msra.mxu0 %v89
    %2105 = vmatprep.subr.mxu0 %v94
    %2106 = vmatpush1.msra.mxu0 %v93
    %2107 = vmatprep.subr.mxu0 %v98
    %2108 = vmatpush1.msra.mxu0 %v97
    %2109 = vmatprep.subr.mxu0 %v102
    %2110 = vmatpush1.msra.mxu0 %v101
    %2111 = vmatprep.subr.mxu0 %v106
    %2112 = vmatpush1.msra.mxu0 %v105
    %2113 = vmatprep.subr.mxu0 %v110
    %2114 = vmatpush1.msra.mxu0 %v109
    %2115 = vmatprep.subr.mxu0 %v114
    %2116 = vmatpush1.msra.mxu0 %v113
    %2117 = vmatprep.subr.mxu0 %v118
    %2118 = vmatpush1.msra.mxu0 %v117
    %2119 = vmatprep.subr.mxu0 %v122
    %2120 = vmatpush1.msra.mxu0 %v121
    %2121 = vmatprep.subr.mxu0 %v126
    %2122 = vmatpush1.msra.mxu0 %v125
    %2123 = vmatprep.subr.mxu0 %v130
    %2124 = vmatpush1.msra.mxu0 %v129
    %2125 = vmatprep.subr.mxu0 %v134
    %2126 = vmatpush1.msra.mxu0 %v133
    %2127 = vmatprep.subr.mxu0 %v138
    %2128 = vmatpush1.msra.mxu0 %v137
    %2129 = vmatprep.subr.mxu0 %v142
    %2130 = vmatpush1.msra.mxu0 %v141
    %2131 = vmatprep.subr.mxu0 %v146
    %2132 = vmatpush1.msra.mxu0 %v145
    %2133 = vmatprep.subr.mxu0 %v150
    %2134 = vmatpush1.msra.mxu0 %v149
    %2135 = vmatprep.subr.mxu0 %v154
    %2136 = vmatpush1.msra.mxu0 %v153
    %2137 = vmatprep.subr.mxu0 %v158
    %2138 = vmatpush1.msra.mxu0 %v157
    %2139 = vmatprep.subr.mxu0 %v162
    %2140 = vmatpush1.msra.mxu0 %v161
    %2141 = vmatprep.subr.mxu0 %v166
    %2142 = vmatpush1.msra.mxu0 %v165
    %2143 = vmatprep.subr.mxu0 %v170
    %2144 = vmatpush1.msra.mxu0 %v169
    %2145 = vmatprep.subr.mxu0 %v174
    %2146 = vmatpush1.msra.mxu0 %v173
    %2147 = vmatprep.subr.mxu0 %v178
    %2148 = vmatpush1.msra.mxu0 %v177
    %2149 = vmatprep.subr.mxu0 %v182
    %2150 = vmatpush1.msra.mxu0 %v181
    %2151 = vmatprep.subr.mxu0 %v186
    %2152 = vmatpush1.msra.mxu0 %v185
    %2153 = vmatprep.subr.mxu0 %v190
    %2154 = vmatpush1.msra.mxu0 %v189
    %2155 = vmatprep.subr.mxu0 %v194
    %2156 = vmatpush1.msra.mxu0 %v193
    %2157 = vmatprep.subr.mxu0 %v198
    %2158 = vmatpush1.msra.mxu0 %v197
    %2159 = vmatprep.subr.mxu0 %v202
    %2160 = vmatpush1.msra.mxu0 %v201
    %2161 = vmatprep.mubr.f32.mxu0 %v1691
    %2162 = vmatmul.mubr.f32.gmra.mrb[0].mxu0 %v2025
    %v2163 = vpop.f32.mrb[0].mxu0
    %v2164 = vadd.f32 %v472, %v2163
    %v2165 = vpop.f32.mrb[0].mxu0
    %v2166 = vadd.f32 %v476, %v2165
    %2167 = vdwg.mxu0
    %v2168 = vxor.u32 %v2093, 2147483648
    %v2169 = vmul.f32 %v2168, 1.442695
    %v2170 = vpow.pop %v2169
    %v2171 = vadd.f32 %v2170, 1.0
    %v2172 = vrcp.pop %v2171
    %v2173 = vmul.f32 1.0, %v2172
    %v2174 = vxor.u32 %v2095, 2147483648
    %v2175 = vmul.f32 %v2174, 1.442695
    %v2176 = vpow.pop %v2175
    %v2177 = vadd.f32 %v2176, 1.0
    %v2178 = vrcp.pop %v2177
    %v2179 = vmul.f32 1.0, %v2178
    %v2180 = vtanh.pop %v2164
    %v2181 = vxor.u32 %v2166, 2147483648
    %v2182 = vmul.f32 %v2181, 1.442695
    %v2183 = vpow.pop %v2182
    %v2184 = vadd.f32 %v2183, 1.0
    %v2185 = vrcp.pop %v2184
    %v2186 = vmul.f32 1.0, %v2185
    %v2187 = vmul.f32 %v2179, %v1689
    %v2188 = vmul.f32 %v2173, %v2180
    %v2189 = vadd.f32 %v2187, %v2188
    %v2190 = vtanh.pop %v2189
    %v2191 = vmul.f32 %v2186, %v2190
    %2192 = vmatprep.subr.mxu0 %v204
    %2193 = vmatpush1.msra.mxu0 %v203
    %2194 = vmatprep.subr.mxu0 %v208
    %2195 = vmatpush1.msra.mxu0 %v207
    %2196 = vmatprep.subr.mxu0 %v212
    %2197 = vmatpush1.msra.mxu0 %v211
    %2198 = vmatprep.subr.mxu0 %v216
    %2199 = vmatpush1.msra.mxu0 %v215
    %2200 = vmatprep.subr.mxu0 %v220
    %2201 = vmatpush1.msra.mxu0 %v219
    %2202 = vmatprep.subr.mxu0 %v224
    %2203 = vmatpush1.msra.mxu0 %v223
    %2204 = vmatprep.subr.mxu0 %v228
    %2205 = vmatpush1.msra.mxu0 %v227
    %2206 = vmatprep.subr.mxu0 %v232
    %2207 = vmatpush1.msra.mxu0 %v231
    %2208 = vmatprep.subr.mxu0 %v236
    %2209 = vmatpush1.msra.mxu0 %v235
    %2210 = vmatprep.subr.mxu0 %v240
    %2211 = vmatpush1.msra.mxu0 %v239
    %2212 = vmatprep.subr.mxu0 %v244
    %2213 = vmatpush1.msra.mxu0 %v243
    %2214 = vmatprep.subr.mxu0 %v248
    %2215 = vmatpush1.msra.mxu0 %v247
    %2216 = vmatprep.subr.mxu0 %v252
    %2217 = vmatpush1.msra.mxu0 %v251
    %2218 = vmatprep.subr.mxu0 %v256
    %2219 = vmatpush1.msra.mxu0 %v255
    %2220 = vmatprep.subr.mxu0 %v260
    %2221 = vmatpush1.msra.mxu0 %v259
    %2222 = vmatprep.subr.mxu0 %v264
    %2223 = vmatpush1.msra.mxu0 %v263
    %2224 = vmatprep.subr.mxu0 %v268
    %2225 = vmatpush1.msra.mxu0 %v267
    %2226 = vmatprep.subr.mxu0 %v272
    %2227 = vmatpush1.msra.mxu0 %v271
    %2228 = vmatprep.subr.mxu0 %v276
    %2229 = vmatpush1.msra.mxu0 %v275
    %2230 = vmatprep.subr.mxu0 %v280
    %2231 = vmatpush1.msra.mxu0 %v279
    %2232 = vmatprep.subr.mxu0 %v284
    %2233 = vmatpush1.msra.mxu0 %v283
    %2234 = vmatprep.subr.mxu0 %v288
    %2235 = vmatpush1.msra.mxu0 %v287
    %2236 = vmatprep.subr.mxu0 %v292
    %2237 = vmatpush1.msra.mxu0 %v291
    %2238 = vmatprep.subr.mxu0 %v296
    %2239 = vmatpush1.msra.mxu0 %v295
    %2240 = vmatprep.subr.mxu0 %v300
    %2241 = vmatpush1.msra.mxu0 %v299
    %2242 = vmatprep.subr.mxu0 %v304
    %2243 = vmatpush1.msra.mxu0 %v303
    %2244 = vmatprep.subr.mxu0 %v308
    %2245 = vmatpush1.msra.mxu0 %v307
    %2246 = vmatprep.subr.mxu0 %v312
    %2247 = vmatpush1.msra.mxu0 %v311
    %2248 = vmatprep.subr.mxu0 %v316
    %2249 = vmatpush1.msra.mxu0 %v315
    %2250 = vmatprep.subr.mxu0 %v320
    %2251 = vmatpush1.msra.mxu0 %v319
    %2252 = vmatprep.subr.mxu0 %v324
    %2253 = vmatpush1.msra.mxu0 %v323
    %2254 = vmatprep.subr.mxu0 %v328
    %2255 = vmatpush1.msra.mxu0 %v327
    %2256 = vmatprep.mubr.f32.mxu0 %v1857
    %2257 = vmatmul.mubr.f32.gmra.mrb[0].mxu0 %v2191
    %v2258 = vpop.f32.mrb[0].mxu0
    %v2259 = vadd.f32 %v486, %v2258
    %v2260 = vpop.f32.mrb[0].mxu0
    %v2261 = vadd.f32 %v490, %v2260
    %2262 = vdwg.mxu0
    %2263 = vmatprep.subr.mxu0 %v206
    %2264 = vmatpush1.msra.mxu0 %v205
    %2265 = vmatprep.subr.mxu0 %v210
    %2266 = vmatpush1.msra.mxu0 %v209
    %2267 = vmatprep.subr.mxu0 %v214
    %2268 = vmatpush1.msra.mxu0 %v213
    %2269 = vmatprep.subr.mxu0 %v218
    %2270 = vmatpush1.msra.mxu0 %v217
    %2271 = vmatprep.subr.mxu0 %v222
    %2272 = vmatpush1.msra.mxu0 %v221
    %2273 = vmatprep.subr.mxu0 %v226
    %2274 = vmatpush1.msra.mxu0 %v225
    %2275 = vmatprep.subr.mxu0 %v230
    %2276 = vmatpush1.msra.mxu0 %v229
    %2277 = vmatprep.subr.mxu0 %v234
    %2278 = vmatpush1.msra.mxu0 %v233
    %2279 = vmatprep.subr.mxu0 %v238
    %2280 = vmatpush1.msra.mxu0 %v237
    %2281 = vmatprep.subr.mxu0 %v242
    %2282 = vmatpush1.msra.mxu0 %v241
    %2283 = vmatprep.subr.mxu0 %v246
    %2284 = vmatpush1.msra.mxu0 %v245
    %2285 = vmatprep.subr.mxu0 %v250
    %2286 = vmatpush1.msra.mxu0 %v249
    %2287 = vmatprep.subr.mxu0 %v254
    %2288 = vmatpush1.msra.mxu0 %v253
    %2289 = vmatprep.subr.mxu0 %v258
    %2290 = vmatpush1.msra.mxu0 %v257
    %2291 = vmatprep.subr.mxu0 %v262
    %2292 = vmatpush1.msra.mxu0 %v261
    %2293 = vmatprep.subr.mxu0 %v266
    %2294 = vmatpush1.msra.mxu0 %v265
    %2295 = vmatprep.subr.mxu0 %v270
    %2296 = vmatpush1.msra.mxu0 %v269
    %2297 = vmatprep.subr.mxu0 %v274
    %2298 = vmatpush1.msra.mxu0 %v273
    %2299 = vmatprep.subr.mxu0 %v278
    %2300 = vmatpush1.msra.mxu0 %v277
    %2301 = vmatprep.subr.mxu0 %v282
    %2302 = vmatpush1.msra.mxu0 %v281
    %2303 = vmatprep.subr.mxu0 %v286
    %2304 = vmatpush1.msra.mxu0 %v285
    %2305 = vmatprep.subr.mxu0 %v290
    %2306 = vmatpush1.msra.mxu0 %v289
    %2307 = vmatprep.subr.mxu0 %v294
    %2308 = vmatpush1.msra.mxu0 %v293
    %2309 = vmatprep.subr.mxu0 %v298
    %2310 = vmatpush1.msra.mxu0 %v297
    %2311 = vmatprep.subr.mxu0 %v302
    %2312 = vmatpush1.msra.mxu0 %v301
    %2313 = vmatprep.subr.mxu0 %v306
    %2314 = vmatpush1.msra.mxu0 %v305
    %2315 = vmatprep.subr.mxu0 %v310
    %2316 = vmatpush1.msra.mxu0 %v309
    %2317 = vmatprep.subr.mxu0 %v314
    %2318 = vmatpush1.msra.mxu0 %v313
    %2319 = vmatprep.subr.mxu0 %v318
    %2320 = vmatpush1.msra.mxu0 %v317
    %2321 = vmatprep.subr.mxu0 %v322
    %2322 = vmatpush1.msra.mxu0 %v321
    %2323 = vmatprep.subr.mxu0 %v326
    %2324 = vmatpush1.msra.mxu0 %v325
    %2325 = vmatprep.subr.mxu0 %v330
    %2326 = vmatpush1.msra.mxu0 %v329
    %2327 = vmatprep.mubr.f32.mxu0 %v1857
    %2328 = vmatmul.mubr.f32.gmra.mrb[0].mxu0 %v2191
    %v2329 = vpop.f32.mrb[0].mxu0
    %v2330 = vadd.f32 %v494, %v2329
    %v2331 = vpop.f32.mrb[0].mxu0
    %v2332 = vadd.f32 %v498, %v2331
    %2333 = vdwg.mxu0
    %v2334 = vxor.u32 %v2259, 2147483648
    %v2335 = vmul.f32 %v2334, 1.442695
    %v2336 = vpow.pop %v2335
    %v2337 = vadd.f32 %v2336, 1.0
    %v2338 = vrcp.pop %v2337
    %v2339 = vmul.f32 1.0, %v2338
    %v2340 = vxor.u32 %v2261, 2147483648
    %v2341 = vmul.f32 %v2340, 1.442695
    %v2342 = vpow.pop %v2341
    %v2343 = vadd.f32 %v2342, 1.0
    %v2344 = vrcp.pop %v2343
    %v2345 = vmul.f32 1.0, %v2344
    %v2346 = vtanh.pop %v2330
    %v2347 = vxor.u32 %v2332, 2147483648
    %v2348 = vmul.f32 %v2347, 1.442695
    %v2349 = vpow.pop %v2348
    %v2350 = vadd.f32 %v2349, 1.0
    %v2351 = vrcp.pop %v2350
    %v2352 = vmul.f32 1.0, %v2351
    %v2353 = vmul.f32 %v2345, %v1855
    %v2354 = vmul.f32 %v2339, %v2346
    %v2355 = vadd.f32 %v2353, %v2354
    %v2356 = vtanh.pop %v2355
    %v2357 = vmul.f32 %v2352, %v2356
    %2358 = vmatprep.subr.mxu0 %v332
    %2359 = vmatpush1.msra.mxu0 %v331
    %2360 = vmatprep.subr.mxu0 %v336
    %2361 = vmatpush1.msra.mxu0 %v335
    %2362 = vmatprep.subr.mxu0 %v340
    %2363 = vmatpush1.msra.mxu0 %v339
    %2364 = vmatprep.subr.mxu0 %v344
    %2365 = vmatpush1.msra.mxu0 %v343
    %2366 = vmatprep.subr.mxu0 %v348
    %2367 = vmatpush1.msra.mxu0 %v347
    %2368 = vmatprep.subr.mxu0 %v352
    %2369 = vmatpush1.msra.mxu0 %v351
    %2370 = vmatprep.subr.mxu0 %v356
    %2371 = vmatpush1.msra.mxu0 %v355
    %2372 = vmatprep.subr.mxu0 %v360
    %2373 = vmatpush1.msra.mxu0 %v359
    %2374 = vmatprep.subr.mxu0 %v364
    %2375 = vmatpush1.msra.mxu0 %v363
    %2376 = vmatprep.subr.mxu0 %v368
    %2377 = vmatpush1.msra.mxu0 %v367
    %2378 = vmatprep.subr.mxu0 %v372
    %2379 = vmatpush1.msra.mxu0 %v371
    %2380 = vmatprep.subr.mxu0 %v376
    %2381 = vmatpush1.msra.mxu0 %v375
    %2382 = vmatprep.subr.mxu0 %v380
    %2383 = vmatpush1.msra.mxu0 %v379
    %2384 = vmatprep.subr.mxu0 %v384
    %2385 = vmatpush1.msra.mxu0 %v383
    %2386 = vmatprep.subr.mxu0 %v388
    %2387 = vmatpush1.msra.mxu0 %v387
    %2388 = vmatprep.subr.mxu0 %v392
    %2389 = vmatpush1.msra.mxu0 %v391
    %2390 = vmatprep.subr.mxu0 %v396
    %2391 = vmatpush1.msra.mxu0 %v395
    %2392 = vmatprep.subr.mxu0 %v400
    %2393 = vmatpush1.msra.mxu0 %v399
    %2394 = vmatprep.subr.mxu0 %v404
    %2395 = vmatpush1.msra.mxu0 %v403
    %2396 = vmatprep.subr.mxu0 %v408
    %2397 = vmatpush1.msra.mxu0 %v407
    %2398 = vmatprep.subr.mxu0 %v412
    %2399 = vmatpush1.msra.mxu0 %v411
    %2400 = vmatprep.subr.mxu0 %v416
    %2401 = vmatpush1.msra.mxu0 %v415
    %2402 = vmatprep.subr.mxu0 %v420
    %2403 = vmatpush1.msra.mxu0 %v419
    %2404 = vmatprep.subr.mxu0 %v424
    %2405 = vmatpush1.msra.mxu0 %v423
    %2406 = vmatprep.subr.mxu0 %v428
    %2407 = vmatpush1.msra.mxu0 %v427
    %2408 = vmatprep.subr.mxu0 %v432
    %2409 = vmatpush1.msra.mxu0 %v431
    %2410 = vmatprep.subr.mxu0 %v436
    %2411 = vmatpush1.msra.mxu0 %v435
    %2412 = vmatprep.subr.mxu0 %v440
    %2413 = vmatpush1.msra.mxu0 %v439
    %2414 = vmatprep.subr.mxu0 %v444
    %2415 = vmatpush1.msra.mxu0 %v443
    %2416 = vmatprep.subr.mxu0 %v448
    %2417 = vmatpush1.msra.mxu0 %v447
    %2418 = vmatprep.subr.mxu0 %v452
    %2419 = vmatpush1.msra.mxu0 %v451
    %2420 = vmatprep.subr.mxu0 %v456
    %2421 = vmatpush1.msra.mxu0 %v455
    %2422 = vmatprep.mubr.f32.mxu0 %v2023
    %2423 = vmatmul.mubr.f32.gmra.mrb[0].mxu0 %v2357
    %v2424 = vpop.f32.mrb[0].mxu0
    %v2425 = vadd.f32 %v508, %v2424
    %v2426 = vpop.f32.mrb[0].mxu0
    %v2427 = vadd.f32 %v512, %v2426
    %2428 = vdwg.mxu0
    %2429 = vmatprep.subr.mxu0 %v334
    %2430 = vmatpush1.msra.mxu0 %v333
    %2431 = vmatprep.subr.mxu0 %v338
    %2432 = vmatpush1.msra.mxu0 %v337
    %2433 = vmatprep.subr.mxu0 %v342
    %2434 = vmatpush1.msra.mxu0 %v341
    %2435 = vmatprep.subr.mxu0 %v346
    %2436 = vmatpush1.msra.mxu0 %v345
    %2437 = vmatprep.subr.mxu0 %v350
    %2438 = vmatpush1.msra.mxu0 %v349
    %2439 = vmatprep.subr.mxu0 %v354
    %2440 = vmatpush1.msra.mxu0 %v353
    %2441 = vmatprep.subr.mxu0 %v358
    %2442 = vmatpush1.msra.mxu0 %v357
    %2443 = vmatprep.subr.mxu0 %v362
    %2444 = vmatpush1.msra.mxu0 %v361
    %2445 = vmatprep.subr.mxu0 %v366
    %2446 = vmatpush1.msra.mxu0 %v365
    %2447 = vmatprep.subr.mxu0 %v370
    %2448 = vmatpush1.msra.mxu0 %v369
    %2449 = vmatprep.subr.mxu0 %v374
    %2450 = vmatpush1.msra.mxu0 %v373
    %2451 = vmatprep.subr.mxu0 %v378
    %2452 = vmatpush1.msra.mxu0 %v377
    %2453 = vmatprep.subr.mxu0 %v382
    %2454 = vmatpush1.msra.mxu0 %v381
    %2455 = vmatprep.subr.mxu0 %v386
    %2456 = vmatpush1.msra.mxu0 %v385
    %2457 = vmatprep.subr.mxu0 %v390
    %2458 = vmatpush1.msra.mxu0 %v389
    %2459 = vmatprep.subr.mxu0 %v394
    %2460 = vmatpush1.msra.mxu0 %v393
    %2461 = vmatprep.subr.mxu0 %v398
    %2462 = vmatpush1.msra.mxu0 %v397
    %2463 = vmatprep.subr.mxu0 %v402
    %2464 = vmatpush1.msra.mxu0 %v401
    %2465 = vmatprep.subr.mxu0 %v406
    %2466 = vmatpush1.msra.mxu0 %v405
    %2467 = vmatprep.subr.mxu0 %v410
    %2468 = vmatpush1.msra.mxu0 %v409
    %2469 = vmatprep.subr.mxu0 %v414
    %2470 = vmatpush1.msra.mxu0 %v413
    %2471 = vmatprep.subr.mxu0 %v418
    %2472 = vmatpush1.msra.mxu0 %v417
    %2473 = vmatprep.subr.mxu0 %v422
    %2474 = vmatpush1.msra.mxu0 %v421
    %2475 = vmatprep.subr.mxu0 %v426
    %2476 = vmatpush1.msra.mxu0 %v425
    %2477 = vmatprep.subr.mxu0 %v430
    %2478 = vmatpush1.msra.mxu0 %v429
    %2479 = vmatprep.subr.mxu0 %v434
    %2480 = vmatpush1.msra.mxu0 %v433
    %2481 = vmatprep.subr.mxu0 %v438
    %2482 = vmatpush1.msra.mxu0 %v437
    %2483 = vmatprep.subr.mxu0 %v442
    %2484 = vmatpush1.msra.mxu0 %v441
    %2485 = vmatprep.subr.mxu0 %v446
    %2486 = vmatpush1.msra.mxu0 %v445
    %2487 = vmatprep.subr.mxu0 %v450
    %2488 = vmatpush1.msra.mxu0 %v449
    %2489 = vmatprep.subr.mxu0 %v454
    %2490 = vmatpush1.msra.mxu0 %v453
    %2491 = vmatprep.subr.mxu0 %v458
    %2492 = vmatpush1.msra.mxu0 %v457
    %2493 = vmatprep.mubr.f32.mxu0 %v2023
    %2494 = vmatmul.mubr.f32.gmra.mrb[0].mxu0 %v2357
    %v2495 = vpop.f32.mrb[0].mxu0
    %v2496 = vadd.f32 %v516, %v2495
    %v2497 = vpop.f32.mrb[0].mxu0
    %v2498 = vadd.f32 %v520, %v2497
    %2499 = vdwg.mxu0
    %v2500 = vxor.u32 %v2425, 2147483648
    %v2501 = vmul.f32 %v2500, 1.442695
    %v2502 = vpow.pop %v2501
    %v2503 = vadd.f32 %v2502, 1.0
    %v2504 = vrcp.pop %v2503
    %v2505 = vmul.f32 1.0, %v2504
    %v2506 = vxor.u32 %v2427, 2147483648
    %v2507 = vmul.f32 %v2506, 1.442695
    %v2508 = vpow.pop %v2507
    %v2509 = vadd.f32 %v2508, 1.0
    %v2510 = vrcp.pop %v2509
    %v2511 = vmul.f32 1.0, %v2510
    %v2512 = vtanh.pop %v2496
    %v2513 = vxor.u32 %v2498, 2147483648
    %v2514 = vmul.f32 %v2513, 1.442695
    %v2515 = vpow.pop %v2514
    %v2516 = vadd.f32 %v2515, 1.0
    %v2517 = vrcp.pop %v2516
    %v2518 = vmul.f32 1.0, %v2517
    %v2519 = vmul.f32 %v2511, %v2021
    %v2520 = vmul.f32 %v2505, %v2512
    %v2521 = vadd.f32 %v2519, %v2520
    %v2522 = vtanh.pop %v2521
    %v2523 = vmul.f32 %v2518, %v2522
    %s2524 = scalar_lea.vmem %s0, 32
    %v2525 = vld [vmem:[%s2524] sm:$0xff]
    %2526 = vmatprep.subr.mxu0 %v76
    %2527 = vmatpush1.msra.mxu0 %v75
    %2528 = vmatprep.subr.mxu0 %v80
    %2529 = vmatpush1.msra.mxu0 %v79
    %2530 = vmatprep.subr.mxu0 %v84
    %2531 = vmatpush1.msra.mxu0 %v83
    %2532 = vmatprep.subr.mxu0 %v88
    %2533 = vmatpush1.msra.mxu0 %v87
    %2534 = vmatprep.subr.mxu0 %v92
    %2535 = vmatpush1.msra.mxu0 %v91
    %2536 = vmatprep.subr.mxu0 %v96
    %2537 = vmatpush1.msra.mxu0 %v95
    %2538 = vmatprep.subr.mxu0 %v100
    %2539 = vmatpush1.msra.mxu0 %v99
    %2540 = vmatprep.subr.mxu0 %v104
    %2541 = vmatpush1.msra.mxu0 %v103
    %2542 = vmatprep.subr.mxu0 %v108
    %2543 = vmatpush1.msra.mxu0 %v107
    %2544 = vmatprep.subr.mxu0 %v112
    %2545 = vmatpush1.msra.mxu0 %v111
    %2546 = vmatprep.subr.mxu0 %v116
    %2547 = vmatpush1.msra.mxu0 %v115
    %2548 = vmatprep.subr.mxu0 %v120
    %2549 = vmatpush1.msra.mxu0 %v119
    %2550 = vmatprep.subr.mxu0 %v124
    %2551 = vmatpush1.msra.mxu0 %v123
    %2552 = vmatprep.subr.mxu0 %v128
    %2553 = vmatpush1.msra.mxu0 %v127
    %2554 = vmatprep.subr.mxu0 %v132
    %2555 = vmatpush1.msra.mxu0 %v131
    %2556 = vmatprep.subr.mxu0 %v136
    %2557 = vmatpush1.msra.mxu0 %v135
    %2558 = vmatprep.subr.mxu0 %v140
    %2559 = vmatpush1.msra.mxu0 %v139
    %2560 = vmatprep.subr.mxu0 %v144
    %2561 = vmatpush1.msra.mxu0 %v143
    %2562 = vmatprep.subr.mxu0 %v148
    %2563 = vmatpush1.msra.mxu0 %v147
    %2564 = vmatprep.subr.mxu0 %v152
    %2565 = vmatpush1.msra.mxu0 %v151
    %2566 = vmatprep.subr.mxu0 %v156
    %2567 = vmatpush1.msra.mxu0 %v155
    %2568 = vmatprep.subr.mxu0 %v160
    %2569 = vmatpush1.msra.mxu0 %v159
    %2570 = vmatprep.subr.mxu0 %v164
    %2571 = vmatpush1.msra.mxu0 %v163
    %2572 = vmatprep.subr.mxu0 %v168
    %2573 = vmatpush1.msra.mxu0 %v167
    %2574 = vmatprep.subr.mxu0 %v172
    %2575 = vmatpush1.msra.mxu0 %v171
    %2576 = vmatprep.subr.mxu0 %v176
    %2577 = vmatpush1.msra.mxu0 %v175
    %2578 = vmatprep.subr.mxu0 %v180
    %2579 = vmatpush1.msra.mxu0 %v179
    %2580 = vmatprep.subr.mxu0 %v184
    %2581 = vmatpush1.msra.mxu0 %v183
    %2582 = vmatprep.subr.mxu0 %v188
    %2583 = vmatpush1.msra.mxu0 %v187
    %2584 = vmatprep.subr.mxu0 %v192
    %2585 = vmatpush1.msra.mxu0 %v191
    %2586 = vmatprep.subr.mxu0 %v196
    %2587 = vmatpush1.msra.mxu0 %v195
    %2588 = vmatprep.subr.mxu0 %v200
    %2589 = vmatpush1.msra.mxu0 %v199
    %2590 = vmatprep.mubr.f32.mxu0 %v2191
    %2591 = vmatmul.mubr.f32.gmra.mrb[0].mxu0 %v2525
    %v2592 = vpop.f32.mrb[0].mxu0
    %v2593 = vadd.f32 %v464, %v2592
    %v2594 = vpop.f32.mrb[0].mxu0
    %v2595 = vadd.f32 %v468, %v2594
    %2596 = vdwg.mxu0
    %2597 = vmatprep.subr.mxu0 %v78
    %2598 = vmatpush1.msra.mxu0 %v77
    %2599 = vmatprep.subr.mxu0 %v82
    %2600 = vmatpush1.msra.mxu0 %v81
    %2601 = vmatprep.subr.mxu0 %v86
    %2602 = vmatpush1.msra.mxu0 %v85
    %2603 = vmatprep.subr.mxu0 %v90
    %2604 = vmatpush1.msra.mxu0 %v89
    %2605 = vmatprep.subr.mxu0 %v94
    %2606 = vmatpush1.msra.mxu0 %v93
    %2607 = vmatprep.subr.mxu0 %v98
    %2608 = vmatpush1.msra.mxu0 %v97
    %2609 = vmatprep.subr.mxu0 %v102
    %2610 = vmatpush1.msra.mxu0 %v101
    %2611 = vmatprep.subr.mxu0 %v106
    %2612 = vmatpush1.msra.mxu0 %v105
    %2613 = vmatprep.subr.mxu0 %v110
    %2614 = vmatpush1.msra.mxu0 %v109
    %2615 = vmatprep.subr.mxu0 %v114
    %2616 = vmatpush1.msra.mxu0 %v113
    %2617 = vmatprep.subr.mxu0 %v118
    %2618 = vmatpush1.msra.mxu0 %v117
    %2619 = vmatprep.subr.mxu0 %v122
    %2620 = vmatpush1.msra.mxu0 %v121
    %2621 = vmatprep.subr.mxu0 %v126
    %2622 = vmatpush1.msra.mxu0 %v125
    %2623 = vmatprep.subr.mxu0 %v130
    %2624 = vmatpush1.msra.mxu0 %v129
    %2625 = vmatprep.subr.mxu0 %v134
    %2626 = vmatpush1.msra.mxu0 %v133
    %2627 = vmatprep.subr.mxu0 %v138
    %2628 = vmatpush1.msra.mxu0 %v137
    %2629 = vmatprep.subr.mxu0 %v142
    %2630 = vmatpush1.msra.mxu0 %v141
    %2631 = vmatprep.subr.mxu0 %v146
    %2632 = vmatpush1.msra.mxu0 %v145
    %2633 = vmatprep.subr.mxu0 %v150
    %2634 = vmatpush1.msra.mxu0 %v149
    %2635 = vmatprep.subr.mxu0 %v154
    %2636 = vmatpush1.msra.mxu0 %v153
    %2637 = vmatprep.subr.mxu0 %v158
    %2638 = vmatpush1.msra.mxu0 %v157
    %2639 = vmatprep.subr.mxu0 %v162
    %2640 = vmatpush1.msra.mxu0 %v161
    %2641 = vmatprep.subr.mxu0 %v166
    %2642 = vmatpush1.msra.mxu0 %v165
    %2643 = vmatprep.subr.mxu0 %v170
    %2644 = vmatpush1.msra.mxu0 %v169
    %2645 = vmatprep.subr.mxu0 %v174
    %2646 = vmatpush1.msra.mxu0 %v173
    %2647 = vmatprep.subr.mxu0 %v178
    %2648 = vmatpush1.msra.mxu0 %v177
    %2649 = vmatprep.subr.mxu0 %v182
    %2650 = vmatpush1.msra.mxu0 %v181
    %2651 = vmatprep.subr.mxu0 %v186
    %2652 = vmatpush1.msra.mxu0 %v185
    %2653 = vmatprep.subr.mxu0 %v190
    %2654 = vmatpush1.msra.mxu0 %v189
    %2655 = vmatprep.subr.mxu0 %v194
    %2656 = vmatpush1.msra.mxu0 %v193
    %2657 = vmatprep.subr.mxu0 %v198
    %2658 = vmatpush1.msra.mxu0 %v197
    %2659 = vmatprep.subr.mxu0 %v202
    %2660 = vmatpush1.msra.mxu0 %v201
    %2661 = vmatprep.mubr.f32.mxu0 %v2191
    %2662 = vmatmul.mubr.f32.gmra.mrb[0].mxu0 %v2525
    %v2663 = vpop.f32.mrb[0].mxu0
    %v2664 = vadd.f32 %v472, %v2663
    %v2665 = vpop.f32.mrb[0].mxu0
    %v2666 = vadd.f32 %v476, %v2665
    %2667 = vdwg.mxu0
    %v2668 = vxor.u32 %v2593, 2147483648
    %v2669 = vmul.f32 %v2668, 1.442695
    %v2670 = vpow.pop %v2669
    %v2671 = vadd.f32 %v2670, 1.0
    %v2672 = vrcp.pop %v2671
    %v2673 = vmul.f32 1.0, %v2672
    %v2674 = vxor.u32 %v2595, 2147483648
    %v2675 = vmul.f32 %v2674, 1.442695
    %v2676 = vpow.pop %v2675
    %v2677 = vadd.f32 %v2676, 1.0
    %v2678 = vrcp.pop %v2677
    %v2679 = vmul.f32 1.0, %v2678
    %v2680 = vtanh.pop %v2664
    %v2681 = vxor.u32 %v2666, 2147483648
    %v2682 = vmul.f32 %v2681, 1.442695
    %v2683 = vpow.pop %v2682
    %v2684 = vadd.f32 %v2683, 1.0
    %v2685 = vrcp.pop %v2684
    %v2686 = vmul.f32 1.0, %v2685
    %v2687 = vmul.f32 %v2679, %v2189
    %v2688 = vmul.f32 %v2673, %v2680
    %v2689 = vadd.f32 %v2687, %v2688
    %v2690 = vtanh.pop %v2689
    %v2691 = vmul.f32 %v2686, %v2690
    %2692 = vmatprep.subr.mxu0 %v204
    %2693 = vmatpush1.msra.mxu0 %v203
    %2694 = vmatprep.subr.mxu0 %v208
    %2695 = vmatpush1.msra.mxu0 %v207
    %2696 = vmatprep.subr.mxu0 %v212
    %2697 = vmatpush1.msra.mxu0 %v211
    %2698 = vmatprep.subr.mxu0 %v216
    %2699 = vmatpush1.msra.mxu0 %v215
    %2700 = vmatprep.subr.mxu0 %v220
    %2701 = vmatpush1.msra.mxu0 %v219
    %2702 = vmatprep.subr.mxu0 %v224
    %2703 = vmatpush1.msra.mxu0 %v223
    %2704 = vmatprep.subr.mxu0 %v228
    %2705 = vmatpush1.msra.mxu0 %v227
    %2706 = vmatprep.subr.mxu0 %v232
    %2707 = vmatpush1.msra.mxu0 %v231
    %2708 = vmatprep.subr.mxu0 %v236
    %2709 = vmatpush1.msra.mxu0 %v235
    %2710 = vmatprep.subr.mxu0 %v240
    %2711 = vmatpush1.msra.mxu0 %v239
    %2712 = vmatprep.subr.mxu0 %v244
    %2713 = vmatpush1.msra.mxu0 %v243
    %2714 = vmatprep.subr.mxu0 %v248
    %2715 = vmatpush1.msra.mxu0 %v247
    %2716 = vmatprep.subr.mxu0 %v252
    %2717 = vmatpush1.msra.mxu0 %v251
    %2718 = vmatprep.subr.mxu0 %v256
    %2719 = vmatpush1.msra.mxu0 %v255
    %2720 = vmatprep.subr.mxu0 %v260
    %2721 = vmatpush1.msra.mxu0 %v259
    %2722 = vmatprep.subr.mxu0 %v264
    %2723 = vmatpush1.msra.mxu0 %v263
    %2724 = vmatprep.subr.mxu0 %v268
    %2725 = vmatpush1.msra.mxu0 %v267
    %2726 = vmatprep.subr.mxu0 %v272
    %2727 = vmatpush1.msra.mxu0 %v271
    %2728 = vmatprep.subr.mxu0 %v276
    %2729 = vmatpush1.msra.mxu0 %v275
    %2730 = vmatprep.subr.mxu0 %v280
    %2731 = vmatpush1.msra.mxu0 %v279
    %2732 = vmatprep.subr.mxu0 %v284
    %2733 = vmatpush1.msra.mxu0 %v283
    %2734 = vmatprep.subr.mxu0 %v288
    %2735 = vmatpush1.msra.mxu0 %v287
    %2736 = vmatprep.subr.mxu0 %v292
    %2737 = vmatpush1.msra.mxu0 %v291
    %2738 = vmatprep.subr.mxu0 %v296
    %2739 = vmatpush1.msra.mxu0 %v295
    %2740 = vmatprep.subr.mxu0 %v300
    %2741 = vmatpush1.msra.mxu0 %v299
    %2742 = vmatprep.subr.mxu0 %v304
    %2743 = vmatpush1.msra.mxu0 %v303
    %2744 = vmatprep.subr.mxu0 %v308
    %2745 = vmatpush1.msra.mxu0 %v307
    %2746 = vmatprep.subr.mxu0 %v312
    %2747 = vmatpush1.msra.mxu0 %v311
    %2748 = vmatprep.subr.mxu0 %v316
    %2749 = vmatpush1.msra.mxu0 %v315
    %2750 = vmatprep.subr.mxu0 %v320
    %2751 = vmatpush1.msra.mxu0 %v319
    %2752 = vmatprep.subr.mxu0 %v324
    %2753 = vmatpush1.msra.mxu0 %v323
    %2754 = vmatprep.subr.mxu0 %v328
    %2755 = vmatpush1.msra.mxu0 %v327
    %2756 = vmatprep.mubr.f32.mxu0 %v2357
    %2757 = vmatmul.mubr.f32.gmra.mrb[0].mxu0 %v2691
    %v2758 = vpop.f32.mrb[0].mxu0
    %v2759 = vadd.f32 %v486, %v2758
    %v2760 = vpop.f32.mrb[0].mxu0
    %v2761 = vadd.f32 %v490, %v2760
    %2762 = vdwg.mxu0
    %2763 = vmatprep.subr.mxu0 %v206
    %2764 = vmatpush1.msra.mxu0 %v205
    %2765 = vmatprep.subr.mxu0 %v210
    %2766 = vmatpush1.msra.mxu0 %v209
    %2767 = vmatprep.subr.mxu0 %v214
    %2768 = vmatpush1.msra.mxu0 %v213
    %2769 = vmatprep.subr.mxu0 %v218
    %2770 = vmatpush1.msra.mxu0 %v217
    %2771 = vmatprep.subr.mxu0 %v222
    %2772 = vmatpush1.msra.mxu0 %v221
    %2773 = vmatprep.subr.mxu0 %v226
    %2774 = vmatpush1.msra.mxu0 %v225
    %2775 = vmatprep.subr.mxu0 %v230
    %2776 = vmatpush1.msra.mxu0 %v229
    %2777 = vmatprep.subr.mxu0 %v234
    %2778 = vmatpush1.msra.mxu0 %v233
    %2779 = vmatprep.subr.mxu0 %v238
    %2780 = vmatpush1.msra.mxu0 %v237
    %2781 = vmatprep.subr.mxu0 %v242
    %2782 = vmatpush1.msra.mxu0 %v241
    %2783 = vmatprep.subr.mxu0 %v246
    %2784 = vmatpush1.msra.mxu0 %v245
    %2785 = vmatprep.subr.mxu0 %v250
    %2786 = vmatpush1.msra.mxu0 %v249
    %2787 = vmatprep.subr.mxu0 %v254
    %2788 = vmatpush1.msra.mxu0 %v253
    %2789 = vmatprep.subr.mxu0 %v258
    %2790 = vmatpush1.msra.mxu0 %v257
    %2791 = vmatprep.subr.mxu0 %v262
    %2792 = vmatpush1.msra.mxu0 %v261
    %2793 = vmatprep.subr.mxu0 %v266
    %2794 = vmatpush1.msra.mxu0 %v265
    %2795 = vmatprep.subr.mxu0 %v270
    %2796 = vmatpush1.msra.mxu0 %v269
    %2797 = vmatprep.subr.mxu0 %v274
    %2798 = vmatpush1.msra.mxu0 %v273
    %2799 = vmatprep.subr.mxu0 %v278
    %2800 = vmatpush1.msra.mxu0 %v277
    %2801 = vmatprep.subr.mxu0 %v282
    %2802 = vmatpush1.msra.mxu0 %v281
    %2803 = vmatprep.subr.mxu0 %v286
    %2804 = vmatpush1.msra.mxu0 %v285
    %2805 = vmatprep.subr.mxu0 %v290
    %2806 = vmatpush1.msra.mxu0 %v289
    %2807 = vmatprep.subr.mxu0 %v294
    %2808 = vmatpush1.msra.mxu0 %v293
    %2809 = vmatprep.subr.mxu0 %v298
    %2810 = vmatpush1.msra.mxu0 %v297
    %2811 = vmatprep.subr.mxu0 %v302
    %2812 = vmatpush1.msra.mxu0 %v301
    %2813 = vmatprep.subr.mxu0 %v306
    %2814 = vmatpush1.msra.mxu0 %v305
    %2815 = vmatprep.subr.mxu0 %v310
    %2816 = vmatpush1.msra.mxu0 %v309
    %2817 = vmatprep.subr.mxu0 %v314
    %2818 = vmatpush1.msra.mxu0 %v313
    %2819 = vmatprep.subr.mxu0 %v318
    %2820 = vmatpush1.msra.mxu0 %v317
    %2821 = vmatprep.subr.mxu0 %v322
    %2822 = vmatpush1.msra.mxu0 %v321
    %2823 = vmatprep.subr.mxu0 %v326
    %2824 = vmatpush1.msra.mxu0 %v325
    %2825 = vmatprep.subr.mxu0 %v330
    %2826 = vmatpush1.msra.mxu0 %v329
    %2827 = vmatprep.mubr.f32.mxu0 %v2357
    %2828 = vmatmul.mubr.f32.gmra.mrb[0].mxu0 %v2691
    %v2829 = vpop.f32.mrb[0].mxu0
    %v2830 = vadd.f32 %v494, %v2829
    %v2831 = vpop.f32.mrb[0].mxu0
    %v2832 = vadd.f32 %v498, %v2831
    %2833 = vdwg.mxu0
    %v2834 = vxor.u32 %v2759, 2147483648
    %v2835 = vmul.f32 %v2834, 1.442695
    %v2836 = vpow.pop %v2835
    %v2837 = vadd.f32 %v2836, 1.0
    %v2838 = vrcp.pop %v2837
    %v2839 = vmul.f32 1.0, %v2838
    %v2840 = vxor.u32 %v2761, 2147483648
    %v2841 = vmul.f32 %v2840, 1.442695
    %v2842 = vpow.pop %v2841
    %v2843 = vadd.f32 %v2842, 1.0
    %v2844 = vrcp.pop %v2843
    %v2845 = vmul.f32 1.0, %v2844
    %v2846 = vtanh.pop %v2830
    %v2847 = vxor.u32 %v2832, 2147483648
    %v2848 = vmul.f32 %v2847, 1.442695
    %v2849 = vpow.pop %v2848
    %v2850 = vadd.f32 %v2849, 1.0
    %v2851 = vrcp.pop %v2850
    %v2852 = vmul.f32 1.0, %v2851
    %v2853 = vmul.f32 %v2845, %v2355
    %v2854 = vmul.f32 %v2839, %v2846
    %v2855 = vadd.f32 %v2853, %v2854
    %v2856 = vtanh.pop %v2855
    %v2857 = vmul.f32 %v2852, %v2856
    %2858 = vmatprep.subr.mxu0 %v332
    %2859 = vmatpush1.msra.mxu0 %v331
    %2860 = vmatprep.subr.mxu0 %v336
    %2861 = vmatpush1.msra.mxu0 %v335
    %2862 = vmatprep.subr.mxu0 %v340
    %2863 = vmatpush1.msra.mxu0 %v339
    %2864 = vmatprep.subr.mxu0 %v344
    %2865 = vmatpush1.msra.mxu0 %v343
    %2866 = vmatprep.subr.mxu0 %v348
    %2867 = vmatpush1.msra.mxu0 %v347
    %2868 = vmatprep.subr.mxu0 %v352
    %2869 = vmatpush1.msra.mxu0 %v351
    %2870 = vmatprep.subr.mxu0 %v356
    %2871 = vmatpush1.msra.mxu0 %v355
    %2872 = vmatprep.subr.mxu0 %v360
    %2873 = vmatpush1.msra.mxu0 %v359
    %2874 = vmatprep.subr.mxu0 %v364
    %2875 = vmatpush1.msra.mxu0 %v363
    %2876 = vmatprep.subr.mxu0 %v368
    %2877 = vmatpush1.msra.mxu0 %v367
    %2878 = vmatprep.subr.mxu0 %v372
    %2879 = vmatpush1.msra.mxu0 %v371
    %2880 = vmatprep.subr.mxu0 %v376
    %2881 = vmatpush1.msra.mxu0 %v375
    %2882 = vmatprep.subr.mxu0 %v380
    %2883 = vmatpush1.msra.mxu0 %v379
    %2884 = vmatprep.subr.mxu0 %v384
    %2885 = vmatpush1.msra.mxu0 %v383
    %2886 = vmatprep.subr.mxu0 %v388
    %2887 = vmatpush1.msra.mxu0 %v387
    %2888 = vmatprep.subr.mxu0 %v392
    %2889 = vmatpush1.msra.mxu0 %v391
    %2890 = vmatprep.subr.mxu0 %v396
    %2891 = vmatpush1.msra.mxu0 %v395
    %2892 = vmatprep.subr.mxu0 %v400
    %2893 = vmatpush1.msra.mxu0 %v399
    %2894 = vmatprep.subr.mxu0 %v404
    %2895 = vmatpush1.msra.mxu0 %v403
    %2896 = vmatprep.subr.mxu0 %v408
    %2897 = vmatpush1.msra.mxu0 %v407
    %2898 = vmatprep.subr.mxu0 %v412
    %2899 = vmatpush1.msra.mxu0 %v411
    %2900 = vmatprep.subr.mxu0 %v416
    %2901 = vmatpush1.msra.mxu0 %v415
    %2902 = vmatprep.subr.mxu0 %v420
    %2903 = vmatpush1.msra.mxu0 %v419
    %2904 = vmatprep.subr.mxu0 %v424
    %2905 = vmatpush1.msra.mxu0 %v423
    %2906 = vmatprep.subr.mxu0 %v428
    %2907 = vmatpush1.msra.mxu0 %v427
    %2908 = vmatprep.subr.mxu0 %v432
    %2909 = vmatpush1.msra.mxu0 %v431
    %2910 = vmatprep.subr.mxu0 %v436
    %2911 = vmatpush1.msra.mxu0 %v435
    %2912 = vmatprep.subr.mxu0 %v440
    %2913 = vmatpush1.msra.mxu0 %v439
    %2914 = vmatprep.subr.mxu0 %v444
    %2915 = vmatpush1.msra.mxu0 %v443
    %2916 = vmatprep.subr.mxu0 %v448
    %2917 = vmatpush1.msra.mxu0 %v447
    %2918 = vmatprep.subr.mxu0 %v452
    %2919 = vmatpush1.msra.mxu0 %v451
    %2920 = vmatprep.subr.mxu0 %v456
    %2921 = vmatpush1.msra.mxu0 %v455
    %2922 = vmatprep.mubr.f32.mxu0 %v2523
    %2923 = vmatmul.mubr.f32.gmra.mrb[0].mxu0 %v2857
    %v2924 = vpop.f32.mrb[0].mxu0
    %v2925 = vadd.f32 %v508, %v2924
    %v2926 = vpop.f32.mrb[0].mxu0
    %v2927 = vadd.f32 %v512, %v2926
    %2928 = vdwg.mxu0
    %2929 = vmatprep.subr.mxu0 %v334
    %2930 = vmatpush1.msra.mxu0 %v333
    %2931 = vmatprep.subr.mxu0 %v338
    %2932 = vmatpush1.msra.mxu0 %v337
    %2933 = vmatprep.subr.mxu0 %v342
    %2934 = vmatpush1.msra.mxu0 %v341
    %2935 = vmatprep.subr.mxu0 %v346
    %2936 = vmatpush1.msra.mxu0 %v345
    %2937 = vmatprep.subr.mxu0 %v350
    %2938 = vmatpush1.msra.mxu0 %v349
    %2939 = vmatprep.subr.mxu0 %v354
    %2940 = vmatpush1.msra.mxu0 %v353
    %2941 = vmatprep.subr.mxu0 %v358
    %2942 = vmatpush1.msra.mxu0 %v357
    %2943 = vmatprep.subr.mxu0 %v362
    %2944 = vmatpush1.msra.mxu0 %v361
    %2945 = vmatprep.subr.mxu0 %v366
    %2946 = vmatpush1.msra.mxu0 %v365
    %2947 = vmatprep.subr.mxu0 %v370
    %2948 = vmatpush1.msra.mxu0 %v369
    %2949 = vmatprep.subr.mxu0 %v374
    %2950 = vmatpush1.msra.mxu0 %v373
    %2951 = vmatprep.subr.mxu0 %v378
    %2952 = vmatpush1.msra.mxu0 %v377
    %2953 = vmatprep.subr.mxu0 %v382
    %2954 = vmatpush1.msra.mxu0 %v381
    %2955 = vmatprep.subr.mxu0 %v386
    %2956 = vmatpush1.msra.mxu0 %v385
    %2957 = vmatprep.subr.mxu0 %v390
    %2958 = vmatpush1.msra.mxu0 %v389
    %2959 = vmatprep.subr.mxu0 %v394
    %2960 = vmatpush1.msra.mxu0 %v393
    %2961 = vmatprep.subr.mxu0 %v398
    %2962 = vmatpush1.msra.mxu0 %v397
    %2963 = vmatprep.subr.mxu0 %v402
    %2964 = vmatpush1.msra.mxu0 %v401
    %2965 = vmatprep.subr.mxu0 %v406
    %2966 = vmatpush1.msra.mxu0 %v405
    %2967 = vmatprep.subr.mxu0 %v410
    %2968 = vmatpush1.msra.mxu0 %v409
    %2969 = vmatprep.subr.mxu0 %v414
    %2970 = vmatpush1.msra.mxu0 %v413
    %2971 = vmatprep.subr.mxu0 %v418
    %2972 = vmatpush1.msra.mxu0 %v417
    %2973 = vmatprep.subr.mxu0 %v422
    %2974 = vmatpush1.msra.mxu0 %v421
    %2975 = vmatprep.subr.mxu0 %v426
    %2976 = vmatpush1.msra.mxu0 %v425
    %2977 = vmatprep.subr.mxu0 %v430
    %2978 = vmatpush1.msra.mxu0 %v429
    %2979 = vmatprep.subr.mxu0 %v434
    %2980 = vmatpush1.msra.mxu0 %v433
    %2981 = vmatprep.subr.mxu0 %v438
    %2982 = vmatpush1.msra.mxu0 %v437
    %2983 = vmatprep.subr.mxu0 %v442
    %2984 = vmatpush1.msra.mxu0 %v441
    %2985 = vmatprep.subr.mxu0 %v446
    %2986 = vmatpush1.msra.mxu0 %v445
    %2987 = vmatprep.subr.mxu0 %v450
    %2988 = vmatpush1.msra.mxu0 %v449
    %2989 = vmatprep.subr.mxu0 %v454
    %2990 = vmatpush1.msra.mxu0 %v453
    %2991 = vmatprep.subr.mxu0 %v458
    %2992 = vmatpush1.msra.mxu0 %v457
    %2993 = vmatprep.mubr.f32.mxu0 %v2523
    %2994 = vmatmul.mubr.f32.gmra.mrb[0].mxu0 %v2857
    %v2995 = vpop.f32.mrb[0].mxu0
    %v2996 = vadd.f32 %v516, %v2995
    %v2997 = vpop.f32.mrb[0].mxu0
    %v2998 = vadd.f32 %v520, %v2997
    %2999 = vdwg.mxu0
    %v3000 = vxor.u32 %v2925, 2147483648
    %v3001 = vmul.f32 %v3000, 1.442695
    %v3002 = vpow.pop %v3001
    %v3003 = vadd.f32 %v3002, 1.0
    %v3004 = vrcp.pop %v3003
    %v3005 = vmul.f32 1.0, %v3004
    %v3006 = vxor.u32 %v2927, 2147483648
    %v3007 = vmul.f32 %v3006, 1.442695
    %v3008 = vpow.pop %v3007
    %v3009 = vadd.f32 %v3008, 1.0
    %v3010 = vrcp.pop %v3009
    %v3011 = vmul.f32 1.0, %v3010
    %v3012 = vtanh.pop %v2996
    %v3013 = vxor.u32 %v2998, 2147483648
    %v3014 = vmul.f32 %v3013, 1.442695
    %v3015 = vpow.pop %v3014
    %v3016 = vadd.f32 %v3015, 1.0
    %v3017 = vrcp.pop %v3016
    %v3018 = vmul.f32 1.0, %v3017
    %v3019 = vmul.f32 %v3011, %v2521
    %v3020 = vmul.f32 %v3005, %v3012
    %v3021 = vadd.f32 %v3019, %v3020
    %v3022 = vtanh.pop %v3021
    %v3023 = vmul.f32 %v3018, %v3022
    %s3024 = scalar_lea.vmem %s0, 40
    %v3025 = vld [vmem:[%s3024] sm:$0xff]
    %3026 = vmatprep.subr.mxu0 %v76
    %3027 = vmatpush1.msra.mxu0 %v75
    %3028 = vmatprep.subr.mxu0 %v80
    %3029 = vmatpush1.msra.mxu0 %v79
    %3030 = vmatprep.subr.mxu0 %v84
    %3031 = vmatpush1.msra.mxu0 %v83
    %3032 = vmatprep.subr.mxu0 %v88
    %3033 = vmatpush1.msra.mxu0 %v87
    %3034 = vmatprep.subr.mxu0 %v92
    %3035 = vmatpush1.msra.mxu0 %v91
    %3036 = vmatprep.subr.mxu0 %v96
    %3037 = vmatpush1.msra.mxu0 %v95
    %3038 = vmatprep.subr.mxu0 %v100
    %3039 = vmatpush1.msra.mxu0 %v99
    %3040 = vmatprep.subr.mxu0 %v104
    %3041 = vmatpush1.msra.mxu0 %v103
    %3042 = vmatprep.subr.mxu0 %v108
    %3043 = vmatpush1.msra.mxu0 %v107
    %3044 = vmatprep.subr.mxu0 %v112
    %3045 = vmatpush1.msra.mxu0 %v111
    %3046 = vmatprep.subr.mxu0 %v116
    %3047 = vmatpush1.msra.mxu0 %v115
    %3048 = vmatprep.subr.mxu0 %v120
    %3049 = vmatpush1.msra.mxu0 %v119
    %3050 = vmatprep.subr.mxu0 %v124
    %3051 = vmatpush1.msra.mxu0 %v123
    %3052 = vmatprep.subr.mxu0 %v128
    %3053 = vmatpush1.msra.mxu0 %v127
    %3054 = vmatprep.subr.mxu0 %v132
    %3055 = vmatpush1.msra.mxu0 %v131
    %3056 = vmatprep.subr.mxu0 %v136
    %3057 = vmatpush1.msra.mxu0 %v135
    %3058 = vmatprep.subr.mxu0 %v140
    %3059 = vmatpush1.msra.mxu0 %v139
    %3060 = vmatprep.subr.mxu0 %v144
    %3061 = vmatpush1.msra.mxu0 %v143
    %3062 = vmatprep.subr.mxu0 %v148
    %3063 = vmatpush1.msra.mxu0 %v147
    %3064 = vmatprep.subr.mxu0 %v152
    %3065 = vmatpush1.msra.mxu0 %v151
    %3066 = vmatprep.subr.mxu0 %v156
    %3067 = vmatpush1.msra.mxu0 %v155
    %3068 = vmatprep.subr.mxu0 %v160
    %3069 = vmatpush1.msra.mxu0 %v159
    %3070 = vmatprep.subr.mxu0 %v164
    %3071 = vmatpush1.msra.mxu0 %v163
    %3072 = vmatprep.subr.mxu0 %v168
    %3073 = vmatpush1.msra.mxu0 %v167
    %3074 = vmatprep.subr.mxu0 %v172
    %3075 = vmatpush1.msra.mxu0 %v171
    %3076 = vmatprep.subr.mxu0 %v176
    %3077 = vmatpush1.msra.mxu0 %v175
    %3078 = vmatprep.subr.mxu0 %v180
    %3079 = vmatpush1.msra.mxu0 %v179
    %3080 = vmatprep.subr.mxu0 %v184
    %3081 = vmatpush1.msra.mxu0 %v183
    %3082 = vmatprep.subr.mxu0 %v188
    %3083 = vmatpush1.msra.mxu0 %v187
    %3084 = vmatprep.subr.mxu0 %v192
    %3085 = vmatpush1.msra.mxu0 %v191
    %3086 = vmatprep.subr.mxu0 %v196
    %3087 = vmatpush1.msra.mxu0 %v195
    %3088 = vmatprep.subr.mxu0 %v200
    %3089 = vmatpush1.msra.mxu0 %v199
    %3090 = vmatprep.mubr.f32.mxu0 %v2691
    %3091 = vmatmul.mubr.f32.gmra.mrb[0].mxu0 %v3025
    %v3092 = vpop.f32.mrb[0].mxu0
    %v3093 = vadd.f32 %v464, %v3092
    %v3094 = vpop.f32.mrb[0].mxu0
    %v3095 = vadd.f32 %v468, %v3094
    %3096 = vdwg.mxu0
    %3097 = vmatprep.subr.mxu0 %v78
    %3098 = vmatpush1.msra.mxu0 %v77
    %3099 = vmatprep.subr.mxu0 %v82
    %3100 = vmatpush1.msra.mxu0 %v81
    %3101 = vmatprep.subr.mxu0 %v86
    %3102 = vmatpush1.msra.mxu0 %v85
    %3103 = vmatprep.subr.mxu0 %v90
    %3104 = vmatpush1.msra.mxu0 %v89
    %3105 = vmatprep.subr.mxu0 %v94
    %3106 = vmatpush1.msra.mxu0 %v93
    %3107 = vmatprep.subr.mxu0 %v98
    %3108 = vmatpush1.msra.mxu0 %v97
    %3109 = vmatprep.subr.mxu0 %v102
    %3110 = vmatpush1.msra.mxu0 %v101
    %3111 = vmatprep.subr.mxu0 %v106
    %3112 = vmatpush1.msra.mxu0 %v105
    %3113 = vmatprep.subr.mxu0 %v110
    %3114 = vmatpush1.msra.mxu0 %v109
    %3115 = vmatprep.subr.mxu0 %v114
    %3116 = vmatpush1.msra.mxu0 %v113
    %3117 = vmatprep.subr.mxu0 %v118
    %3118 = vmatpush1.msra.mxu0 %v117
    %3119 = vmatprep.subr.mxu0 %v122
    %3120 = vmatpush1.msra.mxu0 %v121
    %3121 = vmatprep.subr.mxu0 %v126
    %3122 = vmatpush1.msra.mxu0 %v125
    %3123 = vmatprep.subr.mxu0 %v130
    %3124 = vmatpush1.msra.mxu0 %v129
    %3125 = vmatprep.subr.mxu0 %v134
    %3126 = vmatpush1.msra.mxu0 %v133
    %3127 = vmatprep.subr.mxu0 %v138
    %3128 = vmatpush1.msra.mxu0 %v137
    %3129 = vmatprep.subr.mxu0 %v142
    %3130 = vmatpush1.msra.mxu0 %v141
    %3131 = vmatprep.subr.mxu0 %v146
    %3132 = vmatpush1.msra.mxu0 %v145
    %3133 = vmatprep.subr.mxu0 %v150
    %3134 = vmatpush1.msra.mxu0 %v149
    %3135 = vmatprep.subr.mxu0 %v154
    %3136 = vmatpush1.msra.mxu0 %v153
    %3137 = vmatprep.subr.mxu0 %v158
    %3138 = vmatpush1.msra.mxu0 %v157
    %3139 = vmatprep.subr.mxu0 %v162
    %3140 = vmatpush1.msra.mxu0 %v161
    %3141 = vmatprep.subr.mxu0 %v166
    %3142 = vmatpush1.msra.mxu0 %v165
    %3143 = vmatprep.subr.mxu0 %v170
    %3144 = vmatpush1.msra.mxu0 %v169
    %3145 = vmatprep.subr.mxu0 %v174
    %3146 = vmatpush1.msra.mxu0 %v173
    %3147 = vmatprep.subr.mxu0 %v178
    %3148 = vmatpush1.msra.mxu0 %v177
    %3149 = vmatprep.subr.mxu0 %v182
    %3150 = vmatpush1.msra.mxu0 %v181
    %3151 = vmatprep.subr.mxu0 %v186
    %3152 = vmatpush1.msra.mxu0 %v185
    %3153 = vmatprep.subr.mxu0 %v190
    %3154 = vmatpush1.msra.mxu0 %v189
    %3155 = vmatprep.subr.mxu0 %v194
    %3156 = vmatpush1.msra.mxu0 %v193
    %3157 = vmatprep.subr.mxu0 %v198
    %3158 = vmatpush1.msra.mxu0 %v197
    %3159 = vmatprep.subr.mxu0 %v202
    %3160 = vmatpush1.msra.mxu0 %v201
    %3161 = vmatprep.mubr.f32.mxu0 %v2691
    %3162 = vmatmul.mubr.f32.gmra.mrb[0].mxu0 %v3025
    %v3163 = vpop.f32.mrb[0].mxu0
    %v3164 = vadd.f32 %v472, %v3163
    %v3165 = vpop.f32.mrb[0].mxu0
    %v3166 = vadd.f32 %v476, %v3165
    %3167 = vdwg.mxu0
    %v3168 = vxor.u32 %v3093, 2147483648
    %v3169 = vmul.f32 %v3168, 1.442695
    %v3170 = vpow.pop %v3169
    %v3171 = vadd.f32 %v3170, 1.0
    %v3172 = vrcp.pop %v3171
    %v3173 = vmul.f32 1.0, %v3172
    %v3174 = vxor.u32 %v3095, 2147483648
    %v3175 = vmul.f32 %v3174, 1.442695
    %v3176 = vpow.pop %v3175
    %v3177 = vadd.f32 %v3176, 1.0
    %v3178 = vrcp.pop %v3177
    %v3179 = vmul.f32 1.0, %v3178
    %v3180 = vtanh.pop %v3164
    %v3181 = vxor.u32 %v3166, 2147483648
    %v3182 = vmul.f32 %v3181, 1.442695
    %v3183 = vpow.pop %v3182
    %v3184 = vadd.f32 %v3183, 1.0
    %v3185 = vrcp.pop %v3184
    %v3186 = vmul.f32 1.0, %v3185
    %v3187 = vmul.f32 %v3179, %v2689
    %v3188 = vmul.f32 %v3173, %v3180
    %v3189 = vadd.f32 %v3187, %v3188
    %v3190 = vtanh.pop %v3189
    %v3191 = vmul.f32 %v3186, %v3190
    %3192 = vmatprep.subr.mxu0 %v204
    %3193 = vmatpush1.msra.mxu0 %v203
    %3194 = vmatprep.subr.mxu0 %v208
    %3195 = vmatpush1.msra.mxu0 %v207
    %3196 = vmatprep.subr.mxu0 %v212
    %3197 = vmatpush1.msra.mxu0 %v211
    %3198 = vmatprep.subr.mxu0 %v216
    %3199 = vmatpush1.msra.mxu0 %v215
    %3200 = vmatprep.subr.mxu0 %v220
    %3201 = vmatpush1.msra.mxu0 %v219
    %3202 = vmatprep.subr.mxu0 %v224
    %3203 = vmatpush1.msra.mxu0 %v223
    %3204 = vmatprep.subr.mxu0 %v228
    %3205 = vmatpush1.msra.mxu0 %v227
    %3206 = vmatprep.subr.mxu0 %v232
    %3207 = vmatpush1.msra.mxu0 %v231
    %3208 = vmatprep.subr.mxu0 %v236
    %3209 = vmatpush1.msra.mxu0 %v235
    %3210 = vmatprep.subr.mxu0 %v240
    %3211 = vmatpush1.msra.mxu0 %v239
    %3212 = vmatprep.subr.mxu0 %v244
    %3213 = vmatpush1.msra.mxu0 %v243
    %3214 = vmatprep.subr.mxu0 %v248
    %3215 = vmatpush1.msra.mxu0 %v247
    %3216 = vmatprep.subr.mxu0 %v252
    %3217 = vmatpush1.msra.mxu0 %v251
    %3218 = vmatprep.subr.mxu0 %v256
    %3219 = vmatpush1.msra.mxu0 %v255
    %3220 = vmatprep.subr.mxu0 %v260
    %3221 = vmatpush1.msra.mxu0 %v259
    %3222 = vmatprep.subr.mxu0 %v264
    %3223 = vmatpush1.msra.mxu0 %v263
    %3224 = vmatprep.subr.mxu0 %v268
    %3225 = vmatpush1.msra.mxu0 %v267
    %3226 = vmatprep.subr.mxu0 %v272
    %3227 = vmatpush1.msra.mxu0 %v271
    %3228 = vmatprep.subr.mxu0 %v276
    %3229 = vmatpush1.msra.mxu0 %v275
    %3230 = vmatprep.subr.mxu0 %v280
    %3231 = vmatpush1.msra.mxu0 %v279
    %3232 = vmatprep.subr.mxu0 %v284
    %3233 = vmatpush1.msra.mxu0 %v283
    %3234 = vmatprep.subr.mxu0 %v288
    %3235 = vmatpush1.msra.mxu0 %v287
    %3236 = vmatprep.subr.mxu0 %v292
    %3237 = vmatpush1.msra.mxu0 %v291
    %3238 = vmatprep.subr.mxu0 %v296
    %3239 = vmatpush1.msra.mxu0 %v295
    %3240 = vmatprep.subr.mxu0 %v300
    %3241 = vmatpush1.msra.mxu0 %v299
    %3242 = vmatprep.subr.mxu0 %v304
    %3243 = vmatpush1.msra.mxu0 %v303
    %3244 = vmatprep.subr.mxu0 %v308
    %3245 = vmatpush1.msra.mxu0 %v307
    %3246 = vmatprep.subr.mxu0 %v312
    %3247 = vmatpush1.msra.mxu0 %v311
    %3248 = vmatprep.subr.mxu0 %v316
    %3249 = vmatpush1.msra.mxu0 %v315
    %3250 = vmatprep.subr.mxu0 %v320
    %3251 = vmatpush1.msra.mxu0 %v319
    %3252 = vmatprep.subr.mxu0 %v324
    %3253 = vmatpush1.msra.mxu0 %v323
    %3254 = vmatprep.subr.mxu0 %v328
    %3255 = vmatpush1.msra.mxu0 %v327
    %3256 = vmatprep.mubr.f32.mxu0 %v2857
    %3257 = vmatmul.mubr.f32.gmra.mrb[0].mxu0 %v3191
    %v3258 = vpop.f32.mrb[0].mxu0
    %v3259 = vadd.f32 %v486, %v3258
    %v3260 = vpop.f32.mrb[0].mxu0
    %v3261 = vadd.f32 %v490, %v3260
    %3262 = vdwg.mxu0
    %3263 = vmatprep.subr.mxu0 %v206
    %3264 = vmatpush1.msra.mxu0 %v205
    %3265 = vmatprep.subr.mxu0 %v210
    %3266 = vmatpush1.msra.mxu0 %v209
    %3267 = vmatprep.subr.mxu0 %v214
    %3268 = vmatpush1.msra.mxu0 %v213
    %3269 = vmatprep.subr.mxu0 %v218
    %3270 = vmatpush1.msra.mxu0 %v217
    %3271 = vmatprep.subr.mxu0 %v222
    %3272 = vmatpush1.msra.mxu0 %v221
    %3273 = vmatprep.subr.mxu0 %v226
    %3274 = vmatpush1.msra.mxu0 %v225
    %3275 = vmatprep.subr.mxu0 %v230
    %3276 = vmatpush1.msra.mxu0 %v229
    %3277 = vmatprep.subr.mxu0 %v234
    %3278 = vmatpush1.msra.mxu0 %v233
    %3279 = vmatprep.subr.mxu0 %v238
    %3280 = vmatpush1.msra.mxu0 %v237
    %3281 = vmatprep.subr.mxu0 %v242
    %3282 = vmatpush1.msra.mxu0 %v241
    %3283 = vmatprep.subr.mxu0 %v246
    %3284 = vmatpush1.msra.mxu0 %v245
    %3285 = vmatprep.subr.mxu0 %v250
    %3286 = vmatpush1.msra.mxu0 %v249
    %3287 = vmatprep.subr.mxu0 %v254
    %3288 = vmatpush1.msra.mxu0 %v253
    %3289 = vmatprep.subr.mxu0 %v258
    %3290 = vmatpush1.msra.mxu0 %v257
    %3291 = vmatprep.subr.mxu0 %v262
    %3292 = vmatpush1.msra.mxu0 %v261
    %3293 = vmatprep.subr.mxu0 %v266
    %3294 = vmatpush1.msra.mxu0 %v265
    %3295 = vmatprep.subr.mxu0 %v270
    %3296 = vmatpush1.msra.mxu0 %v269
    %3297 = vmatprep.subr.mxu0 %v274
    %3298 = vmatpush1.msra.mxu0 %v273
    %3299 = vmatprep.subr.mxu0 %v278
    %3300 = vmatpush1.msra.mxu0 %v277
    %3301 = vmatprep.subr.mxu0 %v282
    %3302 = vmatpush1.msra.mxu0 %v281
    %3303 = vmatprep.subr.mxu0 %v286
    %3304 = vmatpush1.msra.mxu0 %v285
    %3305 = vmatprep.subr.mxu0 %v290
    %3306 = vmatpush1.msra.mxu0 %v289
    %3307 = vmatprep.subr.mxu0 %v294
    %3308 = vmatpush1.msra.mxu0 %v293
    %3309 = vmatprep.subr.mxu0 %v298
    %3310 = vmatpush1.msra.mxu0 %v297
    %3311 = vmatprep.subr.mxu0 %v302
    %3312 = vmatpush1.msra.mxu0 %v301
    %3313 = vmatprep.subr.mxu0 %v306
    %3314 = vmatpush1.msra.mxu0 %v305
    %3315 = vmatprep.subr.mxu0 %v310
    %3316 = vmatpush1.msra.mxu0 %v309
    %3317 = vmatprep.subr.mxu0 %v314
    %3318 = vmatpush1.msra.mxu0 %v313
    %3319 = vmatprep.subr.mxu0 %v318
    %3320 = vmatpush1.msra.mxu0 %v317
    %3321 = vmatprep.subr.mxu0 %v322
    %3322 = vmatpush1.msra.mxu0 %v321
    %3323 = vmatprep.subr.mxu0 %v326
    %3324 = vmatpush1.msra.mxu0 %v325
    %3325 = vmatprep.subr.mxu0 %v330
    %3326 = vmatpush1.msra.mxu0 %v329
    %3327 = vmatprep.mubr.f32.mxu0 %v2857
    %3328 = vmatmul.mubr.f32.gmra.mrb[0].mxu0 %v3191
    %v3329 = vpop.f32.mrb[0].mxu0
    %v3330 = vadd.f32 %v494, %v3329
    %v3331 = vpop.f32.mrb[0].mxu0
    %v3332 = vadd.f32 %v498, %v3331
    %3333 = vdwg.mxu0
    %v3334 = vxor.u32 %v3259, 2147483648
    %v3335 = vmul.f32 %v3334, 1.442695
    %v3336 = vpow.pop %v3335
    %v3337 = vadd.f32 %v3336, 1.0
    %v3338 = vrcp.pop %v3337
    %v3339 = vmul.f32 1.0, %v3338
    %v3340 = vxor.u32 %v3261, 2147483648
    %v3341 = vmul.f32 %v3340, 1.442695
    %v3342 = vpow.pop %v3341
    %v3343 = vadd.f32 %v3342, 1.0
    %v3344 = vrcp.pop %v3343
    %v3345 = vmul.f32 1.0, %v3344
    %v3346 = vtanh.pop %v3330
    %v3347 = vxor.u32 %v3332, 2147483648
    %v3348 = vmul.f32 %v3347, 1.442695
    %v3349 = vpow.pop %v3348
    %v3350 = vadd.f32 %v3349, 1.0
    %v3351 = vrcp.pop %v3350
    %v3352 = vmul.f32 1.0, %v3351
    %v3353 = vmul.f32 %v3345, %v2855
    %v3354 = vmul.f32 %v3339, %v3346
    %v3355 = vadd.f32 %v3353, %v3354
    %v3356 = vtanh.pop %v3355
    %v3357 = vmul.f32 %v3352, %v3356
    %3358 = vmatprep.subr.mxu0 %v332
    %3359 = vmatpush1.msra.mxu0 %v331
    %3360 = vmatprep.subr.mxu0 %v336
    %3361 = vmatpush1.msra.mxu0 %v335
    %3362 = vmatprep.subr.mxu0 %v340
    %3363 = vmatpush1.msra.mxu0 %v339
    %3364 = vmatprep.subr.mxu0 %v344
    %3365 = vmatpush1.msra.mxu0 %v343
    %3366 = vmatprep.subr.mxu0 %v348
    %3367 = vmatpush1.msra.mxu0 %v347
    %3368 = vmatprep.subr.mxu0 %v352
    %3369 = vmatpush1.msra.mxu0 %v351
    %3370 = vmatprep.subr.mxu0 %v356
    %3371 = vmatpush1.msra.mxu0 %v355
    %3372 = vmatprep.subr.mxu0 %v360
    %3373 = vmatpush1.msra.mxu0 %v359
    %3374 = vmatprep.subr.mxu0 %v364
    %3375 = vmatpush1.msra.mxu0 %v363
    %3376 = vmatprep.subr.mxu0 %v368
    %3377 = vmatpush1.msra.mxu0 %v367
    %3378 = vmatprep.subr.mxu0 %v372
    %3379 = vmatpush1.msra.mxu0 %v371
    %3380 = vmatprep.subr.mxu0 %v376
    %3381 = vmatpush1.msra.mxu0 %v375
    %3382 = vmatprep.subr.mxu0 %v380
    %3383 = vmatpush1.msra.mxu0 %v379
    %3384 = vmatprep.subr.mxu0 %v384
    %3385 = vmatpush1.msra.mxu0 %v383
    %3386 = vmatprep.subr.mxu0 %v388
    %3387 = vmatpush1.msra.mxu0 %v387
    %3388 = vmatprep.subr.mxu0 %v392
    %3389 = vmatpush1.msra.mxu0 %v391
    %3390 = vmatprep.subr.mxu0 %v396
    %3391 = vmatpush1.msra.mxu0 %v395
    %3392 = vmatprep.subr.mxu0 %v400
    %3393 = vmatpush1.msra.mxu0 %v399
    %3394 = vmatprep.subr.mxu0 %v404
    %3395 = vmatpush1.msra.mxu0 %v403
    %3396 = vmatprep.subr.mxu0 %v408
    %3397 = vmatpush1.msra.mxu0 %v407
    %3398 = vmatprep.subr.mxu0 %v412
    %3399 = vmatpush1.msra.mxu0 %v411
    %3400 = vmatprep.subr.mxu0 %v416
    %3401 = vmatpush1.msra.mxu0 %v415
    %3402 = vmatprep.subr.mxu0 %v420
    %3403 = vmatpush1.msra.mxu0 %v419
    %3404 = vmatprep.subr.mxu0 %v424
    %3405 = vmatpush1.msra.mxu0 %v423
    %3406 = vmatprep.subr.mxu0 %v428
    %3407 = vmatpush1.msra.mxu0 %v427
    %3408 = vmatprep.subr.mxu0 %v432
    %3409 = vmatpush1.msra.mxu0 %v431
    %3410 = vmatprep.subr.mxu0 %v436
    %3411 = vmatpush1.msra.mxu0 %v435
    %3412 = vmatprep.subr.mxu0 %v440
    %3413 = vmatpush1.msra.mxu0 %v439
    %3414 = vmatprep.subr.mxu0 %v444
    %3415 = vmatpush1.msra.mxu0 %v443
    %3416 = vmatprep.subr.mxu0 %v448
    %3417 = vmatpush1.msra.mxu0 %v447
    %3418 = vmatprep.subr.mxu0 %v452
    %3419 = vmatpush1.msra.mxu0 %v451
    %3420 = vmatprep.subr.mxu0 %v456
    %3421 = vmatpush1.msra.mxu0 %v455
    %3422 = vmatprep.mubr.f32.mxu0 %v3023
    %3423 = vmatmul.mubr.f32.gmra.mrb[0].mxu0 %v3357
    %v3424 = vpop.f32.mrb[0].mxu0
    %v3425 = vadd.f32 %v508, %v3424
    %v3426 = vpop.f32.mrb[0].mxu0
    %v3427 = vadd.f32 %v512, %v3426
    %3428 = vdwg.mxu0
    %3429 = vmatprep.subr.mxu0 %v334
    %3430 = vmatpush1.msra.mxu0 %v333
    %3431 = vmatprep.subr.mxu0 %v338
    %3432 = vmatpush1.msra.mxu0 %v337
    %3433 = vmatprep.subr.mxu0 %v342
    %3434 = vmatpush1.msra.mxu0 %v341
    %3435 = vmatprep.subr.mxu0 %v346
    %3436 = vmatpush1.msra.mxu0 %v345
    %3437 = vmatprep.subr.mxu0 %v350
    %3438 = vmatpush1.msra.mxu0 %v349
    %3439 = vmatprep.subr.mxu0 %v354
    %3440 = vmatpush1.msra.mxu0 %v353
    %3441 = vmatprep.subr.mxu0 %v358
    %3442 = vmatpush1.msra.mxu0 %v357
    %3443 = vmatprep.subr.mxu0 %v362
    %3444 = vmatpush1.msra.mxu0 %v361
    %3445 = vmatprep.subr.mxu0 %v366
    %3446 = vmatpush1.msra.mxu0 %v365
    %3447 = vmatprep.subr.mxu0 %v370
    %3448 = vmatpush1.msra.mxu0 %v369
    %3449 = vmatprep.subr.mxu0 %v374
    %3450 = vmatpush1.msra.mxu0 %v373
    %3451 = vmatprep.subr.mxu0 %v378
    %3452 = vmatpush1.msra.mxu0 %v377
    %3453 = vmatprep.subr.mxu0 %v382
    %3454 = vmatpush1.msra.mxu0 %v381
    %3455 = vmatprep.subr.mxu0 %v386
    %3456 = vmatpush1.msra.mxu0 %v385
    %3457 = vmatprep.subr.mxu0 %v390
    %3458 = vmatpush1.msra.mxu0 %v389
    %3459 = vmatprep.subr.mxu0 %v394
    %3460 = vmatpush1.msra.mxu0 %v393
    %3461 = vmatprep.subr.mxu0 %v398
    %3462 = vmatpush1.msra.mxu0 %v397
    %3463 = vmatprep.subr.mxu0 %v402
    %3464 = vmatpush1.msra.mxu0 %v401
    %3465 = vmatprep.subr.mxu0 %v406
    %3466 = vmatpush1.msra.mxu0 %v405
    %3467 = vmatprep.subr.mxu0 %v410
    %3468 = vmatpush1.msra.mxu0 %v409
    %3469 = vmatprep.subr.mxu0 %v414
    %3470 = vmatpush1.msra.mxu0 %v413
    %3471 = vmatprep.subr.mxu0 %v418
    %3472 = vmatpush1.msra.mxu0 %v417
    %3473 = vmatprep.subr.mxu0 %v422
    %3474 = vmatpush1.msra.mxu0 %v421
    %3475 = vmatprep.subr.mxu0 %v426
    %3476 = vmatpush1.msra.mxu0 %v425
    %3477 = vmatprep.subr.mxu0 %v430
    %3478 = vmatpush1.msra.mxu0 %v429
    %3479 = vmatprep.subr.mxu0 %v434
    %3480 = vmatpush1.msra.mxu0 %v433
    %3481 = vmatprep.subr.mxu0 %v438
    %3482 = vmatpush1.msra.mxu0 %v437
    %3483 = vmatprep.subr.mxu0 %v442
    %3484 = vmatpush1.msra.mxu0 %v441
    %3485 = vmatprep.subr.mxu0 %v446
    %3486 = vmatpush1.msra.mxu0 %v445
    %3487 = vmatprep.subr.mxu0 %v450
    %3488 = vmatpush1.msra.mxu0 %v449
    %3489 = vmatprep.subr.mxu0 %v454
    %3490 = vmatpush1.msra.mxu0 %v453
    %3491 = vmatprep.subr.mxu0 %v458
    %3492 = vmatpush1.msra.mxu0 %v457
    %3493 = vmatprep.mubr.f32.mxu0 %v3023
    %3494 = vmatmul.mubr.f32.gmra.mrb[0].mxu0 %v3357
    %v3495 = vpop.f32.mrb[0].mxu0
    %v3496 = vadd.f32 %v516, %v3495
    %v3497 = vpop.f32.mrb[0].mxu0
    %v3498 = vadd.f32 %v520, %v3497
    %3499 = vdwg.mxu0
    %v3500 = vxor.u32 %v3425, 2147483648
    %v3501 = vmul.f32 %v3500, 1.442695
    %v3502 = vpow.pop %v3501
    %v3503 = vadd.f32 %v3502, 1.0
    %v3504 = vrcp.pop %v3503
    %v3505 = vmul.f32 1.0, %v3504
    %v3506 = vxor.u32 %v3427, 2147483648
    %v3507 = vmul.f32 %v3506, 1.442695
    %v3508 = vpow.pop %v3507
    %v3509 = vadd.f32 %v3508, 1.0
    %v3510 = vrcp.pop %v3509
    %v3511 = vmul.f32 1.0, %v3510
    %v3512 = vtanh.pop %v3496
    %v3513 = vxor.u32 %v3498, 2147483648
    %v3514 = vmul.f32 %v3513, 1.442695
    %v3515 = vpow.pop %v3514
    %v3516 = vadd.f32 %v3515, 1.0
    %v3517 = vrcp.pop %v3516
    %v3518 = vmul.f32 1.0, %v3517
    %v3519 = vmul.f32 %v3511, %v3021
    %v3520 = vmul.f32 %v3505, %v3512
    %v3521 = vadd.f32 %v3519, %v3520
    %v3522 = vtanh.pop %v3521
    %v3523 = vmul.f32 %v3518, %v3522
    %s3524 = scalar_lea.vmem %s0, 48
    %v3525 = vld [vmem:[%s3524] sm:$0xff]
    %3526 = vmatprep.subr.mxu0 %v76
    %3527 = vmatpush1.msra.mxu0 %v75
    %3528 = vmatprep.subr.mxu0 %v80
    %3529 = vmatpush1.msra.mxu0 %v79
    %3530 = vmatprep.subr.mxu0 %v84
    %3531 = vmatpush1.msra.mxu0 %v83
    %3532 = vmatprep.subr.mxu0 %v88
    %3533 = vmatpush1.msra.mxu0 %v87
    %3534 = vmatprep.subr.mxu0 %v92
    %3535 = vmatpush1.msra.mxu0 %v91
    %3536 = vmatprep.subr.mxu0 %v96
    %3537 = vmatpush1.msra.mxu0 %v95
    %3538 = vmatprep.subr.mxu0 %v100
    %3539 = vmatpush1.msra.mxu0 %v99
    %3540 = vmatprep.subr.mxu0 %v104
    %3541 = vmatpush1.msra.mxu0 %v103
    %3542 = vmatprep.subr.mxu0 %v108
    %3543 = vmatpush1.msra.mxu0 %v107
    %3544 = vmatprep.subr.mxu0 %v112
    %3545 = vmatpush1.msra.mxu0 %v111
    %3546 = vmatprep.subr.mxu0 %v116
    %3547 = vmatpush1.msra.mxu0 %v115
    %3548 = vmatprep.subr.mxu0 %v120
    %3549 = vmatpush1.msra.mxu0 %v119
    %3550 = vmatprep.subr.mxu0 %v124
    %3551 = vmatpush1.msra.mxu0 %v123
    %3552 = vmatprep.subr.mxu0 %v128
    %3553 = vmatpush1.msra.mxu0 %v127
    %3554 = vmatprep.subr.mxu0 %v132
    %3555 = vmatpush1.msra.mxu0 %v131
    %3556 = vmatprep.subr.mxu0 %v136
    %3557 = vmatpush1.msra.mxu0 %v135
    %3558 = vmatprep.subr.mxu0 %v140
    %3559 = vmatpush1.msra.mxu0 %v139
    %3560 = vmatprep.subr.mxu0 %v144
    %3561 = vmatpush1.msra.mxu0 %v143
    %3562 = vmatprep.subr.mxu0 %v148
    %3563 = vmatpush1.msra.mxu0 %v147
    %3564 = vmatprep.subr.mxu0 %v152
    %3565 = vmatpush1.msra.mxu0 %v151
    %3566 = vmatprep.subr.mxu0 %v156
    %3567 = vmatpush1.msra.mxu0 %v155
    %3568 = vmatprep.subr.mxu0 %v160
    %3569 = vmatpush1.msra.mxu0 %v159
    %3570 = vmatprep.subr.mxu0 %v164
    %3571 = vmatpush1.msra.mxu0 %v163
    %3572 = vmatprep.subr.mxu0 %v168
    %3573 = vmatpush1.msra.mxu0 %v167
    %3574 = vmatprep.subr.mxu0 %v172
    %3575 = vmatpush1.msra.mxu0 %v171
    %3576 = vmatprep.subr.mxu0 %v176
    %3577 = vmatpush1.msra.mxu0 %v175
    %3578 = vmatprep.subr.mxu0 %v180
    %3579 = vmatpush1.msra.mxu0 %v179
    %3580 = vmatprep.subr.mxu0 %v184
    %3581 = vmatpush1.msra.mxu0 %v183
    %3582 = vmatprep.subr.mxu0 %v188
    %3583 = vmatpush1.msra.mxu0 %v187
    %3584 = vmatprep.subr.mxu0 %v192
    %3585 = vmatpush1.msra.mxu0 %v191
    %3586 = vmatprep.subr.mxu0 %v196
    %3587 = vmatpush1.msra.mxu0 %v195
    %3588 = vmatprep.subr.mxu0 %v200
    %3589 = vmatpush1.msra.mxu0 %v199
    %3590 = vmatprep.mubr.f32.mxu0 %v3191
    %3591 = vmatmul.mubr.f32.gmra.mrb[0].mxu0 %v3525
    %v3592 = vpop.f32.mrb[0].mxu0
    %v3593 = vadd.f32 %v464, %v3592
    %v3594 = vpop.f32.mrb[0].mxu0
    %v3595 = vadd.f32 %v468, %v3594
    %3596 = vdwg.mxu0
    %3597 = vmatprep.subr.mxu0 %v78
    %3598 = vmatpush1.msra.mxu0 %v77
    %3599 = vmatprep.subr.mxu0 %v82
    %3600 = vmatpush1.msra.mxu0 %v81
    %3601 = vmatprep.subr.mxu0 %v86
    %3602 = vmatpush1.msra.mxu0 %v85
    %3603 = vmatprep.subr.mxu0 %v90
    %3604 = vmatpush1.msra.mxu0 %v89
    %3605 = vmatprep.subr.mxu0 %v94
    %3606 = vmatpush1.msra.mxu0 %v93
    %3607 = vmatprep.subr.mxu0 %v98
    %3608 = vmatpush1.msra.mxu0 %v97
    %3609 = vmatprep.subr.mxu0 %v102
    %3610 = vmatpush1.msra.mxu0 %v101
    %3611 = vmatprep.subr.mxu0 %v106
    %3612 = vmatpush1.msra.mxu0 %v105
    %3613 = vmatprep.subr.mxu0 %v110
    %3614 = vmatpush1.msra.mxu0 %v109
    %3615 = vmatprep.subr.mxu0 %v114
    %3616 = vmatpush1.msra.mxu0 %v113
    %3617 = vmatprep.subr.mxu0 %v118
    %3618 = vmatpush1.msra.mxu0 %v117
    %3619 = vmatprep.subr.mxu0 %v122
    %3620 = vmatpush1.msra.mxu0 %v121
    %3621 = vmatprep.subr.mxu0 %v126
    %3622 = vmatpush1.msra.mxu0 %v125
    %3623 = vmatprep.subr.mxu0 %v130
    %3624 = vmatpush1.msra.mxu0 %v129
    %3625 = vmatprep.subr.mxu0 %v134
    %3626 = vmatpush1.msra.mxu0 %v133
    %3627 = vmatprep.subr.mxu0 %v138
    %3628 = vmatpush1.msra.mxu0 %v137
    %3629 = vmatprep.subr.mxu0 %v142
    %3630 = vmatpush1.msra.mxu0 %v141
    %3631 = vmatprep.subr.mxu0 %v146
    %3632 = vmatpush1.msra.mxu0 %v145
    %3633 = vmatprep.subr.mxu0 %v150
    %3634 = vmatpush1.msra.mxu0 %v149
    %3635 = vmatprep.subr.mxu0 %v154
    %3636 = vmatpush1.msra.mxu0 %v153
    %3637 = vmatprep.subr.mxu0 %v158
    %3638 = vmatpush1.msra.mxu0 %v157
    %3639 = vmatprep.subr.mxu0 %v162
    %3640 = vmatpush1.msra.mxu0 %v161
    %3641 = vmatprep.subr.mxu0 %v166
    %3642 = vmatpush1.msra.mxu0 %v165
    %3643 = vmatprep.subr.mxu0 %v170
    %3644 = vmatpush1.msra.mxu0 %v169
    %3645 = vmatprep.subr.mxu0 %v174
    %3646 = vmatpush1.msra.mxu0 %v173
    %3647 = vmatprep.subr.mxu0 %v178
    %3648 = vmatpush1.msra.mxu0 %v177
    %3649 = vmatprep.subr.mxu0 %v182
    %3650 = vmatpush1.msra.mxu0 %v181
    %3651 = vmatprep.subr.mxu0 %v186
    %3652 = vmatpush1.msra.mxu0 %v185
    %3653 = vmatprep.subr.mxu0 %v190
    %3654 = vmatpush1.msra.mxu0 %v189
    %3655 = vmatprep.subr.mxu0 %v194
    %3656 = vmatpush1.msra.mxu0 %v193
    %3657 = vmatprep.subr.mxu0 %v198
    %3658 = vmatpush1.msra.mxu0 %v197
    %3659 = vmatprep.subr.mxu0 %v202
    %3660 = vmatpush1.msra.mxu0 %v201
    %3661 = vmatprep.mubr.f32.mxu0 %v3191
    %3662 = vmatmul.mubr.f32.gmra.mrb[0].mxu0 %v3525
    %v3663 = vpop.f32.mrb[0].mxu0
    %v3664 = vadd.f32 %v472, %v3663
    %v3665 = vpop.f32.mrb[0].mxu0
    %v3666 = vadd.f32 %v476, %v3665
    %3667 = vdwg.mxu0
    %v3668 = vxor.u32 %v3593, 2147483648
    %v3669 = vmul.f32 %v3668, 1.442695
    %v3670 = vpow.pop %v3669
    %v3671 = vadd.f32 %v3670, 1.0
    %v3672 = vrcp.pop %v3671
    %v3673 = vmul.f32 1.0, %v3672
    %v3674 = vxor.u32 %v3595, 2147483648
    %v3675 = vmul.f32 %v3674, 1.442695
    %v3676 = vpow.pop %v3675
    %v3677 = vadd.f32 %v3676, 1.0
    %v3678 = vrcp.pop %v3677
    %v3679 = vmul.f32 1.0, %v3678
    %v3680 = vtanh.pop %v3664
    %v3681 = vxor.u32 %v3666, 2147483648
    %v3682 = vmul.f32 %v3681, 1.442695
    %v3683 = vpow.pop %v3682
    %v3684 = vadd.f32 %v3683, 1.0
    %v3685 = vrcp.pop %v3684
    %v3686 = vmul.f32 1.0, %v3685
    %v3687 = vmul.f32 %v3679, %v3189
    %v3688 = vmul.f32 %v3673, %v3680
    %v3689 = vadd.f32 %v3687, %v3688
    %v3690 = vtanh.pop %v3689
    %v3691 = vmul.f32 %v3686, %v3690
    %3692 = vmatprep.subr.mxu0 %v204
    %3693 = vmatpush1.msra.mxu0 %v203
    %3694 = vmatprep.subr.mxu0 %v208
    %3695 = vmatpush1.msra.mxu0 %v207
    %3696 = vmatprep.subr.mxu0 %v212
    %3697 = vmatpush1.msra.mxu0 %v211
    %3698 = vmatprep.subr.mxu0 %v216
    %3699 = vmatpush1.msra.mxu0 %v215
    %3700 = vmatprep.subr.mxu0 %v220
    %3701 = vmatpush1.msra.mxu0 %v219
    %3702 = vmatprep.subr.mxu0 %v224
    %3703 = vmatpush1.msra.mxu0 %v223
    %3704 = vmatprep.subr.mxu0 %v228
    %3705 = vmatpush1.msra.mxu0 %v227
    %3706 = vmatprep.subr.mxu0 %v232
    %3707 = vmatpush1.msra.mxu0 %v231
    %3708 = vmatprep.subr.mxu0 %v236
    %3709 = vmatpush1.msra.mxu0 %v235
    %3710 = vmatprep.subr.mxu0 %v240
    %3711 = vmatpush1.msra.mxu0 %v239
    %3712 = vmatprep.subr.mxu0 %v244
    %3713 = vmatpush1.msra.mxu0 %v243
    %3714 = vmatprep.subr.mxu0 %v248
    %3715 = vmatpush1.msra.mxu0 %v247
    %3716 = vmatprep.subr.mxu0 %v252
    %3717 = vmatpush1.msra.mxu0 %v251
    %3718 = vmatprep.subr.mxu0 %v256
    %3719 = vmatpush1.msra.mxu0 %v255
    %3720 = vmatprep.subr.mxu0 %v260
    %3721 = vmatpush1.msra.mxu0 %v259
    %3722 = vmatprep.subr.mxu0 %v264
    %3723 = vmatpush1.msra.mxu0 %v263
    %3724 = vmatprep.subr.mxu0 %v268
    %3725 = vmatpush1.msra.mxu0 %v267
    %3726 = vmatprep.subr.mxu0 %v272
    %3727 = vmatpush1.msra.mxu0 %v271
    %3728 = vmatprep.subr.mxu0 %v276
    %3729 = vmatpush1.msra.mxu0 %v275
    %3730 = vmatprep.subr.mxu0 %v280
    %3731 = vmatpush1.msra.mxu0 %v279
    %3732 = vmatprep.subr.mxu0 %v284
    %3733 = vmatpush1.msra.mxu0 %v283
    %3734 = vmatprep.subr.mxu0 %v288
    %3735 = vmatpush1.msra.mxu0 %v287
    %3736 = vmatprep.subr.mxu0 %v292
    %3737 = vmatpush1.msra.mxu0 %v291
    %3738 = vmatprep.subr.mxu0 %v296
    %3739 = vmatpush1.msra.mxu0 %v295
    %3740 = vmatprep.subr.mxu0 %v300
    %3741 = vmatpush1.msra.mxu0 %v299
    %3742 = vmatprep.subr.mxu0 %v304
    %3743 = vmatpush1.msra.mxu0 %v303
    %3744 = vmatprep.subr.mxu0 %v308
    %3745 = vmatpush1.msra.mxu0 %v307
    %3746 = vmatprep.subr.mxu0 %v312
    %3747 = vmatpush1.msra.mxu0 %v311
    %3748 = vmatprep.subr.mxu0 %v316
    %3749 = vmatpush1.msra.mxu0 %v315
    %3750 = vmatprep.subr.mxu0 %v320
    %3751 = vmatpush1.msra.mxu0 %v319
    %3752 = vmatprep.subr.mxu0 %v324
    %3753 = vmatpush1.msra.mxu0 %v323
    %3754 = vmatprep.subr.mxu0 %v328
    %3755 = vmatpush1.msra.mxu0 %v327
    %3756 = vmatprep.mubr.f32.mxu0 %v3357
    %3757 = vmatmul.mubr.f32.gmra.mrb[0].mxu0 %v3691
    %v3758 = vpop.f32.mrb[0].mxu0
    %v3759 = vadd.f32 %v486, %v3758
    %v3760 = vpop.f32.mrb[0].mxu0
    %v3761 = vadd.f32 %v490, %v3760
    %3762 = vdwg.mxu0
    %3763 = vmatprep.subr.mxu0 %v206
    %3764 = vmatpush1.msra.mxu0 %v205
    %3765 = vmatprep.subr.mxu0 %v210
    %3766 = vmatpush1.msra.mxu0 %v209
    %3767 = vmatprep.subr.mxu0 %v214
    %3768 = vmatpush1.msra.mxu0 %v213
    %3769 = vmatprep.subr.mxu0 %v218
    %3770 = vmatpush1.msra.mxu0 %v217
    %3771 = vmatprep.subr.mxu0 %v222
    %3772 = vmatpush1.msra.mxu0 %v221
    %3773 = vmatprep.subr.mxu0 %v226
    %3774 = vmatpush1.msra.mxu0 %v225
    %3775 = vmatprep.subr.mxu0 %v230
    %3776 = vmatpush1.msra.mxu0 %v229
    %3777 = vmatprep.subr.mxu0 %v234
    %3778 = vmatpush1.msra.mxu0 %v233
    %3779 = vmatprep.subr.mxu0 %v238
    %3780 = vmatpush1.msra.mxu0 %v237
    %3781 = vmatprep.subr.mxu0 %v242
    %3782 = vmatpush1.msra.mxu0 %v241
    %3783 = vmatprep.subr.mxu0 %v246
    %3784 = vmatpush1.msra.mxu0 %v245
    %3785 = vmatprep.subr.mxu0 %v250
    %3786 = vmatpush1.msra.mxu0 %v249
    %3787 = vmatprep.subr.mxu0 %v254
    %3788 = vmatpush1.msra.mxu0 %v253
    %3789 = vmatprep.subr.mxu0 %v258
    %3790 = vmatpush1.msra.mxu0 %v257
    %3791 = vmatprep.subr.mxu0 %v262
    %3792 = vmatpush1.msra.mxu0 %v261
    %3793 = vmatprep.subr.mxu0 %v266
    %3794 = vmatpush1.msra.mxu0 %v265
    %3795 = vmatprep.subr.mxu0 %v270
    %3796 = vmatpush1.msra.mxu0 %v269
    %3797 = vmatprep.subr.mxu0 %v274
    %3798 = vmatpush1.msra.mxu0 %v273
    %3799 = vmatprep.subr.mxu0 %v278
    %3800 = vmatpush1.msra.mxu0 %v277
    %3801 = vmatprep.subr.mxu0 %v282
    %3802 = vmatpush1.msra.mxu0 %v281
    %3803 = vmatprep.subr.mxu0 %v286
    %3804 = vmatpush1.msra.mxu0 %v285
    %3805 = vmatprep.subr.mxu0 %v290
    %3806 = vmatpush1.msra.mxu0 %v289
    %3807 = vmatprep.subr.mxu0 %v294
    %3808 = vmatpush1.msra.mxu0 %v293
    %3809 = vmatprep.subr.mxu0 %v298
    %3810 = vmatpush1.msra.mxu0 %v297
    %3811 = vmatprep.subr.mxu0 %v302
    %3812 = vmatpush1.msra.mxu0 %v301
    %3813 = vmatprep.subr.mxu0 %v306
    %3814 = vmatpush1.msra.mxu0 %v305
    %3815 = vmatprep.subr.mxu0 %v310
    %3816 = vmatpush1.msra.mxu0 %v309
    %3817 = vmatprep.subr.mxu0 %v314
    %3818 = vmatpush1.msra.mxu0 %v313
    %3819 = vmatprep.subr.mxu0 %v318
    %3820 = vmatpush1.msra.mxu0 %v317
    %3821 = vmatprep.subr.mxu0 %v322
    %3822 = vmatpush1.msra.mxu0 %v321
    %3823 = vmatprep.subr.mxu0 %v326
    %3824 = vmatpush1.msra.mxu0 %v325
    %3825 = vmatprep.subr.mxu0 %v330
    %3826 = vmatpush1.msra.mxu0 %v329
    %3827 = vmatprep.mubr.f32.mxu0 %v3357
    %3828 = vmatmul.mubr.f32.gmra.mrb[0].mxu0 %v3691
    %v3829 = vpop.f32.mrb[0].mxu0
    %v3830 = vadd.f32 %v494, %v3829
    %v3831 = vpop.f32.mrb[0].mxu0
    %v3832 = vadd.f32 %v498, %v3831
    %3833 = vdwg.mxu0
    %v3834 = vxor.u32 %v3759, 2147483648
    %v3835 = vmul.f32 %v3834, 1.442695
    %v3836 = vpow.pop %v3835
    %v3837 = vadd.f32 %v3836, 1.0
    %v3838 = vrcp.pop %v3837
    %v3839 = vmul.f32 1.0, %v3838
    %v3840 = vxor.u32 %v3761, 2147483648
    %v3841 = vmul.f32 %v3840, 1.442695
    %v3842 = vpow.pop %v3841
    %v3843 = vadd.f32 %v3842, 1.0
    %v3844 = vrcp.pop %v3843
    %v3845 = vmul.f32 1.0, %v3844
    %v3846 = vtanh.pop %v3830
    %v3847 = vxor.u32 %v3832, 2147483648
    %v3848 = vmul.f32 %v3847, 1.442695
    %v3849 = vpow.pop %v3848
    %v3850 = vadd.f32 %v3849, 1.0
    %v3851 = vrcp.pop %v3850
    %v3852 = vmul.f32 1.0, %v3851
    %v3853 = vmul.f32 %v3845, %v3355
    %v3854 = vmul.f32 %v3839, %v3846
    %v3855 = vadd.f32 %v3853, %v3854
    %v3856 = vtanh.pop %v3855
    %v3857 = vmul.f32 %v3852, %v3856
    %3858 = vmatprep.subr.mxu0 %v332
    %3859 = vmatpush1.msra.mxu0 %v331
    %3860 = vmatprep.subr.mxu0 %v336
    %3861 = vmatpush1.msra.mxu0 %v335
    %3862 = vmatprep.subr.mxu0 %v340
    %3863 = vmatpush1.msra.mxu0 %v339
    %3864 = vmatprep.subr.mxu0 %v344
    %3865 = vmatpush1.msra.mxu0 %v343
    %3866 = vmatprep.subr.mxu0 %v348
    %3867 = vmatpush1.msra.mxu0 %v347
    %3868 = vmatprep.subr.mxu0 %v352
    %3869 = vmatpush1.msra.mxu0 %v351
    %3870 = vmatprep.subr.mxu0 %v356
    %3871 = vmatpush1.msra.mxu0 %v355
    %3872 = vmatprep.subr.mxu0 %v360
    %3873 = vmatpush1.msra.mxu0 %v359
    %3874 = vmatprep.subr.mxu0 %v364
    %3875 = vmatpush1.msra.mxu0 %v363
    %3876 = vmatprep.subr.mxu0 %v368
    %3877 = vmatpush1.msra.mxu0 %v367
    %3878 = vmatprep.subr.mxu0 %v372
    %3879 = vmatpush1.msra.mxu0 %v371
    %3880 = vmatprep.subr.mxu0 %v376
    %3881 = vmatpush1.msra.mxu0 %v375
    %3882 = vmatprep.subr.mxu0 %v380
    %3883 = vmatpush1.msra.mxu0 %v379
    %3884 = vmatprep.subr.mxu0 %v384
    %3885 = vmatpush1.msra.mxu0 %v383
    %3886 = vmatprep.subr.mxu0 %v388
    %3887 = vmatpush1.msra.mxu0 %v387
    %3888 = vmatprep.subr.mxu0 %v392
    %3889 = vmatpush1.msra.mxu0 %v391
    %3890 = vmatprep.subr.mxu0 %v396
    %3891 = vmatpush1.msra.mxu0 %v395
    %3892 = vmatprep.subr.mxu0 %v400
    %3893 = vmatpush1.msra.mxu0 %v399
    %3894 = vmatprep.subr.mxu0 %v404
    %3895 = vmatpush1.msra.mxu0 %v403
    %3896 = vmatprep.subr.mxu0 %v408
    %3897 = vmatpush1.msra.mxu0 %v407
    %3898 = vmatprep.subr.mxu0 %v412
    %3899 = vmatpush1.msra.mxu0 %v411
    %3900 = vmatprep.subr.mxu0 %v416
    %3901 = vmatpush1.msra.mxu0 %v415
    %3902 = vmatprep.subr.mxu0 %v420
    %3903 = vmatpush1.msra.mxu0 %v419
    %3904 = vmatprep.subr.mxu0 %v424
    %3905 = vmatpush1.msra.mxu0 %v423
    %3906 = vmatprep.subr.mxu0 %v428
    %3907 = vmatpush1.msra.mxu0 %v427
    %3908 = vmatprep.subr.mxu0 %v432
    %3909 = vmatpush1.msra.mxu0 %v431
    %3910 = vmatprep.subr.mxu0 %v436
    %3911 = vmatpush1.msra.mxu0 %v435
    %3912 = vmatprep.subr.mxu0 %v440
    %3913 = vmatpush1.msra.mxu0 %v439
    %3914 = vmatprep.subr.mxu0 %v444
    %3915 = vmatpush1.msra.mxu0 %v443
    %3916 = vmatprep.subr.mxu0 %v448
    %3917 = vmatpush1.msra.mxu0 %v447
    %3918 = vmatprep.subr.mxu0 %v452
    %3919 = vmatpush1.msra.mxu0 %v451
    %3920 = vmatprep.subr.mxu0 %v456
    %3921 = vmatpush1.msra.mxu0 %v455
    %3922 = vmatprep.mubr.f32.mxu0 %v3523
    %3923 = vmatmul.mubr.f32.gmra.mrb[0].mxu0 %v3857
    %v3924 = vpop.f32.mrb[0].mxu0
    %v3925 = vadd.f32 %v508, %v3924
    %v3926 = vpop.f32.mrb[0].mxu0
    %v3927 = vadd.f32 %v512, %v3926
    %3928 = vdwg.mxu0
    %3929 = vmatprep.subr.mxu0 %v334
    %3930 = vmatpush1.msra.mxu0 %v333
    %3931 = vmatprep.subr.mxu0 %v338
    %3932 = vmatpush1.msra.mxu0 %v337
    %3933 = vmatprep.subr.mxu0 %v342
    %3934 = vmatpush1.msra.mxu0 %v341
    %3935 = vmatprep.subr.mxu0 %v346
    %3936 = vmatpush1.msra.mxu0 %v345
    %3937 = vmatprep.subr.mxu0 %v350
    %3938 = vmatpush1.msra.mxu0 %v349
    %3939 = vmatprep.subr.mxu0 %v354
    %3940 = vmatpush1.msra.mxu0 %v353
    %3941 = vmatprep.subr.mxu0 %v358
    %3942 = vmatpush1.msra.mxu0 %v357
    %3943 = vmatprep.subr.mxu0 %v362
    %3944 = vmatpush1.msra.mxu0 %v361
    %3945 = vmatprep.subr.mxu0 %v366
    %3946 = vmatpush1.msra.mxu0 %v365
    %3947 = vmatprep.subr.mxu0 %v370
    %3948 = vmatpush1.msra.mxu0 %v369
    %3949 = vmatprep.subr.mxu0 %v374
    %3950 = vmatpush1.msra.mxu0 %v373
    %3951 = vmatprep.subr.mxu0 %v378
    %3952 = vmatpush1.msra.mxu0 %v377
    %3953 = vmatprep.subr.mxu0 %v382
    %3954 = vmatpush1.msra.mxu0 %v381
    %3955 = vmatprep.subr.mxu0 %v386
    %3956 = vmatpush1.msra.mxu0 %v385
    %3957 = vmatprep.subr.mxu0 %v390
    %3958 = vmatpush1.msra.mxu0 %v389
    %3959 = vmatprep.subr.mxu0 %v394
    %3960 = vmatpush1.msra.mxu0 %v393
    %3961 = vmatprep.subr.mxu0 %v398
    %3962 = vmatpush1.msra.mxu0 %v397
    %3963 = vmatprep.subr.mxu0 %v402
    %3964 = vmatpush1.msra.mxu0 %v401
    %3965 = vmatprep.subr.mxu0 %v406
    %3966 = vmatpush1.msra.mxu0 %v405
    %3967 = vmatprep.subr.mxu0 %v410
    %3968 = vmatpush1.msra.mxu0 %v409
    %3969 = vmatprep.subr.mxu0 %v414
    %3970 = vmatpush1.msra.mxu0 %v413
    %3971 = vmatprep.subr.mxu0 %v418
    %3972 = vmatpush1.msra.mxu0 %v417
    %3973 = vmatprep.subr.mxu0 %v422
    %3974 = vmatpush1.msra.mxu0 %v421
    %3975 = vmatprep.subr.mxu0 %v426
    %3976 = vmatpush1.msra.mxu0 %v425
    %3977 = vmatprep.subr.mxu0 %v430
    %3978 = vmatpush1.msra.mxu0 %v429
    %3979 = vmatprep.subr.mxu0 %v434
    %3980 = vmatpush1.msra.mxu0 %v433
    %3981 = vmatprep.subr.mxu0 %v438
    %3982 = vmatpush1.msra.mxu0 %v437
    %3983 = vmatprep.subr.mxu0 %v442
    %3984 = vmatpush1.msra.mxu0 %v441
    %3985 = vmatprep.subr.mxu0 %v446
    %3986 = vmatpush1.msra.mxu0 %v445
    %3987 = vmatprep.subr.mxu0 %v450
    %3988 = vmatpush1.msra.mxu0 %v449
    %3989 = vmatprep.subr.mxu0 %v454
    %3990 = vmatpush1.msra.mxu0 %v453
    %3991 = vmatprep.subr.mxu0 %v458
    %3992 = vmatpush1.msra.mxu0 %v457
    %3993 = vmatprep.mubr.f32.mxu0 %v3523
    %3994 = vmatmul.mubr.f32.gmra.mrb[0].mxu0 %v3857
    %v3995 = vpop.f32.mrb[0].mxu0
    %v3996 = vadd.f32 %v516, %v3995
    %v3997 = vpop.f32.mrb[0].mxu0
    %v3998 = vadd.f32 %v520, %v3997
    %3999 = vdwg.mxu0
    %v4000 = vxor.u32 %v3925, 2147483648
    %v4001 = vmul.f32 %v4000, 1.442695
    %v4002 = vpow.pop %v4001
    %v4003 = vadd.f32 %v4002, 1.0
    %v4004 = vrcp.pop %v4003
    %v4005 = vmul.f32 1.0, %v4004
    %v4006 = vxor.u32 %v3927, 2147483648
    %v4007 = vmul.f32 %v4006, 1.442695
    %v4008 = vpow.pop %v4007
    %v4009 = vadd.f32 %v4008, 1.0
    %v4010 = vrcp.pop %v4009
    %v4011 = vmul.f32 1.0, %v4010
    %v4012 = vtanh.pop %v3996
    %v4013 = vxor.u32 %v3998, 2147483648
    %v4014 = vmul.f32 %v4013, 1.442695
    %v4015 = vpow.pop %v4014
    %v4016 = vadd.f32 %v4015, 1.0
    %v4017 = vrcp.pop %v4016
    %v4018 = vmul.f32 1.0, %v4017
    %v4019 = vmul.f32 %v4011, %v3521
    %v4020 = vmul.f32 %v4005, %v4012
    %v4021 = vadd.f32 %v4019, %v4020
    %v4022 = vtanh.pop %v4021
    %v4023 = vmul.f32 %v4018, %v4022
    %s4024 = scalar_lea.vmem %s0, 56
    %v4025 = vld [vmem:[%s4024] sm:$0xff]
    %4026 = vmatprep.subr.mxu0 %v76
    %4027 = vmatpush1.msra.mxu0 %v75
    %4028 = vmatprep.subr.mxu0 %v80
    %4029 = vmatpush1.msra.mxu0 %v79
    %4030 = vmatprep.subr.mxu0 %v84
    %4031 = vmatpush1.msra.mxu0 %v83
    %4032 = vmatprep.subr.mxu0 %v88
    %4033 = vmatpush1.msra.mxu0 %v87
    %4034 = vmatprep.subr.mxu0 %v92
    %4035 = vmatpush1.msra.mxu0 %v91
    %4036 = vmatprep.subr.mxu0 %v96
    %4037 = vmatpush1.msra.mxu0 %v95
    %4038 = vmatprep.subr.mxu0 %v100
    %4039 = vmatpush1.msra.mxu0 %v99
    %4040 = vmatprep.subr.mxu0 %v104
    %4041 = vmatpush1.msra.mxu0 %v103
    %4042 = vmatprep.subr.mxu0 %v108
    %4043 = vmatpush1.msra.mxu0 %v107
    %4044 = vmatprep.subr.mxu0 %v112
    %4045 = vmatpush1.msra.mxu0 %v111
    %4046 = vmatprep.subr.mxu0 %v116
    %4047 = vmatpush1.msra.mxu0 %v115
    %4048 = vmatprep.subr.mxu0 %v120
    %4049 = vmatpush1.msra.mxu0 %v119
    %4050 = vmatprep.subr.mxu0 %v124
    %4051 = vmatpush1.msra.mxu0 %v123
    %4052 = vmatprep.subr.mxu0 %v128
    %4053 = vmatpush1.msra.mxu0 %v127
    %4054 = vmatprep.subr.mxu0 %v132
    %4055 = vmatpush1.msra.mxu0 %v131
    %4056 = vmatprep.subr.mxu0 %v136
    %4057 = vmatpush1.msra.mxu0 %v135
    %4058 = vmatprep.subr.mxu0 %v140
    %4059 = vmatpush1.msra.mxu0 %v139
    %4060 = vmatprep.subr.mxu0 %v144
    %4061 = vmatpush1.msra.mxu0 %v143
    %4062 = vmatprep.subr.mxu0 %v148
    %4063 = vmatpush1.msra.mxu0 %v147
    %4064 = vmatprep.subr.mxu0 %v152
    %4065 = vmatpush1.msra.mxu0 %v151
    %4066 = vmatprep.subr.mxu0 %v156
    %4067 = vmatpush1.msra.mxu0 %v155
    %4068 = vmatprep.subr.mxu0 %v160
    %4069 = vmatpush1.msra.mxu0 %v159
    %4070 = vmatprep.subr.mxu0 %v164
    %4071 = vmatpush1.msra.mxu0 %v163
    %4072 = vmatprep.subr.mxu0 %v168
    %4073 = vmatpush1.msra.mxu0 %v167
    %4074 = vmatprep.subr.mxu0 %v172
    %4075 = vmatpush1.msra.mxu0 %v171
    %4076 = vmatprep.subr.mxu0 %v176
    %4077 = vmatpush1.msra.mxu0 %v175
    %4078 = vmatprep.subr.mxu0 %v180
    %4079 = vmatpush1.msra.mxu0 %v179
    %4080 = vmatprep.subr.mxu0 %v184
    %4081 = vmatpush1.msra.mxu0 %v183
    %4082 = vmatprep.subr.mxu0 %v188
    %4083 = vmatpush1.msra.mxu0 %v187
    %4084 = vmatprep.subr.mxu0 %v192
    %4085 = vmatpush1.msra.mxu0 %v191
    %4086 = vmatprep.subr.mxu0 %v196
    %4087 = vmatpush1.msra.mxu0 %v195
    %4088 = vmatprep.subr.mxu0 %v200
    %4089 = vmatpush1.msra.mxu0 %v199
    %4090 = vmatprep.mubr.f32.mxu0 %v3691
    %4091 = vmatmul.mubr.f32.gmra.mrb[0].mxu0 %v4025
    %v4092 = vpop.f32.mrb[0].mxu0
    %v4093 = vadd.f32 %v464, %v4092
    %v4094 = vpop.f32.mrb[0].mxu0
    %v4095 = vadd.f32 %v468, %v4094
    %4096 = vdwg.mxu0
    %4097 = vmatprep.subr.mxu0 %v78
    %4098 = vmatpush1.msra.mxu0 %v77
    %4099 = vmatprep.subr.mxu0 %v82
    %4100 = vmatpush1.msra.mxu0 %v81
    %4101 = vmatprep.subr.mxu0 %v86
    %4102 = vmatpush1.msra.mxu0 %v85
    %4103 = vmatprep.subr.mxu0 %v90
    %4104 = vmatpush1.msra.mxu0 %v89
    %4105 = vmatprep.subr.mxu0 %v94
    %4106 = vmatpush1.msra.mxu0 %v93
    %4107 = vmatprep.subr.mxu0 %v98
    %4108 = vmatpush1.msra.mxu0 %v97
    %4109 = vmatprep.subr.mxu0 %v102
    %4110 = vmatpush1.msra.mxu0 %v101
    %4111 = vmatprep.subr.mxu0 %v106
    %4112 = vmatpush1.msra.mxu0 %v105
    %4113 = vmatprep.subr.mxu0 %v110
    %4114 = vmatpush1.msra.mxu0 %v109
    %4115 = vmatprep.subr.mxu0 %v114
    %4116 = vmatpush1.msra.mxu0 %v113
    %4117 = vmatprep.subr.mxu0 %v118
    %4118 = vmatpush1.msra.mxu0 %v117
    %4119 = vmatprep.subr.mxu0 %v122
    %4120 = vmatpush1.msra.mxu0 %v121
    %4121 = vmatprep.subr.mxu0 %v126
    %4122 = vmatpush1.msra.mxu0 %v125
    %4123 = vmatprep.subr.mxu0 %v130
    %4124 = vmatpush1.msra.mxu0 %v129
    %4125 = vmatprep.subr.mxu0 %v134
    %4126 = vmatpush1.msra.mxu0 %v133
    %4127 = vmatprep.subr.mxu0 %v138
    %4128 = vmatpush1.msra.mxu0 %v137
    %4129 = vmatprep.subr.mxu0 %v142
    %4130 = vmatpush1.msra.mxu0 %v141
    %4131 = vmatprep.subr.mxu0 %v146
    %4132 = vmatpush1.msra.mxu0 %v145
    %4133 = vmatprep.subr.mxu0 %v150
    %4134 = vmatpush1.msra.mxu0 %v149
    %4135 = vmatprep.subr.mxu0 %v154
    %4136 = vmatpush1.msra.mxu0 %v153
    %4137 = vmatprep.subr.mxu0 %v158
    %4138 = vmatpush1.msra.mxu0 %v157
    %4139 = vmatprep.subr.mxu0 %v162
    %4140 = vmatpush1.msra.mxu0 %v161
    %4141 = vmatprep.subr.mxu0 %v166
    %4142 = vmatpush1.msra.mxu0 %v165
    %4143 = vmatprep.subr.mxu0 %v170
    %4144 = vmatpush1.msra.mxu0 %v169
    %4145 = vmatprep.subr.mxu0 %v174
    %4146 = vmatpush1.msra.mxu0 %v173
    %4147 = vmatprep.subr.mxu0 %v178
    %4148 = vmatpush1.msra.mxu0 %v177
    %4149 = vmatprep.subr.mxu0 %v182
    %4150 = vmatpush1.msra.mxu0 %v181
    %4151 = vmatprep.subr.mxu0 %v186
    %4152 = vmatpush1.msra.mxu0 %v185
    %4153 = vmatprep.subr.mxu0 %v190
    %4154 = vmatpush1.msra.mxu0 %v189
    %4155 = vmatprep.subr.mxu0 %v194
    %4156 = vmatpush1.msra.mxu0 %v193
    %4157 = vmatprep.subr.mxu0 %v198
    %4158 = vmatpush1.msra.mxu0 %v197
    %4159 = vmatprep.subr.mxu0 %v202
    %4160 = vmatpush1.msra.mxu0 %v201
    %4161 = vmatprep.mubr.f32.mxu0 %v3691
    %4162 = vmatmul.mubr.f32.gmra.mrb[0].mxu0 %v4025
    %v4163 = vpop.f32.mrb[0].mxu0
    %v4164 = vadd.f32 %v472, %v4163
    %v4165 = vpop.f32.mrb[0].mxu0
    %v4166 = vadd.f32 %v476, %v4165
    %4167 = vdwg.mxu0
    %v4168 = vxor.u32 %v4093, 2147483648
    %v4169 = vmul.f32 %v4168, 1.442695
    %v4170 = vpow.pop %v4169
    %v4171 = vadd.f32 %v4170, 1.0
    %v4172 = vrcp.pop %v4171
    %v4173 = vmul.f32 1.0, %v4172
    %v4174 = vxor.u32 %v4095, 2147483648
    %v4175 = vmul.f32 %v4174, 1.442695
    %v4176 = vpow.pop %v4175
    %v4177 = vadd.f32 %v4176, 1.0
    %v4178 = vrcp.pop %v4177
    %v4179 = vmul.f32 1.0, %v4178
    %v4180 = vtanh.pop %v4164
    %v4181 = vxor.u32 %v4166, 2147483648
    %v4182 = vmul.f32 %v4181, 1.442695
    %v4183 = vpow.pop %v4182
    %v4184 = vadd.f32 %v4183, 1.0
    %v4185 = vrcp.pop %v4184
    %v4186 = vmul.f32 1.0, %v4185
    %v4187 = vmul.f32 %v4179, %v3689
    %v4188 = vmul.f32 %v4173, %v4180
    %v4189 = vadd.f32 %v4187, %v4188
    %v4190 = vtanh.pop %v4189
    %v4191 = vmul.f32 %v4186, %v4190
    %4192 = vmatprep.subr.mxu0 %v204
    %4193 = vmatpush1.msra.mxu0 %v203
    %4194 = vmatprep.subr.mxu0 %v208
    %4195 = vmatpush1.msra.mxu0 %v207
    %4196 = vmatprep.subr.mxu0 %v212
    %4197 = vmatpush1.msra.mxu0 %v211
    %4198 = vmatprep.subr.mxu0 %v216
    %4199 = vmatpush1.msra.mxu0 %v215
    %4200 = vmatprep.subr.mxu0 %v220
    %4201 = vmatpush1.msra.mxu0 %v219
    %4202 = vmatprep.subr.mxu0 %v224
    %4203 = vmatpush1.msra.mxu0 %v223
    %4204 = vmatprep.subr.mxu0 %v228
    %4205 = vmatpush1.msra.mxu0 %v227
    %4206 = vmatprep.subr.mxu0 %v232
    %4207 = vmatpush1.msra.mxu0 %v231
    %4208 = vmatprep.subr.mxu0 %v236
    %4209 = vmatpush1.msra.mxu0 %v235
    %4210 = vmatprep.subr.mxu0 %v240
    %4211 = vmatpush1.msra.mxu0 %v239
    %4212 = vmatprep.subr.mxu0 %v244
    %4213 = vmatpush1.msra.mxu0 %v243
    %4214 = vmatprep.subr.mxu0 %v248
    %4215 = vmatpush1.msra.mxu0 %v247
    %4216 = vmatprep.subr.mxu0 %v252
    %4217 = vmatpush1.msra.mxu0 %v251
    %4218 = vmatprep.subr.mxu0 %v256
    %4219 = vmatpush1.msra.mxu0 %v255
    %4220 = vmatprep.subr.mxu0 %v260
    %4221 = vmatpush1.msra.mxu0 %v259
    %4222 = vmatprep.subr.mxu0 %v264
    %4223 = vmatpush1.msra.mxu0 %v263
    %4224 = vmatprep.subr.mxu0 %v268
    %4225 = vmatpush1.msra.mxu0 %v267
    %4226 = vmatprep.subr.mxu0 %v272
    %4227 = vmatpush1.msra.mxu0 %v271
    %4228 = vmatprep.subr.mxu0 %v276
    %4229 = vmatpush1.msra.mxu0 %v275
    %4230 = vmatprep.subr.mxu0 %v280
    %4231 = vmatpush1.msra.mxu0 %v279
    %4232 = vmatprep.subr.mxu0 %v284
    %4233 = vmatpush1.msra.mxu0 %v283
    %4234 = vmatprep.subr.mxu0 %v288
    %4235 = vmatpush1.msra.mxu0 %v287
    %4236 = vmatprep.subr.mxu0 %v292
    %4237 = vmatpush1.msra.mxu0 %v291
    %4238 = vmatprep.subr.mxu0 %v296
    %4239 = vmatpush1.msra.mxu0 %v295
    %4240 = vmatprep.subr.mxu0 %v300
    %4241 = vmatpush1.msra.mxu0 %v299
    %4242 = vmatprep.subr.mxu0 %v304
    %4243 = vmatpush1.msra.mxu0 %v303
    %4244 = vmatprep.subr.mxu0 %v308
    %4245 = vmatpush1.msra.mxu0 %v307
    %4246 = vmatprep.subr.mxu0 %v312
    %4247 = vmatpush1.msra.mxu0 %v311
    %4248 = vmatprep.subr.mxu0 %v316
    %4249 = vmatpush1.msra.mxu0 %v315
    %4250 = vmatprep.subr.mxu0 %v320
    %4251 = vmatpush1.msra.mxu0 %v319
    %4252 = vmatprep.subr.mxu0 %v324
    %4253 = vmatpush1.msra.mxu0 %v323
    %4254 = vmatprep.subr.mxu0 %v328
    %4255 = vmatpush1.msra.mxu0 %v327
    %4256 = vmatprep.mubr.f32.mxu0 %v3857
    %4257 = vmatmul.mubr.f32.gmra.mrb[0].mxu0 %v4191
    %v4258 = vpop.f32.mrb[0].mxu0
    %v4259 = vadd.f32 %v486, %v4258
    %v4260 = vpop.f32.mrb[0].mxu0
    %v4261 = vadd.f32 %v490, %v4260
    %4262 = vdwg.mxu0
    %4263 = vmatprep.subr.mxu0 %v206
    %4264 = vmatpush1.msra.mxu0 %v205
    %4265 = vmatprep.subr.mxu0 %v210
    %4266 = vmatpush1.msra.mxu0 %v209
    %4267 = vmatprep.subr.mxu0 %v214
    %4268 = vmatpush1.msra.mxu0 %v213
    %4269 = vmatprep.subr.mxu0 %v218
    %4270 = vmatpush1.msra.mxu0 %v217
    %4271 = vmatprep.subr.mxu0 %v222
    %4272 = vmatpush1.msra.mxu0 %v221
    %4273 = vmatprep.subr.mxu0 %v226
    %4274 = vmatpush1.msra.mxu0 %v225
    %4275 = vmatprep.subr.mxu0 %v230
    %4276 = vmatpush1.msra.mxu0 %v229
    %4277 = vmatprep.subr.mxu0 %v234
    %4278 = vmatpush1.msra.mxu0 %v233
    %4279 = vmatprep.subr.mxu0 %v238
    %4280 = vmatpush1.msra.mxu0 %v237
    %4281 = vmatprep.subr.mxu0 %v242
    %4282 = vmatpush1.msra.mxu0 %v241
    %4283 = vmatprep.subr.mxu0 %v246
    %4284 = vmatpush1.msra.mxu0 %v245
    %4285 = vmatprep.subr.mxu0 %v250
    %4286 = vmatpush1.msra.mxu0 %v249
    %4287 = vmatprep.subr.mxu0 %v254
    %4288 = vmatpush1.msra.mxu0 %v253
    %4289 = vmatprep.subr.mxu0 %v258
    %4290 = vmatpush1.msra.mxu0 %v257
    %4291 = vmatprep.subr.mxu0 %v262
    %4292 = vmatpush1.msra.mxu0 %v261
    %4293 = vmatprep.subr.mxu0 %v266
    %4294 = vmatpush1.msra.mxu0 %v265
    %4295 = vmatprep.subr.mxu0 %v270
    %4296 = vmatpush1.msra.mxu0 %v269
    %4297 = vmatprep.subr.mxu0 %v274
    %4298 = vmatpush1.msra.mxu0 %v273
    %4299 = vmatprep.subr.mxu0 %v278
    %4300 = vmatpush1.msra.mxu0 %v277
    %4301 = vmatprep.subr.mxu0 %v282
    %4302 = vmatpush1.msra.mxu0 %v281
    %4303 = vmatprep.subr.mxu0 %v286
    %4304 = vmatpush1.msra.mxu0 %v285
    %4305 = vmatprep.subr.mxu0 %v290
    %4306 = vmatpush1.msra.mxu0 %v289
    %4307 = vmatprep.subr.mxu0 %v294
    %4308 = vmatpush1.msra.mxu0 %v293
    %4309 = vmatprep.subr.mxu0 %v298
    %4310 = vmatpush1.msra.mxu0 %v297
    %4311 = vmatprep.subr.mxu0 %v302
    %4312 = vmatpush1.msra.mxu0 %v301
    %4313 = vmatprep.subr.mxu0 %v306
    %4314 = vmatpush1.msra.mxu0 %v305
    %4315 = vmatprep.subr.mxu0 %v310
    %4316 = vmatpush1.msra.mxu0 %v309
    %4317 = vmatprep.subr.mxu0 %v314
    %4318 = vmatpush1.msra.mxu0 %v313
    %4319 = vmatprep.subr.mxu0 %v318
    %4320 = vmatpush1.msra.mxu0 %v317
    %4321 = vmatprep.subr.mxu0 %v322
    %4322 = vmatpush1.msra.mxu0 %v321
    %4323 = vmatprep.subr.mxu0 %v326
    %4324 = vmatpush1.msra.mxu0 %v325
    %4325 = vmatprep.subr.mxu0 %v330
    %4326 = vmatpush1.msra.mxu0 %v329
    %4327 = vmatprep.mubr.f32.mxu0 %v3857
    %4328 = vmatmul.mubr.f32.gmra.mrb[0].mxu0 %v4191
    %v4329 = vpop.f32.mrb[0].mxu0
    %v4330 = vadd.f32 %v494, %v4329
    %v4331 = vpop.f32.mrb[0].mxu0
    %v4332 = vadd.f32 %v498, %v4331
    %4333 = vdwg.mxu0
    %v4334 = vxor.u32 %v4259, 2147483648
    %v4335 = vmul.f32 %v4334, 1.442695
    %v4336 = vpow.pop %v4335
    %v4337 = vadd.f32 %v4336, 1.0
    %v4338 = vrcp.pop %v4337
    %v4339 = vmul.f32 1.0, %v4338
    %v4340 = vxor.u32 %v4261, 2147483648
    %v4341 = vmul.f32 %v4340, 1.442695
    %v4342 = vpow.pop %v4341
    %v4343 = vadd.f32 %v4342, 1.0
    %v4344 = vrcp.pop %v4343
    %v4345 = vmul.f32 1.0, %v4344
    %v4346 = vtanh.pop %v4330
    %v4347 = vxor.u32 %v4332, 2147483648
    %v4348 = vmul.f32 %v4347, 1.442695
    %v4349 = vpow.pop %v4348
    %v4350 = vadd.f32 %v4349, 1.0
    %v4351 = vrcp.pop %v4350
    %v4352 = vmul.f32 1.0, %v4351
    %v4353 = vmul.f32 %v4345, %v3855
    %v4354 = vmul.f32 %v4339, %v4346
    %v4355 = vadd.f32 %v4353, %v4354
    %v4356 = vtanh.pop %v4355
    %v4357 = vmul.f32 %v4352, %v4356
    %4358 = vmatprep.subr.mxu0 %v332
    %4359 = vmatpush1.msra.mxu0 %v331
    %4360 = vmatprep.subr.mxu0 %v336
    %4361 = vmatpush1.msra.mxu0 %v335
    %4362 = vmatprep.subr.mxu0 %v340
    %4363 = vmatpush1.msra.mxu0 %v339
    %4364 = vmatprep.subr.mxu0 %v344
    %4365 = vmatpush1.msra.mxu0 %v343
    %4366 = vmatprep.subr.mxu0 %v348
    %4367 = vmatpush1.msra.mxu0 %v347
    %4368 = vmatprep.subr.mxu0 %v352
    %4369 = vmatpush1.msra.mxu0 %v351
    %4370 = vmatprep.subr.mxu0 %v356
    %4371 = vmatpush1.msra.mxu0 %v355
    %4372 = vmatprep.subr.mxu0 %v360
    %4373 = vmatpush1.msra.mxu0 %v359
    %4374 = vmatprep.subr.mxu0 %v364
    %4375 = vmatpush1.msra.mxu0 %v363
    %4376 = vmatprep.subr.mxu0 %v368
    %4377 = vmatpush1.msra.mxu0 %v367
    %4378 = vmatprep.subr.mxu0 %v372
    %4379 = vmatpush1.msra.mxu0 %v371
    %4380 = vmatprep.subr.mxu0 %v376
    %4381 = vmatpush1.msra.mxu0 %v375
    %4382 = vmatprep.subr.mxu0 %v380
    %4383 = vmatpush1.msra.mxu0 %v379
    %4384 = vmatprep.subr.mxu0 %v384
    %4385 = vmatpush1.msra.mxu0 %v383
    %4386 = vmatprep.subr.mxu0 %v388
    %4387 = vmatpush1.msra.mxu0 %v387
    %4388 = vmatprep.subr.mxu0 %v392
    %4389 = vmatpush1.msra.mxu0 %v391
    %4390 = vmatprep.subr.mxu0 %v396
    %4391 = vmatpush1.msra.mxu0 %v395
    %4392 = vmatprep.subr.mxu0 %v400
    %4393 = vmatpush1.msra.mxu0 %v399
    %4394 = vmatprep.subr.mxu0 %v404
    %4395 = vmatpush1.msra.mxu0 %v403
    %4396 = vmatprep.subr.mxu0 %v408
    %4397 = vmatpush1.msra.mxu0 %v407
    %4398 = vmatprep.subr.mxu0 %v412
    %4399 = vmatpush1.msra.mxu0 %v411
    %4400 = vmatprep.subr.mxu0 %v416
    %4401 = vmatpush1.msra.mxu0 %v415
    %4402 = vmatprep.subr.mxu0 %v420
    %4403 = vmatpush1.msra.mxu0 %v419
    %4404 = vmatprep.subr.mxu0 %v424
    %4405 = vmatpush1.msra.mxu0 %v423
    %4406 = vmatprep.subr.mxu0 %v428
    %4407 = vmatpush1.msra.mxu0 %v427
    %4408 = vmatprep.subr.mxu0 %v432
    %4409 = vmatpush1.msra.mxu0 %v431
    %4410 = vmatprep.subr.mxu0 %v436
    %4411 = vmatpush1.msra.mxu0 %v435
    %4412 = vmatprep.subr.mxu0 %v440
    %4413 = vmatpush1.msra.mxu0 %v439
    %4414 = vmatprep.subr.mxu0 %v444
    %4415 = vmatpush1.msra.mxu0 %v443
    %4416 = vmatprep.subr.mxu0 %v448
    %4417 = vmatpush1.msra.mxu0 %v447
    %4418 = vmatprep.subr.mxu0 %v452
    %4419 = vmatpush1.msra.mxu0 %v451
    %4420 = vmatprep.subr.mxu0 %v456
    %4421 = vmatpush1.msra.mxu0 %v455
    %4422 = vmatprep.mubr.f32.mxu0 %v4023
    %4423 = vmatmul.mubr.f32.gmra.mrb[0].mxu0 %v4357
    %v4424 = vpop.f32.mrb[0].mxu0
    %v4425 = vadd.f32 %v508, %v4424
    %v4426 = vpop.f32.mrb[0].mxu0
    %v4427 = vadd.f32 %v512, %v4426
    %4428 = vdwg.mxu0
    %4429 = vmatprep.subr.mxu0 %v334
    %4430 = vmatpush1.msra.mxu0 %v333
    %4431 = vmatprep.subr.mxu0 %v338
    %4432 = vmatpush1.msra.mxu0 %v337
    %4433 = vmatprep.subr.mxu0 %v342
    %4434 = vmatpush1.msra.mxu0 %v341
    %4435 = vmatprep.subr.mxu0 %v346
    %4436 = vmatpush1.msra.mxu0 %v345
    %4437 = vmatprep.subr.mxu0 %v350
    %4438 = vmatpush1.msra.mxu0 %v349
    %4439 = vmatprep.subr.mxu0 %v354
    %4440 = vmatpush1.msra.mxu0 %v353
    %4441 = vmatprep.subr.mxu0 %v358
    %4442 = vmatpush1.msra.mxu0 %v357
    %4443 = vmatprep.subr.mxu0 %v362
    %4444 = vmatpush1.msra.mxu0 %v361
    %4445 = vmatprep.subr.mxu0 %v366
    %4446 = vmatpush1.msra.mxu0 %v365
    %4447 = vmatprep.subr.mxu0 %v370
    %4448 = vmatpush1.msra.mxu0 %v369
    %4449 = vmatprep.subr.mxu0 %v374
    %4450 = vmatpush1.msra.mxu0 %v373
    %4451 = vmatprep.subr.mxu0 %v378
    %4452 = vmatpush1.msra.mxu0 %v377
    %4453 = vmatprep.subr.mxu0 %v382
    %4454 = vmatpush1.msra.mxu0 %v381
    %4455 = vmatprep.subr.mxu0 %v386
    %4456 = vmatpush1.msra.mxu0 %v385
    %4457 = vmatprep.subr.mxu0 %v390
    %4458 = vmatpush1.msra.mxu0 %v389
    %4459 = vmatprep.subr.mxu0 %v394
    %4460 = vmatpush1.msra.mxu0 %v393
    %4461 = vmatprep.subr.mxu0 %v398
    %4462 = vmatpush1.msra.mxu0 %v397
    %4463 = vmatprep.subr.mxu0 %v402
    %4464 = vmatpush1.msra.mxu0 %v401
    %4465 = vmatprep.subr.mxu0 %v406
    %4466 = vmatpush1.msra.mxu0 %v405
    %4467 = vmatprep.subr.mxu0 %v410
    %4468 = vmatpush1.msra.mxu0 %v409
    %4469 = vmatprep.subr.mxu0 %v414
    %4470 = vmatpush1.msra.mxu0 %v413
    %4471 = vmatprep.subr.mxu0 %v418
    %4472 = vmatpush1.msra.mxu0 %v417
    %4473 = vmatprep.subr.mxu0 %v422
    %4474 = vmatpush1.msra.mxu0 %v421
    %4475 = vmatprep.subr.mxu0 %v426
    %4476 = vmatpush1.msra.mxu0 %v425
    %4477 = vmatprep.subr.mxu0 %v430
    %4478 = vmatpush1.msra.mxu0 %v429
    %4479 = vmatprep.subr.mxu0 %v434
    %4480 = vmatpush1.msra.mxu0 %v433
    %4481 = vmatprep.subr.mxu0 %v438
    %4482 = vmatpush1.msra.mxu0 %v437
    %4483 = vmatprep.subr.mxu0 %v442
    %4484 = vmatpush1.msra.mxu0 %v441
    %4485 = vmatprep.subr.mxu0 %v446
    %4486 = vmatpush1.msra.mxu0 %v445
    %4487 = vmatprep.subr.mxu0 %v450
    %4488 = vmatpush1.msra.mxu0 %v449
    %4489 = vmatprep.subr.mxu0 %v454
    %4490 = vmatpush1.msra.mxu0 %v453
    %4491 = vmatprep.subr.mxu0 %v458
    %4492 = vmatpush1.msra.mxu0 %v457
    %4493 = vmatprep.mubr.f32.mxu0 %v4023
    %4494 = vmatmul.mubr.f32.gmra.mrb[0].mxu0 %v4357
    %v4495 = vpop.f32.mrb[0].mxu0
    %v4496 = vadd.f32 %v516, %v4495
    %v4497 = vpop.f32.mrb[0].mxu0
    %v4498 = vadd.f32 %v520, %v4497
    %4499 = vdwg.mxu0
    %v4500 = vxor.u32 %v4425, 2147483648
    %v4501 = vmul.f32 %v4500, 1.442695
    %v4502 = vpow.pop %v4501
    %v4503 = vadd.f32 %v4502, 1.0
    %v4504 = vrcp.pop %v4503
    %v4505 = vmul.f32 1.0, %v4504
    %v4506 = vxor.u32 %v4427, 2147483648
    %v4507 = vmul.f32 %v4506, 1.442695
    %v4508 = vpow.pop %v4507
    %v4509 = vadd.f32 %v4508, 1.0
    %v4510 = vrcp.pop %v4509
    %v4511 = vmul.f32 1.0, %v4510
    %v4512 = vtanh.pop %v4496
    %v4513 = vxor.u32 %v4498, 2147483648
    %v4514 = vmul.f32 %v4513, 1.442695
    %v4515 = vpow.pop %v4514
    %v4516 = vadd.f32 %v4515, 1.0
    %v4517 = vrcp.pop %v4516
    %v4518 = vmul.f32 1.0, %v4517
    %v4519 = vmul.f32 %v4511, %v4021
    %v4520 = vmul.f32 %v4505, %v4512
    %v4521 = vadd.f32 %v4519, %v4520
    %v4522 = vtanh.pop %v4521
    %v4523 = vmul.f32 %v4518, %v4522
    %4524 = vmatprep.subr.mxu0 %v76
    %4525 = vmatpush1.msra.mxu0 %v75
    %4526 = vmatprep.subr.mxu0 %v80
    %4527 = vmatpush1.msra.mxu0 %v79
    %4528 = vmatprep.subr.mxu0 %v84
    %4529 = vmatpush1.msra.mxu0 %v83
    %4530 = vmatprep.subr.mxu0 %v88
    %4531 = vmatpush1.msra.mxu0 %v87
    %4532 = vmatprep.subr.mxu0 %v92
    %4533 = vmatpush1.msra.mxu0 %v91
    %4534 = vmatprep.subr.mxu0 %v96
    %4535 = vmatpush1.msra.mxu0 %v95
    %4536 = vmatprep.subr.mxu0 %v100
    %4537 = vmatpush1.msra.mxu0 %v99
    %4538 = vmatprep.subr.mxu0 %v104
    %4539 = vmatpush1.msra.mxu0 %v103
    %4540 = vmatprep.subr.mxu0 %v108
    %4541 = vmatpush1.msra.mxu0 %v107
    %4542 = vmatprep.subr.mxu0 %v112
    %4543 = vmatpush1.msra.mxu0 %v111
    %4544 = vmatprep.subr.mxu0 %v116
    %4545 = vmatpush1.msra.mxu0 %v115
    %4546 = vmatprep.subr.mxu0 %v120
    %4547 = vmatpush1.msra.mxu0 %v119
    %4548 = vmatprep.subr.mxu0 %v124
    %4549 = vmatpush1.msra.mxu0 %v123
    %4550 = vmatprep.subr.mxu0 %v128
    %4551 = vmatpush1.msra.mxu0 %v127
    %4552 = vmatprep.subr.mxu0 %v132
    %4553 = vmatpush1.msra.mxu0 %v131
    %4554 = vmatprep.subr.mxu0 %v136
    %4555 = vmatpush1.msra.mxu0 %v135
    %4556 = vmatprep.subr.mxu0 %v140
    %4557 = vmatpush1.msra.mxu0 %v139
    %4558 = vmatprep.subr.mxu0 %v144
    %4559 = vmatpush1.msra.mxu0 %v143
    %4560 = vmatprep.subr.mxu0 %v148
    %4561 = vmatpush1.msra.mxu0 %v147
    %4562 = vmatprep.subr.mxu0 %v152
    %4563 = vmatpush1.msra.mxu0 %v151
    %4564 = vmatprep.subr.mxu0 %v156
    %4565 = vmatpush1.msra.mxu0 %v155
    %4566 = vmatprep.subr.mxu0 %v160
    %4567 = vmatpush1.msra.mxu0 %v159
    %4568 = vmatprep.subr.mxu0 %v164
    %4569 = vmatpush1.msra.mxu0 %v163
    %4570 = vmatprep.subr.mxu0 %v168
    %4571 = vmatpush1.msra.mxu0 %v167
    %4572 = vmatprep.subr.mxu0 %v172
    %4573 = vmatpush1.msra.mxu0 %v171
    %4574 = vmatprep.subr.mxu0 %v176
    %4575 = vmatpush1.msra.mxu0 %v175
    %4576 = vmatprep.subr.mxu0 %v180
    %4577 = vmatpush1.msra.mxu0 %v179
    %4578 = vmatprep.subr.mxu0 %v184
    %4579 = vmatpush1.msra.mxu0 %v183
    %4580 = vmatprep.subr.mxu0 %v188
    %4581 = vmatpush1.msra.mxu0 %v187
    %4582 = vmatprep.subr.mxu0 %v192
    %4583 = vmatpush1.msra.mxu0 %v191
    %4584 = vmatprep.subr.mxu0 %v196
    %4585 = vmatpush1.msra.mxu0 %v195
    %4586 = vmatprep.subr.mxu0 %v200
    %4587 = vmatpush1.msra.mxu0 %v199
    %4588 = vmatprep.mubr.f32.mxu0 %v4191
    %4589 = vmatmul.mubr.f32.gmra.mrb[0].mxu0 %v2525
    %v4590 = vpop.f32.mrb[0].mxu0
    %v4591 = vadd.f32 %v464, %v4590
    %v4592 = vpop.f32.mrb[0].mxu0
    %v4593 = vadd.f32 %v468, %v4592
    %4594 = vdwg.mxu0
    %4595 = vmatprep.subr.mxu0 %v78
    %4596 = vmatpush1.msra.mxu0 %v77
    %4597 = vmatprep.subr.mxu0 %v82
    %4598 = vmatpush1.msra.mxu0 %v81
    %4599 = vmatprep.subr.mxu0 %v86
    %4600 = vmatpush1.msra.mxu0 %v85
    %4601 = vmatprep.subr.mxu0 %v90
    %4602 = vmatpush1.msra.mxu0 %v89
    %4603 = vmatprep.subr.mxu0 %v94
    %4604 = vmatpush1.msra.mxu0 %v93
    %4605 = vmatprep.subr.mxu0 %v98
    %4606 = vmatpush1.msra.mxu0 %v97
    %4607 = vmatprep.subr.mxu0 %v102
    %4608 = vmatpush1.msra.mxu0 %v101
    %4609 = vmatprep.subr.mxu0 %v106
    %4610 = vmatpush1.msra.mxu0 %v105
    %4611 = vmatprep.subr.mxu0 %v110
    %4612 = vmatpush1.msra.mxu0 %v109
    %4613 = vmatprep.subr.mxu0 %v114
    %4614 = vmatpush1.msra.mxu0 %v113
    %4615 = vmatprep.subr.mxu0 %v118
    %4616 = vmatpush1.msra.mxu0 %v117
    %4617 = vmatprep.subr.mxu0 %v122
    %4618 = vmatpush1.msra.mxu0 %v121
    %4619 = vmatprep.subr.mxu0 %v126
    %4620 = vmatpush1.msra.mxu0 %v125
    %4621 = vmatprep.subr.mxu0 %v130
    %4622 = vmatpush1.msra.mxu0 %v129
    %4623 = vmatprep.subr.mxu0 %v134
    %4624 = vmatpush1.msra.mxu0 %v133
    %4625 = vmatprep.subr.mxu0 %v138
    %4626 = vmatpush1.msra.mxu0 %v137
    %4627 = vmatprep.subr.mxu0 %v142
    %4628 = vmatpush1.msra.mxu0 %v141
    %4629 = vmatprep.subr.mxu0 %v146
    %4630 = vmatpush1.msra.mxu0 %v145
    %4631 = vmatprep.subr.mxu0 %v150
    %4632 = vmatpush1.msra.mxu0 %v149
    %4633 = vmatprep.subr.mxu0 %v154
    %4634 = vmatpush1.msra.mxu0 %v153
    %4635 = vmatprep.subr.mxu0 %v158
    %4636 = vmatpush1.msra.mxu0 %v157
    %4637 = vmatprep.subr.mxu0 %v162
    %4638 = vmatpush1.msra.mxu0 %v161
    %4639 = vmatprep.subr.mxu0 %v166
    %4640 = vmatpush1.msra.mxu0 %v165
    %4641 = vmatprep.subr.mxu0 %v170
    %4642 = vmatpush1.msra.mxu0 %v169
    %4643 = vmatprep.subr.mxu0 %v174
    %4644 = vmatpush1.msra.mxu0 %v173
    %4645 = vmatprep.subr.mxu0 %v178
    %4646 = vmatpush1.msra.mxu0 %v177
    %4647 = vmatprep.subr.mxu0 %v182
    %4648 = vmatpush1.msra.mxu0 %v181
    %4649 = vmatprep.subr.mxu0 %v186
    %4650 = vmatpush1.msra.mxu0 %v185
    %4651 = vmatprep.subr.mxu0 %v190
    %4652 = vmatpush1.msra.mxu0 %v189
    %4653 = vmatprep.subr.mxu0 %v194
    %4654 = vmatpush1.msra.mxu0 %v193
    %4655 = vmatprep.subr.mxu0 %v198
    %4656 = vmatpush1.msra.mxu0 %v197
    %4657 = vmatprep.subr.mxu0 %v202
    %4658 = vmatpush1.msra.mxu0 %v201
    %4659 = vmatprep.mubr.f32.mxu0 %v4191
    %4660 = vmatmul.mubr.f32.gmra.mrb[0].mxu0 %v2525
    %v4661 = vpop.f32.mrb[0].mxu0
    %v4662 = vadd.f32 %v472, %v4661
    %v4663 = vpop.f32.mrb[0].mxu0
    %v4664 = vadd.f32 %v476, %v4663
    %4665 = vdwg.mxu0
    %v4666 = vxor.u32 %v4591, 2147483648
    %v4667 = vmul.f32 %v4666, 1.442695
    %v4668 = vpow.pop %v4667
    %v4669 = vadd.f32 %v4668, 1.0
    %v4670 = vrcp.pop %v4669
    %v4671 = vmul.f32 1.0, %v4670
    %v4672 = vxor.u32 %v4593, 2147483648
    %v4673 = vmul.f32 %v4672, 1.442695
    %v4674 = vpow.pop %v4673
    %v4675 = vadd.f32 %v4674, 1.0
    %v4676 = vrcp.pop %v4675
    %v4677 = vmul.f32 1.0, %v4676
    %v4678 = vtanh.pop %v4662
    %v4679 = vxor.u32 %v4664, 2147483648
    %v4680 = vmul.f32 %v4679, 1.442695
    %v4681 = vpow.pop %v4680
    %v4682 = vadd.f32 %v4681, 1.0
    %v4683 = vrcp.pop %v4682
    %v4684 = vmul.f32 1.0, %v4683
    %v4685 = vmul.f32 %v4677, %v4189
    %v4686 = vmul.f32 %v4671, %v4678
    %v4687 = vadd.f32 %v4685, %v4686
    %v4688 = vtanh.pop %v4687
    %v4689 = vmul.f32 %v4684, %v4688
    %4690 = vmatprep.subr.mxu0 %v204
    %4691 = vmatpush1.msra.mxu0 %v203
    %4692 = vmatprep.subr.mxu0 %v208
    %4693 = vmatpush1.msra.mxu0 %v207
    %4694 = vmatprep.subr.mxu0 %v212
    %4695 = vmatpush1.msra.mxu0 %v211
    %4696 = vmatprep.subr.mxu0 %v216
    %4697 = vmatpush1.msra.mxu0 %v215
    %4698 = vmatprep.subr.mxu0 %v220
    %4699 = vmatpush1.msra.mxu0 %v219
    %4700 = vmatprep.subr.mxu0 %v224
    %4701 = vmatpush1.msra.mxu0 %v223
    %4702 = vmatprep.subr.mxu0 %v228
    %4703 = vmatpush1.msra.mxu0 %v227
    %4704 = vmatprep.subr.mxu0 %v232
    %4705 = vmatpush1.msra.mxu0 %v231
    %4706 = vmatprep.subr.mxu0 %v236
    %4707 = vmatpush1.msra.mxu0 %v235
    %4708 = vmatprep.subr.mxu0 %v240
    %4709 = vmatpush1.msra.mxu0 %v239
    %4710 = vmatprep.subr.mxu0 %v244
    %4711 = vmatpush1.msra.mxu0 %v243
    %4712 = vmatprep.subr.mxu0 %v248
    %4713 = vmatpush1.msra.mxu0 %v247
    %4714 = vmatprep.subr.mxu0 %v252
    %4715 = vmatpush1.msra.mxu0 %v251
    %4716 = vmatprep.subr.mxu0 %v256
    %4717 = vmatpush1.msra.mxu0 %v255
    %4718 = vmatprep.subr.mxu0 %v260
    %4719 = vmatpush1.msra.mxu0 %v259
    %4720 = vmatprep.subr.mxu0 %v264
    %4721 = vmatpush1.msra.mxu0 %v263
    %4722 = vmatprep.subr.mxu0 %v268
    %4723 = vmatpush1.msra.mxu0 %v267
    %4724 = vmatprep.subr.mxu0 %v272
    %4725 = vmatpush1.msra.mxu0 %v271
    %4726 = vmatprep.subr.mxu0 %v276
    %4727 = vmatpush1.msra.mxu0 %v275
    %4728 = vmatprep.subr.mxu0 %v280
    %4729 = vmatpush1.msra.mxu0 %v279
    %4730 = vmatprep.subr.mxu0 %v284
    %4731 = vmatpush1.msra.mxu0 %v283
    %4732 = vmatprep.subr.mxu0 %v288
    %4733 = vmatpush1.msra.mxu0 %v287
    %4734 = vmatprep.subr.mxu0 %v292
    %4735 = vmatpush1.msra.mxu0 %v291
    %4736 = vmatprep.subr.mxu0 %v296
    %4737 = vmatpush1.msra.mxu0 %v295
    %4738 = vmatprep.subr.mxu0 %v300
    %4739 = vmatpush1.msra.mxu0 %v299
    %4740 = vmatprep.subr.mxu0 %v304
    %4741 = vmatpush1.msra.mxu0 %v303
    %4742 = vmatprep.subr.mxu0 %v308
    %4743 = vmatpush1.msra.mxu0 %v307
    %4744 = vmatprep.subr.mxu0 %v312
    %4745 = vmatpush1.msra.mxu0 %v311
    %4746 = vmatprep.subr.mxu0 %v316
    %4747 = vmatpush1.msra.mxu0 %v315
    %4748 = vmatprep.subr.mxu0 %v320
    %4749 = vmatpush1.msra.mxu0 %v319
    %4750 = vmatprep.subr.mxu0 %v324
    %4751 = vmatpush1.msra.mxu0 %v323
    %4752 = vmatprep.subr.mxu0 %v328
    %4753 = vmatpush1.msra.mxu0 %v327
    %4754 = vmatprep.mubr.f32.mxu0 %v4357
    %4755 = vmatmul.mubr.f32.gmra.mrb[0].mxu0 %v4689
    %v4756 = vpop.f32.mrb[0].mxu0
    %v4757 = vadd.f32 %v486, %v4756
    %v4758 = vpop.f32.mrb[0].mxu0
    %v4759 = vadd.f32 %v490, %v4758
    %4760 = vdwg.mxu0
    %4761 = vmatprep.subr.mxu0 %v206
    %4762 = vmatpush1.msra.mxu0 %v205
    %4763 = vmatprep.subr.mxu0 %v210
    %4764 = vmatpush1.msra.mxu0 %v209
    %4765 = vmatprep.subr.mxu0 %v214
    %4766 = vmatpush1.msra.mxu0 %v213
    %4767 = vmatprep.subr.mxu0 %v218
    %4768 = vmatpush1.msra.mxu0 %v217
    %4769 = vmatprep.subr.mxu0 %v222
    %4770 = vmatpush1.msra.mxu0 %v221
    %4771 = vmatprep.subr.mxu0 %v226
    %4772 = vmatpush1.msra.mxu0 %v225
    %4773 = vmatprep.subr.mxu0 %v230
    %4774 = vmatpush1.msra.mxu0 %v229
    %4775 = vmatprep.subr.mxu0 %v234
    %4776 = vmatpush1.msra.mxu0 %v233
    %4777 = vmatprep.subr.mxu0 %v238
    %4778 = vmatpush1.msra.mxu0 %v237
    %4779 = vmatprep.subr.mxu0 %v242
    %4780 = vmatpush1.msra.mxu0 %v241
    %4781 = vmatprep.subr.mxu0 %v246
    %4782 = vmatpush1.msra.mxu0 %v245
    %4783 = vmatprep.subr.mxu0 %v250
    %4784 = vmatpush1.msra.mxu0 %v249
    %4785 = vmatprep.subr.mxu0 %v254
    %4786 = vmatpush1.msra.mxu0 %v253
    %4787 = vmatprep.subr.mxu0 %v258
    %4788 = vmatpush1.msra.mxu0 %v257
    %4789 = vmatprep.subr.mxu0 %v262
    %4790 = vmatpush1.msra.mxu0 %v261
    %4791 = vmatprep.subr.mxu0 %v266
    %4792 = vmatpush1.msra.mxu0 %v265
    %4793 = vmatprep.subr.mxu0 %v270
    %4794 = vmatpush1.msra.mxu0 %v269
    %4795 = vmatprep.subr.mxu0 %v274
    %4796 = vmatpush1.msra.mxu0 %v273
    %4797 = vmatprep.subr.mxu0 %v278
    %4798 = vmatpush1.msra.mxu0 %v277
    %4799 = vmatprep.subr.mxu0 %v282
    %4800 = vmatpush1.msra.mxu0 %v281
    %4801 = vmatprep.subr.mxu0 %v286
    %4802 = vmatpush1.msra.mxu0 %v285
    %4803 = vmatprep.subr.mxu0 %v290
    %4804 = vmatpush1.msra.mxu0 %v289
    %4805 = vmatprep.subr.mxu0 %v294
    %4806 = vmatpush1.msra.mxu0 %v293
    %4807 = vmatprep.subr.mxu0 %v298
    %4808 = vmatpush1.msra.mxu0 %v297
    %4809 = vmatprep.subr.mxu0 %v302
    %4810 = vmatpush1.msra.mxu0 %v301
    %4811 = vmatprep.subr.mxu0 %v306
    %4812 = vmatpush1.msra.mxu0 %v305
    %4813 = vmatprep.subr.mxu0 %v310
    %4814 = vmatpush1.msra.mxu0 %v309
    %4815 = vmatprep.subr.mxu0 %v314
    %4816 = vmatpush1.msra.mxu0 %v313
    %4817 = vmatprep.subr.mxu0 %v318
    %4818 = vmatpush1.msra.mxu0 %v317
    %4819 = vmatprep.subr.mxu0 %v322
    %4820 = vmatpush1.msra.mxu0 %v321
    %4821 = vmatprep.subr.mxu0 %v326
    %4822 = vmatpush1.msra.mxu0 %v325
    %4823 = vmatprep.subr.mxu0 %v330
    %4824 = vmatpush1.msra.mxu0 %v329
    %4825 = vmatprep.mubr.f32.mxu0 %v4357
    %4826 = vmatmul.mubr.f32.gmra.mrb[0].mxu0 %v4689
    %v4827 = vpop.f32.mrb[0].mxu0
    %v4828 = vadd.f32 %v494, %v4827
    %v4829 = vpop.f32.mrb[0].mxu0
    %v4830 = vadd.f32 %v498, %v4829
    %4831 = vdwg.mxu0
    %v4832 = vxor.u32 %v4757, 2147483648
    %v4833 = vmul.f32 %v4832, 1.442695
    %v4834 = vpow.pop %v4833
    %v4835 = vadd.f32 %v4834, 1.0
    %v4836 = vrcp.pop %v4835
    %v4837 = vmul.f32 1.0, %v4836
    %v4838 = vxor.u32 %v4759, 2147483648
    %v4839 = vmul.f32 %v4838, 1.442695
    %v4840 = vpow.pop %v4839
    %v4841 = vadd.f32 %v4840, 1.0
    %v4842 = vrcp.pop %v4841
    %v4843 = vmul.f32 1.0, %v4842
    %v4844 = vtanh.pop %v4828
    %v4845 = vxor.u32 %v4830, 2147483648
    %v4846 = vmul.f32 %v4845, 1.442695
    %v4847 = vpow.pop %v4846
    %v4848 = vadd.f32 %v4847, 1.0
    %v4849 = vrcp.pop %v4848
    %v4850 = vmul.f32 1.0, %v4849
    %v4851 = vmul.f32 %v4843, %v4355
    %v4852 = vmul.f32 %v4837, %v4844
    %v4853 = vadd.f32 %v4851, %v4852
    %v4854 = vtanh.pop %v4853
    %v4855 = vmul.f32 %v4850, %v4854
    %4856 = vmatprep.subr.mxu0 %v332
    %4857 = vmatpush1.msra.mxu0 %v331
    %4858 = vmatprep.subr.mxu0 %v336
    %4859 = vmatpush1.msra.mxu0 %v335
    %4860 = vmatprep.subr.mxu0 %v340
    %4861 = vmatpush1.msra.mxu0 %v339
    %4862 = vmatprep.subr.mxu0 %v344
    %4863 = vmatpush1.msra.mxu0 %v343
    %4864 = vmatprep.subr.mxu0 %v348
    %4865 = vmatpush1.msra.mxu0 %v347
    %4866 = vmatprep.subr.mxu0 %v352
    %4867 = vmatpush1.msra.mxu0 %v351
    %4868 = vmatprep.subr.mxu0 %v356
    %4869 = vmatpush1.msra.mxu0 %v355
    %4870 = vmatprep.subr.mxu0 %v360
    %4871 = vmatpush1.msra.mxu0 %v359
    %4872 = vmatprep.subr.mxu0 %v364
    %4873 = vmatpush1.msra.mxu0 %v363
    %4874 = vmatprep.subr.mxu0 %v368
    %4875 = vmatpush1.msra.mxu0 %v367
    %4876 = vmatprep.subr.mxu0 %v372
    %4877 = vmatpush1.msra.mxu0 %v371
    %4878 = vmatprep.subr.mxu0 %v376
    %4879 = vmatpush1.msra.mxu0 %v375
    %4880 = vmatprep.subr.mxu0 %v380
    %4881 = vmatpush1.msra.mxu0 %v379
    %4882 = vmatprep.subr.mxu0 %v384
    %4883 = vmatpush1.msra.mxu0 %v383
    %4884 = vmatprep.subr.mxu0 %v388
    %4885 = vmatpush1.msra.mxu0 %v387
    %4886 = vmatprep.subr.mxu0 %v392
    %4887 = vmatpush1.msra.mxu0 %v391
    %4888 = vmatprep.subr.mxu0 %v396
    %4889 = vmatpush1.msra.mxu0 %v395
    %4890 = vmatprep.subr.mxu0 %v400
    %4891 = vmatpush1.msra.mxu0 %v399
    %4892 = vmatprep.subr.mxu0 %v404
    %4893 = vmatpush1.msra.mxu0 %v403
    %4894 = vmatprep.subr.mxu0 %v408
    %4895 = vmatpush1.msra.mxu0 %v407
    %4896 = vmatprep.subr.mxu0 %v412
    %4897 = vmatpush1.msra.mxu0 %v411
    %4898 = vmatprep.subr.mxu0 %v416
    %4899 = vmatpush1.msra.mxu0 %v415
    %4900 = vmatprep.subr.mxu0 %v420
    %4901 = vmatpush1.msra.mxu0 %v419
    %4902 = vmatprep.subr.mxu0 %v424
    %4903 = vmatpush1.msra.mxu0 %v423
    %4904 = vmatprep.subr.mxu0 %v428
    %4905 = vmatpush1.msra.mxu0 %v427
    %4906 = vmatprep.subr.mxu0 %v432
    %4907 = vmatpush1.msra.mxu0 %v431
    %4908 = vmatprep.subr.mxu0 %v436
    %4909 = vmatpush1.msra.mxu0 %v435
    %4910 = vmatprep.subr.mxu0 %v440
    %4911 = vmatpush1.msra.mxu0 %v439
    %4912 = vmatprep.subr.mxu0 %v444
    %4913 = vmatpush1.msra.mxu0 %v443
    %4914 = vmatprep.subr.mxu0 %v448
    %4915 = vmatpush1.msra.mxu0 %v447
    %4916 = vmatprep.subr.mxu0 %v452
    %4917 = vmatpush1.msra.mxu0 %v451
    %4918 = vmatprep.subr.mxu0 %v456
    %4919 = vmatpush1.msra.mxu0 %v455
    %4920 = vmatprep.mubr.f32.mxu0 %v4523
    %4921 = vmatmul.mubr.f32.gmra.mrb[0].mxu0 %v4855
    %v4922 = vpop.f32.mrb[0].mxu0
    %v4923 = vadd.f32 %v508, %v4922
    %v4924 = vpop.f32.mrb[0].mxu0
    %v4925 = vadd.f32 %v512, %v4924
    %4926 = vdwg.mxu0
    %4927 = vmatprep.subr.mxu0 %v334
    %4928 = vmatpush1.msra.mxu0 %v333
    %4929 = vmatprep.subr.mxu0 %v338
    %4930 = vmatpush1.msra.mxu0 %v337
    %4931 = vmatprep.subr.mxu0 %v342
    %4932 = vmatpush1.msra.mxu0 %v341
    %4933 = vmatprep.subr.mxu0 %v346
    %4934 = vmatpush1.msra.mxu0 %v345
    %4935 = vmatprep.subr.mxu0 %v350
    %4936 = vmatpush1.msra.mxu0 %v349
    %4937 = vmatprep.subr.mxu0 %v354
    %4938 = vmatpush1.msra.mxu0 %v353
    %4939 = vmatprep.subr.mxu0 %v358
    %4940 = vmatpush1.msra.mxu0 %v357
    %4941 = vmatprep.subr.mxu0 %v362
    %4942 = vmatpush1.msra.mxu0 %v361
    %4943 = vmatprep.subr.mxu0 %v366
    %4944 = vmatpush1.msra.mxu0 %v365
    %4945 = vmatprep.subr.mxu0 %v370
    %4946 = vmatpush1.msra.mxu0 %v369
    %4947 = vmatprep.subr.mxu0 %v374
    %4948 = vmatpush1.msra.mxu0 %v373
    %4949 = vmatprep.subr.mxu0 %v378
    %4950 = vmatpush1.msra.mxu0 %v377
    %4951 = vmatprep.subr.mxu0 %v382
    %4952 = vmatpush1.msra.mxu0 %v381
    %4953 = vmatprep.subr.mxu0 %v386
    %4954 = vmatpush1.msra.mxu0 %v385
    %4955 = vmatprep.subr.mxu0 %v390
    %4956 = vmatpush1.msra.mxu0 %v389
    %4957 = vmatprep.subr.mxu0 %v394
    %4958 = vmatpush1.msra.mxu0 %v393
    %4959 = vmatprep.subr.mxu0 %v398
    %4960 = vmatpush1.msra.mxu0 %v397
    %4961 = vmatprep.subr.mxu0 %v402
    %4962 = vmatpush1.msra.mxu0 %v401
    %4963 = vmatprep.subr.mxu0 %v406
    %4964 = vmatpush1.msra.mxu0 %v405
    %4965 = vmatprep.subr.mxu0 %v410
    %4966 = vmatpush1.msra.mxu0 %v409
    %4967 = vmatprep.subr.mxu0 %v414
    %4968 = vmatpush1.msra.mxu0 %v413
    %4969 = vmatprep.subr.mxu0 %v418
    %4970 = vmatpush1.msra.mxu0 %v417
    %4971 = vmatprep.subr.mxu0 %v422
    %4972 = vmatpush1.msra.mxu0 %v421
    %4973 = vmatprep.subr.mxu0 %v426
    %4974 = vmatpush1.msra.mxu0 %v425
    %4975 = vmatprep.subr.mxu0 %v430
    %4976 = vmatpush1.msra.mxu0 %v429
    %4977 = vmatprep.subr.mxu0 %v434
    %4978 = vmatpush1.msra.mxu0 %v433
    %4979 = vmatprep.subr.mxu0 %v438
    %4980 = vmatpush1.msra.mxu0 %v437
    %4981 = vmatprep.subr.mxu0 %v442
    %4982 = vmatpush1.msra.mxu0 %v441
    %4983 = vmatprep.subr.mxu0 %v446
    %4984 = vmatpush1.msra.mxu0 %v445
    %4985 = vmatprep.subr.mxu0 %v450
    %4986 = vmatpush1.msra.mxu0 %v449
    %4987 = vmatprep.subr.mxu0 %v454
    %4988 = vmatpush1.msra.mxu0 %v453
    %4989 = vmatprep.subr.mxu0 %v458
    %4990 = vmatpush1.msra.mxu0 %v457
    %4991 = vmatprep.mubr.f32.mxu0 %v4523
    %4992 = vmatmul.mubr.f32.gmra.mrb[0].mxu0 %v4855
    %v4993 = vpop.f32.mrb[0].mxu0
    %v4994 = vadd.f32 %v516, %v4993
    %v4995 = vpop.f32.mrb[0].mxu0
    %v4996 = vadd.f32 %v520, %v4995
    %4997 = vdwg.mxu0
    %v4998 = vxor.u32 %v4923, 2147483648
    %v4999 = vmul.f32 %v4998, 1.442695
    %v5000 = vpow.pop %v4999
    %v5001 = vadd.f32 %v5000, 1.0
    %v5002 = vrcp.pop %v5001
    %v5003 = vmul.f32 1.0, %v5002
    %v5004 = vxor.u32 %v4925, 2147483648
    %v5005 = vmul.f32 %v5004, 1.442695
    %v5006 = vpow.pop %v5005
    %v5007 = vadd.f32 %v5006, 1.0
    %v5008 = vrcp.pop %v5007
    %v5009 = vmul.f32 1.0, %v5008
    %v5010 = vtanh.pop %v4994
    %v5011 = vxor.u32 %v4996, 2147483648
    %v5012 = vmul.f32 %v5011, 1.442695
    %v5013 = vpow.pop %v5012
    %v5014 = vadd.f32 %v5013, 1.0
    %v5015 = vrcp.pop %v5014
    %v5016 = vmul.f32 1.0, %v5015
    %v5017 = vmul.f32 %v5009, %v4521
    %v5018 = vmul.f32 %v5003, %v5010
    %v5019 = vadd.f32 %v5017, %v5018
    %v5020 = vtanh.pop %v5019
    %v5021 = vmul.f32 %v5016, %v5020
    %v5022 = vld [vmem:[%s7] sm:$0xff]
    %v5023 = vld [vmem:[%s7 + $0x8] sm:$0xff]
    %v5024 = vld [vmem:[%s7 + $0x10] sm:$0xff]
    %v5025 = vld [vmem:[%s7 + $0x18] sm:$0xff]
    %v5026 = vld [vmem:[%s7 + $0x20] sm:$0xff]
    %v5027 = vld [vmem:[%s7 + $0x28] sm:$0xff]
    %v5028 = vld [vmem:[%s7 + $0x30] sm:$0xff]
    %v5029 = vld [vmem:[%s7 + $0x38] sm:$0xff]
    %v5030 = vld [vmem:[%s7 + $0x40] sm:$0xff]
    %v5031 = vld [vmem:[%s7 + $0x48] sm:$0xff]
    %v5032 = vld [vmem:[%s7 + $0x50] sm:$0xff]
    %v5033 = vld [vmem:[%s7 + $0x58] sm:$0xff]
    %v5034 = vld [vmem:[%s7 + $0x60] sm:$0xff]
    %v5035 = vld [vmem:[%s7 + $0x68] sm:$0xff]
    %v5036 = vld [vmem:[%s7 + $0x70] sm:$0xff]
    %v5037 = vld [vmem:[%s7 + $0x78] sm:$0xff]
    %v5038 = vld [vmem:[#allocation2] sm:$0x1]
    %v5040 = vlaneseq
    %v5041 = vshrl.u32 %v5040, 7
    %v5042 = vsub.s32 0, %v5041
    %v5043 = vrot.slane %v5038, %v5042
    %5045 = vmatprep.subr.mxu0 0.0
    %5046 = vmatpush1.msra.mxu0 %v5022
    %5047 = vmatprep.subr.mxu0 0.0
    %5048 = vmatpush1.msra.mxu0 %v5023
    %5049 = vmatprep.subr.mxu0 0.0
    %5050 = vmatpush1.msra.mxu0 %v5024
    %5051 = vmatprep.subr.mxu0 0.0
    %5052 = vmatpush1.msra.mxu0 %v5025
    %5053 = vmatprep.subr.mxu0 0.0
    %5054 = vmatpush1.msra.mxu0 %v5026
    %5055 = vmatprep.subr.mxu0 0.0
    %5056 = vmatpush1.msra.mxu0 %v5027
    %5057 = vmatprep.subr.mxu0 0.0
    %5058 = vmatpush1.msra.mxu0 %v5028
    %5059 = vmatprep.subr.mxu0 0.0
    %5060 = vmatpush1.msra.mxu0 %v5029
    %5061 = vmatprep.subr.mxu0 0.0
    %5062 = vmatpush1.msra.mxu0 %v5030
    %5063 = vmatprep.subr.mxu0 0.0
    %5064 = vmatpush1.msra.mxu0 %v5031
    %5065 = vmatprep.subr.mxu0 0.0
    %5066 = vmatpush1.msra.mxu0 %v5032
    %5067 = vmatprep.subr.mxu0 0.0
    %5068 = vmatpush1.msra.mxu0 %v5033
    %5069 = vmatprep.subr.mxu0 0.0
    %5070 = vmatpush1.msra.mxu0 %v5034
    %5071 = vmatprep.subr.mxu0 0.0
    %5072 = vmatpush1.msra.mxu0 %v5035
    %5073 = vmatprep.subr.mxu0 0.0
    %5074 = vmatpush1.msra.mxu0 %v5036
    %5075 = vmatprep.subr.mxu0 0.0
    %5076 = vmatpush1.msra.mxu0 %v5037
    %5077 = vmatprep.subr.mxu0 0.0
    %5078 = vmatpush1.msra.mxu0 0.0
    %5079 = vmatprep.subr.mxu0 0.0
    %5080 = vmatpush1.msra.mxu0 0.0
    %5081 = vmatprep.subr.mxu0 0.0
    %5082 = vmatpush1.msra.mxu0 0.0
    %5083 = vmatprep.subr.mxu0 0.0
    %5084 = vmatpush1.msra.mxu0 0.0
    %5085 = vmatprep.subr.mxu0 0.0
    %5086 = vmatpush1.msra.mxu0 0.0
    %5087 = vmatprep.subr.mxu0 0.0
    %5088 = vmatpush1.msra.mxu0 0.0
    %5089 = vmatprep.subr.mxu0 0.0
    %5090 = vmatpush1.msra.mxu0 0.0
    %5091 = vmatprep.subr.mxu0 0.0
    %5092 = vmatpush1.msra.mxu0 0.0
    %5093 = vmatprep.subr.mxu0 0.0
    %5094 = vmatpush1.msra.mxu0 0.0
    %5095 = vmatprep.subr.mxu0 0.0
    %5096 = vmatpush1.msra.mxu0 0.0
    %5097 = vmatprep.subr.mxu0 0.0
    %5098 = vmatpush1.msra.mxu0 0.0
    %5099 = vmatprep.subr.mxu0 0.0
    %5100 = vmatpush1.msra.mxu0 0.0
    %5101 = vmatprep.subr.mxu0 0.0
    %5102 = vmatpush1.msra.mxu0 0.0
    %5103 = vmatprep.subr.mxu0 0.0
    %5104 = vmatpush1.msra.mxu0 0.0
    %5105 = vmatprep.subr.mxu0 0.0
    %5106 = vmatpush1.msra.mxu0 0.0
    %5107 = vmatprep.subr.mxu0 0.0
    %5108 = vmatpush1.msra.mxu0 0.0
    %5109 = vmatprep.mubr.f32.mxu0 0.0
    %5110 = vmatmul.mubr.f32.gmra.mrb[0].mxu0 %v5021
    %v5111 = vpop.f32.mrb[0].mxu0
    %v5112 = vadd.f32 %v5043, %v5111
    %v5113 = vpop.f32.mrb[0].mxu0
    %5114 = vdwg.mxu0
    %vm5115 = vcmask 7168
    %5116 = vst.msk [vmem:[%s9] sm:$0xff] %vm5115, %v5112
    // Predicated region
    $region50: #{sequence_forward.1} parent=1 // pred_check
      _
    $region51: #{sequence_forward.1} parent=1 // pred_check_branch
      %5118 = sbr.rel (0) target = $region53
    $region52: #{sequence_forward.1} parent=1 // pred_region
      _
    $region53: #{sequence_forward.1} parent=1 // pred_fallthru
      _
    // Predicated region
    $region54: #{sequence_forward.1} parent=1 // pred_check
      _
    $region55: #{sequence_forward.1} parent=1 // pred_check_branch
      %5120 = sbr.rel (0) target = $region57
    $region56: #{sequence_forward.1} parent=1 // pred_region
      _
    $region57: #{sequence_forward.1} parent=1 // pred_fallthru
      _
    %5121 = vsyncpa [#allocation4], 1
    %5122 = vsyncpa [#allocation6], 1

</llo_original>
